<compile_context>
chip_gen: v5e
topology: v5e:2x2
jax: 0.10.0
libtpu: 0.0.40
codegen_flags: <defaults>
</compile_context>

<pallas_src>
import functools

import jax
import jax.numpy as jnp
import numpy as np
from jax import lax
from jax.experimental import pallas as pl
from jax.experimental.pallas import tpu as pltpu

LANE = 128


def _rup(n, m=LANE):
    return ((n + m - 1) // m) * m


def _fixed(shape):
    """BlockSpec for a block that is identical for every grid step (weights)."""
    return pl.BlockSpec(shape, lambda b, _s=shape: tuple(0 for _ in _s))


# ----------------------------------------------------------------------------
# Host-side weight preparation: pad every feature width to 128 lanes.
# ----------------------------------------------------------------------------
def _pad_groups(w, axis, groups, e, ep):
    """Pad `axis` (laid out as `groups` consecutive blocks of width e) to width ep blocks."""
    w = np.asarray(w, np.float32)
    shp = list(w.shape)
    assert shp[axis] == groups * e, (shp, axis, groups, e)
    w = w.reshape(shp[:axis] + [groups, e] + shp[axis + 1:])
    pad = [(0, 0)] * w.ndim
    pad[axis + 1] = (0, ep - e)
    w = np.pad(w, pad)
    return w.reshape(shp[:axis] + [groups * ep] + shp[axis + 1:])


def _head_expansion(num_head, size):
    """0/1 head -> lane expansion matrix (H, size)."""
    head = size // num_head
    return np.kron(np.eye(num_head, dtype=np.float32), np.ones((1, head), np.float32))


def prepare_params(params, cfg):
    E = cfg['encoder_size']
    P = cfg['performance_size']
    note_dim = cfg['note_dim']
    H = cfg['num_attention_head']
    Z = cfg['encoded_vector_size']
    Ne = int(np.asarray(params['gg']['wz']).shape[0])
    EP, PP, ZP2 = _rup(E), _rup(P), _rup(2 * Z)

    f32 = lambda a: np.asarray(a, np.float32)

    def pad_cols(w, c):
        w = f32(w)
        return np.pad(w, ((0, 0), (0, c - w.shape[1])))

    def pad_rows(w, r):
        w = f32(w)
        return np.pad(w, ((0, r - w.shape[0]), (0, 0)))

    def pad_vec(v, n):
        v = f32(v)
        return np.pad(v, (0, n - v.shape[0]))

    # --- embedding + contractor (note/perf halves of con_w split once) ---
    emb_w = pad_cols(params['emb_w'], PP)
    emb_b = pad_vec(params['emb_b'], PP).reshape(1, PP)
    con_w = f32(params['con_w'])
    w_note = pad_cols(con_w[:note_dim], EP)                  # batch-invariant half
    w_perf = pad_rows(pad_cols(con_w[note_dim:], EP), PP)
    con_b = pad_vec(params['con_b'], EP).reshape(1, EP)

    # --- GatedGraph fused weights in padded layout ---
    gg = params['gg']

    def pad_ee(w):
        return pad_rows(pad_cols(w, EP), EP)

    wcat = np.concatenate(
        [np.concatenate([pad_ee(gg['wz'][e]), pad_ee(gg['wr'][e]), pad_ee(gg['wh'][e])], axis=1)
         for e in range(Ne)], axis=1)                        # (EP, Ne*3*EP)
    uzr = np.concatenate([pad_ee(gg['uz']), pad_ee(gg['ur'])], axis=1)          # (EP, 2EP)
    uh = pad_ee(gg['uh'])
    bzr = np.concatenate([pad_vec(gg['bz'], EP), pad_vec(gg['br'], EP)]).reshape(1, 2 * EP)
    bh = pad_vec(gg['bh'], EP).reshape(1, EP)

    # --- measure attention ---
    ma_w = pad_ee(params['ma_w'])
    ma_b = pad_vec(params['ma_b'], EP).reshape(1, EP)
    exp_m = _head_expansion(H, E)                                                # (H, E)
    ctx_m = exp_m.T * f32(params['ma_ctx']).reshape(-1)[:, None]                 # (E, H)
    ma_expand = np.pad(exp_m, ((0, 0), (0, EP - E)))
    ma_ctx_mat = np.pad(ctx_m, ((0, EP - E), (0, 0)))

    # --- final attention + fused mu/var head in the [hf(EP)|hb(EP)] layout ---
    exp_f = _head_expansion(H, 2 * E)                                            # (H, 2E)
    ctx_f = exp_f.T * f32(params['fa_ctx']).reshape(-1)[:, None]                 # (2E, H)
    fa_w = _pad_groups(_pad_groups(params['fa_w'], 0, 2, E, EP), 1, 2, E, EP)    # (2EP, 2EP)
    fa_b = _pad_groups(f32(params['fa_b']).reshape(1, -1), 1, 2, E, EP)          # (1, 2EP)
    fa_expand = _pad_groups(exp_f, 1, 2, E, EP)                                  # (H, 2EP)
    fa_ctx_mat = _pad_groups(ctx_f, 0, 2, E, EP)                                 # (2EP, H)
    head_w = np.concatenate([f32(params['mean_w']), f32(params['var_w'])], axis=1)
    head_w = np.pad(_pad_groups(head_w, 0, 2, E, EP), ((0, 0), (0, ZP2 - 2 * Z)))  # (2EP, ZP2)
    head_b = np.pad(np.concatenate([f32(params['mean_b']), f32(params['var_b'])]),
                    (0, ZP2 - 2 * Z)).reshape(1, ZP2)

    # --- BiLSTM layers: fused [fwd|bwd] input weights, PyTorch gate order i,f,g,o ---
    lstm = []
    for li, layer in enumerate(params['lstm']):
        in_groups = 1 if li == 0 else 2

        def prep_wih(w, _g=in_groups):
            w = _pad_groups(w, 0, _g, E, EP)
            return _pad_groups(w, 1, 4, E, EP)

        def prep_whh(w):
            return _pad_groups(pad_rows(w, EP), 1, 4, E, EP)

        def prep_b(b):
            return _pad_groups(f32(b).reshape(1, -1), 1, 4, E, EP)

        lstm.append(dict(
            wih_cat=jnp.asarray(np.concatenate([prep_wih(layer['wih_f']),
                                                prep_wih(layer['wih_b'])], axis=1)),
            b_cat=jnp.asarray(np.concatenate([prep_b(layer['b_f']),
                                              prep_b(layer['b_b'])], axis=1)),
            whh_f=jnp.asarray(prep_whh(layer['whh_f'])),
            whh_b=jnp.asarray(prep_whh(layer['whh_b'])),
        ))

    j = jnp.asarray
    return dict(ep=EP, pp=PP, zp2=ZP2, ne=Ne, nh=H,
                emb_w=j(emb_w), emb_b=j(emb_b), w_note=j(w_note), w_perf=j(w_perf),
                con_b=j(con_b),
                wcat=j(wcat), uzr=j(uzr), uh=j(uh), bzr=j(bzr), bh=j(bh),
                ma_w=j(ma_w), ma_b=j(ma_b), ma_ctx_mat=j(ma_ctx_mat), ma_expand=j(ma_expand),
                fa=dict(w=j(fa_w), b=j(fa_b), ctx=j(fa_ctx_mat), expand=j(fa_expand)),
                head=dict(w=j(head_w), b=j(head_b)),
                lstm=lstm)


# ----------------------------------------------------------------------------
# Kernel 1 ("front"): fused embed+contract -> GatedGraph -> measure attention.
# grid=(B,), all weights resident (same block every step -> no re-DMA).
# ----------------------------------------------------------------------------
def _encoder_front_kernel(y_ref, noteproj_ref, embw_ref, embb_ref, wperf_ref, conb_ref,
                          at_ref, wcat_ref, uzr_ref, uh_ref, bzr_ref, bh_ref,
                          maw_ref, mab_ref, ctxmat_ref, expand_ref, mask_ref, maskt_ref,
                          o_ref, *, iterations, num_edge_types, ep):
    f32 = jnp.float32
    EP = ep
    E3 = 3 * EP

    # ---- fused performance embedding + contractor (Linear+ReLU, Linear+ReLU) ----
    y = y_ref[0]                                                          # (N, out_size)
    expanded = jnp.maximum(
        jnp.dot(y, embw_ref[...], preferred_element_type=f32) + embb_ref[...], 0.0)
    x = jnp.maximum(
        noteproj_ref[...]
        + jnp.dot(expanded, wperf_ref[...], preferred_element_type=f32)
        + conb_ref[...], 0.0)                                             # (N, EP)

    # ---- GatedGraph (GGNN / GRU-style node update) ----
    at = at_ref[...]                                                      # (Ne, N, N) = A^T
    wcat = wcat_ref[...]                                                  # (EP, Ne*3EP)
    uzr = uzr_ref[...]
    uh = uh_ref[...]
    bzr = bzr_ref[...]
    bh = bh_ref[...]

    def body(_, x):
        # one lane-dense projection for every edge type and gate, then Ne adjacency
        # matmuls summed into one accumulator (no per-iteration lane concatenate).
        proj = jnp.dot(x, wcat, preferred_element_type=f32)               # (N, Ne*3EP)
        gm = jnp.zeros((x.shape[0], E3), f32)
        for e in range(num_edge_types):                                   # static
            gm = gm + jnp.dot(at[e], proj[:, e * E3:(e + 1) * E3],
                              preferred_element_type=f32)                 # (N, 3EP)
        zr = jax.nn.sigmoid(jnp.dot(x, uzr, preferred_element_type=f32) + bzr
                            + gm[:, :2 * EP])
        z = zr[:, :EP]
        r = zr[:, EP:2 * EP]
        h = jnp.tanh(gm[:, 2 * EP:]
                     + jnp.dot(r * x, uh, preferred_element_type=f32) + bh)
        return (1.0 - z) * x + z * h

    x = lax.fori_loop(0, iterations, body, x, unroll=True)

    # ---- per-measure multi-head ContextAttention (segmented softmax) ----
    mask = mask_ref[...]                                                  # (M, N)
    att = jnp.tanh(jnp.dot(x, maw_ref[...], preferred_element_type=f32) + mab_ref[...])
    sim = jnp.dot(att, ctxmat_ref[...], preferred_element_type=f32)       # (N, H)
    # Per-segment shift (exact: softmax is invariant to any per-segment constant).
    # Segment MEAN is used so everything stays 2-D matmuls; with tanh-bounded att
    # the residual range is tiny, so no under/overflow.
    seg_cnt = jnp.maximum(jnp.sum(mask, axis=1, keepdims=True), 1.0)      # (M, 1)
    seg_mean = jnp.dot(mask, sim, preferred_element_type=f32) / seg_cnt   # (M, H)
    shift = jnp.dot(maskt_ref[...], seg_mean, preferred_element_type=f32)  # (N, H)
    ex = jnp.exp(sim - shift)                                             # (N, H)
    expand = expand_ref[...]                                              # (H, EP) 0/1
    ex_full = jnp.dot(ex, expand, preferred_element_type=f32)             # (N, EP)
    num = jnp.dot(mask, ex_full * x, preferred_element_type=f32)          # (M, EP)
    den = jnp.dot(jnp.dot(mask, ex, preferred_element_type=f32), expand,
                  preferred_element_type=f32)                             # (M, EP)
    o_ref[0] = num / jnp.maximum(den, 1e-12)                              # empty seg / pad guard


def pallas_encoder_front(y, note_proj, at, mask, prep, iterations=10):
    B, N, out_size = y.shape
    M = mask.shape[0]
    EP, PP, Ne, H = prep['ep'], prep['pp'], prep['ne'], prep['nh']
    maskT = mask.T
    return pl.pallas_call(
        functools.partial(_encoder_front_kernel, iterations=iterations,
                          num_edge_types=Ne, ep=EP),
        out_shape=jax.ShapeDtypeStruct((B, M, EP), jnp.float32),
        grid=(B,),
        in_specs=[
            pl.BlockSpec((1, N, out_size), lambda b: (b, 0, 0)),
            _fixed((N, EP)),
            _fixed((out_size, PP)),
            _fixed((1, PP)),
            _fixed((PP, EP)),
            _fixed((1, EP)),
            _fixed((Ne, N, N)),
            _fixed((EP, Ne * 3 * EP)),
            _fixed((EP, 2 * EP)),
            _fixed((EP, EP)),
            _fixed((1, 2 * EP)),
            _fixed((1, EP)),
            _fixed((EP, EP)),
            _fixed((1, EP)),
            _fixed((EP, H)),
            _fixed((H, EP)),
            _fixed((M, N)),
            _fixed((N, M)),
        ],
        out_specs=pl.BlockSpec((1, M, EP), lambda b: (b, 0, 0)),
        # tiny batch: keep on one core (v7x feedback), grid axis is just a loop
        compiler_params=pltpu.CompilerParams(dimension_semantics=("arbitrary",)),
    )(y, note_proj, prep['emb_w'], prep['emb_b'], prep['w_perf'], prep['con_b'],
      at, prep['wcat'], prep['uzr'], prep['uh'], prep['bzr'], prep['bh'],
      prep['ma_w'], prep['ma_b'], prep['ma_ctx_mat'], prep['ma_expand'], mask, maskT)


# ----------------------------------------------------------------------------
# Kernel 2: BiLSTM (last layer) + final ContextAttention + fused mu/var head.
# Input projection hoisted out of the recurrence, fwd/bwd cells share one loop
# iteration, hidden states live only in VMEM scratch.
# ----------------------------------------------------------------------------
def _lstm_cell_from_gates(g, c, ep):
    i = jax.nn.sigmoid(g[:, 0 * ep:1 * ep])
    f = jax.nn.sigmoid(g[:, 1 * ep:2 * ep])
    gc = jnp.tanh(g[:, 2 * ep:3 * ep])
    o = jax.nn.sigmoid(g[:, 3 * ep:4 * ep])
    c2 = f * c + i * gc
    return o * jnp.tanh(c2), c2


def _bilstm_pass(x2, wihcat_ref, bcat_ref, whhf_ref, whhb_ref, gin_ref,
                 hsf_ref=None, hsb_ref=None, out_ref=None, *, m, bsz, ep, unroll=2):
    f32 = jnp.float32
    # Hoisted input projection for BOTH directions: one throughput matmul,
    # completely off the serial h-recurrence chain.
    gin_ref[...] = (jnp.dot(x2, wihcat_ref[...], preferred_element_type=f32)
                    + bcat_ref[...])                                      # (M*B, 8EP)
    whhf = whhf_ref[...]
    whhb = whhb_ref[...]
    zeros = jnp.zeros((bsz, ep), f32)

    def step(t, carry):
        hf, cf, hb, cb = carry
        tb = m - 1 - t
        gf = gin_ref[pl.ds(t * bsz, bsz), 0:4 * ep] + jnp.dot(
            hf, whhf, preferred_element_type=f32)
        gb = gin_ref[pl.ds(tb * bsz, bsz), 4 * ep:8 * ep] + jnp.dot(
            hb, whhb, preferred_element_type=f32)
        hf2, cf2 = _lstm_cell_from_gates(gf, cf, ep)
        hb2, cb2 = _lstm_cell_from_gates(gb, cb, ep)
        if hsf_ref is not None:
            hsf_ref[t] = hf2
            hsb_ref[tb] = hb2
        if out_ref is not None:
            out_ref[pl.ds(t * bsz, bsz), 0:ep] = hf2
            out_ref[pl.ds(tb * bsz, bsz), ep:2 * ep] = hb2
        return hf2, cf2, hb2, cb2

    lax.fori_loop(0, m, step, (zeros, zeros, zeros, zeros), unroll=unroll)


def _bilstm_final_kernel(x2_ref, wihcat_ref, bcat_ref, whhf_ref, whhb_ref,
                         faw_ref, fab_ref, factx_ref, faexp_ref, headw_ref, headb_ref,
                         o_ref, gin_ref, hsf_ref, hsb_ref, *, m, bsz, ep, unroll):
    f32 = jnp.float32
    _bilstm_pass(x2_ref[...], wihcat_ref, bcat_ref, whhf_ref, whhb_ref, gin_ref,
                 hsf_ref=hsf_ref, hsb_ref=hsb_ref, m=m, bsz=bsz, ep=ep, unroll=unroll)

    # ---- epilogue: final ContextAttention (single segment) + fused mu/var head ----
    faw = faw_ref[...]
    fab = fab_ref[...]
    ctx = factx_ref[...]
    expand = faexp_ref[...]
    headw = headw_ref[...]
    headb = headb_ref[...]
    hsf_all = hsf_ref[...]                                                # (M, B, EP)
    hsb_all = hsb_ref[...]

    rows = []
    for b in range(bsz):                                                  # tiny static batch loop
        hs = jnp.concatenate([hsf_all[:, b, :], hsb_all[:, b, :]], axis=-1)   # (M, 2EP)
        att = jnp.tanh(jnp.dot(hs, faw, preferred_element_type=f32) + fab)
        sim = jnp.dot(att, ctx, preferred_element_type=f32)               # (M, H)
        ex = jnp.exp(sim - jnp.max(sim, axis=0, keepdims=True))
        ex_full = jnp.dot(ex, expand, preferred_element_type=f32)         # (M, 2EP)
        num = jnp.sum(ex_full * hs, axis=0, keepdims=True)                # (1, 2EP)
        den = jnp.dot(jnp.sum(ex, axis=0, keepdims=True), expand,
                      preferred_element_type=f32)                         # (1, 2EP)
        style = num / jnp.maximum(den, 1e-12)
        rows.append(jnp.dot(style, headw, preferred_element_type=f32) + headb)   # (1, ZP2)
    o_ref[...] = jnp.concatenate(rows, axis=0)


def pallas_bilstm_final(x2, layer, fa, head, *, m, bsz, ep):
    MB = x2.shape[0]
    zp2 = head['w'].shape[1]
    return pl.pallas_call(
        functools.partial(_bilstm_final_kernel, m=m, bsz=bsz, ep=ep, unroll=2),
        out_shape=jax.ShapeDtypeStruct((bsz, zp2), jnp.float32),
        in_specs=[pl.BlockSpec(memory_space=pltpu.MemorySpace.VMEM)] * 11,
        out_specs=pl.BlockSpec(memory_space=pltpu.MemorySpace.VMEM),
        scratch_shapes=[pltpu.VMEM((MB, 8 * ep), jnp.float32),
                        pltpu.VMEM((m, bsz, ep), jnp.float32),
                        pltpu.VMEM((m, bsz, ep), jnp.float32)],
    )(x2, layer['wih_cat'], layer['b_cat'], layer['whh_f'], layer['whh_b'],
      fa['w'], fa['b'], fa['ctx'], fa['expand'], head['w'], head['b'])


# Non-final BiLSTM layers (only used when encoder_layer > 1).
def _bilstm_layer_kernel(x2_ref, wihcat_ref, bcat_ref, whhf_ref, whhb_ref,
                         o_ref, gin_ref, *, m, bsz, ep, unroll):
    _bilstm_pass(x2_ref[...], wihcat_ref, bcat_ref, whhf_ref, whhb_ref, gin_ref,
                 out_ref=o_ref, m=m, bsz=bsz, ep=ep, unroll=unroll)


def pallas_bilstm_layer(x2, layer, *, m, bsz, ep):
    MB = x2.shape[0]
    return pl.pallas_call(
        functools.partial(_bilstm_layer_kernel, m=m, bsz=bsz, ep=ep, unroll=2),
        out_shape=jax.ShapeDtypeStruct((MB, 2 * ep), jnp.float32),
        in_specs=[pl.BlockSpec(memory_space=pltpu.MemorySpace.VMEM)] * 5,
        out_specs=pl.BlockSpec(memory_space=pltpu.MemorySpace.VMEM),
        scratch_shapes=[pltpu.VMEM((MB, 8 * ep), jnp.float32)],
    )(x2, layer['wih_cat'], layer['b_cat'], layer['whh_f'], layer['whh_b'])


# ----------------------------------------------------------------------------
# Glue: reparameterization (plain JAX) and the full forward pass.
# ----------------------------------------------------------------------------
def reparameterize(key, mu, logvar):
    std = jnp.exp(0.5 * logvar)
    eps = jax.random.normal(key, mu.shape, dtype=mu.dtype)
    return mu + eps * std


def sample_multiple_z(key, perform_mu, perform_var, num=10):
    keys = jax.random.split(key, num)
    return [reparameterize(k, perform_mu, perform_var) for k in keys]


def isgn_perf_encoder_forward(params, cfg, score_embedding, y, edges, note_locations,
                              key, return_z=False, num_samples=10):
    measure_numbers = np.asarray(note_locations['measure'])
    note_out = score_embedding['total_note_cat']                       # (1, N, note_dim)
    B, N, _ = y.shape
    Z = cfg['encoded_vector_size']

    prep = prepare_params(params, cfg)                                 # padded weights (cacheable)
    EP = prep['ep']

    # Batch-invariant note-side half of the contractor: applied exactly once.
    note_proj = jnp.dot(note_out[0].astype(jnp.float32), prep['w_note'])   # (N, EP)

    # Per-measure segment mask.
    meas0 = measure_numbers - measure_numbers[0]
    M = int(meas0[-1]) + 1
    mask = jnp.asarray((meas0[None, :] == np.arange(M)[:, None]).astype(np.float32))

    # Adjacency (messages flow src -> dst).
    at = jnp.transpose(edges.astype(jnp.float32), (0, 2, 1))

    # ---- fused front: embed+contract -> GatedGraph -> measure attention ----
    measure_nodes = pallas_encoder_front(y.astype(jnp.float32), note_proj, at, mask,
                                         prep, iterations=10)          # (B, M, EP)

    # ---- fused back: BiLSTM stack -> final attention -> mu/var head ----
    x2 = jnp.transpose(measure_nodes, (1, 0, 2)).reshape(M * B, EP)    # seq-major rows (m*B + b)
    layers = prep['lstm']
    for layer in layers[:-1]:
        x2 = pallas_bilstm_layer(x2, layer, m=M, bsz=B, ep=EP)
    mu_var = pallas_bilstm_final(x2, layers[-1], prep['fa'], prep['head'],
                                 m=M, bsz=B, ep=EP)                    # (B, ZP2)

    perform_mu = mu_var[:, :Z]
    perform_var = mu_var[:, Z:2 * Z]          # interpreted as log-variance (encode_with_net)
    perform_z = reparameterize(key, perform_mu, perform_var)

    if return_z:
        return sample_multiple_z(key, perform_mu, perform_var, num_samples)
    return perform_z, perform_mu, perform_var


# ----------------------------------------------------------------------------
# Deterministic parameter initialization (synthetic, no checkpoints).
# ----------------------------------------------------------------------------
def init_params(key, cfg):
    note_dim = cfg['note_dim']
    perf_size = cfg['performance_size']
    out_size = cfg['output_size']
    E = cfg['encoder_size']
    Ne = cfg['num_edge_types']
    H = cfg['num_attention_head']
    Z = cfg['encoded_vector_size']
    L = cfg['encoder_layer']
    enc_in = note_dim + perf_size

    keys = iter(jax.random.split(key, 64))

    def nrm(shape, scale=0.1):
        return (scale * jax.random.normal(next(keys), shape)).astype(jnp.float32)

    def unif(shape):
        return jax.random.uniform(next(keys), shape, minval=-1.0, maxval=1.0).astype(jnp.float32)

    params = {
        'emb_w': nrm((out_size, perf_size)), 'emb_b': nrm((perf_size,)),
        'con_w': nrm((enc_in, E)), 'con_b': nrm((E,)),
        'gg': {
            'wz': nrm((Ne, E, E)), 'wr': nrm((Ne, E, E)), 'wh': nrm((Ne, E, E)),
            'uz': nrm((E, E)), 'ur': nrm((E, E)), 'uh': nrm((E, E)),
            'bz': nrm((E,)), 'br': nrm((E,)), 'bh': nrm((E,)),
        },
        'ma_w': nrm((E, E)), 'ma_b': nrm((E,)), 'ma_ctx': unif((H, E // H)),
        'fa_w': nrm((2 * E, 2 * E)), 'fa_b': nrm((2 * E,)), 'fa_ctx': unif((H, 2 * E // H)),
        'mean_w': nrm((2 * E, Z)), 'mean_b': nrm((Z,)),
        'var_w': nrm((2 * E, Z)), 'var_b': nrm((Z,)),
    }
    lstm = []
    d_in = E
    for _ in range(L):
        lstm.append({
            'wih_f': nrm((d_in, 4 * E)), 'whh_f': nrm((E, 4 * E)), 'b_f': nrm((4 * E,)),
            'wih_b': nrm((d_in, 4 * E)), 'whh_b': nrm((E, 4 * E)), 'b_b': nrm((4 * E,)),
        })
        d_in = 2 * E
    params['lstm'] = lstm
    return params


if __name__ == "__main__":
    cfg = dict(note_dim=16, performance_size=16, output_size=8, encoder_size=32,
               encoder_layer=1, num_edge_types=3, num_attention_head=4,
               encoded_vector_size=16)

    key = jax.random.PRNGKey(0)
    kp, ky, kn, ke, kz = jax.random.split(key, 5)
    params = init_params(kp, cfg)

    B, N = 2, 16                                        # 2 perf samples, 16 notes
    y = jax.random.normal(ky, (B, N, cfg['output_size']), dtype=jnp.float32)
    note_out = jax.random.normal(kn, (1, N, cfg['note_dim']), dtype=jnp.float32)
    edges = (jax.random.uniform(ke, (cfg['num_edge_types'], N, N)) < 0.2).astype(jnp.float32)
    measure_numbers = np.repeat(np.arange(4, dtype=np.int32), N // 4)   # 4 measures

    score_embedding = {'total_note_cat': note_out}
    note_locations = {'measure': measure_numbers}

    z, mu, var = isgn_perf_encoder_forward(params, cfg, score_embedding, y, edges,
                                           note_locations, key=kz)
    jax.block_until_ready((z, mu, var))
    assert z.shape == (B, cfg['encoded_vector_size'])
    assert mu.shape == (B, cfg['encoded_vector_size'])
    assert var.shape == (B, cfg['encoded_vector_size'])
    assert bool(jnp.all(jnp.isfinite(z)) & jnp.all(jnp.isfinite(mu)) & jnp.all(jnp.isfinite(var)))
    print("KERNEL_OK")
</pallas_src>

<mosaic_0001>
module attributes {stable_mosaic.version = 11 : i64} {
  func.func @_encoder_front_kernel(%arg0: i32, %arg1: memref<1x16x8xf32, #tpu.memory_space<vmem>>, %arg2: memref<16x128xf32, #tpu.memory_space<vmem>>, %arg3: memref<8x128xf32, #tpu.memory_space<vmem>>, %arg4: memref<1x128xf32, #tpu.memory_space<vmem>>, %arg5: memref<128x128xf32, #tpu.memory_space<vmem>>, %arg6: memref<1x128xf32, #tpu.memory_space<vmem>>, %arg7: memref<3x16x16xf32, #tpu.memory_space<vmem>>, %arg8: memref<128x1152xf32, #tpu.memory_space<vmem>>, %arg9: memref<128x256xf32, #tpu.memory_space<vmem>>, %arg10: memref<128x128xf32, #tpu.memory_space<vmem>>, %arg11: memref<1x256xf32, #tpu.memory_space<vmem>>, %arg12: memref<1x128xf32, #tpu.memory_space<vmem>>, %arg13: memref<128x128xf32, #tpu.memory_space<vmem>>, %arg14: memref<1x128xf32, #tpu.memory_space<vmem>>, %arg15: memref<128x4xf32, #tpu.memory_space<vmem>>, %arg16: memref<4x128xf32, #tpu.memory_space<vmem>>, %arg17: memref<4x16xf32, #tpu.memory_space<vmem>>, %arg18: memref<16x4xf32, #tpu.memory_space<vmem>>, %arg19: memref<1x4x128xf32, #tpu.memory_space<vmem>>) attributes {dimension_semantics = [#tpu.dimension_semantics<arbitrary>], iteration_bounds = array<i64: 2>, scalar_prefetch = 0 : i64, scratch_operands = 0 : i64, tpu.core_type = #tpu.core_type<tc>, window_params = [{transform_indices = @transform_0, window_bounds = array<i64: 1, 16, 8>}, {pipeline_mode = #tpu.pipeline_mode<synchronous>, transform_indices = @transform_1, window_bounds = array<i64: 16, 128>}, {pipeline_mode = #tpu.pipeline_mode<synchronous>, transform_indices = @transform_2, window_bounds = array<i64: 8, 128>}, {pipeline_mode = #tpu.pipeline_mode<synchronous>, transform_indices = @transform_3, window_bounds = array<i64: 1, 128>}, {pipeline_mode = #tpu.pipeline_mode<synchronous>, transform_indices = @transform_4, window_bounds = array<i64: 128, 128>}, {pipeline_mode = #tpu.pipeline_mode<synchronous>, transform_indices = @transform_5, window_bounds = array<i64: 1, 128>}, {pipeline_mode = #tpu.pipeline_mode<synchronous>, transform_indices = @transform_6, window_bounds = array<i64: 3, 16, 16>}, {pipeline_mode = #tpu.pipeline_mode<synchronous>, transform_indices = @transform_7, window_bounds = array<i64: 128, 1152>}, {pipeline_mode = #tpu.pipeline_mode<synchronous>, transform_indices = @transform_8, window_bounds = array<i64: 128, 256>}, {pipeline_mode = #tpu.pipeline_mode<synchronous>, transform_indices = @transform_9, window_bounds = array<i64: 128, 128>}, {pipeline_mode = #tpu.pipeline_mode<synchronous>, transform_indices = @transform_10, window_bounds = array<i64: 1, 256>}, {pipeline_mode = #tpu.pipeline_mode<synchronous>, transform_indices = @transform_11, window_bounds = array<i64: 1, 128>}, {pipeline_mode = #tpu.pipeline_mode<synchronous>, transform_indices = @transform_12, window_bounds = array<i64: 128, 128>}, {pipeline_mode = #tpu.pipeline_mode<synchronous>, transform_indices = @transform_13, window_bounds = array<i64: 1, 128>}, {pipeline_mode = #tpu.pipeline_mode<synchronous>, transform_indices = @transform_14, window_bounds = array<i64: 128, 4>}, {pipeline_mode = #tpu.pipeline_mode<synchronous>, transform_indices = @transform_15, window_bounds = array<i64: 4, 128>}, {pipeline_mode = #tpu.pipeline_mode<synchronous>, transform_indices = @transform_16, window_bounds = array<i64: 4, 16>}, {pipeline_mode = #tpu.pipeline_mode<synchronous>, transform_indices = @transform_17, window_bounds = array<i64: 16, 4>}, {transform_indices = @transform_18, window_bounds = array<i64: 1, 4, 128>}]} {
    %c0 = arith.constant 0 : index
    %c0_0 = arith.constant 0 : index
    %c0_1 = arith.constant 0 : index
    %0 = vector.load %arg1[%c0, %c0_0, %c0_1] : memref<1x16x8xf32, #tpu.memory_space<vmem>>, vector<1x16x8xf32>
    %1 = vector.shape_cast %0 : vector<1x16x8xf32> to vector<16x8xf32>
    %c0_2 = arith.constant 0 : index
    %c0_3 = arith.constant 0 : index
    %2 = vector.load %arg3[%c0_2, %c0_3] : memref<8x128xf32, #tpu.memory_space<vmem>>, vector<8x128xf32>
    %cst = arith.constant dense<0.000000e+00> : vector<16x128xf32>
    %3 = tpu.matmul %1, %2, %cst {dimension_numbers = #tpu.dot_dimension_numbers<[1], [0], [0], [1], [0, 0, 1, 1], [], []>} : vector<16x8xf32>, vector<8x128xf32>, vector<16x128xf32> -> vector<16x128xf32>
    %c0_4 = arith.constant 0 : index
    %c0_5 = arith.constant 0 : index
    %4 = vector.load %arg4[%c0_4, %c0_5] : memref<1x128xf32, #tpu.memory_space<vmem>>, vector<1x128xf32>
    %5 = vector.broadcast %4 : vector<1x128xf32> to vector<16x128xf32>
    %6 = arith.addf %3, %5 : vector<16x128xf32>
    %cst_6 = arith.constant 0.000000e+00 : f32
    %7 = vector.broadcast %cst_6 : f32 to vector<16x128xf32>
    %8 = arith.maximumf %6, %7 : vector<16x128xf32>
    %c0_7 = arith.constant 0 : index
    %c0_8 = arith.constant 0 : index
    %9 = vector.load %arg2[%c0_7, %c0_8] : memref<16x128xf32, #tpu.memory_space<vmem>>, vector<16x128xf32>
    %c0_9 = arith.constant 0 : index
    %c0_10 = arith.constant 0 : index
    %10 = vector.load %arg5[%c0_9, %c0_10] : memref<128x128xf32, #tpu.memory_space<vmem>>, vector<128x128xf32>
    %cst_11 = arith.constant dense<0.000000e+00> : vector<16x128xf32>
    %11 = tpu.matmul %8, %10, %cst_11 {dimension_numbers = #tpu.dot_dimension_numbers<[1], [0], [0], [1], [0, 0, 1, 1], [], []>} : vector<16x128xf32>, vector<128x128xf32>, vector<16x128xf32> -> vector<16x128xf32>
    %12 = arith.addf %9, %11 : vector<16x128xf32>
    %c0_12 = arith.constant 0 : index
    %c0_13 = arith.constant 0 : index
    %13 = vector.load %arg6[%c0_12, %c0_13] : memref<1x128xf32, #tpu.memory_space<vmem>>, vector<1x128xf32>
    %14 = vector.broadcast %13 : vector<1x128xf32> to vector<16x128xf32>
    %15 = arith.addf %12, %14 : vector<16x128xf32>
    %cst_14 = arith.constant 0.000000e+00 : f32
    %16 = vector.broadcast %cst_14 : f32 to vector<16x128xf32>
    %17 = arith.maximumf %15, %16 : vector<16x128xf32>
    %c0_15 = arith.constant 0 : index
    %c0_16 = arith.constant 0 : index
    %c0_17 = arith.constant 0 : index
    %18 = vector.load %arg7[%c0_15, %c0_16, %c0_17] : memref<3x16x16xf32, #tpu.memory_space<vmem>>, vector<3x16x16xf32>
    %c0_18 = arith.constant 0 : index
    %c0_19 = arith.constant 0 : index
    %19 = vector.load %arg8[%c0_18, %c0_19] : memref<128x1152xf32, #tpu.memory_space<vmem>>, vector<128x1152xf32>
    %c0_20 = arith.constant 0 : index
    %c0_21 = arith.constant 0 : index
    %20 = vector.load %arg9[%c0_20, %c0_21] : memref<128x256xf32, #tpu.memory_space<vmem>>, vector<128x256xf32>
    %c0_22 = arith.constant 0 : index
    %c0_23 = arith.constant 0 : index
    %21 = vector.load %arg10[%c0_22, %c0_23] : memref<128x128xf32, #tpu.memory_space<vmem>>, vector<128x128xf32>
    %c0_24 = arith.constant 0 : index
    %c0_25 = arith.constant 0 : index
    %22 = vector.load %arg11[%c0_24, %c0_25] : memref<1x256xf32, #tpu.memory_space<vmem>>, vector<1x256xf32>
    %c0_26 = arith.constant 0 : index
    %c0_27 = arith.constant 0 : index
    %23 = vector.load %arg12[%c0_26, %c0_27] : memref<1x128xf32, #tpu.memory_space<vmem>>, vector<1x128xf32>
    %c0_i32 = arith.constant 0 : i32
    %cst_28 = arith.constant dense<0.000000e+00> : vector<16x1152xf32>
    %24 = tpu.matmul %17, %19, %cst_28 {dimension_numbers = #tpu.dot_dimension_numbers<[1], [0], [0], [1], [0, 0, 1, 1], [], []>} : vector<16x128xf32>, vector<128x1152xf32>, vector<16x1152xf32> -> vector<16x1152xf32>
    %cst_29 = arith.constant 0.000000e+00 : f32
    %25 = vector.broadcast %cst_29 : f32 to vector<16x384xf32>
    %26 = vector.extract_strided_slice %18 {offsets = [0, 0, 0], sizes = [1, 16, 16], strides = [1, 1, 1]} : vector<3x16x16xf32> to vector<1x16x16xf32>
    %27 = vector.shape_cast %26 : vector<1x16x16xf32> to vector<16x16xf32>
    %28 = vector.extract_strided_slice %24 {offsets = [0, 0], sizes = [16, 384], strides = [1, 1]} : vector<16x1152xf32> to vector<16x384xf32>
    %cst_30 = arith.constant dense<0.000000e+00> : vector<16x384xf32>
    %29 = tpu.matmul %27, %28, %cst_30 {dimension_numbers = #tpu.dot_dimension_numbers<[1], [0], [0], [1], [0, 0, 1, 1], [], []>} : vector<16x16xf32>, vector<16x384xf32>, vector<16x384xf32> -> vector<16x384xf32>
    %30 = arith.addf %25, %29 : vector<16x384xf32>
    %31 = vector.extract_strided_slice %18 {offsets = [1, 0, 0], sizes = [1, 16, 16], strides = [1, 1, 1]} : vector<3x16x16xf32> to vector<1x16x16xf32>
    %32 = vector.shape_cast %31 : vector<1x16x16xf32> to vector<16x16xf32>
    %33 = vector.extract_strided_slice %24 {offsets = [0, 384], sizes = [16, 384], strides = [1, 1]} : vector<16x1152xf32> to vector<16x384xf32>
    %cst_31 = arith.constant dense<0.000000e+00> : vector<16x384xf32>
    %34 = tpu.matmul %32, %33, %cst_31 {dimension_numbers = #tpu.dot_dimension_numbers<[1], [0], [0], [1], [0, 0, 1, 1], [], []>} : vector<16x16xf32>, vector<16x384xf32>, vector<16x384xf32> -> vector<16x384xf32>
    %35 = arith.addf %30, %34 : vector<16x384xf32>
    %36 = vector.extract_strided_slice %18 {offsets = [2, 0, 0], sizes = [1, 16, 16], strides = [1, 1, 1]} : vector<3x16x16xf32> to vector<1x16x16xf32>
    %37 = vector.shape_cast %36 : vector<1x16x16xf32> to vector<16x16xf32>
    %38 = vector.extract_strided_slice %24 {offsets = [0, 768], sizes = [16, 384], strides = [1, 1]} : vector<16x1152xf32> to vector<16x384xf32>
    %cst_32 = arith.constant dense<0.000000e+00> : vector<16x384xf32>
    %39 = tpu.matmul %37, %38, %cst_32 {dimension_numbers = #tpu.dot_dimension_numbers<[1], [0], [0], [1], [0, 0, 1, 1], [], []>} : vector<16x16xf32>, vector<16x384xf32>, vector<16x384xf32> -> vector<16x384xf32>
    %40 = arith.addf %35, %39 : vector<16x384xf32>
    %cst_33 = arith.constant dense<0.000000e+00> : vector<16x256xf32>
    %41 = tpu.matmul %17, %20, %cst_33 {dimension_numbers = #tpu.dot_dimension_numbers<[1], [0], [0], [1], [0, 0, 1, 1], [], []>} : vector<16x128xf32>, vector<128x256xf32>, vector<16x256xf32> -> vector<16x256xf32>
    %42 = vector.broadcast %22 : vector<1x256xf32> to vector<16x256xf32>
    %43 = arith.addf %41, %42 : vector<16x256xf32>
    %44 = vector.extract_strided_slice %40 {offsets = [0, 0], sizes = [16, 256], strides = [1, 1]} : vector<16x384xf32> to vector<16x256xf32>
    %45 = arith.addf %43, %44 : vector<16x256xf32>
    %46 = arith.negf %45 : vector<16x256xf32>
    %47 = math.exp %46 : vector<16x256xf32>
    %cst_34 = arith.constant 1.000000e+00 : f32
    %48 = vector.broadcast %cst_34 : f32 to vector<16x256xf32>
    %49 = arith.addf %48, %47 : vector<16x256xf32>
    %50 = arith.divf %48, %49 : vector<16x256xf32>
    %51 = vector.extract_strided_slice %50 {offsets = [0, 0], sizes = [16, 128], strides = [1, 1]} : vector<16x256xf32> to vector<16x128xf32>
    %52 = vector.extract_strided_slice %50 {offsets = [0, 128], sizes = [16, 128], strides = [1, 1]} : vector<16x256xf32> to vector<16x128xf32>
    %53 = vector.extract_strided_slice %40 {offsets = [0, 256], sizes = [16, 128], strides = [1, 1]} : vector<16x384xf32> to vector<16x128xf32>
    %54 = arith.mulf %52, %17 : vector<16x128xf32>
    %cst_35 = arith.constant dense<0.000000e+00> : vector<16x128xf32>
    %55 = tpu.matmul %54, %21, %cst_35 {dimension_numbers = #tpu.dot_dimension_numbers<[1], [0], [0], [1], [0, 0, 1, 1], [], []>} : vector<16x128xf32>, vector<128x128xf32>, vector<16x128xf32> -> vector<16x128xf32>
    %56 = arith.addf %53, %55 : vector<16x128xf32>
    %57 = vector.broadcast %23 : vector<1x128xf32> to vector<16x128xf32>
    %58 = arith.addf %56, %57 : vector<16x128xf32>
    %59 = math.tanh %58 : vector<16x128xf32>
    %cst_36 = arith.constant 1.000000e+00 : f32
    %60 = vector.broadcast %cst_36 : f32 to vector<16x128xf32>
    %61 = arith.subf %60, %51 : vector<16x128xf32>
    %62 = arith.mulf %61, %17 : vector<16x128xf32>
    %63 = arith.mulf %51, %59 : vector<16x128xf32>
    %64 = arith.addf %62, %63 : vector<16x128xf32>
    %c1_i32 = arith.constant 1 : i32
    %cst_37 = arith.constant dense<0.000000e+00> : vector<16x1152xf32>
    %65 = tpu.matmul %64, %19, %cst_37 {dimension_numbers = #tpu.dot_dimension_numbers<[1], [0], [0], [1], [0, 0, 1, 1], [], []>} : vector<16x128xf32>, vector<128x1152xf32>, vector<16x1152xf32> -> vector<16x1152xf32>
    %cst_38 = arith.constant 0.000000e+00 : f32
    %66 = vector.broadcast %cst_38 : f32 to vector<16x384xf32>
    %67 = vector.extract_strided_slice %18 {offsets = [0, 0, 0], sizes = [1, 16, 16], strides = [1, 1, 1]} : vector<3x16x16xf32> to vector<1x16x16xf32>
    %68 = vector.shape_cast %67 : vector<1x16x16xf32> to vector<16x16xf32>
    %69 = vector.extract_strided_slice %65 {offsets = [0, 0], sizes = [16, 384], strides = [1, 1]} : vector<16x1152xf32> to vector<16x384xf32>
    %cst_39 = arith.constant dense<0.000000e+00> : vector<16x384xf32>
    %70 = tpu.matmul %68, %69, %cst_39 {dimension_numbers = #tpu.dot_dimension_numbers<[1], [0], [0], [1], [0, 0, 1, 1], [], []>} : vector<16x16xf32>, vector<16x384xf32>, vector<16x384xf32> -> vector<16x384xf32>
    %71 = arith.addf %66, %70 : vector<16x384xf32>
    %72 = vector.extract_strided_slice %18 {offsets = [1, 0, 0], sizes = [1, 16, 16], strides = [1, 1, 1]} : vector<3x16x16xf32> to vector<1x16x16xf32>
    %73 = vector.shape_cast %72 : vector<1x16x16xf32> to vector<16x16xf32>
    %74 = vector.extract_strided_slice %65 {offsets = [0, 384], sizes = [16, 384], strides = [1, 1]} : vector<16x1152xf32> to vector<16x384xf32>
    %cst_40 = arith.constant dense<0.000000e+00> : vector<16x384xf32>
    %75 = tpu.matmul %73, %74, %cst_40 {dimension_numbers = #tpu.dot_dimension_numbers<[1], [0], [0], [1], [0, 0, 1, 1], [], []>} : vector<16x16xf32>, vector<16x384xf32>, vector<16x384xf32> -> vector<16x384xf32>
    %76 = arith.addf %71, %75 : vector<16x384xf32>
    %77 = vector.extract_strided_slice %18 {offsets = [2, 0, 0], sizes = [1, 16, 16], strides = [1, 1, 1]} : vector<3x16x16xf32> to vector<1x16x16xf32>
    %78 = vector.shape_cast %77 : vector<1x16x16xf32> to vector<16x16xf32>
    %79 = vector.extract_strided_slice %65 {offsets = [0, 768], sizes = [16, 384], strides = [1, 1]} : vector<16x1152xf32> to vector<16x384xf32>
    %cst_41 = arith.constant dense<0.000000e+00> : vector<16x384xf32>
    %80 = tpu.matmul %78, %79, %cst_41 {dimension_numbers = #tpu.dot_dimension_numbers<[1], [0], [0], [1], [0, 0, 1, 1], [], []>} : vector<16x16xf32>, vector<16x384xf32>, vector<16x384xf32> -> vector<16x384xf32>
    %81 = arith.addf %76, %80 : vector<16x384xf32>
    %cst_42 = arith.constant dense<0.000000e+00> : vector<16x256xf32>
    %82 = tpu.matmul %64, %20, %cst_42 {dimension_numbers = #tpu.dot_dimension_numbers<[1], [0], [0], [1], [0, 0, 1, 1], [], []>} : vector<16x128xf32>, vector<128x256xf32>, vector<16x256xf32> -> vector<16x256xf32>
    %83 = vector.broadcast %22 : vector<1x256xf32> to vector<16x256xf32>
    %84 = arith.addf %82, %83 : vector<16x256xf32>
    %85 = vector.extract_strided_slice %81 {offsets = [0, 0], sizes = [16, 256], strides = [1, 1]} : vector<16x384xf32> to vector<16x256xf32>
    %86 = arith.addf %84, %85 : vector<16x256xf32>
    %87 = arith.negf %86 : vector<16x256xf32>
    %88 = math.exp %87 : vector<16x256xf32>
    %cst_43 = arith.constant 1.000000e+00 : f32
    %89 = vector.broadcast %cst_43 : f32 to vector<16x256xf32>
    %90 = arith.addf %89, %88 : vector<16x256xf32>
    %91 = arith.divf %89, %90 : vector<16x256xf32>
    %92 = vector.extract_strided_slice %91 {offsets = [0, 0], sizes = [16, 128], strides = [1, 1]} : vector<16x256xf32> to vector<16x128xf32>
    %93 = vector.extract_strided_slice %91 {offsets = [0, 128], sizes = [16, 128], strides = [1, 1]} : vector<16x256xf32> to vector<16x128xf32>
    %94 = vector.extract_strided_slice %81 {offsets = [0, 256], sizes = [16, 128], strides = [1, 1]} : vector<16x384xf32> to vector<16x128xf32>
    %95 = arith.mulf %93, %64 : vector<16x128xf32>
    %cst_44 = arith.constant dense<0.000000e+00> : vector<16x128xf32>
    %96 = tpu.matmul %95, %21, %cst_44 {dimension_numbers = #tpu.dot_dimension_numbers<[1], [0], [0], [1], [0, 0, 1, 1], [], []>} : vector<16x128xf32>, vector<128x128xf32>, vector<16x128xf32> -> vector<16x128xf32>
    %97 = arith.addf %94, %96 : vector<16x128xf32>
    %98 = vector.broadcast %23 : vector<1x128xf32> to vector<16x128xf32>
    %99 = arith.addf %97, %98 : vector<16x128xf32>
    %100 = math.tanh %99 : vector<16x128xf32>
    %cst_45 = arith.constant 1.000000e+00 : f32
    %101 = vector.broadcast %cst_45 : f32 to vector<16x128xf32>
    %102 = arith.subf %101, %92 : vector<16x128xf32>
    %103 = arith.mulf %102, %64 : vector<16x128xf32>
    %104 = arith.mulf %92, %100 : vector<16x128xf32>
    %105 = arith.addf %103, %104 : vector<16x128xf32>
    %c2_i32 = arith.constant 2 : i32
    %cst_46 = arith.constant dense<0.000000e+00> : vector<16x1152xf32>
    %106 = tpu.matmul %105, %19, %cst_46 {dimension_numbers = #tpu.dot_dimension_numbers<[1], [0], [0], [1], [0, 0, 1, 1], [], []>} : vector<16x128xf32>, vector<128x1152xf32>, vector<16x1152xf32> -> vector<16x1152xf32>
    %cst_47 = arith.constant 0.000000e+00 : f32
    %107 = vector.broadcast %cst_47 : f32 to vector<16x384xf32>
    %108 = vector.extract_strided_slice %18 {offsets = [0, 0, 0], sizes = [1, 16, 16], strides = [1, 1, 1]} : vector<3x16x16xf32> to vector<1x16x16xf32>
    %109 = vector.shape_cast %108 : vector<1x16x16xf32> to vector<16x16xf32>
    %110 = vector.extract_strided_slice %106 {offsets = [0, 0], sizes = [16, 384], strides = [1, 1]} : vector<16x1152xf32> to vector<16x384xf32>
    %cst_48 = arith.constant dense<0.000000e+00> : vector<16x384xf32>
    %111 = tpu.matmul %109, %110, %cst_48 {dimension_numbers = #tpu.dot_dimension_numbers<[1], [0], [0], [1], [0, 0, 1, 1], [], []>} : vector<16x16xf32>, vector<16x384xf32>, vector<16x384xf32> -> vector<16x384xf32>
    %112 = arith.addf %107, %111 : vector<16x384xf32>
    %113 = vector.extract_strided_slice %18 {offsets = [1, 0, 0], sizes = [1, 16, 16], strides = [1, 1, 1]} : vector<3x16x16xf32> to vector<1x16x16xf32>
    %114 = vector.shape_cast %113 : vector<1x16x16xf32> to vector<16x16xf32>
    %115 = vector.extract_strided_slice %106 {offsets = [0, 384], sizes = [16, 384], strides = [1, 1]} : vector<16x1152xf32> to vector<16x384xf32>
    %cst_49 = arith.constant dense<0.000000e+00> : vector<16x384xf32>
    %116 = tpu.matmul %114, %115, %cst_49 {dimension_numbers = #tpu.dot_dimension_numbers<[1], [0], [0], [1], [0, 0, 1, 1], [], []>} : vector<16x16xf32>, vector<16x384xf32>, vector<16x384xf32> -> vector<16x384xf32>
    %117 = arith.addf %112, %116 : vector<16x384xf32>
    %118 = vector.extract_strided_slice %18 {offsets = [2, 0, 0], sizes = [1, 16, 16], strides = [1, 1, 1]} : vector<3x16x16xf32> to vector<1x16x16xf32>
    %119 = vector.shape_cast %118 : vector<1x16x16xf32> to vector<16x16xf32>
    %120 = vector.extract_strided_slice %106 {offsets = [0, 768], sizes = [16, 384], strides = [1, 1]} : vector<16x1152xf32> to vector<16x384xf32>
    %cst_50 = arith.constant dense<0.000000e+00> : vector<16x384xf32>
    %121 = tpu.matmul %119, %120, %cst_50 {dimension_numbers = #tpu.dot_dimension_numbers<[1], [0], [0], [1], [0, 0, 1, 1], [], []>} : vector<16x16xf32>, vector<16x384xf32>, vector<16x384xf32> -> vector<16x384xf32>
    %122 = arith.addf %117, %121 : vector<16x384xf32>
    %cst_51 = arith.constant dense<0.000000e+00> : vector<16x256xf32>
    %123 = tpu.matmul %105, %20, %cst_51 {dimension_numbers = #tpu.dot_dimension_numbers<[1], [0], [0], [1], [0, 0, 1, 1], [], []>} : vector<16x128xf32>, vector<128x256xf32>, vector<16x256xf32> -> vector<16x256xf32>
    %124 = vector.broadcast %22 : vector<1x256xf32> to vector<16x256xf32>
    %125 = arith.addf %123, %124 : vector<16x256xf32>
    %126 = vector.extract_strided_slice %122 {offsets = [0, 0], sizes = [16, 256], strides = [1, 1]} : vector<16x384xf32> to vector<16x256xf32>
    %127 = arith.addf %125, %126 : vector<16x256xf32>
    %128 = arith.negf %127 : vector<16x256xf32>
    %129 = math.exp %128 : vector<16x256xf32>
    %cst_52 = arith.constant 1.000000e+00 : f32
    %130 = vector.broadcast %cst_52 : f32 to vector<16x256xf32>
    %131 = arith.addf %130, %129 : vector<16x256xf32>
    %132 = arith.divf %130, %131 : vector<16x256xf32>
    %133 = vector.extract_strided_slice %132 {offsets = [0, 0], sizes = [16, 128], strides = [1, 1]} : vector<16x256xf32> to vector<16x128xf32>
    %134 = vector.extract_strided_slice %132 {offsets = [0, 128], sizes = [16, 128], strides = [1, 1]} : vector<16x256xf32> to vector<16x128xf32>
    %135 = vector.extract_strided_slice %122 {offsets = [0, 256], sizes = [16, 128], strides = [1, 1]} : vector<16x384xf32> to vector<16x128xf32>
    %136 = arith.mulf %134, %105 : vector<16x128xf32>
    %cst_53 = arith.constant dense<0.000000e+00> : vector<16x128xf32>
    %137 = tpu.matmul %136, %21, %cst_53 {dimension_numbers = #tpu.dot_dimension_numbers<[1], [0], [0], [1], [0, 0, 1, 1], [], []>} : vector<16x128xf32>, vector<128x128xf32>, vector<16x128xf32> -> vector<16x128xf32>
    %138 = arith.addf %135, %137 : vector<16x128xf32>
    %139 = vector.broadcast %23 : vector<1x128xf32> to vector<16x128xf32>
    %140 = arith.addf %138, %139 : vector<16x128xf32>
    %141 = math.tanh %140 : vector<16x128xf32>
    %cst_54 = arith.constant 1.000000e+00 : f32
    %142 = vector.broadcast %cst_54 : f32 to vector<16x128xf32>
    %143 = arith.subf %142, %133 : vector<16x128xf32>
    %144 = arith.mulf %143, %105 : vector<16x128xf32>
    %145 = arith.mulf %133, %141 : vector<16x128xf32>
    %146 = arith.addf %144, %145 : vector<16x128xf32>
    %c3_i32 = arith.constant 3 : i32
    %cst_55 = arith.constant dense<0.000000e+00> : vector<16x1152xf32>
    %147 = tpu.matmul %146, %19, %cst_55 {dimension_numbers = #tpu.dot_dimension_numbers<[1], [0], [0], [1], [0, 0, 1, 1], [], []>} : vector<16x128xf32>, vector<128x1152xf32>, vector<16x1152xf32> -> vector<16x1152xf32>
    %cst_56 = arith.constant 0.000000e+00 : f32
    %148 = vector.broadcast %cst_56 : f32 to vector<16x384xf32>
    %149 = vector.extract_strided_slice %18 {offsets = [0, 0, 0], sizes = [1, 16, 16], strides = [1, 1, 1]} : vector<3x16x16xf32> to vector<1x16x16xf32>
    %150 = vector.shape_cast %149 : vector<1x16x16xf32> to vector<16x16xf32>
    %151 = vector.extract_strided_slice %147 {offsets = [0, 0], sizes = [16, 384], strides = [1, 1]} : vector<16x1152xf32> to vector<16x384xf32>
    %cst_57 = arith.constant dense<0.000000e+00> : vector<16x384xf32>
    %152 = tpu.matmul %150, %151, %cst_57 {dimension_numbers = #tpu.dot_dimension_numbers<[1], [0], [0], [1], [0, 0, 1, 1], [], []>} : vector<16x16xf32>, vector<16x384xf32>, vector<16x384xf32> -> vector<16x384xf32>
    %153 = arith.addf %148, %152 : vector<16x384xf32>
    %154 = vector.extract_strided_slice %18 {offsets = [1, 0, 0], sizes = [1, 16, 16], strides = [1, 1, 1]} : vector<3x16x16xf32> to vector<1x16x16xf32>
    %155 = vector.shape_cast %154 : vector<1x16x16xf32> to vector<16x16xf32>
    %156 = vector.extract_strided_slice %147 {offsets = [0, 384], sizes = [16, 384], strides = [1, 1]} : vector<16x1152xf32> to vector<16x384xf32>
    %cst_58 = arith.constant dense<0.000000e+00> : vector<16x384xf32>
    %157 = tpu.matmul %155, %156, %cst_58 {dimension_numbers = #tpu.dot_dimension_numbers<[1], [0], [0], [1], [0, 0, 1, 1], [], []>} : vector<16x16xf32>, vector<16x384xf32>, vector<16x384xf32> -> vector<16x384xf32>
    %158 = arith.addf %153, %157 : vector<16x384xf32>
    %159 = vector.extract_strided_slice %18 {offsets = [2, 0, 0], sizes = [1, 16, 16], strides = [1, 1, 1]} : vector<3x16x16xf32> to vector<1x16x16xf32>
    %160 = vector.shape_cast %159 : vector<1x16x16xf32> to vector<16x16xf32>
    %161 = vector.extract_strided_slice %147 {offsets = [0, 768], sizes = [16, 384], strides = [1, 1]} : vector<16x1152xf32> to vector<16x384xf32>
    %cst_59 = arith.constant dense<0.000000e+00> : vector<16x384xf32>
    %162 = tpu.matmul %160, %161, %cst_59 {dimension_numbers = #tpu.dot_dimension_numbers<[1], [0], [0], [1], [0, 0, 1, 1], [], []>} : vector<16x16xf32>, vector<16x384xf32>, vector<16x384xf32> -> vector<16x384xf32>
    %163 = arith.addf %158, %162 : vector<16x384xf32>
    %cst_60 = arith.constant dense<0.000000e+00> : vector<16x256xf32>
    %164 = tpu.matmul %146, %20, %cst_60 {dimension_numbers = #tpu.dot_dimension_numbers<[1], [0], [0], [1], [0, 0, 1, 1], [], []>} : vector<16x128xf32>, vector<128x256xf32>, vector<16x256xf32> -> vector<16x256xf32>
    %165 = vector.broadcast %22 : vector<1x256xf32> to vector<16x256xf32>
    %166 = arith.addf %164, %165 : vector<16x256xf32>
    %167 = vector.extract_strided_slice %163 {offsets = [0, 0], sizes = [16, 256], strides = [1, 1]} : vector<16x384xf32> to vector<16x256xf32>
    %168 = arith.addf %166, %167 : vector<16x256xf32>
    %169 = arith.negf %168 : vector<16x256xf32>
    %170 = math.exp %169 : vector<16x256xf32>
    %cst_61 = arith.constant 1.000000e+00 : f32
    %171 = vector.broadcast %cst_61 : f32 to vector<16x256xf32>
    %172 = arith.addf %171, %170 : vector<16x256xf32>
    %173 = arith.divf %171, %172 : vector<16x256xf32>
    %174 = vector.extract_strided_slice %173 {offsets = [0, 0], sizes = [16, 128], strides = [1, 1]} : vector<16x256xf32> to vector<16x128xf32>
    %175 = vector.extract_strided_slice %173 {offsets = [0, 128], sizes = [16, 128], strides = [1, 1]} : vector<16x256xf32> to vector<16x128xf32>
    %176 = vector.extract_strided_slice %163 {offsets = [0, 256], sizes = [16, 128], strides = [1, 1]} : vector<16x384xf32> to vector<16x128xf32>
    %177 = arith.mulf %175, %146 : vector<16x128xf32>
    %cst_62 = arith.constant dense<0.000000e+00> : vector<16x128xf32>
    %178 = tpu.matmul %177, %21, %cst_62 {dimension_numbers = #tpu.dot_dimension_numbers<[1], [0], [0], [1], [0, 0, 1, 1], [], []>} : vector<16x128xf32>, vector<128x128xf32>, vector<16x128xf32> -> vector<16x128xf32>
    %179 = arith.addf %176, %178 : vector<16x128xf32>
    %180 = vector.broadcast %23 : vector<1x128xf32> to vector<16x128xf32>
    %181 = arith.addf %179, %180 : vector<16x128xf32>
    %182 = math.tanh %181 : vector<16x128xf32>
    %cst_63 = arith.constant 1.000000e+00 : f32
    %183 = vector.broadcast %cst_63 : f32 to vector<16x128xf32>
    %184 = arith.subf %183, %174 : vector<16x128xf32>
    %185 = arith.mulf %184, %146 : vector<16x128xf32>
    %186 = arith.mulf %174, %182 : vector<16x128xf32>
    %187 = arith.addf %185, %186 : vector<16x128xf32>
    %c4_i32 = arith.constant 4 : i32
    %cst_64 = arith.constant dense<0.000000e+00> : vector<16x1152xf32>
    %188 = tpu.matmul %187, %19, %cst_64 {dimension_numbers = #tpu.dot_dimension_numbers<[1], [0], [0], [1], [0, 0, 1, 1], [], []>} : vector<16x128xf32>, vector<128x1152xf32>, vector<16x1152xf32> -> vector<16x1152xf32>
    %cst_65 = arith.constant 0.000000e+00 : f32
    %189 = vector.broadcast %cst_65 : f32 to vector<16x384xf32>
    %190 = vector.extract_strided_slice %18 {offsets = [0, 0, 0], sizes = [1, 16, 16], strides = [1, 1, 1]} : vector<3x16x16xf32> to vector<1x16x16xf32>
    %191 = vector.shape_cast %190 : vector<1x16x16xf32> to vector<16x16xf32>
    %192 = vector.extract_strided_slice %188 {offsets = [0, 0], sizes = [16, 384], strides = [1, 1]} : vector<16x1152xf32> to vector<16x384xf32>
    %cst_66 = arith.constant dense<0.000000e+00> : vector<16x384xf32>
    %193 = tpu.matmul %191, %192, %cst_66 {dimension_numbers = #tpu.dot_dimension_numbers<[1], [0], [0], [1], [0, 0, 1, 1], [], []>} : vector<16x16xf32>, vector<16x384xf32>, vector<16x384xf32> -> vector<16x384xf32>
    %194 = arith.addf %189, %193 : vector<16x384xf32>
    %195 = vector.extract_strided_slice %18 {offsets = [1, 0, 0], sizes = [1, 16, 16], strides = [1, 1, 1]} : vector<3x16x16xf32> to vector<1x16x16xf32>
    %196 = vector.shape_cast %195 : vector<1x16x16xf32> to vector<16x16xf32>
    %197 = vector.extract_strided_slice %188 {offsets = [0, 384], sizes = [16, 384], strides = [1, 1]} : vector<16x1152xf32> to vector<16x384xf32>
    %cst_67 = arith.constant dense<0.000000e+00> : vector<16x384xf32>
    %198 = tpu.matmul %196, %197, %cst_67 {dimension_numbers = #tpu.dot_dimension_numbers<[1], [0], [0], [1], [0, 0, 1, 1], [], []>} : vector<16x16xf32>, vector<16x384xf32>, vector<16x384xf32> -> vector<16x384xf32>
    %199 = arith.addf %194, %198 : vector<16x384xf32>
    %200 = vector.extract_strided_slice %18 {offsets = [2, 0, 0], sizes = [1, 16, 16], strides = [1, 1, 1]} : vector<3x16x16xf32> to vector<1x16x16xf32>
    %201 = vector.shape_cast %200 : vector<1x16x16xf32> to vector<16x16xf32>
    %202 = vector.extract_strided_slice %188 {offsets = [0, 768], sizes = [16, 384], strides = [1, 1]} : vector<16x1152xf32> to vector<16x384xf32>
    %cst_68 = arith.constant dense<0.000000e+00> : vector<16x384xf32>
    %203 = tpu.matmul %201, %202, %cst_68 {dimension_numbers = #tpu.dot_dimension_numbers<[1], [0], [0], [1], [0, 0, 1, 1], [], []>} : vector<16x16xf32>, vector<16x384xf32>, vector<16x384xf32> -> vector<16x384xf32>
    %204 = arith.addf %199, %203 : vector<16x384xf32>
    %cst_69 = arith.constant dense<0.000000e+00> : vector<16x256xf32>
    %205 = tpu.matmul %187, %20, %cst_69 {dimension_numbers = #tpu.dot_dimension_numbers<[1], [0], [0], [1], [0, 0, 1, 1], [], []>} : vector<16x128xf32>, vector<128x256xf32>, vector<16x256xf32> -> vector<16x256xf32>
    %206 = vector.broadcast %22 : vector<1x256xf32> to vector<16x256xf32>
    %207 = arith.addf %205, %206 : vector<16x256xf32>
    %208 = vector.extract_strided_slice %204 {offsets = [0, 0], sizes = [16, 256], strides = [1, 1]} : vector<16x384xf32> to vector<16x256xf32>
    %209 = arith.addf %207, %208 : vector<16x256xf32>
    %210 = arith.negf %209 : vector<16x256xf32>
    %211 = math.exp %210 : vector<16x256xf32>
    %cst_70 = arith.constant 1.000000e+00 : f32
    %212 = vector.broadcast %cst_70 : f32 to vector<16x256xf32>
    %213 = arith.addf %212, %211 : vector<16x256xf32>
    %214 = arith.divf %212, %213 : vector<16x256xf32>
    %215 = vector.extract_strided_slice %214 {offsets = [0, 0], sizes = [16, 128], strides = [1, 1]} : vector<16x256xf32> to vector<16x128xf32>
    %216 = vector.extract_strided_slice %214 {offsets = [0, 128], sizes = [16, 128], strides = [1, 1]} : vector<16x256xf32> to vector<16x128xf32>
    %217 = vector.extract_strided_slice %204 {offsets = [0, 256], sizes = [16, 128], strides = [1, 1]} : vector<16x384xf32> to vector<16x128xf32>
    %218 = arith.mulf %216, %187 : vector<16x128xf32>
    %cst_71 = arith.constant dense<0.000000e+00> : vector<16x128xf32>
    %219 = tpu.matmul %218, %21, %cst_71 {dimension_numbers = #tpu.dot_dimension_numbers<[1], [0], [0], [1], [0, 0, 1, 1], [], []>} : vector<16x128xf32>, vector<128x128xf32>, vector<16x128xf32> -> vector<16x128xf32>
    %220 = arith.addf %217, %219 : vector<16x128xf32>
    %221 = vector.broadcast %23 : vector<1x128xf32> to vector<16x128xf32>
    %222 = arith.addf %220, %221 : vector<16x128xf32>
    %223 = math.tanh %222 : vector<16x128xf32>
    %cst_72 = arith.constant 1.000000e+00 : f32
    %224 = vector.broadcast %cst_72 : f32 to vector<16x128xf32>
    %225 = arith.subf %224, %215 : vector<16x128xf32>
    %226 = arith.mulf %225, %187 : vector<16x128xf32>
    %227 = arith.mulf %215, %223 : vector<16x128xf32>
    %228 = arith.addf %226, %227 : vector<16x128xf32>
    %c5_i32 = arith.constant 5 : i32
    %cst_73 = arith.constant dense<0.000000e+00> : vector<16x1152xf32>
    %229 = tpu.matmul %228, %19, %cst_73 {dimension_numbers = #tpu.dot_dimension_numbers<[1], [0], [0], [1], [0, 0, 1, 1], [], []>} : vector<16x128xf32>, vector<128x1152xf32>, vector<16x1152xf32> -> vector<16x1152xf32>
    %cst_74 = arith.constant 0.000000e+00 : f32
    %230 = vector.broadcast %cst_74 : f32 to vector<16x384xf32>
    %231 = vector.extract_strided_slice %18 {offsets = [0, 0, 0], sizes = [1, 16, 16], strides = [1, 1, 1]} : vector<3x16x16xf32> to vector<1x16x16xf32>
    %232 = vector.shape_cast %231 : vector<1x16x16xf32> to vector<16x16xf32>
    %233 = vector.extract_strided_slice %229 {offsets = [0, 0], sizes = [16, 384], strides = [1, 1]} : vector<16x1152xf32> to vector<16x384xf32>
    %cst_75 = arith.constant dense<0.000000e+00> : vector<16x384xf32>
    %234 = tpu.matmul %232, %233, %cst_75 {dimension_numbers = #tpu.dot_dimension_numbers<[1], [0], [0], [1], [0, 0, 1, 1], [], []>} : vector<16x16xf32>, vector<16x384xf32>, vector<16x384xf32> -> vector<16x384xf32>
    %235 = arith.addf %230, %234 : vector<16x384xf32>
    %236 = vector.extract_strided_slice %18 {offsets = [1, 0, 0], sizes = [1, 16, 16], strides = [1, 1, 1]} : vector<3x16x16xf32> to vector<1x16x16xf32>
    %237 = vector.shape_cast %236 : vector<1x16x16xf32> to vector<16x16xf32>
    %238 = vector.extract_strided_slice %229 {offsets = [0, 384], sizes = [16, 384], strides = [1, 1]} : vector<16x1152xf32> to vector<16x384xf32>
    %cst_76 = arith.constant dense<0.000000e+00> : vector<16x384xf32>
    %239 = tpu.matmul %237, %238, %cst_76 {dimension_numbers = #tpu.dot_dimension_numbers<[1], [0], [0], [1], [0, 0, 1, 1], [], []>} : vector<16x16xf32>, vector<16x384xf32>, vector<16x384xf32> -> vector<16x384xf32>
    %240 = arith.addf %235, %239 : vector<16x384xf32>
    %241 = vector.extract_strided_slice %18 {offsets = [2, 0, 0], sizes = [1, 16, 16], strides = [1, 1, 1]} : vector<3x16x16xf32> to vector<1x16x16xf32>
    %242 = vector.shape_cast %241 : vector<1x16x16xf32> to vector<16x16xf32>
    %243 = vector.extract_strided_slice %229 {offsets = [0, 768], sizes = [16, 384], strides = [1, 1]} : vector<16x1152xf32> to vector<16x384xf32>
    %cst_77 = arith.constant dense<0.000000e+00> : vector<16x384xf32>
    %244 = tpu.matmul %242, %243, %cst_77 {dimension_numbers = #tpu.dot_dimension_numbers<[1], [0], [0], [1], [0, 0, 1, 1], [], []>} : vector<16x16xf32>, vector<16x384xf32>, vector<16x384xf32> -> vector<16x384xf32>
    %245 = arith.addf %240, %244 : vector<16x384xf32>
    %cst_78 = arith.constant dense<0.000000e+00> : vector<16x256xf32>
    %246 = tpu.matmul %228, %20, %cst_78 {dimension_numbers = #tpu.dot_dimension_numbers<[1], [0], [0], [1], [0, 0, 1, 1], [], []>} : vector<16x128xf32>, vector<128x256xf32>, vector<16x256xf32> -> vector<16x256xf32>
    %247 = vector.broadcast %22 : vector<1x256xf32> to vector<16x256xf32>
    %248 = arith.addf %246, %247 : vector<16x256xf32>
    %249 = vector.extract_strided_slice %245 {offsets = [0, 0], sizes = [16, 256], strides = [1, 1]} : vector<16x384xf32> to vector<16x256xf32>
    %250 = arith.addf %248, %249 : vector<16x256xf32>
    %251 = arith.negf %250 : vector<16x256xf32>
    %252 = math.exp %251 : vector<16x256xf32>
    %cst_79 = arith.constant 1.000000e+00 : f32
    %253 = vector.broadcast %cst_79 : f32 to vector<16x256xf32>
    %254 = arith.addf %253, %252 : vector<16x256xf32>
    %255 = arith.divf %253, %254 : vector<16x256xf32>
    %256 = vector.extract_strided_slice %255 {offsets = [0, 0], sizes = [16, 128], strides = [1, 1]} : vector<16x256xf32> to vector<16x128xf32>
    %257 = vector.extract_strided_slice %255 {offsets = [0, 128], sizes = [16, 128], strides = [1, 1]} : vector<16x256xf32> to vector<16x128xf32>
    %258 = vector.extract_strided_slice %245 {offsets = [0, 256], sizes = [16, 128], strides = [1, 1]} : vector<16x384xf32> to vector<16x128xf32>
    %259 = arith.mulf %257, %228 : vector<16x128xf32>
    %cst_80 = arith.constant dense<0.000000e+00> : vector<16x128xf32>
    %260 = tpu.matmul %259, %21, %cst_80 {dimension_numbers = #tpu.dot_dimension_numbers<[1], [0], [0], [1], [0, 0, 1, 1], [], []>} : vector<16x128xf32>, vector<128x128xf32>, vector<16x128xf32> -> vector<16x128xf32>
    %261 = arith.addf %258, %260 : vector<16x128xf32>
    %262 = vector.broadcast %23 : vector<1x128xf32> to vector<16x128xf32>
    %263 = arith.addf %261, %262 : vector<16x128xf32>
    %264 = math.tanh %263 : vector<16x128xf32>
    %cst_81 = arith.constant 1.000000e+00 : f32
    %265 = vector.broadcast %cst_81 : f32 to vector<16x128xf32>
    %266 = arith.subf %265, %256 : vector<16x128xf32>
    %267 = arith.mulf %266, %228 : vector<16x128xf32>
    %268 = arith.mulf %256, %264 : vector<16x128xf32>
    %269 = arith.addf %267, %268 : vector<16x128xf32>
    %c6_i32 = arith.constant 6 : i32
    %cst_82 = arith.constant dense<0.000000e+00> : vector<16x1152xf32>
    %270 = tpu.matmul %269, %19, %cst_82 {dimension_numbers = #tpu.dot_dimension_numbers<[1], [0], [0], [1], [0, 0, 1, 1], [], []>} : vector<16x128xf32>, vector<128x1152xf32>, vector<16x1152xf32> -> vector<16x1152xf32>
    %cst_83 = arith.constant 0.000000e+00 : f32
    %271 = vector.broadcast %cst_83 : f32 to vector<16x384xf32>
    %272 = vector.extract_strided_slice %18 {offsets = [0, 0, 0], sizes = [1, 16, 16], strides = [1, 1, 1]} : vector<3x16x16xf32> to vector<1x16x16xf32>
    %273 = vector.shape_cast %272 : vector<1x16x16xf32> to vector<16x16xf32>
    %274 = vector.extract_strided_slice %270 {offsets = [0, 0], sizes = [16, 384], strides = [1, 1]} : vector<16x1152xf32> to vector<16x384xf32>
    %cst_84 = arith.constant dense<0.000000e+00> : vector<16x384xf32>
    %275 = tpu.matmul %273, %274, %cst_84 {dimension_numbers = #tpu.dot_dimension_numbers<[1], [0], [0], [1], [0, 0, 1, 1], [], []>} : vector<16x16xf32>, vector<16x384xf32>, vector<16x384xf32> -> vector<16x384xf32>
    %276 = arith.addf %271, %275 : vector<16x384xf32>
    %277 = vector.extract_strided_slice %18 {offsets = [1, 0, 0], sizes = [1, 16, 16], strides = [1, 1, 1]} : vector<3x16x16xf32> to vector<1x16x16xf32>
    %278 = vector.shape_cast %277 : vector<1x16x16xf32> to vector<16x16xf32>
    %279 = vector.extract_strided_slice %270 {offsets = [0, 384], sizes = [16, 384], strides = [1, 1]} : vector<16x1152xf32> to vector<16x384xf32>
    %cst_85 = arith.constant dense<0.000000e+00> : vector<16x384xf32>
    %280 = tpu.matmul %278, %279, %cst_85 {dimension_numbers = #tpu.dot_dimension_numbers<[1], [0], [0], [1], [0, 0, 1, 1], [], []>} : vector<16x16xf32>, vector<16x384xf32>, vector<16x384xf32> -> vector<16x384xf32>
    %281 = arith.addf %276, %280 : vector<16x384xf32>
    %282 = vector.extract_strided_slice %18 {offsets = [2, 0, 0], sizes = [1, 16, 16], strides = [1, 1, 1]} : vector<3x16x16xf32> to vector<1x16x16xf32>
    %283 = vector.shape_cast %282 : vector<1x16x16xf32> to vector<16x16xf32>
    %284 = vector.extract_strided_slice %270 {offsets = [0, 768], sizes = [16, 384], strides = [1, 1]} : vector<16x1152xf32> to vector<16x384xf32>
    %cst_86 = arith.constant dense<0.000000e+00> : vector<16x384xf32>
    %285 = tpu.matmul %283, %284, %cst_86 {dimension_numbers = #tpu.dot_dimension_numbers<[1], [0], [0], [1], [0, 0, 1, 1], [], []>} : vector<16x16xf32>, vector<16x384xf32>, vector<16x384xf32> -> vector<16x384xf32>
    %286 = arith.addf %281, %285 : vector<16x384xf32>
    %cst_87 = arith.constant dense<0.000000e+00> : vector<16x256xf32>
    %287 = tpu.matmul %269, %20, %cst_87 {dimension_numbers = #tpu.dot_dimension_numbers<[1], [0], [0], [1], [0, 0, 1, 1], [], []>} : vector<16x128xf32>, vector<128x256xf32>, vector<16x256xf32> -> vector<16x256xf32>
    %288 = vector.broadcast %22 : vector<1x256xf32> to vector<16x256xf32>
    %289 = arith.addf %287, %288 : vector<16x256xf32>
    %290 = vector.extract_strided_slice %286 {offsets = [0, 0], sizes = [16, 256], strides = [1, 1]} : vector<16x384xf32> to vector<16x256xf32>
    %291 = arith.addf %289, %290 : vector<16x256xf32>
    %292 = arith.negf %291 : vector<16x256xf32>
    %293 = math.exp %292 : vector<16x256xf32>
    %cst_88 = arith.constant 1.000000e+00 : f32
    %294 = vector.broadcast %cst_88 : f32 to vector<16x256xf32>
    %295 = arith.addf %294, %293 : vector<16x256xf32>
    %296 = arith.divf %294, %295 : vector<16x256xf32>
    %297 = vector.extract_strided_slice %296 {offsets = [0, 0], sizes = [16, 128], strides = [1, 1]} : vector<16x256xf32> to vector<16x128xf32>
    %298 = vector.extract_strided_slice %296 {offsets = [0, 128], sizes = [16, 128], strides = [1, 1]} : vector<16x256xf32> to vector<16x128xf32>
    %299 = vector.extract_strided_slice %286 {offsets = [0, 256], sizes = [16, 128], strides = [1, 1]} : vector<16x384xf32> to vector<16x128xf32>
    %300 = arith.mulf %298, %269 : vector<16x128xf32>
    %cst_89 = arith.constant dense<0.000000e+00> : vector<16x128xf32>
    %301 = tpu.matmul %300, %21, %cst_89 {dimension_numbers = #tpu.dot_dimension_numbers<[1], [0], [0], [1], [0, 0, 1, 1], [], []>} : vector<16x128xf32>, vector<128x128xf32>, vector<16x128xf32> -> vector<16x128xf32>
    %302 = arith.addf %299, %301 : vector<16x128xf32>
    %303 = vector.broadcast %23 : vector<1x128xf32> to vector<16x128xf32>
    %304 = arith.addf %302, %303 : vector<16x128xf32>
    %305 = math.tanh %304 : vector<16x128xf32>
    %cst_90 = arith.constant 1.000000e+00 : f32
    %306 = vector.broadcast %cst_90 : f32 to vector<16x128xf32>
    %307 = arith.subf %306, %297 : vector<16x128xf32>
    %308 = arith.mulf %307, %269 : vector<16x128xf32>
    %309 = arith.mulf %297, %305 : vector<16x128xf32>
    %310 = arith.addf %308, %309 : vector<16x128xf32>
    %c7_i32 = arith.constant 7 : i32
    %cst_91 = arith.constant dense<0.000000e+00> : vector<16x1152xf32>
    %311 = tpu.matmul %310, %19, %cst_91 {dimension_numbers = #tpu.dot_dimension_numbers<[1], [0], [0], [1], [0, 0, 1, 1], [], []>} : vector<16x128xf32>, vector<128x1152xf32>, vector<16x1152xf32> -> vector<16x1152xf32>
    %cst_92 = arith.constant 0.000000e+00 : f32
    %312 = vector.broadcast %cst_92 : f32 to vector<16x384xf32>
    %313 = vector.extract_strided_slice %18 {offsets = [0, 0, 0], sizes = [1, 16, 16], strides = [1, 1, 1]} : vector<3x16x16xf32> to vector<1x16x16xf32>
    %314 = vector.shape_cast %313 : vector<1x16x16xf32> to vector<16x16xf32>
    %315 = vector.extract_strided_slice %311 {offsets = [0, 0], sizes = [16, 384], strides = [1, 1]} : vector<16x1152xf32> to vector<16x384xf32>
    %cst_93 = arith.constant dense<0.000000e+00> : vector<16x384xf32>
    %316 = tpu.matmul %314, %315, %cst_93 {dimension_numbers = #tpu.dot_dimension_numbers<[1], [0], [0], [1], [0, 0, 1, 1], [], []>} : vector<16x16xf32>, vector<16x384xf32>, vector<16x384xf32> -> vector<16x384xf32>
    %317 = arith.addf %312, %316 : vector<16x384xf32>
    %318 = vector.extract_strided_slice %18 {offsets = [1, 0, 0], sizes = [1, 16, 16], strides = [1, 1, 1]} : vector<3x16x16xf32> to vector<1x16x16xf32>
    %319 = vector.shape_cast %318 : vector<1x16x16xf32> to vector<16x16xf32>
    %320 = vector.extract_strided_slice %311 {offsets = [0, 384], sizes = [16, 384], strides = [1, 1]} : vector<16x1152xf32> to vector<16x384xf32>
    %cst_94 = arith.constant dense<0.000000e+00> : vector<16x384xf32>
    %321 = tpu.matmul %319, %320, %cst_94 {dimension_numbers = #tpu.dot_dimension_numbers<[1], [0], [0], [1], [0, 0, 1, 1], [], []>} : vector<16x16xf32>, vector<16x384xf32>, vector<16x384xf32> -> vector<16x384xf32>
    %322 = arith.addf %317, %321 : vector<16x384xf32>
    %323 = vector.extract_strided_slice %18 {offsets = [2, 0, 0], sizes = [1, 16, 16], strides = [1, 1, 1]} : vector<3x16x16xf32> to vector<1x16x16xf32>
    %324 = vector.shape_cast %323 : vector<1x16x16xf32> to vector<16x16xf32>
    %325 = vector.extract_strided_slice %311 {offsets = [0, 768], sizes = [16, 384], strides = [1, 1]} : vector<16x1152xf32> to vector<16x384xf32>
    %cst_95 = arith.constant dense<0.000000e+00> : vector<16x384xf32>
    %326 = tpu.matmul %324, %325, %cst_95 {dimension_numbers = #tpu.dot_dimension_numbers<[1], [0], [0], [1], [0, 0, 1, 1], [], []>} : vector<16x16xf32>, vector<16x384xf32>, vector<16x384xf32> -> vector<16x384xf32>
    %327 = arith.addf %322, %326 : vector<16x384xf32>
    %cst_96 = arith.constant dense<0.000000e+00> : vector<16x256xf32>
    %328 = tpu.matmul %310, %20, %cst_96 {dimension_numbers = #tpu.dot_dimension_numbers<[1], [0], [0], [1], [0, 0, 1, 1], [], []>} : vector<16x128xf32>, vector<128x256xf32>, vector<16x256xf32> -> vector<16x256xf32>
    %329 = vector.broadcast %22 : vector<1x256xf32> to vector<16x256xf32>
    %330 = arith.addf %328, %329 : vector<16x256xf32>
    %331 = vector.extract_strided_slice %327 {offsets = [0, 0], sizes = [16, 256], strides = [1, 1]} : vector<16x384xf32> to vector<16x256xf32>
    %332 = arith.addf %330, %331 : vector<16x256xf32>
    %333 = arith.negf %332 : vector<16x256xf32>
    %334 = math.exp %333 : vector<16x256xf32>
    %cst_97 = arith.constant 1.000000e+00 : f32
    %335 = vector.broadcast %cst_97 : f32 to vector<16x256xf32>
    %336 = arith.addf %335, %334 : vector<16x256xf32>
    %337 = arith.divf %335, %336 : vector<16x256xf32>
    %338 = vector.extract_strided_slice %337 {offsets = [0, 0], sizes = [16, 128], strides = [1, 1]} : vector<16x256xf32> to vector<16x128xf32>
    %339 = vector.extract_strided_slice %337 {offsets = [0, 128], sizes = [16, 128], strides = [1, 1]} : vector<16x256xf32> to vector<16x128xf32>
    %340 = vector.extract_strided_slice %327 {offsets = [0, 256], sizes = [16, 128], strides = [1, 1]} : vector<16x384xf32> to vector<16x128xf32>
    %341 = arith.mulf %339, %310 : vector<16x128xf32>
    %cst_98 = arith.constant dense<0.000000e+00> : vector<16x128xf32>
    %342 = tpu.matmul %341, %21, %cst_98 {dimension_numbers = #tpu.dot_dimension_numbers<[1], [0], [0], [1], [0, 0, 1, 1], [], []>} : vector<16x128xf32>, vector<128x128xf32>, vector<16x128xf32> -> vector<16x128xf32>
    %343 = arith.addf %340, %342 : vector<16x128xf32>
    %344 = vector.broadcast %23 : vector<1x128xf32> to vector<16x128xf32>
    %345 = arith.addf %343, %344 : vector<16x128xf32>
    %346 = math.tanh %345 : vector<16x128xf32>
    %cst_99 = arith.constant 1.000000e+00 : f32
    %347 = vector.broadcast %cst_99 : f32 to vector<16x128xf32>
    %348 = arith.subf %347, %338 : vector<16x128xf32>
    %349 = arith.mulf %348, %310 : vector<16x128xf32>
    %350 = arith.mulf %338, %346 : vector<16x128xf32>
    %351 = arith.addf %349, %350 : vector<16x128xf32>
    %c8_i32 = arith.constant 8 : i32
    %cst_100 = arith.constant dense<0.000000e+00> : vector<16x1152xf32>
    %352 = tpu.matmul %351, %19, %cst_100 {dimension_numbers = #tpu.dot_dimension_numbers<[1], [0], [0], [1], [0, 0, 1, 1], [], []>} : vector<16x128xf32>, vector<128x1152xf32>, vector<16x1152xf32> -> vector<16x1152xf32>
    %cst_101 = arith.constant 0.000000e+00 : f32
    %353 = vector.broadcast %cst_101 : f32 to vector<16x384xf32>
    %354 = vector.extract_strided_slice %18 {offsets = [0, 0, 0], sizes = [1, 16, 16], strides = [1, 1, 1]} : vector<3x16x16xf32> to vector<1x16x16xf32>
    %355 = vector.shape_cast %354 : vector<1x16x16xf32> to vector<16x16xf32>
    %356 = vector.extract_strided_slice %352 {offsets = [0, 0], sizes = [16, 384], strides = [1, 1]} : vector<16x1152xf32> to vector<16x384xf32>
    %cst_102 = arith.constant dense<0.000000e+00> : vector<16x384xf32>
    %357 = tpu.matmul %355, %356, %cst_102 {dimension_numbers = #tpu.dot_dimension_numbers<[1], [0], [0], [1], [0, 0, 1, 1], [], []>} : vector<16x16xf32>, vector<16x384xf32>, vector<16x384xf32> -> vector<16x384xf32>
    %358 = arith.addf %353, %357 : vector<16x384xf32>
    %359 = vector.extract_strided_slice %18 {offsets = [1, 0, 0], sizes = [1, 16, 16], strides = [1, 1, 1]} : vector<3x16x16xf32> to vector<1x16x16xf32>
    %360 = vector.shape_cast %359 : vector<1x16x16xf32> to vector<16x16xf32>
    %361 = vector.extract_strided_slice %352 {offsets = [0, 384], sizes = [16, 384], strides = [1, 1]} : vector<16x1152xf32> to vector<16x384xf32>
    %cst_103 = arith.constant dense<0.000000e+00> : vector<16x384xf32>
    %362 = tpu.matmul %360, %361, %cst_103 {dimension_numbers = #tpu.dot_dimension_numbers<[1], [0], [0], [1], [0, 0, 1, 1], [], []>} : vector<16x16xf32>, vector<16x384xf32>, vector<16x384xf32> -> vector<16x384xf32>
    %363 = arith.addf %358, %362 : vector<16x384xf32>
    %364 = vector.extract_strided_slice %18 {offsets = [2, 0, 0], sizes = [1, 16, 16], strides = [1, 1, 1]} : vector<3x16x16xf32> to vector<1x16x16xf32>
    %365 = vector.shape_cast %364 : vector<1x16x16xf32> to vector<16x16xf32>
    %366 = vector.extract_strided_slice %352 {offsets = [0, 768], sizes = [16, 384], strides = [1, 1]} : vector<16x1152xf32> to vector<16x384xf32>
    %cst_104 = arith.constant dense<0.000000e+00> : vector<16x384xf32>
    %367 = tpu.matmul %365, %366, %cst_104 {dimension_numbers = #tpu.dot_dimension_numbers<[1], [0], [0], [1], [0, 0, 1, 1], [], []>} : vector<16x16xf32>, vector<16x384xf32>, vector<16x384xf32> -> vector<16x384xf32>
    %368 = arith.addf %363, %367 : vector<16x384xf32>
    %cst_105 = arith.constant dense<0.000000e+00> : vector<16x256xf32>
    %369 = tpu.matmul %351, %20, %cst_105 {dimension_numbers = #tpu.dot_dimension_numbers<[1], [0], [0], [1], [0, 0, 1, 1], [], []>} : vector<16x128xf32>, vector<128x256xf32>, vector<16x256xf32> -> vector<16x256xf32>
    %370 = vector.broadcast %22 : vector<1x256xf32> to vector<16x256xf32>
    %371 = arith.addf %369, %370 : vector<16x256xf32>
    %372 = vector.extract_strided_slice %368 {offsets = [0, 0], sizes = [16, 256], strides = [1, 1]} : vector<16x384xf32> to vector<16x256xf32>
    %373 = arith.addf %371, %372 : vector<16x256xf32>
    %374 = arith.negf %373 : vector<16x256xf32>
    %375 = math.exp %374 : vector<16x256xf32>
    %cst_106 = arith.constant 1.000000e+00 : f32
    %376 = vector.broadcast %cst_106 : f32 to vector<16x256xf32>
    %377 = arith.addf %376, %375 : vector<16x256xf32>
    %378 = arith.divf %376, %377 : vector<16x256xf32>
    %379 = vector.extract_strided_slice %378 {offsets = [0, 0], sizes = [16, 128], strides = [1, 1]} : vector<16x256xf32> to vector<16x128xf32>
    %380 = vector.extract_strided_slice %378 {offsets = [0, 128], sizes = [16, 128], strides = [1, 1]} : vector<16x256xf32> to vector<16x128xf32>
    %381 = vector.extract_strided_slice %368 {offsets = [0, 256], sizes = [16, 128], strides = [1, 1]} : vector<16x384xf32> to vector<16x128xf32>
    %382 = arith.mulf %380, %351 : vector<16x128xf32>
    %cst_107 = arith.constant dense<0.000000e+00> : vector<16x128xf32>
    %383 = tpu.matmul %382, %21, %cst_107 {dimension_numbers = #tpu.dot_dimension_numbers<[1], [0], [0], [1], [0, 0, 1, 1], [], []>} : vector<16x128xf32>, vector<128x128xf32>, vector<16x128xf32> -> vector<16x128xf32>
    %384 = arith.addf %381, %383 : vector<16x128xf32>
    %385 = vector.broadcast %23 : vector<1x128xf32> to vector<16x128xf32>
    %386 = arith.addf %384, %385 : vector<16x128xf32>
    %387 = math.tanh %386 : vector<16x128xf32>
    %cst_108 = arith.constant 1.000000e+00 : f32
    %388 = vector.broadcast %cst_108 : f32 to vector<16x128xf32>
    %389 = arith.subf %388, %379 : vector<16x128xf32>
    %390 = arith.mulf %389, %351 : vector<16x128xf32>
    %391 = arith.mulf %379, %387 : vector<16x128xf32>
    %392 = arith.addf %390, %391 : vector<16x128xf32>
    %c9_i32 = arith.constant 9 : i32
    %cst_109 = arith.constant dense<0.000000e+00> : vector<16x1152xf32>
    %393 = tpu.matmul %392, %19, %cst_109 {dimension_numbers = #tpu.dot_dimension_numbers<[1], [0], [0], [1], [0, 0, 1, 1], [], []>} : vector<16x128xf32>, vector<128x1152xf32>, vector<16x1152xf32> -> vector<16x1152xf32>
    %cst_110 = arith.constant 0.000000e+00 : f32
    %394 = vector.broadcast %cst_110 : f32 to vector<16x384xf32>
    %395 = vector.extract_strided_slice %18 {offsets = [0, 0, 0], sizes = [1, 16, 16], strides = [1, 1, 1]} : vector<3x16x16xf32> to vector<1x16x16xf32>
    %396 = vector.shape_cast %395 : vector<1x16x16xf32> to vector<16x16xf32>
    %397 = vector.extract_strided_slice %393 {offsets = [0, 0], sizes = [16, 384], strides = [1, 1]} : vector<16x1152xf32> to vector<16x384xf32>
    %cst_111 = arith.constant dense<0.000000e+00> : vector<16x384xf32>
    %398 = tpu.matmul %396, %397, %cst_111 {dimension_numbers = #tpu.dot_dimension_numbers<[1], [0], [0], [1], [0, 0, 1, 1], [], []>} : vector<16x16xf32>, vector<16x384xf32>, vector<16x384xf32> -> vector<16x384xf32>
    %399 = arith.addf %394, %398 : vector<16x384xf32>
    %400 = vector.extract_strided_slice %18 {offsets = [1, 0, 0], sizes = [1, 16, 16], strides = [1, 1, 1]} : vector<3x16x16xf32> to vector<1x16x16xf32>
    %401 = vector.shape_cast %400 : vector<1x16x16xf32> to vector<16x16xf32>
    %402 = vector.extract_strided_slice %393 {offsets = [0, 384], sizes = [16, 384], strides = [1, 1]} : vector<16x1152xf32> to vector<16x384xf32>
    %cst_112 = arith.constant dense<0.000000e+00> : vector<16x384xf32>
    %403 = tpu.matmul %401, %402, %cst_112 {dimension_numbers = #tpu.dot_dimension_numbers<[1], [0], [0], [1], [0, 0, 1, 1], [], []>} : vector<16x16xf32>, vector<16x384xf32>, vector<16x384xf32> -> vector<16x384xf32>
    %404 = arith.addf %399, %403 : vector<16x384xf32>
    %405 = vector.extract_strided_slice %18 {offsets = [2, 0, 0], sizes = [1, 16, 16], strides = [1, 1, 1]} : vector<3x16x16xf32> to vector<1x16x16xf32>
    %406 = vector.shape_cast %405 : vector<1x16x16xf32> to vector<16x16xf32>
    %407 = vector.extract_strided_slice %393 {offsets = [0, 768], sizes = [16, 384], strides = [1, 1]} : vector<16x1152xf32> to vector<16x384xf32>
    %cst_113 = arith.constant dense<0.000000e+00> : vector<16x384xf32>
    %408 = tpu.matmul %406, %407, %cst_113 {dimension_numbers = #tpu.dot_dimension_numbers<[1], [0], [0], [1], [0, 0, 1, 1], [], []>} : vector<16x16xf32>, vector<16x384xf32>, vector<16x384xf32> -> vector<16x384xf32>
    %409 = arith.addf %404, %408 : vector<16x384xf32>
    %cst_114 = arith.constant dense<0.000000e+00> : vector<16x256xf32>
    %410 = tpu.matmul %392, %20, %cst_114 {dimension_numbers = #tpu.dot_dimension_numbers<[1], [0], [0], [1], [0, 0, 1, 1], [], []>} : vector<16x128xf32>, vector<128x256xf32>, vector<16x256xf32> -> vector<16x256xf32>
    %411 = vector.broadcast %22 : vector<1x256xf32> to vector<16x256xf32>
    %412 = arith.addf %410, %411 : vector<16x256xf32>
    %413 = vector.extract_strided_slice %409 {offsets = [0, 0], sizes = [16, 256], strides = [1, 1]} : vector<16x384xf32> to vector<16x256xf32>
    %414 = arith.addf %412, %413 : vector<16x256xf32>
    %415 = arith.negf %414 : vector<16x256xf32>
    %416 = math.exp %415 : vector<16x256xf32>
    %cst_115 = arith.constant 1.000000e+00 : f32
    %417 = vector.broadcast %cst_115 : f32 to vector<16x256xf32>
    %418 = arith.addf %417, %416 : vector<16x256xf32>
    %419 = arith.divf %417, %418 : vector<16x256xf32>
    %420 = vector.extract_strided_slice %419 {offsets = [0, 0], sizes = [16, 128], strides = [1, 1]} : vector<16x256xf32> to vector<16x128xf32>
    %421 = vector.extract_strided_slice %419 {offsets = [0, 128], sizes = [16, 128], strides = [1, 1]} : vector<16x256xf32> to vector<16x128xf32>
    %422 = vector.extract_strided_slice %409 {offsets = [0, 256], sizes = [16, 128], strides = [1, 1]} : vector<16x384xf32> to vector<16x128xf32>
    %423 = arith.mulf %421, %392 : vector<16x128xf32>
    %cst_116 = arith.constant dense<0.000000e+00> : vector<16x128xf32>
    %424 = tpu.matmul %423, %21, %cst_116 {dimension_numbers = #tpu.dot_dimension_numbers<[1], [0], [0], [1], [0, 0, 1, 1], [], []>} : vector<16x128xf32>, vector<128x128xf32>, vector<16x128xf32> -> vector<16x128xf32>
    %425 = arith.addf %422, %424 : vector<16x128xf32>
    %426 = vector.broadcast %23 : vector<1x128xf32> to vector<16x128xf32>
    %427 = arith.addf %425, %426 : vector<16x128xf32>
    %428 = math.tanh %427 : vector<16x128xf32>
    %cst_117 = arith.constant 1.000000e+00 : f32
    %429 = vector.broadcast %cst_117 : f32 to vector<16x128xf32>
    %430 = arith.subf %429, %420 : vector<16x128xf32>
    %431 = arith.mulf %430, %392 : vector<16x128xf32>
    %432 = arith.mulf %420, %428 : vector<16x128xf32>
    %433 = arith.addf %431, %432 : vector<16x128xf32>
    %c0_118 = arith.constant 0 : index
    %c0_119 = arith.constant 0 : index
    %434 = vector.load %arg17[%c0_118, %c0_119] : memref<4x16xf32, #tpu.memory_space<vmem>>, vector<4x16xf32>
    %c0_120 = arith.constant 0 : index
    %c0_121 = arith.constant 0 : index
    %435 = vector.load %arg13[%c0_120, %c0_121] : memref<128x128xf32, #tpu.memory_space<vmem>>, vector<128x128xf32>
    %cst_122 = arith.constant dense<0.000000e+00> : vector<16x128xf32>
    %436 = tpu.matmul %433, %435, %cst_122 {dimension_numbers = #tpu.dot_dimension_numbers<[1], [0], [0], [1], [0, 0, 1, 1], [], []>} : vector<16x128xf32>, vector<128x128xf32>, vector<16x128xf32> -> vector<16x128xf32>
    %c0_123 = arith.constant 0 : index
    %c0_124 = arith.constant 0 : index
    %437 = vector.load %arg14[%c0_123, %c0_124] : memref<1x128xf32, #tpu.memory_space<vmem>>, vector<1x128xf32>
    %438 = vector.broadcast %437 : vector<1x128xf32> to vector<16x128xf32>
    %439 = arith.addf %436, %438 : vector<16x128xf32>
    %440 = math.tanh %439 : vector<16x128xf32>
    %c0_125 = arith.constant 0 : index
    %c0_126 = arith.constant 0 : index
    %441 = vector.load %arg15[%c0_125, %c0_126] : memref<128x4xf32, #tpu.memory_space<vmem>>, vector<128x4xf32>
    %cst_127 = arith.constant dense<0.000000e+00> : vector<16x4xf32>
    %442 = tpu.matmul %440, %441, %cst_127 {dimension_numbers = #tpu.dot_dimension_numbers<[1], [0], [0], [1], [0, 0, 1, 1], [], []>} : vector<16x128xf32>, vector<128x4xf32>, vector<16x4xf32> -> vector<16x4xf32>
    %cst_128 = arith.constant dense<0.000000e+00> : vector<4xf32>
    %443 = vector.multi_reduction <add>, %434, %cst_128 [1] : vector<4x16xf32> to vector<4xf32>
    %444 = vector.shape_cast %443 : vector<4xf32> to vector<4x1xf32>
    %cst_129 = arith.constant 1.000000e+00 : f32
    %445 = vector.broadcast %cst_129 : f32 to vector<4x1xf32>
    %446 = arith.maximumf %444, %445 : vector<4x1xf32>
    %cst_130 = arith.constant dense<0.000000e+00> : vector<4x4xf32>
    %447 = tpu.matmul %434, %442, %cst_130 {dimension_numbers = #tpu.dot_dimension_numbers<[1], [0], [0], [1], [0, 0, 1, 1], [], []>} : vector<4x16xf32>, vector<16x4xf32>, vector<4x4xf32> -> vector<4x4xf32>
    %448 = vector.broadcast %446 : vector<4x1xf32> to vector<4x4xf32>
    %449 = arith.divf %447, %448 : vector<4x4xf32>
    %c0_131 = arith.constant 0 : index
    %c0_132 = arith.constant 0 : index
    %450 = vector.load %arg18[%c0_131, %c0_132] : memref<16x4xf32, #tpu.memory_space<vmem>>, vector<16x4xf32>
    %cst_133 = arith.constant dense<0.000000e+00> : vector<16x4xf32>
    %451 = tpu.matmul %450, %449, %cst_133 {dimension_numbers = #tpu.dot_dimension_numbers<[1], [0], [0], [1], [0, 0, 1, 1], [], []>} : vector<16x4xf32>, vector<4x4xf32>, vector<16x4xf32> -> vector<16x4xf32>
    %452 = arith.subf %442, %451 : vector<16x4xf32>
    %453 = math.exp %452 : vector<16x4xf32>
    %c0_134 = arith.constant 0 : index
    %c0_135 = arith.constant 0 : index
    %454 = vector.load %arg16[%c0_134, %c0_135] : memref<4x128xf32, #tpu.memory_space<vmem>>, vector<4x128xf32>
    %cst_136 = arith.constant dense<0.000000e+00> : vector<16x128xf32>
    %455 = tpu.matmul %453, %454, %cst_136 {dimension_numbers = #tpu.dot_dimension_numbers<[1], [0], [0], [1], [0, 0, 1, 1], [], []>} : vector<16x4xf32>, vector<4x128xf32>, vector<16x128xf32> -> vector<16x128xf32>
    %456 = arith.mulf %455, %433 : vector<16x128xf32>
    %cst_137 = arith.constant dense<0.000000e+00> : vector<4x128xf32>
    %457 = tpu.matmul %434, %456, %cst_137 {dimension_numbers = #tpu.dot_dimension_numbers<[1], [0], [0], [1], [0, 0, 1, 1], [], []>} : vector<4x16xf32>, vector<16x128xf32>, vector<4x128xf32> -> vector<4x128xf32>
    %cst_138 = arith.constant dense<0.000000e+00> : vector<4x4xf32>
    %458 = tpu.matmul %434, %453, %cst_138 {dimension_numbers = #tpu.dot_dimension_numbers<[1], [0], [0], [1], [0, 0, 1, 1], [], []>} : vector<4x16xf32>, vector<16x4xf32>, vector<4x4xf32> -> vector<4x4xf32>
    %cst_139 = arith.constant dense<0.000000e+00> : vector<4x128xf32>
    %459 = tpu.matmul %458, %454, %cst_139 {dimension_numbers = #tpu.dot_dimension_numbers<[1], [0], [0], [1], [0, 0, 1, 1], [], []>} : vector<4x4xf32>, vector<4x128xf32>, vector<4x128xf32> -> vector<4x128xf32>
    %cst_140 = arith.constant 9.99999996E-13 : f32
    %460 = vector.broadcast %cst_140 : f32 to vector<4x128xf32>
    %461 = arith.maximumf %459, %460 : vector<4x128xf32>
    %462 = arith.divf %457, %461 : vector<4x128xf32>
    %c0_141 = arith.constant 0 : index
    %c0_142 = arith.constant 0 : index
    %c0_143 = arith.constant 0 : index
    %463 = vector.load %arg19[%c0_141, %c0_142, %c0_143] : memref<1x4x128xf32, #tpu.memory_space<vmem>>, vector<1x4x128xf32>
    %464 = vector.shape_cast %463 : vector<1x4x128xf32> to vector<4x128xf32>
    %465 = vector.shape_cast %462 : vector<4x128xf32> to vector<1x4x128xf32>
    tpu.vector_store %arg19[%c0_141, %c0_142, %c0_143], %465 {strides = array<i32>} : memref<1x4x128xf32, #tpu.memory_space<vmem>>, vector<1x4x128xf32>,
    return
  }
  func.func @transform_0(%arg0: i32) -> (i32, i32, i32) {
    %c0_i32 = arith.constant 0 : i32
    %c0_i32_0 = arith.constant 0 : i32
    %c0_i32_1 = arith.constant 0 : i32
    return %arg0, %c0_i32, %c0_i32_0 : i32, i32, i32
  }
  func.func @transform_1(%arg0: i32) -> (i32, i32) {
    %c0_i32 = arith.constant 0 : i32
    %c0_i32_0 = arith.constant 0 : i32
    %c0_i32_1 = arith.constant 0 : i32
    return %c0_i32, %c0_i32_0 : i32, i32
  }
  func.func @transform_2(%arg0: i32) -> (i32, i32) {
    %c0_i32 = arith.constant 0 : i32
    %c0_i32_0 = arith.constant 0 : i32
    %c0_i32_1 = arith.constant 0 : i32
    return %c0_i32, %c0_i32_0 : i32, i32
  }
  func.func @transform_3(%arg0: i32) -> (i32, i32) {
    %c0_i32 = arith.constant 0 : i32
    %c0_i32_0 = arith.constant 0 : i32
    %c0_i32_1 = arith.constant 0 : i32
    return %c0_i32, %c0_i32_0 : i32, i32
  }
  func.func @transform_4(%arg0: i32) -> (i32, i32) {
    %c0_i32 = arith.constant 0 : i32
    %c0_i32_0 = arith.constant 0 : i32
    %c0_i32_1 = arith.constant 0 : i32
    return %c0_i32, %c0_i32_0 : i32, i32
  }
  func.func @transform_5(%arg0: i32) -> (i32, i32) {
    %c0_i32 = arith.constant 0 : i32
    %c0_i32_0 = arith.constant 0 : i32
    %c0_i32_1 = arith.constant 0 : i32
    return %c0_i32, %c0_i32_0 : i32, i32
  }
  func.func @transform_6(%arg0: i32) -> (i32, i32, i32) {
    %c0_i32 = arith.constant 0 : i32
    %c0_i32_0 = arith.constant 0 : i32
    %c0_i32_1 = arith.constant 0 : i32
    %c0_i32_2 = arith.constant 0 : i32
    return %c0_i32, %c0_i32_0, %c0_i32_1 : i32, i32, i32
  }
  func.func @transform_7(%arg0: i32) -> (i32, i32) {
    %c0_i32 = arith.constant 0 : i32
    %c0_i32_0 = arith.constant 0 : i32
    %c0_i32_1 = arith.constant 0 : i32
    return %c0_i32, %c0_i32_0 : i32, i32
  }
  func.func @transform_8(%arg0: i32) -> (i32, i32) {
    %c0_i32 = arith.constant 0 : i32
    %c0_i32_0 = arith.constant 0 : i32
    %c0_i32_1 = arith.constant 0 : i32
    return %c0_i32, %c0_i32_0 : i32, i32
  }
  func.func @transform_9(%arg0: i32) -> (i32, i32) {
    %c0_i32 = arith.constant 0 : i32
    %c0_i32_0 = arith.constant 0 : i32
    %c0_i32_1 = arith.constant 0 : i32
    return %c0_i32, %c0_i32_0 : i32, i32
  }
  func.func @transform_10(%arg0: i32) -> (i32, i32) {
    %c0_i32 = arith.constant 0 : i32
    %c0_i32_0 = arith.constant 0 : i32
    %c0_i32_1 = arith.constant 0 : i32
    return %c0_i32, %c0_i32_0 : i32, i32
  }
  func.func @transform_11(%arg0: i32) -> (i32, i32) {
    %c0_i32 = arith.constant 0 : i32
    %c0_i32_0 = arith.constant 0 : i32
    %c0_i32_1 = arith.constant 0 : i32
    return %c0_i32, %c0_i32_0 : i32, i32
  }
  func.func @transform_12(%arg0: i32) -> (i32, i32) {
    %c0_i32 = arith.constant 0 : i32
    %c0_i32_0 = arith.constant 0 : i32
    %c0_i32_1 = arith.constant 0 : i32
    return %c0_i32, %c0_i32_0 : i32, i32
  }
  func.func @transform_13(%arg0: i32) -> (i32, i32) {
    %c0_i32 = arith.constant 0 : i32
    %c0_i32_0 = arith.constant 0 : i32
    %c0_i32_1 = arith.constant 0 : i32
    return %c0_i32, %c0_i32_0 : i32, i32
  }
  func.func @transform_14(%arg0: i32) -> (i32, i32) {
    %c0_i32 = arith.constant 0 : i32
    %c0_i32_0 = arith.constant 0 : i32
    %c0_i32_1 = arith.constant 0 : i32
    return %c0_i32, %c0_i32_0 : i32, i32
  }
  func.func @transform_15(%arg0: i32) -> (i32, i32) {
    %c0_i32 = arith.constant 0 : i32
    %c0_i32_0 = arith.constant 0 : i32
    %c0_i32_1 = arith.constant 0 : i32
    return %c0_i32, %c0_i32_0 : i32, i32
  }
  func.func @transform_16(%arg0: i32) -> (i32, i32) {
    %c0_i32 = arith.constant 0 : i32
    %c0_i32_0 = arith.constant 0 : i32
    %c0_i32_1 = arith.constant 0 : i32
    return %c0_i32, %c0_i32_0 : i32, i32
  }
  func.func @transform_17(%arg0: i32) -> (i32, i32) {
    %c0_i32 = arith.constant 0 : i32
    %c0_i32_0 = arith.constant 0 : i32
    %c0_i32_1 = arith.constant 0 : i32
    return %c0_i32, %c0_i32_0 : i32, i32
  }
  func.func @transform_18(%arg0: i32) -> (i32, i32, i32) {
    %c0_i32 = arith.constant 0 : i32
    %c0_i32_0 = arith.constant 0 : i32
    %c0_i32_1 = arith.constant 0 : i32
    return %arg0, %c0_i32, %c0_i32_0 : i32, i32, i32
  }
}

</mosaic_0001>

<llo_original>
// kernel: tpu_custom_call.1
$region0: #{tpu_custom_call.1}
  #allocation0 [shape = 'u32[]', space=smem, size = 0x4, offset = 0x4, fixed_abs, tag = 'smem constant byte address 0x4 - core index']
  #allocation1 [shape = 'u32[72,128]{1,0:T(1,128)}', space=vmem, size = 0x9000, scoped, tag = 'internal scratch']
  %s0 = inlined_call_operand.vmem [shape: f32[2,16,8], index: 0, kind: input, shape index: {}]
  %s1 = inlined_call_operand.hbm [shape: f32[16,128], index: 1, kind: input, shape index: {}]
  %s2 = inlined_call_operand.hbm [shape: f32[8,128], index: 2, kind: input, shape index: {}]
  %s3 = inlined_call_operand.hbm [shape: f32[1,128], index: 3, kind: input, shape index: {}]
  %s4 = inlined_call_operand.vmem [shape: f32[128,128], index: 4, kind: input, shape index: {}]
  %s5 = inlined_call_operand.hbm [shape: f32[1,128], index: 5, kind: input, shape index: {}]
  %s6 = inlined_call_operand.vmem [shape: f32[3,16,16], index: 6, kind: input, shape index: {}]
  %s7 = inlined_call_operand.hbm [shape: f32[128,1152], index: 7, kind: input, shape index: {}]
  %s8 = inlined_call_operand.hbm [shape: f32[128,256], index: 8, kind: input, shape index: {}]
  %s9 = inlined_call_operand.hbm [shape: f32[128,128], index: 9, kind: input, shape index: {}]
  %s10 = inlined_call_operand.hbm [shape: f32[1,256], index: 10, kind: input, shape index: {}]
  %s11 = inlined_call_operand.hbm [shape: f32[1,128], index: 11, kind: input, shape index: {}]
  %s12 = inlined_call_operand.hbm [shape: f32[128,128], index: 12, kind: input, shape index: {}]
  %s13 = inlined_call_operand.vmem [shape: f32[1,128], index: 13, kind: input, shape index: {}]
  %s14 = inlined_call_operand.vmem [shape: f32[128,4], index: 14, kind: input, shape index: {}]
  %s15 = inlined_call_operand.vmem [shape: f32[4,128], index: 15, kind: input, shape index: {}]
  %s16 = inlined_call_operand.vmem [shape: f32[4,16], index: 16, kind: input, shape index: {}]
  %s17 = inlined_call_operand.vmem [shape: f32[16,4], index: 17, kind: input, shape index: {}]
  %s18 = inlined_call_operand.hbm [shape: f32[2,4,128], index: 18, kind: output, shape index: {}]
  %s19 = sld [smem:[#allocation0]]
  $region145: #{tpu_custom_call.1} parent=0
    _
  %s21 = ssub.s32 1, %s19
  %s22 = scalar_select 0, %s21, %s19
  $region1: #{tpu_custom_call.1} parent=0
    #allocation2 [shape = 'u8[8192]{0}', space=vmem, size = 0x2000, scoped, tag = 'input window, operand 1, single buffered']
    #allocation3 [shape = 's32[2]{0}', space=sflag, size = 0x8, scoped, tag = 'scoped memory for tpu_custom_call.1']
    #allocation4 [shape = 's32[2]{0}', space=sflag, size = 0x8, scoped, tag = 'scoped memory for tpu_custom_call.1']
    #allocation5 [shape = 'u8[4096]{0}', space=vmem, size = 0x1000, scoped, tag = 'input window, operand 2, single buffered']
    #allocation6 [shape = 's32[1]{0}', space=sflag, size = 0x4, scoped, tag = 'scoped memory for tpu_custom_call.1']
    #allocation7 [shape = 'u8[512]{0}', space=vmem, size = 0x400, scoped, tag = 'input window, operand 3, single buffered']
    #allocation8 [shape = 'u8[512]{0}', space=vmem, size = 0x400, scoped, tag = 'input window, operand 5, single buffered']
    #allocation9 [shape = 's32[1]{0}', space=sflag, size = 0x4, scoped, tag = 'scoped memory for tpu_custom_call.1']
    #allocation10 [shape = 'u8[589824]{0}', space=vmem, size = 0x90000, scoped, tag = 'input window, operand 7, single buffered']
    #allocation11 [shape = 'u8[131072]{0}', space=vmem, size = 0x20000, scoped, tag = 'input window, operand 8, single buffered']
    #allocation12 [shape = 's32[1]{0}', space=sflag, size = 0x4, scoped, tag = 'scoped memory for tpu_custom_call.1']
    #allocation13 [shape = 'u8[65536]{0}', space=vmem, size = 0x10000, scoped, tag = 'input window, operand 9, single buffered']
    #allocation14 [shape = 'u8[1024]{0}', space=vmem, size = 0x400, scoped, tag = 'input window, operand 10, single buffered']
    #allocation15 [shape = 's32[1]{0}', space=sflag, size = 0x4, scoped, tag = 'scoped memory for tpu_custom_call.1']
    #allocation16 [shape = 'u8[512]{0}', space=vmem, size = 0x400, scoped, tag = 'input window, operand 11, single buffered']
    #allocation17 [shape = 'u8[65536]{0}', space=vmem, size = 0x10000, scoped, tag = 'input window, operand 12, single buffered']
    #allocation18 [shape = 's32[1]{0}', space=sflag, size = 0x4, scoped, tag = 'scoped memory for tpu_custom_call.1']
    #allocation19 [shape = 'u8[4096]{0}', space=vmem, size = 0x1000, scoped, tag = 'output window, operand 0']
    %23 = vsyncpa [#allocation3], 0
    %24 = vsyncpa [#allocation6], 0
    %25 = vsyncpa [#allocation9], 0
    %26 = vsyncpa [#allocation12], 0
    %27 = vsyncpa [#allocation15], 0
    %28 = vsyncpa [#allocation18], 0
    %29 = vsyncpa [#allocation4], 0
    %s30 = scalar_lea.sflag [#allocation4], 1
    %31 = vsyncpa %s30, 0
    loop: start=0, step=1, limit=4
    $region2: #{tpu_custom_call.1} parent=1 // loop_pre_header
      _
    $region3: #{tpu_custom_call.1} parent=1 // loop_header
      %s33 = sphi 0, %s37
      %p34 = scmp.ge.s32.totalorder %s33, 4
      %s43 = sphi 0, %s45
      %s46 = sphi 0, %s43
      %s47 = sphi 0, %s46
      %s63 = sphi 0, %s47
      %s67 = sphi 0, %s67
      %s69 = sphi 0, %s67
      %s70 = sphi 0, %s69
      %s84 = sphi 0, %s70
      %s88 = sphi 0, %s88
      %s90 = sphi 0, %s88
      %s91 = sphi 0, %s90
      %s105 = sphi 0, %s91
      %s109 = sphi 0, %s109
      %s111 = sphi 0, %s109
      %s112 = sphi 0, %s111
      %s126 = sphi 0, %s112
      %s130 = sphi 0, %s130
      %s132 = sphi 0, %s130
      %s133 = sphi 0, %s132
      %s147 = sphi 0, %s133
      %s151 = sphi 0, %s151
      %s153 = sphi 0, %s151
      %s154 = sphi 0, %s153
      %s168 = sphi 0, %s154
      %s172 = sphi 0, %s172
      %s174 = sphi 0, %s172
      %s175 = sphi 0, %s174
      %s189 = sphi 0, %s175
      %s193 = sphi 0, %s193
      %s195 = sphi 0, %s193
      %s196 = sphi 0, %s195
      %s210 = sphi 0, %s196
      %s214 = sphi 0, %s214
      %s216 = sphi 0, %s214
      %s217 = sphi 0, %s216
      %s231 = sphi 0, %s217
      %s235 = sphi 0, %s235
      %s237 = sphi 0, %s235
      %s238 = sphi 0, %s237
      %s252 = sphi 0, %s238
      %s256 = sphi 0, %s256
      %s258 = sphi 0, %s256
      %s259 = sphi 0, %s258
      %s273 = sphi 0, %s259
      %s277 = sphi 0, %s277
      %s279 = sphi 0, %s277
      %s280 = sphi 0, %s279
      %s294 = sphi 0, %s280
      %s298 = sphi 0, %s298
      %s300 = sphi 0, %s298
      %s301 = sphi 0, %s300
      %s315 = sphi 0, %s301
      %s319 = sphi 0, %s319
      %s321 = sphi 0, %s319
      %s322 = sphi 0, %s321
      %s336 = sphi 0, %s322
      %s340 = sphi 0, %s340
      %s342 = sphi 0, %s340
      %s343 = sphi 0, %s342
      %s357 = sphi 0, %s343
      %s361 = sphi 0, %s361
      %s363 = sphi 0, %s361
      %s364 = sphi 0, %s363
      %s378 = sphi 0, %s364
      %s382 = sphi 0, %s382
      %s384 = sphi 0, %s382
      %s385 = sphi 0, %s384
      %s399 = sphi 0, %s385
      %s403 = sphi 0, %s403
      %s405 = sphi 0, %s403
      %s406 = sphi 0, %s405
      %s420 = sphi 0, %s406
      %s426 = sphi 0, %s428
      %s429 = sphi 0, %s426
      %s430 = sphi 0, %s429
      %s446 = sphi 0, %s430
    $region4: #{tpu_custom_call.1} parent=1 // loop_header_branch
      %36 = sbr.rel (%p34) target = $region8
    $region5: #{tpu_custom_call.1} parent=1 // loop_body
      %s38 = ssub.s32 %s33, 1
      %s39 = ssub.s32 %s33, 2
      %s40 = sadd.s32 %s33, 1
      %s41 = ssub.s32 %s33, %s40
      %p42 = scmp.eq.s32.totalorder %s41, 0
      %s44 = sadd.s32 %s43, 1
      %s45 = scalar_select %p42, %s43, %s44
      %p48 = pneg %p42
      %p49 = scmp.eq.s32.totalorder %s33, 1
      %p50 = por %p48, %p49
      %p51 = scmp.ne.s32.totalorder %s43, %s46
      %p52 = scmp.eq.s32.totalorder %s33, 0
      %p53 = por %p51, %p52
      %p54 = scmp.ne.s32.totalorder %s43, %s46
      %p55 = scmp.eq.s32.totalorder %s38, 1
      %p56 = por %p54, %p55
      %p57 = scmp.ne.s32.totalorder %s46, %s47
      %p58 = scmp.eq.s32.totalorder %s38, 0
      %p59 = por %p57, %p58
      %p60 = scmp.ne.s32.totalorder %s46, %s47
      %p61 = scmp.eq.s32.totalorder %s39, 1
      %p62 = por %p60, %p61
      %p64 = scmp.ne.s32.totalorder %s47, %s63
      %p65 = scmp.eq.s32.totalorder %s39, 0
      %p66 = por %p64, %p65
      %s68 = sadd.s32 %s67, 1
      %p71 = scmp.eq.s32.totalorder %s33, 1
      %p72 = scmp.ne.s32.totalorder %s67, %s69
      %p73 = scmp.eq.s32.totalorder %s33, 0
      %p74 = por %p72, %p73
      %p75 = scmp.ne.s32.totalorder %s67, %s69
      %p76 = scmp.eq.s32.totalorder %s38, 1
      %p77 = por %p75, %p76
      %p78 = scmp.ne.s32.totalorder %s69, %s70
      %p79 = scmp.eq.s32.totalorder %s38, 0
      %p80 = por %p78, %p79
      %p81 = scmp.ne.s32.totalorder %s69, %s70
      %p82 = scmp.eq.s32.totalorder %s39, 1
      %p83 = por %p81, %p82
      %p85 = scmp.ne.s32.totalorder %s70, %s84
      %p86 = scmp.eq.s32.totalorder %s39, 0
      %p87 = por %p85, %p86
      %s89 = sadd.s32 %s88, 1
      %p92 = scmp.eq.s32.totalorder %s33, 1
      %p93 = scmp.ne.s32.totalorder %s88, %s90
      %p94 = scmp.eq.s32.totalorder %s33, 0
      %p95 = por %p93, %p94
      %p96 = scmp.ne.s32.totalorder %s88, %s90
      %p97 = scmp.eq.s32.totalorder %s38, 1
      %p98 = por %p96, %p97
      %p99 = scmp.ne.s32.totalorder %s90, %s91
      %p100 = scmp.eq.s32.totalorder %s38, 0
      %p101 = por %p99, %p100
      %p102 = scmp.ne.s32.totalorder %s90, %s91
      %p103 = scmp.eq.s32.totalorder %s39, 1
      %p104 = por %p102, %p103
      %p106 = scmp.ne.s32.totalorder %s91, %s105
      %p107 = scmp.eq.s32.totalorder %s39, 0
      %p108 = por %p106, %p107
      %s110 = sadd.s32 %s109, 1
      %p113 = scmp.eq.s32.totalorder %s33, 1
      %p114 = scmp.ne.s32.totalorder %s109, %s111
      %p115 = scmp.eq.s32.totalorder %s33, 0
      %p116 = por %p114, %p115
      %p117 = scmp.ne.s32.totalorder %s109, %s111
      %p118 = scmp.eq.s32.totalorder %s38, 1
      %p119 = por %p117, %p118
      %p120 = scmp.ne.s32.totalorder %s111, %s112
      %p121 = scmp.eq.s32.totalorder %s38, 0
      %p122 = por %p120, %p121
      %p123 = scmp.ne.s32.totalorder %s111, %s112
      %p124 = scmp.eq.s32.totalorder %s39, 1
      %p125 = por %p123, %p124
      %p127 = scmp.ne.s32.totalorder %s112, %s126
      %p128 = scmp.eq.s32.totalorder %s39, 0
      %p129 = por %p127, %p128
      %s131 = sadd.s32 %s130, 1
      %p134 = scmp.eq.s32.totalorder %s33, 1
      %p135 = scmp.ne.s32.totalorder %s130, %s132
      %p136 = scmp.eq.s32.totalorder %s33, 0
      %p137 = por %p135, %p136
      %p138 = scmp.ne.s32.totalorder %s130, %s132
      %p139 = scmp.eq.s32.totalorder %s38, 1
      %p140 = por %p138, %p139
      %p141 = scmp.ne.s32.totalorder %s132, %s133
      %p142 = scmp.eq.s32.totalorder %s38, 0
      %p143 = por %p141, %p142
      %p144 = scmp.ne.s32.totalorder %s132, %s133
      %p145 = scmp.eq.s32.totalorder %s39, 1
      %p146 = por %p144, %p145
      %p148 = scmp.ne.s32.totalorder %s133, %s147
      %p149 = scmp.eq.s32.totalorder %s39, 0
      %p150 = por %p148, %p149
      %s152 = sadd.s32 %s151, 1
      %p155 = scmp.eq.s32.totalorder %s33, 1
      %p156 = scmp.ne.s32.totalorder %s151, %s153
      %p157 = scmp.eq.s32.totalorder %s33, 0
      %p158 = por %p156, %p157
      %p159 = scmp.ne.s32.totalorder %s151, %s153
      %p160 = scmp.eq.s32.totalorder %s38, 1
      %p161 = por %p159, %p160
      %p162 = scmp.ne.s32.totalorder %s153, %s154
      %p163 = scmp.eq.s32.totalorder %s38, 0
      %p164 = por %p162, %p163
      %p165 = scmp.ne.s32.totalorder %s153, %s154
      %p166 = scmp.eq.s32.totalorder %s39, 1
      %p167 = por %p165, %p166
      %p169 = scmp.ne.s32.totalorder %s154, %s168
      %p170 = scmp.eq.s32.totalorder %s39, 0
      %p171 = por %p169, %p170
      %s173 = sadd.s32 %s172, 1
      %p176 = scmp.eq.s32.totalorder %s33, 1
      %p177 = scmp.ne.s32.totalorder %s172, %s174
      %p178 = scmp.eq.s32.totalorder %s33, 0
      %p179 = por %p177, %p178
      %p180 = scmp.ne.s32.totalorder %s172, %s174
      %p181 = scmp.eq.s32.totalorder %s38, 1
      %p182 = por %p180, %p181
      %p183 = scmp.ne.s32.totalorder %s174, %s175
      %p184 = scmp.eq.s32.totalorder %s38, 0
      %p185 = por %p183, %p184
      %p186 = scmp.ne.s32.totalorder %s174, %s175
      %p187 = scmp.eq.s32.totalorder %s39, 1
      %p188 = por %p186, %p187
      %p190 = scmp.ne.s32.totalorder %s175, %s189
      %p191 = scmp.eq.s32.totalorder %s39, 0
      %p192 = por %p190, %p191
      %s194 = sadd.s32 %s193, 1
      %p197 = scmp.eq.s32.totalorder %s33, 1
      %p198 = scmp.ne.s32.totalorder %s193, %s195
      %p199 = scmp.eq.s32.totalorder %s33, 0
      %p200 = por %p198, %p199
      %p201 = scmp.ne.s32.totalorder %s193, %s195
      %p202 = scmp.eq.s32.totalorder %s38, 1
      %p203 = por %p201, %p202
      %p204 = scmp.ne.s32.totalorder %s195, %s196
      %p205 = scmp.eq.s32.totalorder %s38, 0
      %p206 = por %p204, %p205
      %p207 = scmp.ne.s32.totalorder %s195, %s196
      %p208 = scmp.eq.s32.totalorder %s39, 1
      %p209 = por %p207, %p208
      %p211 = scmp.ne.s32.totalorder %s196, %s210
      %p212 = scmp.eq.s32.totalorder %s39, 0
      %p213 = por %p211, %p212
      %s215 = sadd.s32 %s214, 1
      %p218 = scmp.eq.s32.totalorder %s33, 1
      %p219 = scmp.ne.s32.totalorder %s214, %s216
      %p220 = scmp.eq.s32.totalorder %s33, 0
      %p221 = por %p219, %p220
      %p222 = scmp.ne.s32.totalorder %s214, %s216
      %p223 = scmp.eq.s32.totalorder %s38, 1
      %p224 = por %p222, %p223
      %p225 = scmp.ne.s32.totalorder %s216, %s217
      %p226 = scmp.eq.s32.totalorder %s38, 0
      %p227 = por %p225, %p226
      %p228 = scmp.ne.s32.totalorder %s216, %s217
      %p229 = scmp.eq.s32.totalorder %s39, 1
      %p230 = por %p228, %p229
      %p232 = scmp.ne.s32.totalorder %s217, %s231
      %p233 = scmp.eq.s32.totalorder %s39, 0
      %p234 = por %p232, %p233
      %s236 = sadd.s32 %s235, 1
      %p239 = scmp.eq.s32.totalorder %s33, 1
      %p240 = scmp.ne.s32.totalorder %s235, %s237
      %p241 = scmp.eq.s32.totalorder %s33, 0
      %p242 = por %p240, %p241
      %p243 = scmp.ne.s32.totalorder %s235, %s237
      %p244 = scmp.eq.s32.totalorder %s38, 1
      %p245 = por %p243, %p244
      %p246 = scmp.ne.s32.totalorder %s237, %s238
      %p247 = scmp.eq.s32.totalorder %s38, 0
      %p248 = por %p246, %p247
      %p249 = scmp.ne.s32.totalorder %s237, %s238
      %p250 = scmp.eq.s32.totalorder %s39, 1
      %p251 = por %p249, %p250
      %p253 = scmp.ne.s32.totalorder %s238, %s252
      %p254 = scmp.eq.s32.totalorder %s39, 0
      %p255 = por %p253, %p254
      %s257 = sadd.s32 %s256, 1
      %p260 = scmp.eq.s32.totalorder %s33, 1
      %p261 = scmp.ne.s32.totalorder %s256, %s258
      %p262 = scmp.eq.s32.totalorder %s33, 0
      %p263 = por %p261, %p262
      %p264 = scmp.ne.s32.totalorder %s256, %s258
      %p265 = scmp.eq.s32.totalorder %s38, 1
      %p266 = por %p264, %p265
      %p267 = scmp.ne.s32.totalorder %s258, %s259
      %p268 = scmp.eq.s32.totalorder %s38, 0
      %p269 = por %p267, %p268
      %p270 = scmp.ne.s32.totalorder %s258, %s259
      %p271 = scmp.eq.s32.totalorder %s39, 1
      %p272 = por %p270, %p271
      %p274 = scmp.ne.s32.totalorder %s259, %s273
      %p275 = scmp.eq.s32.totalorder %s39, 0
      %p276 = por %p274, %p275
      %s278 = sadd.s32 %s277, 1
      %p281 = scmp.eq.s32.totalorder %s33, 1
      %p282 = scmp.ne.s32.totalorder %s277, %s279
      %p283 = scmp.eq.s32.totalorder %s33, 0
      %p284 = por %p282, %p283
      %p285 = scmp.ne.s32.totalorder %s277, %s279
      %p286 = scmp.eq.s32.totalorder %s38, 1
      %p287 = por %p285, %p286
      %p288 = scmp.ne.s32.totalorder %s279, %s280
      %p289 = scmp.eq.s32.totalorder %s38, 0
      %p290 = por %p288, %p289
      %p291 = scmp.ne.s32.totalorder %s279, %s280
      %p292 = scmp.eq.s32.totalorder %s39, 1
      %p293 = por %p291, %p292
      %p295 = scmp.ne.s32.totalorder %s280, %s294
      %p296 = scmp.eq.s32.totalorder %s39, 0
      %p297 = por %p295, %p296
      %s299 = sadd.s32 %s298, 1
      %p302 = scmp.eq.s32.totalorder %s33, 1
      %p303 = scmp.ne.s32.totalorder %s298, %s300
      %p304 = scmp.eq.s32.totalorder %s33, 0
      %p305 = por %p303, %p304
      %p306 = scmp.ne.s32.totalorder %s298, %s300
      %p307 = scmp.eq.s32.totalorder %s38, 1
      %p308 = por %p306, %p307
      %p309 = scmp.ne.s32.totalorder %s300, %s301
      %p310 = scmp.eq.s32.totalorder %s38, 0
      %p311 = por %p309, %p310
      %p312 = scmp.ne.s32.totalorder %s300, %s301
      %p313 = scmp.eq.s32.totalorder %s39, 1
      %p314 = por %p312, %p313
      %p316 = scmp.ne.s32.totalorder %s301, %s315
      %p317 = scmp.eq.s32.totalorder %s39, 0
      %p318 = por %p316, %p317
      %s320 = sadd.s32 %s319, 1
      %p323 = scmp.eq.s32.totalorder %s33, 1
      %p324 = scmp.ne.s32.totalorder %s319, %s321
      %p325 = scmp.eq.s32.totalorder %s33, 0
      %p326 = por %p324, %p325
      %p327 = scmp.ne.s32.totalorder %s319, %s321
      %p328 = scmp.eq.s32.totalorder %s38, 1
      %p329 = por %p327, %p328
      %p330 = scmp.ne.s32.totalorder %s321, %s322
      %p331 = scmp.eq.s32.totalorder %s38, 0
      %p332 = por %p330, %p331
      %p333 = scmp.ne.s32.totalorder %s321, %s322
      %p334 = scmp.eq.s32.totalorder %s39, 1
      %p335 = por %p333, %p334
      %p337 = scmp.ne.s32.totalorder %s322, %s336
      %p338 = scmp.eq.s32.totalorder %s39, 0
      %p339 = por %p337, %p338
      %s341 = sadd.s32 %s340, 1
      %p344 = scmp.eq.s32.totalorder %s33, 1
      %p345 = scmp.ne.s32.totalorder %s340, %s342
      %p346 = scmp.eq.s32.totalorder %s33, 0
      %p347 = por %p345, %p346
      %p348 = scmp.ne.s32.totalorder %s340, %s342
      %p349 = scmp.eq.s32.totalorder %s38, 1
      %p350 = por %p348, %p349
      %p351 = scmp.ne.s32.totalorder %s342, %s343
      %p352 = scmp.eq.s32.totalorder %s38, 0
      %p353 = por %p351, %p352
      %p354 = scmp.ne.s32.totalorder %s342, %s343
      %p355 = scmp.eq.s32.totalorder %s39, 1
      %p356 = por %p354, %p355
      %p358 = scmp.ne.s32.totalorder %s343, %s357
      %p359 = scmp.eq.s32.totalorder %s39, 0
      %p360 = por %p358, %p359
      %s362 = sadd.s32 %s361, 1
      %p365 = scmp.eq.s32.totalorder %s33, 1
      %p366 = scmp.ne.s32.totalorder %s361, %s363
      %p367 = scmp.eq.s32.totalorder %s33, 0
      %p368 = por %p366, %p367
      %p369 = scmp.ne.s32.totalorder %s361, %s363
      %p370 = scmp.eq.s32.totalorder %s38, 1
      %p371 = por %p369, %p370
      %p372 = scmp.ne.s32.totalorder %s363, %s364
      %p373 = scmp.eq.s32.totalorder %s38, 0
      %p374 = por %p372, %p373
      %p375 = scmp.ne.s32.totalorder %s363, %s364
      %p376 = scmp.eq.s32.totalorder %s39, 1
      %p377 = por %p375, %p376
      %p379 = scmp.ne.s32.totalorder %s364, %s378
      %p380 = scmp.eq.s32.totalorder %s39, 0
      %p381 = por %p379, %p380
      %s383 = sadd.s32 %s382, 1
      %p386 = scmp.eq.s32.totalorder %s33, 1
      %p387 = scmp.ne.s32.totalorder %s382, %s384
      %p388 = scmp.eq.s32.totalorder %s33, 0
      %p389 = por %p387, %p388
      %p390 = scmp.ne.s32.totalorder %s382, %s384
      %p391 = scmp.eq.s32.totalorder %s38, 1
      %p392 = por %p390, %p391
      %p393 = scmp.ne.s32.totalorder %s384, %s385
      %p394 = scmp.eq.s32.totalorder %s38, 0
      %p395 = por %p393, %p394
      %p396 = scmp.ne.s32.totalorder %s384, %s385
      %p397 = scmp.eq.s32.totalorder %s39, 1
      %p398 = por %p396, %p397
      %p400 = scmp.ne.s32.totalorder %s385, %s399
      %p401 = scmp.eq.s32.totalorder %s39, 0
      %p402 = por %p400, %p401
      %s404 = sadd.s32 %s403, 1
      %p407 = scmp.eq.s32.totalorder %s33, 1
      %p408 = scmp.ne.s32.totalorder %s403, %s405
      %p409 = scmp.eq.s32.totalorder %s33, 0
      %p410 = por %p408, %p409
      %p411 = scmp.ne.s32.totalorder %s403, %s405
      %p412 = scmp.eq.s32.totalorder %s38, 1
      %p413 = por %p411, %p412
      %p414 = scmp.ne.s32.totalorder %s405, %s406
      %p415 = scmp.eq.s32.totalorder %s38, 0
      %p416 = por %p414, %p415
      %p417 = scmp.ne.s32.totalorder %s405, %s406
      %p418 = scmp.eq.s32.totalorder %s39, 1
      %p419 = por %p417, %p418
      %p421 = scmp.ne.s32.totalorder %s406, %s420
      %p422 = scmp.eq.s32.totalorder %s39, 0
      %p423 = por %p421, %p422
      %s424 = ssub.s32 %s33, %s40
      %p425 = scmp.eq.s32.totalorder %s424, 0
      %s427 = sadd.s32 %s426, 1
      %s428 = scalar_select %p425, %s426, %s427
      %p431 = pneg %p425
      %p432 = scmp.eq.s32.totalorder %s33, 1
      %p433 = por %p431, %p432
      %p434 = scmp.ne.s32.totalorder %s426, %s429
      %p435 = scmp.eq.s32.totalorder %s33, 0
      %p436 = por %p434, %p435
      %p437 = scmp.ne.s32.totalorder %s426, %s429
      %p438 = scmp.eq.s32.totalorder %s38, 1
      %p439 = por %p437, %p438
      %p440 = scmp.ne.s32.totalorder %s429, %s430
      %p441 = scmp.eq.s32.totalorder %s38, 0
      %p442 = por %p440, %p441
      %p443 = scmp.ne.s32.totalorder %s429, %s430
      %p444 = scmp.eq.s32.totalorder %s39, 1
      %p445 = por %p443, %p444
      %p447 = scmp.ne.s32.totalorder %s430, %s446
      %p448 = scmp.eq.s32.totalorder %s39, 0
      %p449 = por %p447, %p448
      %p450 = scmp.le.s32.totalorder 1, %s33
      %p451 = scmp.lt.s32.totalorder %s33, 3
      %p452 = pnand %p450, %p451
      %p453 = pneg %p452
      // Predicated region
      $region9: #{tpu_custom_call.1} parent=5 // pred_check
        _
      $region10: #{tpu_custom_call.1} parent=5 // pred_check_branch
        %455 = sbr.rel (%p452) target = $region12
      $region11: #{tpu_custom_call.1} parent=5 // pred_region
        %s456 = ssub.s32 %s33, 1
        // Predicated region
        $region13: #{tpu_custom_call.1} parent=11 // pred_check
          %p457 = pneg %p80
        $region14: #{tpu_custom_call.1} parent=11 // pred_check_branch
          %459 = sbr.rel (%p457) target = $region16
        $region15: #{tpu_custom_call.1} parent=11 // pred_region
          %461 = vsyncadd [#allocation3], 0
          %s462 = sshll.u32 %s1, 4
          %s463 = int_to_ptr.hbm [resolvable:$true] %s462
          %s464 = sshll.u32 [#allocation2], 4
          %s465 = int_to_ptr.vmem [resolvable:$true] %s464
          %470 = dma.hbm_to_vmem [thread:$0]  %s463, 256, %s465, [#allocation3], 128, 128, 8
        $region16: #{tpu_custom_call.1} parent=11 // pred_fallthru
          _
        // Predicated region
        $region17: #{tpu_custom_call.1} parent=11 // pred_check
          %p471 = pneg %p101
        $region18: #{tpu_custom_call.1} parent=11 // pred_check_branch
          %473 = sbr.rel (%p471) target = $region20
        $region19: #{tpu_custom_call.1} parent=11 // pred_region
          %475 = vsyncadd [#allocation6], 0
          %s477 = sshll.u32 %s2, 4
          %s478 = int_to_ptr.hbm [resolvable:$true] %s477
          %s479 = sshll.u32 [#allocation5], 4
          %s480 = int_to_ptr.vmem [resolvable:$true] %s479
          %482 = dma.hbm_to_vmem [thread:$0]  %s478, 128, %s480, [#allocation6]
        $region20: #{tpu_custom_call.1} parent=11 // pred_fallthru
          _
        // Predicated region
        $region21: #{tpu_custom_call.1} parent=11 // pred_check
          %p483 = pneg %p122
        $region22: #{tpu_custom_call.1} parent=11 // pred_check_branch
          %485 = sbr.rel (%p483) target = $region24
        $region23: #{tpu_custom_call.1} parent=11 // pred_region
          %487 = vsyncadd [#allocation6], 0
          %s489 = sshll.u32 %s3, 4
          %s490 = int_to_ptr.hbm [resolvable:$true] %s489
          %s491 = sshll.u32 [#allocation7], 4
          %s492 = int_to_ptr.vmem [resolvable:$true] %s491
          %494 = dma.hbm_to_vmem [thread:$0]  %s490, 16, %s492, [#allocation6]
        $region24: #{tpu_custom_call.1} parent=11 // pred_fallthru
          _
        // Predicated region
        $region25: #{tpu_custom_call.1} parent=11 // pred_check
          %p495 = pneg %p143
        $region26: #{tpu_custom_call.1} parent=11 // pred_check_branch
          %497 = sbr.rel (%p495) target = $region28
        $region27: #{tpu_custom_call.1} parent=11 // pred_region
          _
        $region28: #{tpu_custom_call.1} parent=11 // pred_fallthru
          _
        // Predicated region
        $region29: #{tpu_custom_call.1} parent=11 // pred_check
          %p498 = pneg %p164
        $region30: #{tpu_custom_call.1} parent=11 // pred_check_branch
          %500 = sbr.rel (%p498) target = $region32
        $region31: #{tpu_custom_call.1} parent=11 // pred_region
          %502 = vsyncadd [#allocation9], 0
          %s504 = sshll.u32 %s5, 4
          %s505 = int_to_ptr.hbm [resolvable:$true] %s504
          %s506 = sshll.u32 [#allocation8], 4
          %s507 = int_to_ptr.vmem [resolvable:$true] %s506
          %509 = dma.hbm_to_vmem [thread:$0]  %s505, 16, %s507, [#allocation9]
        $region32: #{tpu_custom_call.1} parent=11 // pred_fallthru
          _
        // Predicated region
        $region33: #{tpu_custom_call.1} parent=11 // pred_check
          %p510 = pneg %p185
        $region34: #{tpu_custom_call.1} parent=11 // pred_check_branch
          %512 = sbr.rel (%p510) target = $region36
        $region35: #{tpu_custom_call.1} parent=11 // pred_region
          _
        $region36: #{tpu_custom_call.1} parent=11 // pred_fallthru
          _
        // Predicated region
        $region37: #{tpu_custom_call.1} parent=11 // pred_check
          %p513 = pneg %p206
        $region38: #{tpu_custom_call.1} parent=11 // pred_check_branch
          %515 = sbr.rel (%p513) target = $region40
        $region39: #{tpu_custom_call.1} parent=11 // pred_region
          %517 = vsyncadd [#allocation9], 0
          %s518 = sshll.u32 %s7, 4
          %s519 = int_to_ptr.hbm [resolvable:$true] %s518
          %s520 = sshll.u32 [#allocation10], 4
          %s521 = int_to_ptr.vmem [resolvable:$true] %s520
          %526 = dma.hbm_to_vmem [thread:$0]  %s519, 18432, %s521, [#allocation9], 1152, 1152, 72
        $region40: #{tpu_custom_call.1} parent=11 // pred_fallthru
          _
        // Predicated region
        $region41: #{tpu_custom_call.1} parent=11 // pred_check
          %p527 = pneg %p227
        $region42: #{tpu_custom_call.1} parent=11 // pred_check_branch
          %529 = sbr.rel (%p527) target = $region44
        $region43: #{tpu_custom_call.1} parent=11 // pred_region
          %531 = vsyncadd [#allocation12], 0
          %s532 = sshll.u32 %s8, 4
          %s533 = int_to_ptr.hbm [resolvable:$true] %s532
          %s534 = sshll.u32 [#allocation11], 4
          %s535 = int_to_ptr.vmem [resolvable:$true] %s534
          %540 = dma.hbm_to_vmem [thread:$0]  %s533, 4096, %s535, [#allocation12], 256, 256, 16
        $region44: #{tpu_custom_call.1} parent=11 // pred_fallthru
          _
        // Predicated region
        $region45: #{tpu_custom_call.1} parent=11 // pred_check
          %p541 = pneg %p248
        $region46: #{tpu_custom_call.1} parent=11 // pred_check_branch
          %543 = sbr.rel (%p541) target = $region48
        $region47: #{tpu_custom_call.1} parent=11 // pred_region
          %545 = vsyncadd [#allocation12], 0
          %s546 = sshll.u32 %s9, 4
          %s547 = int_to_ptr.hbm [resolvable:$true] %s546
          %s548 = sshll.u32 [#allocation13], 4
          %s549 = int_to_ptr.vmem [resolvable:$true] %s548
          %554 = dma.hbm_to_vmem [thread:$0]  %s547, 2048, %s549, [#allocation12], 128, 128, 8
        $region48: #{tpu_custom_call.1} parent=11 // pred_fallthru
          _
        // Predicated region
        $region49: #{tpu_custom_call.1} parent=11 // pred_check
          %p555 = pneg %p269
        $region50: #{tpu_custom_call.1} parent=11 // pred_check_branch
          %557 = sbr.rel (%p555) target = $region52
        $region51: #{tpu_custom_call.1} parent=11 // pred_region
          %559 = vsyncadd [#allocation15], 0
          %s561 = sshll.u32 %s10, 4
          %s562 = int_to_ptr.hbm [resolvable:$true] %s561
          %s563 = sshll.u32 [#allocation14], 4
          %s564 = int_to_ptr.vmem [resolvable:$true] %s563
          %566 = dma.hbm_to_vmem [thread:$0]  %s562, 32, %s564, [#allocation15]
        $region52: #{tpu_custom_call.1} parent=11 // pred_fallthru
          _
        // Predicated region
        $region53: #{tpu_custom_call.1} parent=11 // pred_check
          %p567 = pneg %p290
        $region54: #{tpu_custom_call.1} parent=11 // pred_check_branch
          %569 = sbr.rel (%p567) target = $region56
        $region55: #{tpu_custom_call.1} parent=11 // pred_region
          %571 = vsyncadd [#allocation15], 0
          %s573 = sshll.u32 %s11, 4
          %s574 = int_to_ptr.hbm [resolvable:$true] %s573
          %s575 = sshll.u32 [#allocation16], 4
          %s576 = int_to_ptr.vmem [resolvable:$true] %s575
          %578 = dma.hbm_to_vmem [thread:$0]  %s574, 16, %s576, [#allocation15]
        $region56: #{tpu_custom_call.1} parent=11 // pred_fallthru
          _
        // Predicated region
        $region57: #{tpu_custom_call.1} parent=11 // pred_check
          %p579 = pneg %p311
        $region58: #{tpu_custom_call.1} parent=11 // pred_check_branch
          %581 = sbr.rel (%p579) target = $region60
        $region59: #{tpu_custom_call.1} parent=11 // pred_region
          %583 = vsyncadd [#allocation18], 0
          %s584 = sshll.u32 %s12, 4
          %s585 = int_to_ptr.hbm [resolvable:$true] %s584
          %s586 = sshll.u32 [#allocation17], 4
          %s587 = int_to_ptr.vmem [resolvable:$true] %s586
          %592 = dma.hbm_to_vmem [thread:$0]  %s585, 2048, %s587, [#allocation18], 128, 128, 8
        $region60: #{tpu_custom_call.1} parent=11 // pred_fallthru
          _
        // Predicated region
        $region61: #{tpu_custom_call.1} parent=11 // pred_check
          %p593 = pneg %p332
        $region62: #{tpu_custom_call.1} parent=11 // pred_check_branch
          %595 = sbr.rel (%p593) target = $region64
        $region63: #{tpu_custom_call.1} parent=11 // pred_region
          _
        $region64: #{tpu_custom_call.1} parent=11 // pred_fallthru
          _
        // Predicated region
        $region65: #{tpu_custom_call.1} parent=11 // pred_check
          %p596 = pneg %p353
        $region66: #{tpu_custom_call.1} parent=11 // pred_check_branch
          %598 = sbr.rel (%p596) target = $region68
        $region67: #{tpu_custom_call.1} parent=11 // pred_region
          _
        $region68: #{tpu_custom_call.1} parent=11 // pred_fallthru
          _
        // Predicated region
        $region69: #{tpu_custom_call.1} parent=11 // pred_check
          %p599 = pneg %p374
        $region70: #{tpu_custom_call.1} parent=11 // pred_check_branch
          %601 = sbr.rel (%p599) target = $region72
        $region71: #{tpu_custom_call.1} parent=11 // pred_region
          _
        $region72: #{tpu_custom_call.1} parent=11 // pred_fallthru
          _
        // Predicated region
        $region73: #{tpu_custom_call.1} parent=11 // pred_check
          %p602 = pneg %p395
        $region74: #{tpu_custom_call.1} parent=11 // pred_check_branch
          %604 = sbr.rel (%p602) target = $region76
        $region75: #{tpu_custom_call.1} parent=11 // pred_region
          _
        $region76: #{tpu_custom_call.1} parent=11 // pred_fallthru
          _
        // Predicated region
        $region77: #{tpu_custom_call.1} parent=11 // pred_check
          %p605 = pneg %p416
        $region78: #{tpu_custom_call.1} parent=11 // pred_check_branch
          %607 = sbr.rel (%p605) target = $region80
        $region79: #{tpu_custom_call.1} parent=11 // pred_region
          _
        $region80: #{tpu_custom_call.1} parent=11 // pred_fallthru
          _
      $region12: #{tpu_custom_call.1} parent=5 // pred_fallthru
        _
      %p608 = scmp.lt.s32.totalorder %s33, 2
      // Predicated region
      $region81: #{tpu_custom_call.1} parent=5 // pred_check
        %p609 = pneg %p608
      $region82: #{tpu_custom_call.1} parent=5 // pred_check_branch
        %611 = sbr.rel (%p609) target = $region84
      $region83: #{tpu_custom_call.1} parent=5 // pred_region
        // Predicated region
        $region85: #{tpu_custom_call.1} parent=83 // pred_check
          %p612 = pneg %p53
        $region86: #{tpu_custom_call.1} parent=83 // pred_check_branch
          %614 = sbr.rel (%p612) target = $region88
        $region87: #{tpu_custom_call.1} parent=83 // pred_region
          %p615 = scmp.lt.s32.totalorder %s33, 1
          %s616 = scalar_select %p615, %s33, 1
          %s617 = smul.addr %s616, 2
          %s618 = smul.addr %s617, 8
          %s619 = scalar_lea.vmem %s0, %s618
        $region88: #{tpu_custom_call.1} parent=83 // pred_fallthru
          _
      $region84: #{tpu_custom_call.1} parent=5 // pred_fallthru
        _
      %p620 = scmp.le.s32.totalorder 1, %s33
      %p621 = scmp.lt.s32.totalorder %s33, 3
      %p622 = pnand %p620, %p621
      %p623 = pneg %p622
      // Predicated region
      $region89: #{tpu_custom_call.1} parent=5 // pred_check
        _
      $region90: #{tpu_custom_call.1} parent=5 // pred_check_branch
        %625 = sbr.rel (%p622) target = $region92
      $region91: #{tpu_custom_call.1} parent=5 // pred_region
        %s626 = ssub.s32 %s33, 1
        // Predicated region
        $region93: #{tpu_custom_call.1} parent=91 // pred_check
          %p627 = pneg %p80
        $region94: #{tpu_custom_call.1} parent=91 // pred_check_branch
          %629 = sbr.rel (%p627) target = $region96
        $region95: #{tpu_custom_call.1} parent=91 // pred_region
          %631 = dma.done [#allocation3], 256
        $region96: #{tpu_custom_call.1} parent=91 // pred_fallthru
          _
        // Predicated region
        $region97: #{tpu_custom_call.1} parent=91 // pred_check
          %p632 = pneg %p101
        $region98: #{tpu_custom_call.1} parent=91 // pred_check_branch
          %634 = sbr.rel (%p632) target = $region100
        $region99: #{tpu_custom_call.1} parent=91 // pred_region
          %636 = dma.done [#allocation6], 128
        $region100: #{tpu_custom_call.1} parent=91 // pred_fallthru
          _
        // Predicated region
        $region101: #{tpu_custom_call.1} parent=91 // pred_check
          %p637 = pneg %p122
        $region102: #{tpu_custom_call.1} parent=91 // pred_check_branch
          %639 = sbr.rel (%p637) target = $region104
        $region103: #{tpu_custom_call.1} parent=91 // pred_region
          %641 = dma.done [#allocation6], 16
        $region104: #{tpu_custom_call.1} parent=91 // pred_fallthru
          _
        // Predicated region
        $region105: #{tpu_custom_call.1} parent=91 // pred_check
          %p642 = pneg %p164
        $region106: #{tpu_custom_call.1} parent=91 // pred_check_branch
          %644 = sbr.rel (%p642) target = $region108
        $region107: #{tpu_custom_call.1} parent=91 // pred_region
          %646 = dma.done [#allocation9], 16
        $region108: #{tpu_custom_call.1} parent=91 // pred_fallthru
          _
        // Predicated region
        $region109: #{tpu_custom_call.1} parent=91 // pred_check
          %p647 = pneg %p206
        $region110: #{tpu_custom_call.1} parent=91 // pred_check_branch
          %649 = sbr.rel (%p647) target = $region112
        $region111: #{tpu_custom_call.1} parent=91 // pred_region
          %651 = dma.done [#allocation9], 18432
        $region112: #{tpu_custom_call.1} parent=91 // pred_fallthru
          _
        // Predicated region
        $region113: #{tpu_custom_call.1} parent=91 // pred_check
          %p652 = pneg %p227
        $region114: #{tpu_custom_call.1} parent=91 // pred_check_branch
          %654 = sbr.rel (%p652) target = $region116
        $region115: #{tpu_custom_call.1} parent=91 // pred_region
          %656 = dma.done [#allocation12], 4096
        $region116: #{tpu_custom_call.1} parent=91 // pred_fallthru
          _
        // Predicated region
        $region117: #{tpu_custom_call.1} parent=91 // pred_check
          %p657 = pneg %p248
        $region118: #{tpu_custom_call.1} parent=91 // pred_check_branch
          %659 = sbr.rel (%p657) target = $region120
        $region119: #{tpu_custom_call.1} parent=91 // pred_region
          %661 = dma.done [#allocation12], 2048
        $region120: #{tpu_custom_call.1} parent=91 // pred_fallthru
          _
        // Predicated region
        $region121: #{tpu_custom_call.1} parent=91 // pred_check
          %p662 = pneg %p269
        $region122: #{tpu_custom_call.1} parent=91 // pred_check_branch
          %664 = sbr.rel (%p662) target = $region124
        $region123: #{tpu_custom_call.1} parent=91 // pred_region
          %666 = dma.done [#allocation15], 32
        $region124: #{tpu_custom_call.1} parent=91 // pred_fallthru
          _
        // Predicated region
        $region125: #{tpu_custom_call.1} parent=91 // pred_check
          %p667 = pneg %p290
        $region126: #{tpu_custom_call.1} parent=91 // pred_check_branch
          %669 = sbr.rel (%p667) target = $region128
        $region127: #{tpu_custom_call.1} parent=91 // pred_region
          %671 = dma.done [#allocation15], 16
        $region128: #{tpu_custom_call.1} parent=91 // pred_fallthru
          _
        // Predicated region
        $region129: #{tpu_custom_call.1} parent=91 // pred_check
          %p672 = pneg %p311
        $region130: #{tpu_custom_call.1} parent=91 // pred_check_branch
          %674 = sbr.rel (%p672) target = $region132
        $region131: #{tpu_custom_call.1} parent=91 // pred_region
          %676 = dma.done [#allocation18], 2048
        $region132: #{tpu_custom_call.1} parent=91 // pred_fallthru
          _
        %p677 = scmp.lt.s32.totalorder %s38, 1
        %s678 = scalar_select %p677, %s38, 1
        %s679 = smul.addr %s678, 2
        %s680 = smul.addr %s679, 8
        %s681 = scalar_lea.vmem %s0, %s680
        %p682 = pneg %p59
        %p683 = pneg %p56
        %p684 = pneg %p80
        %p685 = pneg %p77
        %p686 = pneg %p101
        %p687 = pneg %p98
        %p688 = pneg %p122
        %p689 = pneg %p119
        %p690 = pneg %p143
        %p691 = pneg %p140
        %p692 = pneg %p164
        %p693 = pneg %p161
        %p694 = pneg %p185
        %p695 = pneg %p182
        %p696 = pneg %p206
        %p697 = pneg %p203
        %p698 = pneg %p227
        %p699 = pneg %p224
        %p700 = pneg %p248
        %p701 = pneg %p245
        %p702 = pneg %p269
        %p703 = pneg %p266
        %p704 = pneg %p290
        %p705 = pneg %p287
        %p706 = pneg %p311
        %p707 = pneg %p308
        %p708 = pneg %p332
        %p709 = pneg %p329
        %p710 = pneg %p353
        %p711 = pneg %p350
        %p712 = pneg %p374
        %p713 = pneg %p371
        %p714 = pneg %p395
        %p715 = pneg %p392
        %p716 = pneg %p416
        %p717 = pneg %p413
        %p718 = pneg %p442
        %p719 = pneg %p439
        %s720 = sand.u32 %s429, 1
        %s721 = scalar_lea.sflag [#allocation4], %s720
        %s722 = sand.u32 %s429, 1
        %s723 = smul.addr %s722, 4
        %s724 = scalar_lea.vmem [#allocation19], %s723
        %p725 = scmp.lt.s32.totalorder %s38, 1
        %s726 = scalar_select %p725, %s38, 1
        %s727 = smul.addr %s726, 2
        %s728 = smul.addr %s727, 8
        %s729 = scalar_lea.vmem %s0, %s728
        %v730 = vld [vmem:[%s729] sm:$0xff]
        %v731 = vld [vmem:[%s729 + $0x8] sm:$0xff]
        %v732 = vld [vmem:[#allocation5] sm:$0xff]
        %v733 = vld [vmem:[#allocation7] sm:$0x1]
        %v735 = vperm.slane %v733, 0
        %vm737 = vcmask 64512
        %v739 = vsel %vm737, %v730, 0
        %v742 = vsel %vm737, %v731, 0
        %744 = vmatpush.msra.mxu0 0.0
        %745 = vmatpush.msra.mxu0 0.0
        %746 = vmatpush.msra.mxu0 0.0
        %747 = vmatpush.msra.mxu0 0.0
        %748 = vmatpush.msra.mxu0 0.0
        %749 = vmatpush.msra.mxu0 0.0
        %750 = vmatpush.msra.mxu0 0.0
        %751 = vmatpush.msra.mxu0 0.0
        %752 = vmatpush.msra.mxu0 0.0
        %753 = vmatpush.msra.mxu0 0.0
        %754 = vmatpush.msra.mxu0 0.0
        %755 = vmatpush.msra.mxu0 0.0
        %756 = vmatpush.msra.mxu0 0.0
        %757 = vmatpush.msra.mxu0 0.0
        %758 = vmatpush.msra.mxu0 0.0
        %759 = vmatpush.msra.mxu0 %v732
        %760 = vmatmul.f32.gmra.mxu0 %v739
        %v761 = vpop.f32.mrf.mxu0
        %v762 = vadd.f32 %v735, %v761
        %763 = vmatmul.f32.gmra.mxu0 %v742
        %v764 = vpop.f32.mrf.mxu0
        %v765 = vadd.f32 %v735, %v764
        %766 = vdwg.mxu0
        %v767 = vmax.f32 %v762, 0.0
        %v768 = vmax.f32 %v765, 0.0
        %v769 = vld [vmem:[#allocation2] sm:$0xff]
        %v770 = vld [vmem:[#allocation2 + $0x8] sm:$0xff]
        %v771 = vld [vmem:[%s4] sm:$0xff]
        %v772 = vld [vmem:[%s4 + $0x8] sm:$0xff]
        %v773 = vld [vmem:[%s4 + $0x10] sm:$0xff]
        %v774 = vld [vmem:[%s4 + $0x18] sm:$0xff]
        %v775 = vld [vmem:[%s4 + $0x20] sm:$0xff]
        %v776 = vld [vmem:[%s4 + $0x28] sm:$0xff]
        %v777 = vld [vmem:[%s4 + $0x30] sm:$0xff]
        %v778 = vld [vmem:[%s4 + $0x38] sm:$0xff]
        %v779 = vld [vmem:[%s4 + $0x40] sm:$0xff]
        %v780 = vld [vmem:[%s4 + $0x48] sm:$0xff]
        %v781 = vld [vmem:[%s4 + $0x50] sm:$0xff]
        %v782 = vld [vmem:[%s4 + $0x58] sm:$0xff]
        %v783 = vld [vmem:[%s4 + $0x60] sm:$0xff]
        %v784 = vld [vmem:[%s4 + $0x68] sm:$0xff]
        %v785 = vld [vmem:[%s4 + $0x70] sm:$0xff]
        %v786 = vld [vmem:[%s4 + $0x78] sm:$0xff]
        %787 = vmatpush.msra.mxu0 %v786
        %788 = vmatpush.msra.mxu0 %v785
        %789 = vmatpush.msra.mxu0 %v784
        %790 = vmatpush.msra.mxu0 %v783
        %791 = vmatpush.msra.mxu0 %v782
        %792 = vmatpush.msra.mxu0 %v781
        %793 = vmatpush.msra.mxu0 %v780
        %794 = vmatpush.msra.mxu0 %v779
        %795 = vmatpush.msra.mxu0 %v778
        %796 = vmatpush.msra.mxu0 %v777
        %797 = vmatpush.msra.mxu0 %v776
        %798 = vmatpush.msra.mxu0 %v775
        %799 = vmatpush.msra.mxu0 %v774
        %800 = vmatpush.msra.mxu0 %v773
        %801 = vmatpush.msra.mxu0 %v772
        %802 = vmatpush.msra.mxu0 %v771
        %803 = vmatmul.f32.gmra.mxu0 %v767
        %v804 = vpop.f32.mrf.mxu0
        %v805 = vadd.f32 0.0, %v804
        %806 = vmatmul.f32.gmra.mxu0 %v768
        %v807 = vpop.f32.mrf.mxu0
        %v808 = vadd.f32 0.0, %v807
        %809 = vdwg.mxu0
        %v810 = vadd.f32 %v769, %v805
        %v811 = vadd.f32 %v770, %v808
        %v812 = vld [vmem:[#allocation8] sm:$0x1]
        %v814 = vperm.slane %v812, 0
        %v816 = vadd.f32 %v810, %v814
        %v817 = vadd.f32 %v811, %v814
        %v818 = vmax.f32 %v816, 0.0
        %v819 = vmax.f32 %v817, 0.0
        %v820 = vld [vmem:[%s6] sm:$0xff]
        %v821 = vld [vmem:[%s6 + $0x8] sm:$0xff]
        %v822 = vld [vmem:[%s6 + $0x10] sm:$0xff]
        %v823 = vld [vmem:[%s6 + $0x18] sm:$0xff]
        %v824 = vld [vmem:[%s6 + $0x20] sm:$0xff]
        %v825 = vld [vmem:[%s6 + $0x28] sm:$0xff]
        %v826 = vld [vmem:[#allocation10] sm:$0xff]
        %v827 = vld [vmem:[#allocation10 + $0x8] sm:$0xff]
        %v828 = vld [vmem:[#allocation10 + $0x10] sm:$0xff]
        %v829 = vld [vmem:[#allocation10 + $0x18] sm:$0xff]
        %v830 = vld [vmem:[#allocation10 + $0x20] sm:$0xff]
        %v831 = vld [vmem:[#allocation10 + $0x28] sm:$0xff]
        %v832 = vld [vmem:[#allocation10 + $0x30] sm:$0xff]
        %v833 = vld [vmem:[#allocation10 + $0x38] sm:$0xff]
        %v834 = vld [vmem:[#allocation10 + $0x40] sm:$0xff]
        %v835 = vld [vmem:[#allocation10 + $0x48] sm:$0xff]
        %v836 = vld [vmem:[#allocation10 + $0x50] sm:$0xff]
        %v837 = vld [vmem:[#allocation10 + $0x58] sm:$0xff]
        %v838 = vld [vmem:[#allocation10 + $0x60] sm:$0xff]
        %v839 = vld [vmem:[#allocation10 + $0x68] sm:$0xff]
        %v840 = vld [vmem:[#allocation10 + $0x70] sm:$0xff]
        %v841 = vld [vmem:[#allocation10 + $0x78] sm:$0xff]
        %v842 = vld [vmem:[#allocation10 + $0x80] sm:$0xff]
        %v843 = vld [vmem:[#allocation10 + $0x88] sm:$0xff]
        %v844 = vld [vmem:[#allocation10 + $0x90] sm:$0xff]
        %v845 = vld [vmem:[#allocation10 + $0x98] sm:$0xff]
        %v846 = vld [vmem:[#allocation10 + $0xa0] sm:$0xff]
        %v847 = vld [vmem:[#allocation10 + $0xa8] sm:$0xff]
        %v848 = vld [vmem:[#allocation10 + $0xb0] sm:$0xff]
        %v849 = vld [vmem:[#allocation10 + $0xb8] sm:$0xff]
        %v850 = vld [vmem:[#allocation10 + $0xc0] sm:$0xff]
        %v851 = vld [vmem:[#allocation10 + $0xc8] sm:$0xff]
        %v852 = vld [vmem:[#allocation10 + $0xd0] sm:$0xff]
        %v853 = vld [vmem:[#allocation10 + $0xd8] sm:$0xff]
        %v854 = vld [vmem:[#allocation10 + $0xe0] sm:$0xff]
        %v855 = vld [vmem:[#allocation10 + $0xe8] sm:$0xff]
        %v856 = vld [vmem:[#allocation10 + $0xf0] sm:$0xff]
        %v857 = vld [vmem:[#allocation10 + $0xf8] sm:$0xff]
        %v858 = vld [vmem:[#allocation10 + $0x100] sm:$0xff]
        %v859 = vld [vmem:[#allocation10 + $0x108] sm:$0xff]
        %v860 = vld [vmem:[#allocation10 + $0x110] sm:$0xff]
        %v861 = vld [vmem:[#allocation10 + $0x118] sm:$0xff]
        %v862 = vld [vmem:[#allocation10 + $0x120] sm:$0xff]
        %v863 = vld [vmem:[#allocation10 + $0x128] sm:$0xff]
        %v864 = vld [vmem:[#allocation10 + $0x130] sm:$0xff]
        %v865 = vld [vmem:[#allocation10 + $0x138] sm:$0xff]
        %v866 = vld [vmem:[#allocation10 + $0x140] sm:$0xff]
        %v867 = vld [vmem:[#allocation10 + $0x148] sm:$0xff]
        %v868 = vld [vmem:[#allocation10 + $0x150] sm:$0xff]
        %v869 = vld [vmem:[#allocation10 + $0x158] sm:$0xff]
        %v870 = vld [vmem:[#allocation10 + $0x160] sm:$0xff]
        %v871 = vld [vmem:[#allocation10 + $0x168] sm:$0xff]
        %v872 = vld [vmem:[#allocation10 + $0x170] sm:$0xff]
        %v873 = vld [vmem:[#allocation10 + $0x178] sm:$0xff]
        %v874 = vld [vmem:[#allocation10 + $0x180] sm:$0xff]
        %v875 = vld [vmem:[#allocation10 + $0x188] sm:$0xff]
        %v876 = vld [vmem:[#allocation10 + $0x190] sm:$0xff]
        %v877 = vld [vmem:[#allocation10 + $0x198] sm:$0xff]
        %v878 = vld [vmem:[#allocation10 + $0x1a0] sm:$0xff]
        %v879 = vld [vmem:[#allocation10 + $0x1a8] sm:$0xff]
        %v880 = vld [vmem:[#allocation10 + $0x1b0] sm:$0xff]
        %v881 = vld [vmem:[#allocation10 + $0x1b8] sm:$0xff]
        %v882 = vld [vmem:[#allocation10 + $0x1c0] sm:$0xff]
        %v883 = vld [vmem:[#allocation10 + $0x1c8] sm:$0xff]
        %v884 = vld [vmem:[#allocation10 + $0x1d0] sm:$0xff]
        %v885 = vld [vmem:[#allocation10 + $0x1d8] sm:$0xff]
        %v886 = vld [vmem:[#allocation10 + $0x1e0] sm:$0xff]
        %v887 = vld [vmem:[#allocation10 + $0x1e8] sm:$0xff]
        %v888 = vld [vmem:[#allocation10 + $0x1f0] sm:$0xff]
        %v889 = vld [vmem:[#allocation10 + $0x1f8] sm:$0xff]
        %v890 = vld [vmem:[#allocation10 + $0x200] sm:$0xff]
        %v891 = vld [vmem:[#allocation10 + $0x208] sm:$0xff]
        %v892 = vld [vmem:[#allocation10 + $0x210] sm:$0xff]
        %v893 = vld [vmem:[#allocation10 + $0x218] sm:$0xff]
        %v894 = vld [vmem:[#allocation10 + $0x220] sm:$0xff]
        %v895 = vld [vmem:[#allocation10 + $0x228] sm:$0xff]
        %v896 = vld [vmem:[#allocation10 + $0x230] sm:$0xff]
        %v897 = vld [vmem:[#allocation10 + $0x238] sm:$0xff]
        %v898 = vld [vmem:[#allocation10 + $0x240] sm:$0xff]
        %v899 = vld [vmem:[#allocation10 + $0x248] sm:$0xff]
        %v900 = vld [vmem:[#allocation10 + $0x250] sm:$0xff]
        %v901 = vld [vmem:[#allocation10 + $0x258] sm:$0xff]
        %v902 = vld [vmem:[#allocation10 + $0x260] sm:$0xff]
        %v903 = vld [vmem:[#allocation10 + $0x268] sm:$0xff]
        %v904 = vld [vmem:[#allocation10 + $0x270] sm:$0xff]
        %v905 = vld [vmem:[#allocation10 + $0x278] sm:$0xff]
        %v906 = vld [vmem:[#allocation10 + $0x280] sm:$0xff]
        %v907 = vld [vmem:[#allocation10 + $0x288] sm:$0xff]
        %v908 = vld [vmem:[#allocation10 + $0x290] sm:$0xff]
        %v909 = vld [vmem:[#allocation10 + $0x298] sm:$0xff]
        %v910 = vld [vmem:[#allocation10 + $0x2a0] sm:$0xff]
        %v911 = vld [vmem:[#allocation10 + $0x2a8] sm:$0xff]
        %v912 = vld [vmem:[#allocation10 + $0x2b0] sm:$0xff]
        %v913 = vld [vmem:[#allocation10 + $0x2b8] sm:$0xff]
        %v914 = vld [vmem:[#allocation10 + $0x2c0] sm:$0xff]
        %v915 = vld [vmem:[#allocation10 + $0x2c8] sm:$0xff]
        %v916 = vld [vmem:[#allocation10 + $0x2d0] sm:$0xff]
        %v917 = vld [vmem:[#allocation10 + $0x2d8] sm:$0xff]
        %v918 = vld [vmem:[#allocation10 + $0x2e0] sm:$0xff]
        %v919 = vld [vmem:[#allocation10 + $0x2e8] sm:$0xff]
        %v920 = vld [vmem:[#allocation10 + $0x2f0] sm:$0xff]
        %v921 = vld [vmem:[#allocation10 + $0x2f8] sm:$0xff]
        %v922 = vld [vmem:[#allocation10 + $0x300] sm:$0xff]
        %v923 = vld [vmem:[#allocation10 + $0x308] sm:$0xff]
        %v924 = vld [vmem:[#allocation10 + $0x310] sm:$0xff]
        %v925 = vld [vmem:[#allocation10 + $0x318] sm:$0xff]
        %v926 = vld [vmem:[#allocation10 + $0x320] sm:$0xff]
        %v927 = vld [vmem:[#allocation10 + $0x328] sm:$0xff]
        %v928 = vld [vmem:[#allocation10 + $0x330] sm:$0xff]
        %v929 = vld [vmem:[#allocation10 + $0x338] sm:$0xff]
        %v930 = vld [vmem:[#allocation10 + $0x340] sm:$0xff]
        %v931 = vld [vmem:[#allocation10 + $0x348] sm:$0xff]
        %v932 = vld [vmem:[#allocation10 + $0x350] sm:$0xff]
        %v933 = vld [vmem:[#allocation10 + $0x358] sm:$0xff]
        %v934 = vld [vmem:[#allocation10 + $0x360] sm:$0xff]
        %v935 = vld [vmem:[#allocation10 + $0x368] sm:$0xff]
        %v936 = vld [vmem:[#allocation10 + $0x370] sm:$0xff]
        %v937 = vld [vmem:[#allocation10 + $0x378] sm:$0xff]
        %v938 = vld [vmem:[#allocation10 + $0x380] sm:$0xff]
        %v939 = vld [vmem:[#allocation10 + $0x388] sm:$0xff]
        %v940 = vld [vmem:[#allocation10 + $0x390] sm:$0xff]
        %v941 = vld [vmem:[#allocation10 + $0x398] sm:$0xff]
        %v942 = vld [vmem:[#allocation10 + $0x3a0] sm:$0xff]
        %v943 = vld [vmem:[#allocation10 + $0x3a8] sm:$0xff]
        %v944 = vld [vmem:[#allocation10 + $0x3b0] sm:$0xff]
        %v945 = vld [vmem:[#allocation10 + $0x3b8] sm:$0xff]
        %v946 = vld [vmem:[#allocation10 + $0x3c0] sm:$0xff]
        %v947 = vld [vmem:[#allocation10 + $0x3c8] sm:$0xff]
        %v948 = vld [vmem:[#allocation10 + $0x3d0] sm:$0xff]
        %v949 = vld [vmem:[#allocation10 + $0x3d8] sm:$0xff]
        %v950 = vld [vmem:[#allocation10 + $0x3e0] sm:$0xff]
        %v951 = vld [vmem:[#allocation10 + $0x3e8] sm:$0xff]
        %v952 = vld [vmem:[#allocation10 + $0x3f0] sm:$0xff]
        %v953 = vld [vmem:[#allocation10 + $0x3f8] sm:$0xff]
        %v954 = vld [vmem:[#allocation10 + $0x400] sm:$0xff]
        %v955 = vld [vmem:[#allocation10 + $0x408] sm:$0xff]
        %v956 = vld [vmem:[#allocation10 + $0x410] sm:$0xff]
        %v957 = vld [vmem:[#allocation10 + $0x418] sm:$0xff]
        %v958 = vld [vmem:[#allocation10 + $0x420] sm:$0xff]
        %v959 = vld [vmem:[#allocation10 + $0x428] sm:$0xff]
        %v960 = vld [vmem:[#allocation10 + $0x430] sm:$0xff]
        %v961 = vld [vmem:[#allocation10 + $0x438] sm:$0xff]
        %v962 = vld [vmem:[#allocation10 + $0x440] sm:$0xff]
        %v963 = vld [vmem:[#allocation10 + $0x448] sm:$0xff]
        %v964 = vld [vmem:[#allocation10 + $0x450] sm:$0xff]
        %v965 = vld [vmem:[#allocation10 + $0x458] sm:$0xff]
        %v966 = vld [vmem:[#allocation10 + $0x460] sm:$0xff]
        %v967 = vld [vmem:[#allocation10 + $0x468] sm:$0xff]
        %v968 = vld [vmem:[#allocation10 + $0x470] sm:$0xff]
        %v969 = vld [vmem:[#allocation10 + $0x478] sm:$0xff]
        %v970 = vld [vmem:[#allocation11] sm:$0xff]
        %v971 = vld [vmem:[#allocation11 + $0x8] sm:$0xff]
        %v972 = vld [vmem:[#allocation11 + $0x10] sm:$0xff]
        %v973 = vld [vmem:[#allocation11 + $0x18] sm:$0xff]
        %v974 = vld [vmem:[#allocation11 + $0x20] sm:$0xff]
        %v975 = vld [vmem:[#allocation11 + $0x28] sm:$0xff]
        %v976 = vld [vmem:[#allocation11 + $0x30] sm:$0xff]
        %v977 = vld [vmem:[#allocation11 + $0x38] sm:$0xff]
        %v978 = vld [vmem:[#allocation11 + $0x40] sm:$0xff]
        %v979 = vld [vmem:[#allocation11 + $0x48] sm:$0xff]
        %v980 = vld [vmem:[#allocation11 + $0x50] sm:$0xff]
        %v981 = vld [vmem:[#allocation11 + $0x58] sm:$0xff]
        %v982 = vld [vmem:[#allocation11 + $0x60] sm:$0xff]
        %v983 = vld [vmem:[#allocation11 + $0x68] sm:$0xff]
        %v984 = vld [vmem:[#allocation11 + $0x70] sm:$0xff]
        %v985 = vld [vmem:[#allocation11 + $0x78] sm:$0xff]
        %v986 = vld [vmem:[#allocation11 + $0x80] sm:$0xff]
        %v987 = vld [vmem:[#allocation11 + $0x88] sm:$0xff]
        %v988 = vld [vmem:[#allocation11 + $0x90] sm:$0xff]
        %v989 = vld [vmem:[#allocation11 + $0x98] sm:$0xff]
        %v990 = vld [vmem:[#allocation11 + $0xa0] sm:$0xff]
        %v991 = vld [vmem:[#allocation11 + $0xa8] sm:$0xff]
        %v992 = vld [vmem:[#allocation11 + $0xb0] sm:$0xff]
        %v993 = vld [vmem:[#allocation11 + $0xb8] sm:$0xff]
        %v994 = vld [vmem:[#allocation11 + $0xc0] sm:$0xff]
        %v995 = vld [vmem:[#allocation11 + $0xc8] sm:$0xff]
        %v996 = vld [vmem:[#allocation11 + $0xd0] sm:$0xff]
        %v997 = vld [vmem:[#allocation11 + $0xd8] sm:$0xff]
        %v998 = vld [vmem:[#allocation11 + $0xe0] sm:$0xff]
        %v999 = vld [vmem:[#allocation11 + $0xe8] sm:$0xff]
        %v1000 = vld [vmem:[#allocation11 + $0xf0] sm:$0xff]
        %v1001 = vld [vmem:[#allocation11 + $0xf8] sm:$0xff]
        %v1002 = vld [vmem:[#allocation13] sm:$0xff]
        %v1003 = vld [vmem:[#allocation13 + $0x8] sm:$0xff]
        %v1004 = vld [vmem:[#allocation13 + $0x10] sm:$0xff]
        %v1005 = vld [vmem:[#allocation13 + $0x18] sm:$0xff]
        %v1006 = vld [vmem:[#allocation13 + $0x20] sm:$0xff]
        %v1007 = vld [vmem:[#allocation13 + $0x28] sm:$0xff]
        %v1008 = vld [vmem:[#allocation13 + $0x30] sm:$0xff]
        %v1009 = vld [vmem:[#allocation13 + $0x38] sm:$0xff]
        %v1010 = vld [vmem:[#allocation13 + $0x40] sm:$0xff]
        %v1011 = vld [vmem:[#allocation13 + $0x48] sm:$0xff]
        %v1012 = vld [vmem:[#allocation13 + $0x50] sm:$0xff]
        %v1013 = vld [vmem:[#allocation13 + $0x58] sm:$0xff]
        %v1014 = vld [vmem:[#allocation13 + $0x60] sm:$0xff]
        %v1015 = vld [vmem:[#allocation13 + $0x68] sm:$0xff]
        %v1016 = vld [vmem:[#allocation13 + $0x70] sm:$0xff]
        %v1017 = vld [vmem:[#allocation13 + $0x78] sm:$0xff]
        %v1018 = vld [vmem:[#allocation14] sm:$0x3]
        %v1019 = vld [vmem:[#allocation16] sm:$0x1]
        %1020 = vmatpush.msra.mxu0 %v961
        %1021 = vmatpush.msra.mxu0 %v952
        %1022 = vmatpush.msra.mxu0 %v943
        %1023 = vmatpush.msra.mxu0 %v934
        %1024 = vmatpush.msra.mxu0 %v925
        %1025 = vmatpush.msra.mxu0 %v916
        %1026 = vmatpush.msra.mxu0 %v907
        %1027 = vmatpush.msra.mxu0 %v898
        %1028 = vmatpush.msra.mxu0 %v889
        %1029 = vmatpush.msra.mxu0 %v880
        %1030 = vmatpush.msra.mxu0 %v871
        %1031 = vmatpush.msra.mxu0 %v862
        %1032 = vmatpush.msra.mxu0 %v853
        %1033 = vmatpush.msra.mxu0 %v844
        %1034 = vmatpush.msra.mxu0 %v835
        %1035 = vmatpush.msra.mxu0 %v826
        %1036 = vmatmul.f32.gmra.mxu0 %v818
        %v1037 = vpop.f32.mrf.mxu0
        %v1038 = vadd.f32 0.0, %v1037
        %1039 = vmatmul.f32.gmra.mxu0 %v819
        %v1040 = vpop.f32.mrf.mxu0
        %v1041 = vadd.f32 0.0, %v1040
        %1042 = vdwg.mxu0
        %1043 = vmatpush.msra.mxu0 %v962
        %1044 = vmatpush.msra.mxu0 %v953
        %1045 = vmatpush.msra.mxu0 %v944
        %1046 = vmatpush.msra.mxu0 %v935
        %1047 = vmatpush.msra.mxu0 %v926
        %1048 = vmatpush.msra.mxu0 %v917
        %1049 = vmatpush.msra.mxu0 %v908
        %1050 = vmatpush.msra.mxu0 %v899
        %1051 = vmatpush.msra.mxu0 %v890
        %1052 = vmatpush.msra.mxu0 %v881
        %1053 = vmatpush.msra.mxu0 %v872
        %1054 = vmatpush.msra.mxu0 %v863
        %1055 = vmatpush.msra.mxu0 %v854
        %1056 = vmatpush.msra.mxu0 %v845
        %1057 = vmatpush.msra.mxu0 %v836
        %1058 = vmatpush.msra.mxu0 %v827
        %1059 = vmatmul.f32.gmra.mxu0 %v818
        %v1060 = vpop.f32.mrf.mxu0
        %v1061 = vadd.f32 0.0, %v1060
        %1062 = vmatmul.f32.gmra.mxu0 %v819
        %v1063 = vpop.f32.mrf.mxu0
        %v1064 = vadd.f32 0.0, %v1063
        %1065 = vdwg.mxu0
        %1066 = vmatpush.msra.mxu0 %v963
        %1067 = vmatpush.msra.mxu0 %v954
        %1068 = vmatpush.msra.mxu0 %v945
        %1069 = vmatpush.msra.mxu0 %v936
        %1070 = vmatpush.msra.mxu0 %v927
        %1071 = vmatpush.msra.mxu0 %v918
        %1072 = vmatpush.msra.mxu0 %v909
        %1073 = vmatpush.msra.mxu0 %v900
        %1074 = vmatpush.msra.mxu0 %v891
        %1075 = vmatpush.msra.mxu0 %v882
        %1076 = vmatpush.msra.mxu0 %v873
        %1077 = vmatpush.msra.mxu0 %v864
        %1078 = vmatpush.msra.mxu0 %v855
        %1079 = vmatpush.msra.mxu0 %v846
        %1080 = vmatpush.msra.mxu0 %v837
        %1081 = vmatpush.msra.mxu0 %v828
        %1082 = vmatmul.f32.gmra.mxu0 %v818
        %v1083 = vpop.f32.mrf.mxu0
        %v1084 = vadd.f32 0.0, %v1083
        %1085 = vmatmul.f32.gmra.mxu0 %v819
        %v1086 = vpop.f32.mrf.mxu0
        %v1087 = vadd.f32 0.0, %v1086
        %1088 = vdwg.mxu0
        %1089 = vmatpush.msra.mxu0 %v964
        %1090 = vmatpush.msra.mxu0 %v955
        %1091 = vmatpush.msra.mxu0 %v946
        %1092 = vmatpush.msra.mxu0 %v937
        %1093 = vmatpush.msra.mxu0 %v928
        %1094 = vmatpush.msra.mxu0 %v919
        %1095 = vmatpush.msra.mxu0 %v910
        %1096 = vmatpush.msra.mxu0 %v901
        %1097 = vmatpush.msra.mxu0 %v892
        %1098 = vmatpush.msra.mxu0 %v883
        %1099 = vmatpush.msra.mxu0 %v874
        %1100 = vmatpush.msra.mxu0 %v865
        %1101 = vmatpush.msra.mxu0 %v856
        %1102 = vmatpush.msra.mxu0 %v847
        %1103 = vmatpush.msra.mxu0 %v838
        %1104 = vmatpush.msra.mxu0 %v829
        %1105 = vmatmul.f32.gmra.mxu0 %v818
        %v1106 = vpop.f32.mrf.mxu0
        %v1107 = vadd.f32 0.0, %v1106
        %1108 = vmatmul.f32.gmra.mxu0 %v819
        %v1109 = vpop.f32.mrf.mxu0
        %v1110 = vadd.f32 0.0, %v1109
        %1111 = vdwg.mxu0
        %1112 = vmatpush.msra.mxu0 %v965
        %1113 = vmatpush.msra.mxu0 %v956
        %1114 = vmatpush.msra.mxu0 %v947
        %1115 = vmatpush.msra.mxu0 %v938
        %1116 = vmatpush.msra.mxu0 %v929
        %1117 = vmatpush.msra.mxu0 %v920
        %1118 = vmatpush.msra.mxu0 %v911
        %1119 = vmatpush.msra.mxu0 %v902
        %1120 = vmatpush.msra.mxu0 %v893
        %1121 = vmatpush.msra.mxu0 %v884
        %1122 = vmatpush.msra.mxu0 %v875
        %1123 = vmatpush.msra.mxu0 %v866
        %1124 = vmatpush.msra.mxu0 %v857
        %1125 = vmatpush.msra.mxu0 %v848
        %1126 = vmatpush.msra.mxu0 %v839
        %1127 = vmatpush.msra.mxu0 %v830
        %1128 = vmatmul.f32.gmra.mxu0 %v818
        %v1129 = vpop.f32.mrf.mxu0
        %v1130 = vadd.f32 0.0, %v1129
        %1131 = vmatmul.f32.gmra.mxu0 %v819
        %v1132 = vpop.f32.mrf.mxu0
        %v1133 = vadd.f32 0.0, %v1132
        %1134 = vdwg.mxu0
        %1135 = vmatpush.msra.mxu0 %v966
        %1136 = vmatpush.msra.mxu0 %v957
        %1137 = vmatpush.msra.mxu0 %v948
        %1138 = vmatpush.msra.mxu0 %v939
        %1139 = vmatpush.msra.mxu0 %v930
        %1140 = vmatpush.msra.mxu0 %v921
        %1141 = vmatpush.msra.mxu0 %v912
        %1142 = vmatpush.msra.mxu0 %v903
        %1143 = vmatpush.msra.mxu0 %v894
        %1144 = vmatpush.msra.mxu0 %v885
        %1145 = vmatpush.msra.mxu0 %v876
        %1146 = vmatpush.msra.mxu0 %v867
        %1147 = vmatpush.msra.mxu0 %v858
        %1148 = vmatpush.msra.mxu0 %v849
        %1149 = vmatpush.msra.mxu0 %v840
        %1150 = vmatpush.msra.mxu0 %v831
        %1151 = vmatmul.f32.gmra.mxu0 %v818
        %v1152 = vpop.f32.mrf.mxu0
        %v1153 = vadd.f32 0.0, %v1152
        %1154 = vmatmul.f32.gmra.mxu0 %v819
        %v1155 = vpop.f32.mrf.mxu0
        %v1156 = vadd.f32 0.0, %v1155
        %1157 = vdwg.mxu0
        %1158 = vmatpush.msra.mxu0 %v967
        %1159 = vmatpush.msra.mxu0 %v958
        %1160 = vmatpush.msra.mxu0 %v949
        %1161 = vmatpush.msra.mxu0 %v940
        %1162 = vmatpush.msra.mxu0 %v931
        %1163 = vmatpush.msra.mxu0 %v922
        %1164 = vmatpush.msra.mxu0 %v913
        %1165 = vmatpush.msra.mxu0 %v904
        %1166 = vmatpush.msra.mxu0 %v895
        %1167 = vmatpush.msra.mxu0 %v886
        %1168 = vmatpush.msra.mxu0 %v877
        %1169 = vmatpush.msra.mxu0 %v868
        %1170 = vmatpush.msra.mxu0 %v859
        %1171 = vmatpush.msra.mxu0 %v850
        %1172 = vmatpush.msra.mxu0 %v841
        %1173 = vmatpush.msra.mxu0 %v832
        %1174 = vmatmul.f32.gmra.mxu0 %v818
        %v1175 = vpop.f32.mrf.mxu0
        %v1176 = vadd.f32 0.0, %v1175
        %1177 = vmatmul.f32.gmra.mxu0 %v819
        %v1178 = vpop.f32.mrf.mxu0
        %v1179 = vadd.f32 0.0, %v1178
        %1180 = vdwg.mxu0
        %1181 = vmatpush.msra.mxu0 %v968
        %1182 = vmatpush.msra.mxu0 %v959
        %1183 = vmatpush.msra.mxu0 %v950
        %1184 = vmatpush.msra.mxu0 %v941
        %1185 = vmatpush.msra.mxu0 %v932
        %1186 = vmatpush.msra.mxu0 %v923
        %1187 = vmatpush.msra.mxu0 %v914
        %1188 = vmatpush.msra.mxu0 %v905
        %1189 = vmatpush.msra.mxu0 %v896
        %1190 = vmatpush.msra.mxu0 %v887
        %1191 = vmatpush.msra.mxu0 %v878
        %1192 = vmatpush.msra.mxu0 %v869
        %1193 = vmatpush.msra.mxu0 %v860
        %1194 = vmatpush.msra.mxu0 %v851
        %1195 = vmatpush.msra.mxu0 %v842
        %1196 = vmatpush.msra.mxu0 %v833
        %1197 = vmatmul.f32.gmra.mxu0 %v818
        %v1198 = vpop.f32.mrf.mxu0
        %v1199 = vadd.f32 0.0, %v1198
        %1200 = vmatmul.f32.gmra.mxu0 %v819
        %v1201 = vpop.f32.mrf.mxu0
        %v1202 = vadd.f32 0.0, %v1201
        %1203 = vdwg.mxu0
        %1204 = vmatpush.msra.mxu0 %v969
        %1205 = vmatpush.msra.mxu0 %v960
        %1206 = vmatpush.msra.mxu0 %v951
        %1207 = vmatpush.msra.mxu0 %v942
        %1208 = vmatpush.msra.mxu0 %v933
        %1209 = vmatpush.msra.mxu0 %v924
        %1210 = vmatpush.msra.mxu0 %v915
        %1211 = vmatpush.msra.mxu0 %v906
        %1212 = vmatpush.msra.mxu0 %v897
        %1213 = vmatpush.msra.mxu0 %v888
        %1214 = vmatpush.msra.mxu0 %v879
        %1215 = vmatpush.msra.mxu0 %v870
        %1216 = vmatpush.msra.mxu0 %v861
        %1217 = vmatpush.msra.mxu0 %v852
        %1218 = vmatpush.msra.mxu0 %v843
        %1219 = vmatpush.msra.mxu0 %v834
        %1220 = vmatmul.f32.gmra.mxu0 %v818
        %v1221 = vpop.f32.mrf.mxu0
        %v1222 = vadd.f32 0.0, %v1221
        %1223 = vmatmul.f32.gmra.mxu0 %v819
        %v1224 = vpop.f32.mrf.mxu0
        %v1225 = vadd.f32 0.0, %v1224
        %1226 = vdwg.mxu0
        %vm1227 = vcmask 130048
        %v1229 = vsel %vm1227, %v822, 0
        %v1232 = vsel %vm1227, %v823, 0
        %1234 = vmatpush.msra.mxu0 0.0
        %1235 = vmatpush.msra.mxu0 0.0
        %1236 = vmatpush.msra.mxu0 0.0
        %1237 = vmatpush.msra.mxu0 0.0
        %1238 = vmatpush.msra.mxu0 0.0
        %1239 = vmatpush.msra.mxu0 0.0
        %1240 = vmatpush.msra.mxu0 0.0
        %1241 = vmatpush.msra.mxu0 0.0
        %1242 = vmatpush.msra.mxu0 0.0
        %1243 = vmatpush.msra.mxu0 0.0
        %1244 = vmatpush.msra.mxu0 0.0
        %1245 = vmatpush.msra.mxu0 0.0
        %1246 = vmatpush.msra.mxu0 0.0
        %1247 = vmatpush.msra.mxu0 0.0
        %1248 = vmatpush.msra.mxu0 %v1110
        %1249 = vmatpush.msra.mxu0 %v1107
        %1250 = vmatmul.f32.gmra.mxu0 %v1229
        %v1251 = vpop.f32.mrf.mxu0
        %v1252 = vadd.f32 0.0, %v1251
        %1253 = vmatmul.f32.gmra.mxu0 %v1232
        %v1254 = vpop.f32.mrf.mxu0
        %v1255 = vadd.f32 0.0, %v1254
        %1256 = vdwg.mxu0
        %1257 = vmatpush.msra.mxu0 0.0
        %1258 = vmatpush.msra.mxu0 0.0
        %1259 = vmatpush.msra.mxu0 0.0
        %1260 = vmatpush.msra.mxu0 0.0
        %1261 = vmatpush.msra.mxu0 0.0
        %1262 = vmatpush.msra.mxu0 0.0
        %1263 = vmatpush.msra.mxu0 0.0
        %1264 = vmatpush.msra.mxu0 0.0
        %1265 = vmatpush.msra.mxu0 0.0
        %1266 = vmatpush.msra.mxu0 0.0
        %1267 = vmatpush.msra.mxu0 0.0
        %1268 = vmatpush.msra.mxu0 0.0
        %1269 = vmatpush.msra.mxu0 0.0
        %1270 = vmatpush.msra.mxu0 0.0
        %1271 = vmatpush.msra.mxu0 %v1133
        %1272 = vmatpush.msra.mxu0 %v1130
        %1273 = vmatmul.f32.gmra.mxu0 %v1229
        %v1274 = vpop.f32.mrf.mxu0
        %v1275 = vadd.f32 0.0, %v1274
        %1276 = vmatmul.f32.gmra.mxu0 %v1232
        %v1277 = vpop.f32.mrf.mxu0
        %v1278 = vadd.f32 0.0, %v1277
        %1279 = vdwg.mxu0
        %1280 = vmatpush.msra.mxu0 0.0
        %1281 = vmatpush.msra.mxu0 0.0
        %1282 = vmatpush.msra.mxu0 0.0
        %1283 = vmatpush.msra.mxu0 0.0
        %1284 = vmatpush.msra.mxu0 0.0
        %1285 = vmatpush.msra.mxu0 0.0
        %1286 = vmatpush.msra.mxu0 0.0
        %1287 = vmatpush.msra.mxu0 0.0
        %1288 = vmatpush.msra.mxu0 0.0
        %1289 = vmatpush.msra.mxu0 0.0
        %1290 = vmatpush.msra.mxu0 0.0
        %1291 = vmatpush.msra.mxu0 0.0
        %1292 = vmatpush.msra.mxu0 0.0
        %1293 = vmatpush.msra.mxu0 0.0
        %1294 = vmatpush.msra.mxu0 %v1156
        %1295 = vmatpush.msra.mxu0 %v1153
        %1296 = vmatmul.f32.gmra.mxu0 %v1229
        %v1297 = vpop.f32.mrf.mxu0
        %v1298 = vadd.f32 0.0, %v1297
        %1299 = vmatmul.f32.gmra.mxu0 %v1232
        %v1300 = vpop.f32.mrf.mxu0
        %v1301 = vadd.f32 0.0, %v1300
        %1302 = vdwg.mxu0
        %v1304 = vsel %vm1227, %v820, 0
        %v1307 = vsel %vm1227, %v821, 0
        %1309 = vmatpush.msra.mxu0 0.0
        %1310 = vmatpush.msra.mxu0 0.0
        %1311 = vmatpush.msra.mxu0 0.0
        %1312 = vmatpush.msra.mxu0 0.0
        %1313 = vmatpush.msra.mxu0 0.0
        %1314 = vmatpush.msra.mxu0 0.0
        %1315 = vmatpush.msra.mxu0 0.0
        %1316 = vmatpush.msra.mxu0 0.0
        %1317 = vmatpush.msra.mxu0 0.0
        %1318 = vmatpush.msra.mxu0 0.0
        %1319 = vmatpush.msra.mxu0 0.0
        %1320 = vmatpush.msra.mxu0 0.0
        %1321 = vmatpush.msra.mxu0 0.0
        %1322 = vmatpush.msra.mxu0 0.0
        %1323 = vmatpush.msra.mxu0 %v1041
        %1324 = vmatpush.msra.mxu0 %v1038
        %1325 = vmatmul.f32.gmra.mxu0 %v1304
        %v1326 = vpop.f32.mrf.mxu0
        %v1327 = vadd.f32 %v1252, %v1326
        %1328 = vmatmul.f32.gmra.mxu0 %v1307
        %v1329 = vpop.f32.mrf.mxu0
        %v1330 = vadd.f32 %v1255, %v1329
        %1331 = vdwg.mxu0
        %1332 = vmatpush.msra.mxu0 0.0
        %1333 = vmatpush.msra.mxu0 0.0
        %1334 = vmatpush.msra.mxu0 0.0
        %1335 = vmatpush.msra.mxu0 0.0
        %1336 = vmatpush.msra.mxu0 0.0
        %1337 = vmatpush.msra.mxu0 0.0
        %1338 = vmatpush.msra.mxu0 0.0
        %1339 = vmatpush.msra.mxu0 0.0
        %1340 = vmatpush.msra.mxu0 0.0
        %1341 = vmatpush.msra.mxu0 0.0
        %1342 = vmatpush.msra.mxu0 0.0
        %1343 = vmatpush.msra.mxu0 0.0
        %1344 = vmatpush.msra.mxu0 0.0
        %1345 = vmatpush.msra.mxu0 0.0
        %1346 = vmatpush.msra.mxu0 %v1064
        %1347 = vmatpush.msra.mxu0 %v1061
        %1348 = vmatmul.f32.gmra.mxu0 %v1304
        %v1349 = vpop.f32.mrf.mxu0
        %v1350 = vadd.f32 %v1275, %v1349
        %1351 = vmatmul.f32.gmra.mxu0 %v1307
        %v1352 = vpop.f32.mrf.mxu0
        %v1353 = vadd.f32 %v1278, %v1352
        %1354 = vdwg.mxu0
        %1355 = vmatpush.msra.mxu0 0.0
        %1356 = vmatpush.msra.mxu0 0.0
        %1357 = vmatpush.msra.mxu0 0.0
        %1358 = vmatpush.msra.mxu0 0.0
        %1359 = vmatpush.msra.mxu0 0.0
        %1360 = vmatpush.msra.mxu0 0.0
        %1361 = vmatpush.msra.mxu0 0.0
        %1362 = vmatpush.msra.mxu0 0.0
        %1363 = vmatpush.msra.mxu0 0.0
        %1364 = vmatpush.msra.mxu0 0.0
        %1365 = vmatpush.msra.mxu0 0.0
        %1366 = vmatpush.msra.mxu0 0.0
        %1367 = vmatpush.msra.mxu0 0.0
        %1368 = vmatpush.msra.mxu0 0.0
        %1369 = vmatpush.msra.mxu0 %v1087
        %1370 = vmatpush.msra.mxu0 %v1084
        %1371 = vmatmul.f32.gmra.mxu0 %v1304
        %v1372 = vpop.f32.mrf.mxu0
        %v1373 = vadd.f32 %v1298, %v1372
        %1374 = vmatmul.f32.gmra.mxu0 %v1307
        %v1375 = vpop.f32.mrf.mxu0
        %v1376 = vadd.f32 %v1301, %v1375
        %1377 = vdwg.mxu0
        %v1379 = vsel %vm1227, %v824, 0
        %v1382 = vsel %vm1227, %v825, 0
        %1384 = vmatpush.msra.mxu0 0.0
        %1385 = vmatpush.msra.mxu0 0.0
        %1386 = vmatpush.msra.mxu0 0.0
        %1387 = vmatpush.msra.mxu0 0.0
        %1388 = vmatpush.msra.mxu0 0.0
        %1389 = vmatpush.msra.mxu0 0.0
        %1390 = vmatpush.msra.mxu0 0.0
        %1391 = vmatpush.msra.mxu0 0.0
        %1392 = vmatpush.msra.mxu0 0.0
        %1393 = vmatpush.msra.mxu0 0.0
        %1394 = vmatpush.msra.mxu0 0.0
        %1395 = vmatpush.msra.mxu0 0.0
        %1396 = vmatpush.msra.mxu0 0.0
        %1397 = vmatpush.msra.mxu0 0.0
        %1398 = vmatpush.msra.mxu0 %v1179
        %1399 = vmatpush.msra.mxu0 %v1176
        %1400 = vmatmul.f32.gmra.mxu0 %v1379
        %v1401 = vpop.f32.mrf.mxu0
        %v1402 = vadd.f32 0.0, %v1401
        %1403 = vmatmul.f32.gmra.mxu0 %v1382
        %v1404 = vpop.f32.mrf.mxu0
        %v1405 = vadd.f32 0.0, %v1404
        %1406 = vdwg.mxu0
        %1407 = vmatpush.msra.mxu0 0.0
        %1408 = vmatpush.msra.mxu0 0.0
        %1409 = vmatpush.msra.mxu0 0.0
        %1410 = vmatpush.msra.mxu0 0.0
        %1411 = vmatpush.msra.mxu0 0.0
        %1412 = vmatpush.msra.mxu0 0.0
        %1413 = vmatpush.msra.mxu0 0.0
        %1414 = vmatpush.msra.mxu0 0.0
        %1415 = vmatpush.msra.mxu0 0.0
        %1416 = vmatpush.msra.mxu0 0.0
        %1417 = vmatpush.msra.mxu0 0.0
        %1418 = vmatpush.msra.mxu0 0.0
        %1419 = vmatpush.msra.mxu0 0.0
        %1420 = vmatpush.msra.mxu0 0.0
        %1421 = vmatpush.msra.mxu0 %v1202
        %1422 = vmatpush.msra.mxu0 %v1199
        %1423 = vmatmul.f32.gmra.mxu0 %v1379
        %v1424 = vpop.f32.mrf.mxu0
        %v1425 = vadd.f32 0.0, %v1424
        %1426 = vmatmul.f32.gmra.mxu0 %v1382
        %v1427 = vpop.f32.mrf.mxu0
        %v1428 = vadd.f32 0.0, %v1427
        %1429 = vdwg.mxu0
        %1430 = vmatpush.msra.mxu0 0.0
        %1431 = vmatpush.msra.mxu0 0.0
        %1432 = vmatpush.msra.mxu0 0.0
        %1433 = vmatpush.msra.mxu0 0.0
        %1434 = vmatpush.msra.mxu0 0.0
        %1435 = vmatpush.msra.mxu0 0.0
        %1436 = vmatpush.msra.mxu0 0.0
        %1437 = vmatpush.msra.mxu0 0.0
        %1438 = vmatpush.msra.mxu0 0.0
        %1439 = vmatpush.msra.mxu0 0.0
        %1440 = vmatpush.msra.mxu0 0.0
        %1441 = vmatpush.msra.mxu0 0.0
        %1442 = vmatpush.msra.mxu0 0.0
        %1443 = vmatpush.msra.mxu0 0.0
        %1444 = vmatpush.msra.mxu0 %v1225
        %1445 = vmatpush.msra.mxu0 %v1222
        %1446 = vmatmul.f32.gmra.mxu0 %v1379
        %v1447 = vpop.f32.mrf.mxu0
        %v1448 = vadd.f32 0.0, %v1447
        %1449 = vmatmul.f32.gmra.mxu0 %v1382
        %v1450 = vpop.f32.mrf.mxu0
        %v1451 = vadd.f32 0.0, %v1450
        %1452 = vdwg.mxu0
        %v1453 = vadd.f32 %v1327, %v1402
        %v1454 = vadd.f32 %v1350, %v1425
        %v1455 = vadd.f32 %v1373, %v1448
        %v1456 = vadd.f32 %v1330, %v1405
        %v1457 = vadd.f32 %v1353, %v1428
        %v1458 = vadd.f32 %v1376, %v1451
        %v1460 = vperm.slane %v1018, 0
        %v1461 = vperm.slane %v1018, 1
        %1464 = vmatpush.msra.mxu0 %v1000
        %1465 = vmatpush.msra.mxu0 %v998
        %1466 = vmatpush.msra.mxu0 %v996
        %1467 = vmatpush.msra.mxu0 %v994
        %1468 = vmatpush.msra.mxu0 %v992
        %1469 = vmatpush.msra.mxu0 %v990
        %1470 = vmatpush.msra.mxu0 %v988
        %1471 = vmatpush.msra.mxu0 %v986
        %1472 = vmatpush.msra.mxu0 %v984
        %1473 = vmatpush.msra.mxu0 %v982
        %1474 = vmatpush.msra.mxu0 %v980
        %1475 = vmatpush.msra.mxu0 %v978
        %1476 = vmatpush.msra.mxu0 %v976
        %1477 = vmatpush.msra.mxu0 %v974
        %1478 = vmatpush.msra.mxu0 %v972
        %1479 = vmatpush.msra.mxu0 %v970
        %1480 = vmatmul.f32.gmra.mxu0 %v818
        %v1481 = vpop.f32.mrf.mxu0
        %v1482 = vadd.f32 %v1460, %v1481
        %1483 = vmatmul.f32.gmra.mxu0 %v819
        %v1484 = vpop.f32.mrf.mxu0
        %v1485 = vadd.f32 %v1460, %v1484
        %1486 = vdwg.mxu0
        %1487 = vmatpush.msra.mxu0 %v1001
        %1488 = vmatpush.msra.mxu0 %v999
        %1489 = vmatpush.msra.mxu0 %v997
        %1490 = vmatpush.msra.mxu0 %v995
        %1491 = vmatpush.msra.mxu0 %v993
        %1492 = vmatpush.msra.mxu0 %v991
        %1493 = vmatpush.msra.mxu0 %v989
        %1494 = vmatpush.msra.mxu0 %v987
        %1495 = vmatpush.msra.mxu0 %v985
        %1496 = vmatpush.msra.mxu0 %v983
        %1497 = vmatpush.msra.mxu0 %v981
        %1498 = vmatpush.msra.mxu0 %v979
        %1499 = vmatpush.msra.mxu0 %v977
        %1500 = vmatpush.msra.mxu0 %v975
        %1501 = vmatpush.msra.mxu0 %v973
        %1502 = vmatpush.msra.mxu0 %v971
        %1503 = vmatmul.f32.gmra.mxu0 %v818
        %v1504 = vpop.f32.mrf.mxu0
        %v1505 = vadd.f32 %v1461, %v1504
        %1506 = vmatmul.f32.gmra.mxu0 %v819
        %v1507 = vpop.f32.mrf.mxu0
        %v1508 = vadd.f32 %v1461, %v1507
        %1509 = vdwg.mxu0
        %v1510 = vadd.f32 %v1482, %v1453
        %v1511 = vadd.f32 %v1505, %v1454
        %v1512 = vadd.f32 %v1485, %v1456
        %v1513 = vadd.f32 %v1508, %v1457
        %v1514 = vxor.u32 %v1510, 2147483648
        %v1515 = vxor.u32 %v1511, 2147483648
        %v1516 = vxor.u32 %v1512, 2147483648
        %v1517 = vxor.u32 %v1513, 2147483648
        %v1518 = vmul.f32 %v1514, 1.442695
        %v1519 = vpow.pop %v1518
        %v1520 = vmul.f32 %v1515, 1.442695
        %v1521 = vpow.pop %v1520
        %v1522 = vmul.f32 %v1516, 1.442695
        %v1523 = vpow.pop %v1522
        %v1524 = vmul.f32 %v1517, 1.442695
        %v1525 = vpow.pop %v1524
        %v1526 = vadd.f32 %v1519, 1.0
        %v1527 = vadd.f32 %v1521, 1.0
        %v1528 = vadd.f32 %v1523, 1.0
        %v1529 = vadd.f32 %v1525, 1.0
        %v1530 = vrcp.pop %v1526
        %v1531 = vmul.f32 %v1526, %v1530
        %v1532 = vsub.f32 1.0, %v1531
        %v1533 = vmul.f32 %v1530, %v1532
        %v1534 = vadd.f32 %v1530, %v1533
        %vm1535 = vweird.f32 %v1526
        %vm1536 = vweird.f32 %v1530
        %vm1537 = vmor %vm1535, %vm1536
        %v1538 = vsel %vm1537, %v1530, %v1534
        %v1539 = vand.u32 2147483647, %v1526
        %vm1540 = vcmp.eq.f32.partialorder %v1539, 8.507059e+37
        %v1541 = vand.u32 %v1526, 2147483648
        %v1542 = vor.u32 1.1754944e-38, %v1541
        %v1543 = vsel %vm1540, %v1542, %v1538
        %v1544 = vmul.f32 1.0, %v1543
        %v1545 = vrcp.pop %v1527
        %v1546 = vmul.f32 %v1527, %v1545
        %v1547 = vsub.f32 1.0, %v1546
        %v1548 = vmul.f32 %v1545, %v1547
        %v1549 = vadd.f32 %v1545, %v1548
        %vm1550 = vweird.f32 %v1527
        %vm1551 = vweird.f32 %v1545
        %vm1552 = vmor %vm1550, %vm1551
        %v1553 = vsel %vm1552, %v1545, %v1549
        %v1554 = vand.u32 2147483647, %v1527
        %vm1555 = vcmp.eq.f32.partialorder %v1554, 8.507059e+37
        %v1556 = vand.u32 %v1527, 2147483648
        %v1557 = vor.u32 1.1754944e-38, %v1556
        %v1558 = vsel %vm1555, %v1557, %v1553
        %v1559 = vmul.f32 1.0, %v1558
        %v1560 = vrcp.pop %v1528
        %v1561 = vmul.f32 %v1528, %v1560
        %v1562 = vsub.f32 1.0, %v1561
        %v1563 = vmul.f32 %v1560, %v1562
        %v1564 = vadd.f32 %v1560, %v1563
        %vm1565 = vweird.f32 %v1528
        %vm1566 = vweird.f32 %v1560
        %vm1567 = vmor %vm1565, %vm1566
        %v1568 = vsel %vm1567, %v1560, %v1564
        %v1569 = vand.u32 2147483647, %v1528
        %vm1570 = vcmp.eq.f32.partialorder %v1569, 8.507059e+37
        %v1571 = vand.u32 %v1528, 2147483648
        %v1572 = vor.u32 1.1754944e-38, %v1571
        %v1573 = vsel %vm1570, %v1572, %v1568
        %v1574 = vmul.f32 1.0, %v1573
        %v1575 = vrcp.pop %v1529
        %v1576 = vmul.f32 %v1529, %v1575
        %v1577 = vsub.f32 1.0, %v1576
        %v1578 = vmul.f32 %v1575, %v1577
        %v1579 = vadd.f32 %v1575, %v1578
        %vm1580 = vweird.f32 %v1529
        %vm1581 = vweird.f32 %v1575
        %vm1582 = vmor %vm1580, %vm1581
        %v1583 = vsel %vm1582, %v1575, %v1579
        %v1584 = vand.u32 2147483647, %v1529
        %vm1585 = vcmp.eq.f32.partialorder %v1584, 8.507059e+37
        %v1586 = vand.u32 %v1529, 2147483648
        %v1587 = vor.u32 1.1754944e-38, %v1586
        %v1588 = vsel %vm1585, %v1587, %v1583
        %v1589 = vmul.f32 1.0, %v1588
        %v1590 = vmul.f32 %v1559, %v818
        %v1591 = vmul.f32 %v1589, %v819
        %1592 = vmatpush.msra.mxu0 %v1017
        %1593 = vmatpush.msra.mxu0 %v1016
        %1594 = vmatpush.msra.mxu0 %v1015
        %1595 = vmatpush.msra.mxu0 %v1014
        %1596 = vmatpush.msra.mxu0 %v1013
        %1597 = vmatpush.msra.mxu0 %v1012
        %1598 = vmatpush.msra.mxu0 %v1011
        %1599 = vmatpush.msra.mxu0 %v1010
        %1600 = vmatpush.msra.mxu0 %v1009
        %1601 = vmatpush.msra.mxu0 %v1008
        %1602 = vmatpush.msra.mxu0 %v1007
        %1603 = vmatpush.msra.mxu0 %v1006
        %1604 = vmatpush.msra.mxu0 %v1005
        %1605 = vmatpush.msra.mxu0 %v1004
        %1606 = vmatpush.msra.mxu0 %v1003
        %1607 = vmatpush.msra.mxu0 %v1002
        %1608 = vmatmul.f32.gmra.mxu0 %v1590
        %v1609 = vpop.f32.mrf.mxu0
        %v1610 = vadd.f32 0.0, %v1609
        %1611 = vmatmul.f32.gmra.mxu0 %v1591
        %v1612 = vpop.f32.mrf.mxu0
        %v1613 = vadd.f32 0.0, %v1612
        %1614 = vdwg.mxu0
        %v1615 = vadd.f32 %v1455, %v1610
        %v1616 = vadd.f32 %v1458, %v1613
        %v1618 = vperm.slane %v1019, 0
        %v1620 = vadd.f32 %v1615, %v1618
        %v1621 = vadd.f32 %v1616, %v1618
        %v1622 = vtanh.pop %v1620
        %v1623 = vtanh.pop %v1621
        %v1624 = vsub.f32 1.0, %v1544
        %v1625 = vsub.f32 1.0, %v1574
        %v1626 = vmul.f32 %v1624, %v818
        %v1627 = vmul.f32 %v1625, %v819
        %v1628 = vmul.f32 %v1544, %v1622
        %v1629 = vmul.f32 %v1574, %v1623
        %v1630 = vadd.f32 %v1626, %v1628
        %v1631 = vadd.f32 %v1627, %v1629
        %1632 = vmatpush.msra.mxu0 %v961
        %1633 = vmatpush.msra.mxu0 %v952
        %1634 = vmatpush.msra.mxu0 %v943
        %1635 = vmatpush.msra.mxu0 %v934
        %1636 = vmatpush.msra.mxu0 %v925
        %1637 = vmatpush.msra.mxu0 %v916
        %1638 = vmatpush.msra.mxu0 %v907
        %1639 = vmatpush.msra.mxu0 %v898
        %1640 = vmatpush.msra.mxu0 %v889
        %1641 = vmatpush.msra.mxu0 %v880
        %1642 = vmatpush.msra.mxu0 %v871
        %1643 = vmatpush.msra.mxu0 %v862
        %1644 = vmatpush.msra.mxu0 %v853
        %1645 = vmatpush.msra.mxu0 %v844
        %1646 = vmatpush.msra.mxu0 %v835
        %1647 = vmatpush.msra.mxu0 %v826
        %1648 = vmatmul.f32.gmra.mxu0 %v1630
        %v1649 = vpop.f32.mrf.mxu0
        %v1650 = vadd.f32 0.0, %v1649
        %1651 = vmatmul.f32.gmra.mxu0 %v1631
        %v1652 = vpop.f32.mrf.mxu0
        %v1653 = vadd.f32 0.0, %v1652
        %1654 = vdwg.mxu0
        %1655 = vmatpush.msra.mxu0 %v962
        %1656 = vmatpush.msra.mxu0 %v953
        %1657 = vmatpush.msra.mxu0 %v944
        %1658 = vmatpush.msra.mxu0 %v935
        %1659 = vmatpush.msra.mxu0 %v926
        %1660 = vmatpush.msra.mxu0 %v917
        %1661 = vmatpush.msra.mxu0 %v908
        %1662 = vmatpush.msra.mxu0 %v899
        %1663 = vmatpush.msra.mxu0 %v890
        %1664 = vmatpush.msra.mxu0 %v881
        %1665 = vmatpush.msra.mxu0 %v872
        %1666 = vmatpush.msra.mxu0 %v863
        %1667 = vmatpush.msra.mxu0 %v854
        %1668 = vmatpush.msra.mxu0 %v845
        %1669 = vmatpush.msra.mxu0 %v836
        %1670 = vmatpush.msra.mxu0 %v827
        %1671 = vmatmul.f32.gmra.mxu0 %v1630
        %v1672 = vpop.f32.mrf.mxu0
        %v1673 = vadd.f32 0.0, %v1672
        %1674 = vmatmul.f32.gmra.mxu0 %v1631
        %v1675 = vpop.f32.mrf.mxu0
        %v1676 = vadd.f32 0.0, %v1675
        %1677 = vdwg.mxu0
        %1678 = vmatpush.msra.mxu0 %v963
        %1679 = vmatpush.msra.mxu0 %v954
        %1680 = vmatpush.msra.mxu0 %v945
        %1681 = vmatpush.msra.mxu0 %v936
        %1682 = vmatpush.msra.mxu0 %v927
        %1683 = vmatpush.msra.mxu0 %v918
        %1684 = vmatpush.msra.mxu0 %v909
        %1685 = vmatpush.msra.mxu0 %v900
        %1686 = vmatpush.msra.mxu0 %v891
        %1687 = vmatpush.msra.mxu0 %v882
        %1688 = vmatpush.msra.mxu0 %v873
        %1689 = vmatpush.msra.mxu0 %v864
        %1690 = vmatpush.msra.mxu0 %v855
        %1691 = vmatpush.msra.mxu0 %v846
        %1692 = vmatpush.msra.mxu0 %v837
        %1693 = vmatpush.msra.mxu0 %v828
        %1694 = vmatmul.f32.gmra.mxu0 %v1630
        %v1695 = vpop.f32.mrf.mxu0
        %v1696 = vadd.f32 0.0, %v1695
        %1697 = vmatmul.f32.gmra.mxu0 %v1631
        %v1698 = vpop.f32.mrf.mxu0
        %v1699 = vadd.f32 0.0, %v1698
        %1700 = vdwg.mxu0
        %1701 = vmatpush.msra.mxu0 %v964
        %1702 = vmatpush.msra.mxu0 %v955
        %1703 = vmatpush.msra.mxu0 %v946
        %1704 = vmatpush.msra.mxu0 %v937
        %1705 = vmatpush.msra.mxu0 %v928
        %1706 = vmatpush.msra.mxu0 %v919
        %1707 = vmatpush.msra.mxu0 %v910
        %1708 = vmatpush.msra.mxu0 %v901
        %1709 = vmatpush.msra.mxu0 %v892
        %1710 = vmatpush.msra.mxu0 %v883
        %1711 = vmatpush.msra.mxu0 %v874
        %1712 = vmatpush.msra.mxu0 %v865
        %1713 = vmatpush.msra.mxu0 %v856
        %1714 = vmatpush.msra.mxu0 %v847
        %1715 = vmatpush.msra.mxu0 %v838
        %1716 = vmatpush.msra.mxu0 %v829
        %1717 = vmatmul.f32.gmra.mxu0 %v1630
        %v1718 = vpop.f32.mrf.mxu0
        %v1719 = vadd.f32 0.0, %v1718
        %1720 = vmatmul.f32.gmra.mxu0 %v1631
        %v1721 = vpop.f32.mrf.mxu0
        %v1722 = vadd.f32 0.0, %v1721
        %1723 = vdwg.mxu0
        %1724 = vmatpush.msra.mxu0 %v965
        %1725 = vmatpush.msra.mxu0 %v956
        %1726 = vmatpush.msra.mxu0 %v947
        %1727 = vmatpush.msra.mxu0 %v938
        %1728 = vmatpush.msra.mxu0 %v929
        %1729 = vmatpush.msra.mxu0 %v920
        %1730 = vmatpush.msra.mxu0 %v911
        %1731 = vmatpush.msra.mxu0 %v902
        %1732 = vmatpush.msra.mxu0 %v893
        %1733 = vmatpush.msra.mxu0 %v884
        %1734 = vmatpush.msra.mxu0 %v875
        %1735 = vmatpush.msra.mxu0 %v866
        %1736 = vmatpush.msra.mxu0 %v857
        %1737 = vmatpush.msra.mxu0 %v848
        %1738 = vmatpush.msra.mxu0 %v839
        %1739 = vmatpush.msra.mxu0 %v830
        %1740 = vmatmul.f32.gmra.mxu0 %v1630
        %v1741 = vpop.f32.mrf.mxu0
        %v1742 = vadd.f32 0.0, %v1741
        %1743 = vmatmul.f32.gmra.mxu0 %v1631
        %v1744 = vpop.f32.mrf.mxu0
        %v1745 = vadd.f32 0.0, %v1744
        %1746 = vdwg.mxu0
        %1747 = vmatpush.msra.mxu0 %v966
        %1748 = vmatpush.msra.mxu0 %v957
        %1749 = vmatpush.msra.mxu0 %v948
        %1750 = vmatpush.msra.mxu0 %v939
        %1751 = vmatpush.msra.mxu0 %v930
        %1752 = vmatpush.msra.mxu0 %v921
        %1753 = vmatpush.msra.mxu0 %v912
        %1754 = vmatpush.msra.mxu0 %v903
        %1755 = vmatpush.msra.mxu0 %v894
        %1756 = vmatpush.msra.mxu0 %v885
        %1757 = vmatpush.msra.mxu0 %v876
        %1758 = vmatpush.msra.mxu0 %v867
        %1759 = vmatpush.msra.mxu0 %v858
        %1760 = vmatpush.msra.mxu0 %v849
        %1761 = vmatpush.msra.mxu0 %v840
        %1762 = vmatpush.msra.mxu0 %v831
        %1763 = vmatmul.f32.gmra.mxu0 %v1630
        %v1764 = vpop.f32.mrf.mxu0
        %v1765 = vadd.f32 0.0, %v1764
        %1766 = vmatmul.f32.gmra.mxu0 %v1631
        %v1767 = vpop.f32.mrf.mxu0
        %v1768 = vadd.f32 0.0, %v1767
        %1769 = vdwg.mxu0
        %1770 = vmatpush.msra.mxu0 %v967
        %1771 = vmatpush.msra.mxu0 %v958
        %1772 = vmatpush.msra.mxu0 %v949
        %1773 = vmatpush.msra.mxu0 %v940
        %1774 = vmatpush.msra.mxu0 %v931
        %1775 = vmatpush.msra.mxu0 %v922
        %1776 = vmatpush.msra.mxu0 %v913
        %1777 = vmatpush.msra.mxu0 %v904
        %1778 = vmatpush.msra.mxu0 %v895
        %1779 = vmatpush.msra.mxu0 %v886
        %1780 = vmatpush.msra.mxu0 %v877
        %1781 = vmatpush.msra.mxu0 %v868
        %1782 = vmatpush.msra.mxu0 %v859
        %1783 = vmatpush.msra.mxu0 %v850
        %1784 = vmatpush.msra.mxu0 %v841
        %1785 = vmatpush.msra.mxu0 %v832
        %1786 = vmatmul.f32.gmra.mxu0 %v1630
        %v1787 = vpop.f32.mrf.mxu0
        %v1788 = vadd.f32 0.0, %v1787
        %1789 = vmatmul.f32.gmra.mxu0 %v1631
        %v1790 = vpop.f32.mrf.mxu0
        %v1791 = vadd.f32 0.0, %v1790
        %1792 = vdwg.mxu0
        %1793 = vmatpush.msra.mxu0 %v968
        %1794 = vmatpush.msra.mxu0 %v959
        %1795 = vmatpush.msra.mxu0 %v950
        %1796 = vmatpush.msra.mxu0 %v941
        %1797 = vmatpush.msra.mxu0 %v932
        %1798 = vmatpush.msra.mxu0 %v923
        %1799 = vmatpush.msra.mxu0 %v914
        %1800 = vmatpush.msra.mxu0 %v905
        %1801 = vmatpush.msra.mxu0 %v896
        %1802 = vmatpush.msra.mxu0 %v887
        %1803 = vmatpush.msra.mxu0 %v878
        %1804 = vmatpush.msra.mxu0 %v869
        %1805 = vmatpush.msra.mxu0 %v860
        %1806 = vmatpush.msra.mxu0 %v851
        %1807 = vmatpush.msra.mxu0 %v842
        %1808 = vmatpush.msra.mxu0 %v833
        %1809 = vmatmul.f32.gmra.mxu0 %v1630
        %v1810 = vpop.f32.mrf.mxu0
        %v1811 = vadd.f32 0.0, %v1810
        %1812 = vmatmul.f32.gmra.mxu0 %v1631
        %v1813 = vpop.f32.mrf.mxu0
        %v1814 = vadd.f32 0.0, %v1813
        %1815 = vdwg.mxu0
        %1816 = vmatpush.msra.mxu0 %v969
        %1817 = vmatpush.msra.mxu0 %v960
        %1818 = vmatpush.msra.mxu0 %v951
        %1819 = vmatpush.msra.mxu0 %v942
        %1820 = vmatpush.msra.mxu0 %v933
        %1821 = vmatpush.msra.mxu0 %v924
        %1822 = vmatpush.msra.mxu0 %v915
        %1823 = vmatpush.msra.mxu0 %v906
        %1824 = vmatpush.msra.mxu0 %v897
        %1825 = vmatpush.msra.mxu0 %v888
        %1826 = vmatpush.msra.mxu0 %v879
        %1827 = vmatpush.msra.mxu0 %v870
        %1828 = vmatpush.msra.mxu0 %v861
        %1829 = vmatpush.msra.mxu0 %v852
        %1830 = vmatpush.msra.mxu0 %v843
        %1831 = vmatpush.msra.mxu0 %v834
        %1832 = vmatmul.f32.gmra.mxu0 %v1630
        %v1833 = vpop.f32.mrf.mxu0
        %v1834 = vadd.f32 0.0, %v1833
        %1835 = vmatmul.f32.gmra.mxu0 %v1631
        %v1836 = vpop.f32.mrf.mxu0
        %v1837 = vadd.f32 0.0, %v1836
        %1838 = vdwg.mxu0
        %1839 = vmatpush.msra.mxu0 0.0
        %1840 = vmatpush.msra.mxu0 0.0
        %1841 = vmatpush.msra.mxu0 0.0
        %1842 = vmatpush.msra.mxu0 0.0
        %1843 = vmatpush.msra.mxu0 0.0
        %1844 = vmatpush.msra.mxu0 0.0
        %1845 = vmatpush.msra.mxu0 0.0
        %1846 = vmatpush.msra.mxu0 0.0
        %1847 = vmatpush.msra.mxu0 0.0
        %1848 = vmatpush.msra.mxu0 0.0
        %1849 = vmatpush.msra.mxu0 0.0
        %1850 = vmatpush.msra.mxu0 0.0
        %1851 = vmatpush.msra.mxu0 0.0
        %1852 = vmatpush.msra.mxu0 0.0
        %1853 = vmatpush.msra.mxu0 %v1722
        %1854 = vmatpush.msra.mxu0 %v1719
        %1855 = vmatmul.f32.gmra.mxu0 %v1229
        %v1856 = vpop.f32.mrf.mxu0
        %v1857 = vadd.f32 0.0, %v1856
        %1858 = vmatmul.f32.gmra.mxu0 %v1232
        %v1859 = vpop.f32.mrf.mxu0
        %v1860 = vadd.f32 0.0, %v1859
        %1861 = vdwg.mxu0
        %1862 = vmatpush.msra.mxu0 0.0
        %1863 = vmatpush.msra.mxu0 0.0
        %1864 = vmatpush.msra.mxu0 0.0
        %1865 = vmatpush.msra.mxu0 0.0
        %1866 = vmatpush.msra.mxu0 0.0
        %1867 = vmatpush.msra.mxu0 0.0
        %1868 = vmatpush.msra.mxu0 0.0
        %1869 = vmatpush.msra.mxu0 0.0
        %1870 = vmatpush.msra.mxu0 0.0
        %1871 = vmatpush.msra.mxu0 0.0
        %1872 = vmatpush.msra.mxu0 0.0
        %1873 = vmatpush.msra.mxu0 0.0
        %1874 = vmatpush.msra.mxu0 0.0
        %1875 = vmatpush.msra.mxu0 0.0
        %1876 = vmatpush.msra.mxu0 %v1745
        %1877 = vmatpush.msra.mxu0 %v1742
        %1878 = vmatmul.f32.gmra.mxu0 %v1229
        %v1879 = vpop.f32.mrf.mxu0
        %v1880 = vadd.f32 0.0, %v1879
        %1881 = vmatmul.f32.gmra.mxu0 %v1232
        %v1882 = vpop.f32.mrf.mxu0
        %v1883 = vadd.f32 0.0, %v1882
        %1884 = vdwg.mxu0
        %1885 = vmatpush.msra.mxu0 0.0
        %1886 = vmatpush.msra.mxu0 0.0
        %1887 = vmatpush.msra.mxu0 0.0
        %1888 = vmatpush.msra.mxu0 0.0
        %1889 = vmatpush.msra.mxu0 0.0
        %1890 = vmatpush.msra.mxu0 0.0
        %1891 = vmatpush.msra.mxu0 0.0
        %1892 = vmatpush.msra.mxu0 0.0
        %1893 = vmatpush.msra.mxu0 0.0
        %1894 = vmatpush.msra.mxu0 0.0
        %1895 = vmatpush.msra.mxu0 0.0
        %1896 = vmatpush.msra.mxu0 0.0
        %1897 = vmatpush.msra.mxu0 0.0
        %1898 = vmatpush.msra.mxu0 0.0
        %1899 = vmatpush.msra.mxu0 %v1768
        %1900 = vmatpush.msra.mxu0 %v1765
        %1901 = vmatmul.f32.gmra.mxu0 %v1229
        %v1902 = vpop.f32.mrf.mxu0
        %v1903 = vadd.f32 0.0, %v1902
        %1904 = vmatmul.f32.gmra.mxu0 %v1232
        %v1905 = vpop.f32.mrf.mxu0
        %v1906 = vadd.f32 0.0, %v1905
        %1907 = vdwg.mxu0
        %1908 = vmatpush.msra.mxu0 0.0
        %1909 = vmatpush.msra.mxu0 0.0
        %1910 = vmatpush.msra.mxu0 0.0
        %1911 = vmatpush.msra.mxu0 0.0
        %1912 = vmatpush.msra.mxu0 0.0
        %1913 = vmatpush.msra.mxu0 0.0
        %1914 = vmatpush.msra.mxu0 0.0
        %1915 = vmatpush.msra.mxu0 0.0
        %1916 = vmatpush.msra.mxu0 0.0
        %1917 = vmatpush.msra.mxu0 0.0
        %1918 = vmatpush.msra.mxu0 0.0
        %1919 = vmatpush.msra.mxu0 0.0
        %1920 = vmatpush.msra.mxu0 0.0
        %1921 = vmatpush.msra.mxu0 0.0
        %1922 = vmatpush.msra.mxu0 %v1653
        %1923 = vmatpush.msra.mxu0 %v1650
        %1924 = vmatmul.f32.gmra.mxu0 %v1304
        %v1925 = vpop.f32.mrf.mxu0
        %v1926 = vadd.f32 %v1857, %v1925
        %1927 = vmatmul.f32.gmra.mxu0 %v1307
        %v1928 = vpop.f32.mrf.mxu0
        %v1929 = vadd.f32 %v1860, %v1928
        %1930 = vdwg.mxu0
        %1931 = vmatpush.msra.mxu0 0.0
        %1932 = vmatpush.msra.mxu0 0.0
        %1933 = vmatpush.msra.mxu0 0.0
        %1934 = vmatpush.msra.mxu0 0.0
        %1935 = vmatpush.msra.mxu0 0.0
        %1936 = vmatpush.msra.mxu0 0.0
        %1937 = vmatpush.msra.mxu0 0.0
        %1938 = vmatpush.msra.mxu0 0.0
        %1939 = vmatpush.msra.mxu0 0.0
        %1940 = vmatpush.msra.mxu0 0.0
        %1941 = vmatpush.msra.mxu0 0.0
        %1942 = vmatpush.msra.mxu0 0.0
        %1943 = vmatpush.msra.mxu0 0.0
        %1944 = vmatpush.msra.mxu0 0.0
        %1945 = vmatpush.msra.mxu0 %v1676
        %1946 = vmatpush.msra.mxu0 %v1673
        %1947 = vmatmul.f32.gmra.mxu0 %v1304
        %v1948 = vpop.f32.mrf.mxu0
        %v1949 = vadd.f32 %v1880, %v1948
        %1950 = vmatmul.f32.gmra.mxu0 %v1307
        %v1951 = vpop.f32.mrf.mxu0
        %v1952 = vadd.f32 %v1883, %v1951
        %1953 = vdwg.mxu0
        %1954 = vmatpush.msra.mxu0 0.0
        %1955 = vmatpush.msra.mxu0 0.0
        %1956 = vmatpush.msra.mxu0 0.0
        %1957 = vmatpush.msra.mxu0 0.0
        %1958 = vmatpush.msra.mxu0 0.0
        %1959 = vmatpush.msra.mxu0 0.0
        %1960 = vmatpush.msra.mxu0 0.0
        %1961 = vmatpush.msra.mxu0 0.0
        %1962 = vmatpush.msra.mxu0 0.0
        %1963 = vmatpush.msra.mxu0 0.0
        %1964 = vmatpush.msra.mxu0 0.0
        %1965 = vmatpush.msra.mxu0 0.0
        %1966 = vmatpush.msra.mxu0 0.0
        %1967 = vmatpush.msra.mxu0 0.0
        %1968 = vmatpush.msra.mxu0 %v1699
        %1969 = vmatpush.msra.mxu0 %v1696
        %1970 = vmatmul.f32.gmra.mxu0 %v1304
        %v1971 = vpop.f32.mrf.mxu0
        %v1972 = vadd.f32 %v1903, %v1971
        %1973 = vmatmul.f32.gmra.mxu0 %v1307
        %v1974 = vpop.f32.mrf.mxu0
        %v1975 = vadd.f32 %v1906, %v1974
        %1976 = vdwg.mxu0
        %1977 = vmatpush.msra.mxu0 0.0
        %1978 = vmatpush.msra.mxu0 0.0
        %1979 = vmatpush.msra.mxu0 0.0
        %1980 = vmatpush.msra.mxu0 0.0
        %1981 = vmatpush.msra.mxu0 0.0
        %1982 = vmatpush.msra.mxu0 0.0
        %1983 = vmatpush.msra.mxu0 0.0
        %1984 = vmatpush.msra.mxu0 0.0
        %1985 = vmatpush.msra.mxu0 0.0
        %1986 = vmatpush.msra.mxu0 0.0
        %1987 = vmatpush.msra.mxu0 0.0
        %1988 = vmatpush.msra.mxu0 0.0
        %1989 = vmatpush.msra.mxu0 0.0
        %1990 = vmatpush.msra.mxu0 0.0
        %1991 = vmatpush.msra.mxu0 %v1791
        %1992 = vmatpush.msra.mxu0 %v1788
        %1993 = vmatmul.f32.gmra.mxu0 %v1379
        %v1994 = vpop.f32.mrf.mxu0
        %v1995 = vadd.f32 0.0, %v1994
        %1996 = vmatmul.f32.gmra.mxu0 %v1382
        %v1997 = vpop.f32.mrf.mxu0
        %v1998 = vadd.f32 0.0, %v1997
        %1999 = vdwg.mxu0
        %2000 = vmatpush.msra.mxu0 0.0
        %2001 = vmatpush.msra.mxu0 0.0
        %2002 = vmatpush.msra.mxu0 0.0
        %2003 = vmatpush.msra.mxu0 0.0
        %2004 = vmatpush.msra.mxu0 0.0
        %2005 = vmatpush.msra.mxu0 0.0
        %2006 = vmatpush.msra.mxu0 0.0
        %2007 = vmatpush.msra.mxu0 0.0
        %2008 = vmatpush.msra.mxu0 0.0
        %2009 = vmatpush.msra.mxu0 0.0
        %2010 = vmatpush.msra.mxu0 0.0
        %2011 = vmatpush.msra.mxu0 0.0
        %2012 = vmatpush.msra.mxu0 0.0
        %2013 = vmatpush.msra.mxu0 0.0
        %2014 = vmatpush.msra.mxu0 %v1814
        %2015 = vmatpush.msra.mxu0 %v1811
        %2016 = vmatmul.f32.gmra.mxu0 %v1379
        %v2017 = vpop.f32.mrf.mxu0
        %v2018 = vadd.f32 0.0, %v2017
        %2019 = vmatmul.f32.gmra.mxu0 %v1382
        %v2020 = vpop.f32.mrf.mxu0
        %v2021 = vadd.f32 0.0, %v2020
        %2022 = vdwg.mxu0
        %2023 = vmatpush.msra.mxu0 0.0
        %2024 = vmatpush.msra.mxu0 0.0
        %2025 = vmatpush.msra.mxu0 0.0
        %2026 = vmatpush.msra.mxu0 0.0
        %2027 = vmatpush.msra.mxu0 0.0
        %2028 = vmatpush.msra.mxu0 0.0
        %2029 = vmatpush.msra.mxu0 0.0
        %2030 = vmatpush.msra.mxu0 0.0
        %2031 = vmatpush.msra.mxu0 0.0
        %2032 = vmatpush.msra.mxu0 0.0
        %2033 = vmatpush.msra.mxu0 0.0
        %2034 = vmatpush.msra.mxu0 0.0
        %2035 = vmatpush.msra.mxu0 0.0
        %2036 = vmatpush.msra.mxu0 0.0
        %2037 = vmatpush.msra.mxu0 %v1837
        %2038 = vmatpush.msra.mxu0 %v1834
        %2039 = vmatmul.f32.gmra.mxu0 %v1379
        %v2040 = vpop.f32.mrf.mxu0
        %v2041 = vadd.f32 0.0, %v2040
        %2042 = vmatmul.f32.gmra.mxu0 %v1382
        %v2043 = vpop.f32.mrf.mxu0
        %v2044 = vadd.f32 0.0, %v2043
        %2045 = vdwg.mxu0
        %v2046 = vadd.f32 %v1926, %v1995
        %v2047 = vadd.f32 %v1949, %v2018
        %v2048 = vadd.f32 %v1972, %v2041
        %v2049 = vadd.f32 %v1929, %v1998
        %v2050 = vadd.f32 %v1952, %v2021
        %v2051 = vadd.f32 %v1975, %v2044
        %2052 = vmatpush.msra.mxu0 %v1000
        %2053 = vmatpush.msra.mxu0 %v998
        %2054 = vmatpush.msra.mxu0 %v996
        %2055 = vmatpush.msra.mxu0 %v994
        %2056 = vmatpush.msra.mxu0 %v992
        %2057 = vmatpush.msra.mxu0 %v990
        %2058 = vmatpush.msra.mxu0 %v988
        %2059 = vmatpush.msra.mxu0 %v986
        %2060 = vmatpush.msra.mxu0 %v984
        %2061 = vmatpush.msra.mxu0 %v982
        %2062 = vmatpush.msra.mxu0 %v980
        %2063 = vmatpush.msra.mxu0 %v978
        %2064 = vmatpush.msra.mxu0 %v976
        %2065 = vmatpush.msra.mxu0 %v974
        %2066 = vmatpush.msra.mxu0 %v972
        %2067 = vmatpush.msra.mxu0 %v970
        %2068 = vmatmul.f32.gmra.mxu0 %v1630
        %v2069 = vpop.f32.mrf.mxu0
        %v2070 = vadd.f32 %v1460, %v2069
        %2071 = vmatmul.f32.gmra.mxu0 %v1631
        %v2072 = vpop.f32.mrf.mxu0
        %v2073 = vadd.f32 %v1460, %v2072
        %2074 = vdwg.mxu0
        %2075 = vmatpush.msra.mxu0 %v1001
        %2076 = vmatpush.msra.mxu0 %v999
        %2077 = vmatpush.msra.mxu0 %v997
        %2078 = vmatpush.msra.mxu0 %v995
        %2079 = vmatpush.msra.mxu0 %v993
        %2080 = vmatpush.msra.mxu0 %v991
        %2081 = vmatpush.msra.mxu0 %v989
        %2082 = vmatpush.msra.mxu0 %v987
        %2083 = vmatpush.msra.mxu0 %v985
        %2084 = vmatpush.msra.mxu0 %v983
        %2085 = vmatpush.msra.mxu0 %v981
        %2086 = vmatpush.msra.mxu0 %v979
        %2087 = vmatpush.msra.mxu0 %v977
        %2088 = vmatpush.msra.mxu0 %v975
        %2089 = vmatpush.msra.mxu0 %v973
        %2090 = vmatpush.msra.mxu0 %v971
        %2091 = vmatmul.f32.gmra.mxu0 %v1630
        %v2092 = vpop.f32.mrf.mxu0
        %v2093 = vadd.f32 %v1461, %v2092
        %2094 = vmatmul.f32.gmra.mxu0 %v1631
        %v2095 = vpop.f32.mrf.mxu0
        %v2096 = vadd.f32 %v1461, %v2095
        %2097 = vdwg.mxu0
        %v2098 = vadd.f32 %v2070, %v2046
        %v2099 = vadd.f32 %v2093, %v2047
        %v2100 = vadd.f32 %v2073, %v2049
        %v2101 = vadd.f32 %v2096, %v2050
        %v2102 = vxor.u32 %v2098, 2147483648
        %v2103 = vxor.u32 %v2099, 2147483648
        %v2104 = vxor.u32 %v2100, 2147483648
        %v2105 = vxor.u32 %v2101, 2147483648
        %v2106 = vmul.f32 %v2102, 1.442695
        %v2107 = vpow.pop %v2106
        %v2108 = vmul.f32 %v2103, 1.442695
        %v2109 = vpow.pop %v2108
        %v2110 = vmul.f32 %v2104, 1.442695
        %v2111 = vpow.pop %v2110
        %v2112 = vmul.f32 %v2105, 1.442695
        %v2113 = vpow.pop %v2112
        %v2114 = vadd.f32 %v2107, 1.0
        %v2115 = vadd.f32 %v2109, 1.0
        %v2116 = vadd.f32 %v2111, 1.0
        %v2117 = vadd.f32 %v2113, 1.0
        %v2118 = vrcp.pop %v2114
        %v2119 = vmul.f32 %v2114, %v2118
        %v2120 = vsub.f32 1.0, %v2119
        %v2121 = vmul.f32 %v2118, %v2120
        %v2122 = vadd.f32 %v2118, %v2121
        %vm2123 = vweird.f32 %v2114
        %vm2124 = vweird.f32 %v2118
        %vm2125 = vmor %vm2123, %vm2124
        %v2126 = vsel %vm2125, %v2118, %v2122
        %v2127 = vand.u32 2147483647, %v2114
        %vm2128 = vcmp.eq.f32.partialorder %v2127, 8.507059e+37
        %v2129 = vand.u32 %v2114, 2147483648
        %v2130 = vor.u32 1.1754944e-38, %v2129
        %v2131 = vsel %vm2128, %v2130, %v2126
        %v2132 = vmul.f32 1.0, %v2131
        %v2133 = vrcp.pop %v2115
        %v2134 = vmul.f32 %v2115, %v2133
        %v2135 = vsub.f32 1.0, %v2134
        %v2136 = vmul.f32 %v2133, %v2135
        %v2137 = vadd.f32 %v2133, %v2136
        %vm2138 = vweird.f32 %v2115
        %vm2139 = vweird.f32 %v2133
        %vm2140 = vmor %vm2138, %vm2139
        %v2141 = vsel %vm2140, %v2133, %v2137
        %v2142 = vand.u32 2147483647, %v2115
        %vm2143 = vcmp.eq.f32.partialorder %v2142, 8.507059e+37
        %v2144 = vand.u32 %v2115, 2147483648
        %v2145 = vor.u32 1.1754944e-38, %v2144
        %v2146 = vsel %vm2143, %v2145, %v2141
        %v2147 = vmul.f32 1.0, %v2146
        %v2148 = vrcp.pop %v2116
        %v2149 = vmul.f32 %v2116, %v2148
        %v2150 = vsub.f32 1.0, %v2149
        %v2151 = vmul.f32 %v2148, %v2150
        %v2152 = vadd.f32 %v2148, %v2151
        %vm2153 = vweird.f32 %v2116
        %vm2154 = vweird.f32 %v2148
        %vm2155 = vmor %vm2153, %vm2154
        %v2156 = vsel %vm2155, %v2148, %v2152
        %v2157 = vand.u32 2147483647, %v2116
        %vm2158 = vcmp.eq.f32.partialorder %v2157, 8.507059e+37
        %v2159 = vand.u32 %v2116, 2147483648
        %v2160 = vor.u32 1.1754944e-38, %v2159
        %v2161 = vsel %vm2158, %v2160, %v2156
        %v2162 = vmul.f32 1.0, %v2161
        %v2163 = vrcp.pop %v2117
        %v2164 = vmul.f32 %v2117, %v2163
        %v2165 = vsub.f32 1.0, %v2164
        %v2166 = vmul.f32 %v2163, %v2165
        %v2167 = vadd.f32 %v2163, %v2166
        %vm2168 = vweird.f32 %v2117
        %vm2169 = vweird.f32 %v2163
        %vm2170 = vmor %vm2168, %vm2169
        %v2171 = vsel %vm2170, %v2163, %v2167
        %v2172 = vand.u32 2147483647, %v2117
        %vm2173 = vcmp.eq.f32.partialorder %v2172, 8.507059e+37
        %v2174 = vand.u32 %v2117, 2147483648
        %v2175 = vor.u32 1.1754944e-38, %v2174
        %v2176 = vsel %vm2173, %v2175, %v2171
        %v2177 = vmul.f32 1.0, %v2176
        %v2178 = vmul.f32 %v2147, %v1630
        %v2179 = vmul.f32 %v2177, %v1631
        %2180 = vmatpush.msra.mxu0 %v1017
        %2181 = vmatpush.msra.mxu0 %v1016
        %2182 = vmatpush.msra.mxu0 %v1015
        %2183 = vmatpush.msra.mxu0 %v1014
        %2184 = vmatpush.msra.mxu0 %v1013
        %2185 = vmatpush.msra.mxu0 %v1012
        %2186 = vmatpush.msra.mxu0 %v1011
        %2187 = vmatpush.msra.mxu0 %v1010
        %2188 = vmatpush.msra.mxu0 %v1009
        %2189 = vmatpush.msra.mxu0 %v1008
        %2190 = vmatpush.msra.mxu0 %v1007
        %2191 = vmatpush.msra.mxu0 %v1006
        %2192 = vmatpush.msra.mxu0 %v1005
        %2193 = vmatpush.msra.mxu0 %v1004
        %2194 = vmatpush.msra.mxu0 %v1003
        %2195 = vmatpush.msra.mxu0 %v1002
        %2196 = vmatmul.f32.gmra.mxu0 %v2178
        %v2197 = vpop.f32.mrf.mxu0
        %v2198 = vadd.f32 0.0, %v2197
        %2199 = vmatmul.f32.gmra.mxu0 %v2179
        %v2200 = vpop.f32.mrf.mxu0
        %v2201 = vadd.f32 0.0, %v2200
        %2202 = vdwg.mxu0
        %v2203 = vadd.f32 %v2048, %v2198
        %v2204 = vadd.f32 %v2051, %v2201
        %v2205 = vadd.f32 %v2203, %v1618
        %v2206 = vadd.f32 %v2204, %v1618
        %v2207 = vtanh.pop %v2205
        %v2208 = vtanh.pop %v2206
        %v2209 = vsub.f32 1.0, %v2132
        %v2210 = vsub.f32 1.0, %v2162
        %v2211 = vmul.f32 %v2209, %v1630
        %v2212 = vmul.f32 %v2210, %v1631
        %v2213 = vmul.f32 %v2132, %v2207
        %v2214 = vmul.f32 %v2162, %v2208
        %v2215 = vadd.f32 %v2211, %v2213
        %v2216 = vadd.f32 %v2212, %v2214
        %2217 = vmatpush.msra.mxu0 %v961
        %2218 = vmatpush.msra.mxu0 %v952
        %2219 = vmatpush.msra.mxu0 %v943
        %2220 = vmatpush.msra.mxu0 %v934
        %2221 = vmatpush.msra.mxu0 %v925
        %2222 = vmatpush.msra.mxu0 %v916
        %2223 = vmatpush.msra.mxu0 %v907
        %2224 = vmatpush.msra.mxu0 %v898
        %2225 = vmatpush.msra.mxu0 %v889
        %2226 = vmatpush.msra.mxu0 %v880
        %2227 = vmatpush.msra.mxu0 %v871
        %2228 = vmatpush.msra.mxu0 %v862
        %2229 = vmatpush.msra.mxu0 %v853
        %2230 = vmatpush.msra.mxu0 %v844
        %2231 = vmatpush.msra.mxu0 %v835
        %2232 = vmatpush.msra.mxu0 %v826
        %2233 = vmatmul.f32.gmra.mxu0 %v2215
        %v2234 = vpop.f32.mrf.mxu0
        %v2235 = vadd.f32 0.0, %v2234
        %2236 = vmatmul.f32.gmra.mxu0 %v2216
        %v2237 = vpop.f32.mrf.mxu0
        %v2238 = vadd.f32 0.0, %v2237
        %2239 = vdwg.mxu0
        %2240 = vmatpush.msra.mxu0 %v962
        %2241 = vmatpush.msra.mxu0 %v953
        %2242 = vmatpush.msra.mxu0 %v944
        %2243 = vmatpush.msra.mxu0 %v935
        %2244 = vmatpush.msra.mxu0 %v926
        %2245 = vmatpush.msra.mxu0 %v917
        %2246 = vmatpush.msra.mxu0 %v908
        %2247 = vmatpush.msra.mxu0 %v899
        %2248 = vmatpush.msra.mxu0 %v890
        %2249 = vmatpush.msra.mxu0 %v881
        %2250 = vmatpush.msra.mxu0 %v872
        %2251 = vmatpush.msra.mxu0 %v863
        %2252 = vmatpush.msra.mxu0 %v854
        %2253 = vmatpush.msra.mxu0 %v845
        %2254 = vmatpush.msra.mxu0 %v836
        %2255 = vmatpush.msra.mxu0 %v827
        %2256 = vmatmul.f32.gmra.mxu0 %v2215
        %v2257 = vpop.f32.mrf.mxu0
        %v2258 = vadd.f32 0.0, %v2257
        %2259 = vmatmul.f32.gmra.mxu0 %v2216
        %v2260 = vpop.f32.mrf.mxu0
        %v2261 = vadd.f32 0.0, %v2260
        %2262 = vdwg.mxu0
        %2263 = vmatpush.msra.mxu0 %v963
        %2264 = vmatpush.msra.mxu0 %v954
        %2265 = vmatpush.msra.mxu0 %v945
        %2266 = vmatpush.msra.mxu0 %v936
        %2267 = vmatpush.msra.mxu0 %v927
        %2268 = vmatpush.msra.mxu0 %v918
        %2269 = vmatpush.msra.mxu0 %v909
        %2270 = vmatpush.msra.mxu0 %v900
        %2271 = vmatpush.msra.mxu0 %v891
        %2272 = vmatpush.msra.mxu0 %v882
        %2273 = vmatpush.msra.mxu0 %v873
        %2274 = vmatpush.msra.mxu0 %v864
        %2275 = vmatpush.msra.mxu0 %v855
        %2276 = vmatpush.msra.mxu0 %v846
        %2277 = vmatpush.msra.mxu0 %v837
        %2278 = vmatpush.msra.mxu0 %v828
        %2279 = vmatmul.f32.gmra.mxu0 %v2215
        %v2280 = vpop.f32.mrf.mxu0
        %v2281 = vadd.f32 0.0, %v2280
        %2282 = vmatmul.f32.gmra.mxu0 %v2216
        %v2283 = vpop.f32.mrf.mxu0
        %v2284 = vadd.f32 0.0, %v2283
        %2285 = vdwg.mxu0
        %2286 = vmatpush.msra.mxu0 %v964
        %2287 = vmatpush.msra.mxu0 %v955
        %2288 = vmatpush.msra.mxu0 %v946
        %2289 = vmatpush.msra.mxu0 %v937
        %2290 = vmatpush.msra.mxu0 %v928
        %2291 = vmatpush.msra.mxu0 %v919
        %2292 = vmatpush.msra.mxu0 %v910
        %2293 = vmatpush.msra.mxu0 %v901
        %2294 = vmatpush.msra.mxu0 %v892
        %2295 = vmatpush.msra.mxu0 %v883
        %2296 = vmatpush.msra.mxu0 %v874
        %2297 = vmatpush.msra.mxu0 %v865
        %2298 = vmatpush.msra.mxu0 %v856
        %2299 = vmatpush.msra.mxu0 %v847
        %2300 = vmatpush.msra.mxu0 %v838
        %2301 = vmatpush.msra.mxu0 %v829
        %2302 = vmatmul.f32.gmra.mxu0 %v2215
        %v2303 = vpop.f32.mrf.mxu0
        %v2304 = vadd.f32 0.0, %v2303
        %2305 = vmatmul.f32.gmra.mxu0 %v2216
        %v2306 = vpop.f32.mrf.mxu0
        %v2307 = vadd.f32 0.0, %v2306
        %2308 = vdwg.mxu0
        %2309 = vmatpush.msra.mxu0 %v965
        %2310 = vmatpush.msra.mxu0 %v956
        %2311 = vmatpush.msra.mxu0 %v947
        %2312 = vmatpush.msra.mxu0 %v938
        %2313 = vmatpush.msra.mxu0 %v929
        %2314 = vmatpush.msra.mxu0 %v920
        %2315 = vmatpush.msra.mxu0 %v911
        %2316 = vmatpush.msra.mxu0 %v902
        %2317 = vmatpush.msra.mxu0 %v893
        %2318 = vmatpush.msra.mxu0 %v884
        %2319 = vmatpush.msra.mxu0 %v875
        %2320 = vmatpush.msra.mxu0 %v866
        %2321 = vmatpush.msra.mxu0 %v857
        %2322 = vmatpush.msra.mxu0 %v848
        %2323 = vmatpush.msra.mxu0 %v839
        %2324 = vmatpush.msra.mxu0 %v830
        %2325 = vmatmul.f32.gmra.mxu0 %v2215
        %v2326 = vpop.f32.mrf.mxu0
        %v2327 = vadd.f32 0.0, %v2326
        %2328 = vmatmul.f32.gmra.mxu0 %v2216
        %v2329 = vpop.f32.mrf.mxu0
        %v2330 = vadd.f32 0.0, %v2329
        %2331 = vdwg.mxu0
        %2332 = vmatpush.msra.mxu0 %v966
        %2333 = vmatpush.msra.mxu0 %v957
        %2334 = vmatpush.msra.mxu0 %v948
        %2335 = vmatpush.msra.mxu0 %v939
        %2336 = vmatpush.msra.mxu0 %v930
        %2337 = vmatpush.msra.mxu0 %v921
        %2338 = vmatpush.msra.mxu0 %v912
        %2339 = vmatpush.msra.mxu0 %v903
        %2340 = vmatpush.msra.mxu0 %v894
        %2341 = vmatpush.msra.mxu0 %v885
        %2342 = vmatpush.msra.mxu0 %v876
        %2343 = vmatpush.msra.mxu0 %v867
        %2344 = vmatpush.msra.mxu0 %v858
        %2345 = vmatpush.msra.mxu0 %v849
        %2346 = vmatpush.msra.mxu0 %v840
        %2347 = vmatpush.msra.mxu0 %v831
        %2348 = vmatmul.f32.gmra.mxu0 %v2215
        %v2349 = vpop.f32.mrf.mxu0
        %v2350 = vadd.f32 0.0, %v2349
        %2351 = vmatmul.f32.gmra.mxu0 %v2216
        %v2352 = vpop.f32.mrf.mxu0
        %v2353 = vadd.f32 0.0, %v2352
        %2354 = vdwg.mxu0
        %2355 = vmatpush.msra.mxu0 %v967
        %2356 = vmatpush.msra.mxu0 %v958
        %2357 = vmatpush.msra.mxu0 %v949
        %2358 = vmatpush.msra.mxu0 %v940
        %2359 = vmatpush.msra.mxu0 %v931
        %2360 = vmatpush.msra.mxu0 %v922
        %2361 = vmatpush.msra.mxu0 %v913
        %2362 = vmatpush.msra.mxu0 %v904
        %2363 = vmatpush.msra.mxu0 %v895
        %2364 = vmatpush.msra.mxu0 %v886
        %2365 = vmatpush.msra.mxu0 %v877
        %2366 = vmatpush.msra.mxu0 %v868
        %2367 = vmatpush.msra.mxu0 %v859
        %2368 = vmatpush.msra.mxu0 %v850
        %2369 = vmatpush.msra.mxu0 %v841
        %2370 = vmatpush.msra.mxu0 %v832
        %2371 = vmatmul.f32.gmra.mxu0 %v2215
        %v2372 = vpop.f32.mrf.mxu0
        %v2373 = vadd.f32 0.0, %v2372
        %2374 = vmatmul.f32.gmra.mxu0 %v2216
        %v2375 = vpop.f32.mrf.mxu0
        %v2376 = vadd.f32 0.0, %v2375
        %2377 = vdwg.mxu0
        %2378 = vmatpush.msra.mxu0 %v968
        %2379 = vmatpush.msra.mxu0 %v959
        %2380 = vmatpush.msra.mxu0 %v950
        %2381 = vmatpush.msra.mxu0 %v941
        %2382 = vmatpush.msra.mxu0 %v932
        %2383 = vmatpush.msra.mxu0 %v923
        %2384 = vmatpush.msra.mxu0 %v914
        %2385 = vmatpush.msra.mxu0 %v905
        %2386 = vmatpush.msra.mxu0 %v896
        %2387 = vmatpush.msra.mxu0 %v887
        %2388 = vmatpush.msra.mxu0 %v878
        %2389 = vmatpush.msra.mxu0 %v869
        %2390 = vmatpush.msra.mxu0 %v860
        %2391 = vmatpush.msra.mxu0 %v851
        %2392 = vmatpush.msra.mxu0 %v842
        %2393 = vmatpush.msra.mxu0 %v833
        %2394 = vmatmul.f32.gmra.mxu0 %v2215
        %v2395 = vpop.f32.mrf.mxu0
        %v2396 = vadd.f32 0.0, %v2395
        %2397 = vmatmul.f32.gmra.mxu0 %v2216
        %v2398 = vpop.f32.mrf.mxu0
        %v2399 = vadd.f32 0.0, %v2398
        %2400 = vdwg.mxu0
        %2401 = vmatpush.msra.mxu0 %v969
        %2402 = vmatpush.msra.mxu0 %v960
        %2403 = vmatpush.msra.mxu0 %v951
        %2404 = vmatpush.msra.mxu0 %v942
        %2405 = vmatpush.msra.mxu0 %v933
        %2406 = vmatpush.msra.mxu0 %v924
        %2407 = vmatpush.msra.mxu0 %v915
        %2408 = vmatpush.msra.mxu0 %v906
        %2409 = vmatpush.msra.mxu0 %v897
        %2410 = vmatpush.msra.mxu0 %v888
        %2411 = vmatpush.msra.mxu0 %v879
        %2412 = vmatpush.msra.mxu0 %v870
        %2413 = vmatpush.msra.mxu0 %v861
        %2414 = vmatpush.msra.mxu0 %v852
        %2415 = vmatpush.msra.mxu0 %v843
        %2416 = vmatpush.msra.mxu0 %v834
        %2417 = vmatmul.f32.gmra.mxu0 %v2215
        %v2418 = vpop.f32.mrf.mxu0
        %v2419 = vadd.f32 0.0, %v2418
        %2420 = vmatmul.f32.gmra.mxu0 %v2216
        %v2421 = vpop.f32.mrf.mxu0
        %v2422 = vadd.f32 0.0, %v2421
        %2423 = vdwg.mxu0
        %2424 = vmatpush.msra.mxu0 0.0
        %2425 = vmatpush.msra.mxu0 0.0
        %2426 = vmatpush.msra.mxu0 0.0
        %2427 = vmatpush.msra.mxu0 0.0
        %2428 = vmatpush.msra.mxu0 0.0
        %2429 = vmatpush.msra.mxu0 0.0
        %2430 = vmatpush.msra.mxu0 0.0
        %2431 = vmatpush.msra.mxu0 0.0
        %2432 = vmatpush.msra.mxu0 0.0
        %2433 = vmatpush.msra.mxu0 0.0
        %2434 = vmatpush.msra.mxu0 0.0
        %2435 = vmatpush.msra.mxu0 0.0
        %2436 = vmatpush.msra.mxu0 0.0
        %2437 = vmatpush.msra.mxu0 0.0
        %2438 = vmatpush.msra.mxu0 %v2307
        %2439 = vmatpush.msra.mxu0 %v2304
        %2440 = vmatmul.f32.gmra.mxu0 %v1229
        %v2441 = vpop.f32.mrf.mxu0
        %v2442 = vadd.f32 0.0, %v2441
        %2443 = vmatmul.f32.gmra.mxu0 %v1232
        %v2444 = vpop.f32.mrf.mxu0
        %v2445 = vadd.f32 0.0, %v2444
        %2446 = vdwg.mxu0
        %2447 = vmatpush.msra.mxu0 0.0
        %2448 = vmatpush.msra.mxu0 0.0
        %2449 = vmatpush.msra.mxu0 0.0
        %2450 = vmatpush.msra.mxu0 0.0
        %2451 = vmatpush.msra.mxu0 0.0
        %2452 = vmatpush.msra.mxu0 0.0
        %2453 = vmatpush.msra.mxu0 0.0
        %2454 = vmatpush.msra.mxu0 0.0
        %2455 = vmatpush.msra.mxu0 0.0
        %2456 = vmatpush.msra.mxu0 0.0
        %2457 = vmatpush.msra.mxu0 0.0
        %2458 = vmatpush.msra.mxu0 0.0
        %2459 = vmatpush.msra.mxu0 0.0
        %2460 = vmatpush.msra.mxu0 0.0
        %2461 = vmatpush.msra.mxu0 %v2330
        %2462 = vmatpush.msra.mxu0 %v2327
        %2463 = vmatmul.f32.gmra.mxu0 %v1229
        %v2464 = vpop.f32.mrf.mxu0
        %v2465 = vadd.f32 0.0, %v2464
        %2466 = vmatmul.f32.gmra.mxu0 %v1232
        %v2467 = vpop.f32.mrf.mxu0
        %v2468 = vadd.f32 0.0, %v2467
        %2469 = vdwg.mxu0
        %2470 = vmatpush.msra.mxu0 0.0
        %2471 = vmatpush.msra.mxu0 0.0
        %2472 = vmatpush.msra.mxu0 0.0
        %2473 = vmatpush.msra.mxu0 0.0
        %2474 = vmatpush.msra.mxu0 0.0
        %2475 = vmatpush.msra.mxu0 0.0
        %2476 = vmatpush.msra.mxu0 0.0
        %2477 = vmatpush.msra.mxu0 0.0
        %2478 = vmatpush.msra.mxu0 0.0
        %2479 = vmatpush.msra.mxu0 0.0
        %2480 = vmatpush.msra.mxu0 0.0
        %2481 = vmatpush.msra.mxu0 0.0
        %2482 = vmatpush.msra.mxu0 0.0
        %2483 = vmatpush.msra.mxu0 0.0
        %2484 = vmatpush.msra.mxu0 %v2353
        %2485 = vmatpush.msra.mxu0 %v2350
        %2486 = vmatmul.f32.gmra.mxu0 %v1229
        %v2487 = vpop.f32.mrf.mxu0
        %v2488 = vadd.f32 0.0, %v2487
        %2489 = vmatmul.f32.gmra.mxu0 %v1232
        %v2490 = vpop.f32.mrf.mxu0
        %v2491 = vadd.f32 0.0, %v2490
        %2492 = vdwg.mxu0
        %2493 = vmatpush.msra.mxu0 0.0
        %2494 = vmatpush.msra.mxu0 0.0
        %2495 = vmatpush.msra.mxu0 0.0
        %2496 = vmatpush.msra.mxu0 0.0
        %2497 = vmatpush.msra.mxu0 0.0
        %2498 = vmatpush.msra.mxu0 0.0
        %2499 = vmatpush.msra.mxu0 0.0
        %2500 = vmatpush.msra.mxu0 0.0
        %2501 = vmatpush.msra.mxu0 0.0
        %2502 = vmatpush.msra.mxu0 0.0
        %2503 = vmatpush.msra.mxu0 0.0
        %2504 = vmatpush.msra.mxu0 0.0
        %2505 = vmatpush.msra.mxu0 0.0
        %2506 = vmatpush.msra.mxu0 0.0
        %2507 = vmatpush.msra.mxu0 %v2238
        %2508 = vmatpush.msra.mxu0 %v2235
        %2509 = vmatmul.f32.gmra.mxu0 %v1304
        %v2510 = vpop.f32.mrf.mxu0
        %v2511 = vadd.f32 %v2442, %v2510
        %2512 = vmatmul.f32.gmra.mxu0 %v1307
        %v2513 = vpop.f32.mrf.mxu0
        %v2514 = vadd.f32 %v2445, %v2513
        %2515 = vdwg.mxu0
        %2516 = vmatpush.msra.mxu0 0.0
        %2517 = vmatpush.msra.mxu0 0.0
        %2518 = vmatpush.msra.mxu0 0.0
        %2519 = vmatpush.msra.mxu0 0.0
        %2520 = vmatpush.msra.mxu0 0.0
        %2521 = vmatpush.msra.mxu0 0.0
        %2522 = vmatpush.msra.mxu0 0.0
        %2523 = vmatpush.msra.mxu0 0.0
        %2524 = vmatpush.msra.mxu0 0.0
        %2525 = vmatpush.msra.mxu0 0.0
        %2526 = vmatpush.msra.mxu0 0.0
        %2527 = vmatpush.msra.mxu0 0.0
        %2528 = vmatpush.msra.mxu0 0.0
        %2529 = vmatpush.msra.mxu0 0.0
        %2530 = vmatpush.msra.mxu0 %v2261
        %2531 = vmatpush.msra.mxu0 %v2258
        %2532 = vmatmul.f32.gmra.mxu0 %v1304
        %v2533 = vpop.f32.mrf.mxu0
        %v2534 = vadd.f32 %v2465, %v2533
        %2535 = vmatmul.f32.gmra.mxu0 %v1307
        %v2536 = vpop.f32.mrf.mxu0
        %v2537 = vadd.f32 %v2468, %v2536
        %2538 = vdwg.mxu0
        %2539 = vmatpush.msra.mxu0 0.0
        %2540 = vmatpush.msra.mxu0 0.0
        %2541 = vmatpush.msra.mxu0 0.0
        %2542 = vmatpush.msra.mxu0 0.0
        %2543 = vmatpush.msra.mxu0 0.0
        %2544 = vmatpush.msra.mxu0 0.0
        %2545 = vmatpush.msra.mxu0 0.0
        %2546 = vmatpush.msra.mxu0 0.0
        %2547 = vmatpush.msra.mxu0 0.0
        %2548 = vmatpush.msra.mxu0 0.0
        %2549 = vmatpush.msra.mxu0 0.0
        %2550 = vmatpush.msra.mxu0 0.0
        %2551 = vmatpush.msra.mxu0 0.0
        %2552 = vmatpush.msra.mxu0 0.0
        %2553 = vmatpush.msra.mxu0 %v2284
        %2554 = vmatpush.msra.mxu0 %v2281
        %2555 = vmatmul.f32.gmra.mxu0 %v1304
        %v2556 = vpop.f32.mrf.mxu0
        %v2557 = vadd.f32 %v2488, %v2556
        %2558 = vmatmul.f32.gmra.mxu0 %v1307
        %v2559 = vpop.f32.mrf.mxu0
        %v2560 = vadd.f32 %v2491, %v2559
        %2561 = vdwg.mxu0
        %2562 = vmatpush.msra.mxu0 0.0
        %2563 = vmatpush.msra.mxu0 0.0
        %2564 = vmatpush.msra.mxu0 0.0
        %2565 = vmatpush.msra.mxu0 0.0
        %2566 = vmatpush.msra.mxu0 0.0
        %2567 = vmatpush.msra.mxu0 0.0
        %2568 = vmatpush.msra.mxu0 0.0
        %2569 = vmatpush.msra.mxu0 0.0
        %2570 = vmatpush.msra.mxu0 0.0
        %2571 = vmatpush.msra.mxu0 0.0
        %2572 = vmatpush.msra.mxu0 0.0
        %2573 = vmatpush.msra.mxu0 0.0
        %2574 = vmatpush.msra.mxu0 0.0
        %2575 = vmatpush.msra.mxu0 0.0
        %2576 = vmatpush.msra.mxu0 %v2376
        %2577 = vmatpush.msra.mxu0 %v2373
        %2578 = vmatmul.f32.gmra.mxu0 %v1379
        %v2579 = vpop.f32.mrf.mxu0
        %v2580 = vadd.f32 0.0, %v2579
        %2581 = vmatmul.f32.gmra.mxu0 %v1382
        %v2582 = vpop.f32.mrf.mxu0
        %v2583 = vadd.f32 0.0, %v2582
        %2584 = vdwg.mxu0
        %2585 = vmatpush.msra.mxu0 0.0
        %2586 = vmatpush.msra.mxu0 0.0
        %2587 = vmatpush.msra.mxu0 0.0
        %2588 = vmatpush.msra.mxu0 0.0
        %2589 = vmatpush.msra.mxu0 0.0
        %2590 = vmatpush.msra.mxu0 0.0
        %2591 = vmatpush.msra.mxu0 0.0
        %2592 = vmatpush.msra.mxu0 0.0
        %2593 = vmatpush.msra.mxu0 0.0
        %2594 = vmatpush.msra.mxu0 0.0
        %2595 = vmatpush.msra.mxu0 0.0
        %2596 = vmatpush.msra.mxu0 0.0
        %2597 = vmatpush.msra.mxu0 0.0
        %2598 = vmatpush.msra.mxu0 0.0
        %2599 = vmatpush.msra.mxu0 %v2399
        %2600 = vmatpush.msra.mxu0 %v2396
        %2601 = vmatmul.f32.gmra.mxu0 %v1379
        %v2602 = vpop.f32.mrf.mxu0
        %v2603 = vadd.f32 0.0, %v2602
        %2604 = vmatmul.f32.gmra.mxu0 %v1382
        %v2605 = vpop.f32.mrf.mxu0
        %v2606 = vadd.f32 0.0, %v2605
        %2607 = vdwg.mxu0
        %2608 = vmatpush.msra.mxu0 0.0
        %2609 = vmatpush.msra.mxu0 0.0
        %2610 = vmatpush.msra.mxu0 0.0
        %2611 = vmatpush.msra.mxu0 0.0
        %2612 = vmatpush.msra.mxu0 0.0
        %2613 = vmatpush.msra.mxu0 0.0
        %2614 = vmatpush.msra.mxu0 0.0
        %2615 = vmatpush.msra.mxu0 0.0
        %2616 = vmatpush.msra.mxu0 0.0
        %2617 = vmatpush.msra.mxu0 0.0
        %2618 = vmatpush.msra.mxu0 0.0
        %2619 = vmatpush.msra.mxu0 0.0
        %2620 = vmatpush.msra.mxu0 0.0
        %2621 = vmatpush.msra.mxu0 0.0
        %2622 = vmatpush.msra.mxu0 %v2422
        %2623 = vmatpush.msra.mxu0 %v2419
        %2624 = vmatmul.f32.gmra.mxu0 %v1379
        %v2625 = vpop.f32.mrf.mxu0
        %v2626 = vadd.f32 0.0, %v2625
        %2627 = vmatmul.f32.gmra.mxu0 %v1382
        %v2628 = vpop.f32.mrf.mxu0
        %v2629 = vadd.f32 0.0, %v2628
        %2630 = vdwg.mxu0
        %v2631 = vadd.f32 %v2511, %v2580
        %v2632 = vadd.f32 %v2534, %v2603
        %v2633 = vadd.f32 %v2557, %v2626
        %v2634 = vadd.f32 %v2514, %v2583
        %v2635 = vadd.f32 %v2537, %v2606
        %v2636 = vadd.f32 %v2560, %v2629
        %2637 = vmatpush.msra.mxu0 %v1000
        %2638 = vmatpush.msra.mxu0 %v998
        %2639 = vmatpush.msra.mxu0 %v996
        %2640 = vmatpush.msra.mxu0 %v994
        %2641 = vmatpush.msra.mxu0 %v992
        %2642 = vmatpush.msra.mxu0 %v990
        %2643 = vmatpush.msra.mxu0 %v988
        %2644 = vmatpush.msra.mxu0 %v986
        %2645 = vmatpush.msra.mxu0 %v984
        %2646 = vmatpush.msra.mxu0 %v982
        %2647 = vmatpush.msra.mxu0 %v980
        %2648 = vmatpush.msra.mxu0 %v978
        %2649 = vmatpush.msra.mxu0 %v976
        %2650 = vmatpush.msra.mxu0 %v974
        %2651 = vmatpush.msra.mxu0 %v972
        %2652 = vmatpush.msra.mxu0 %v970
        %2653 = vmatmul.f32.gmra.mxu0 %v2215
        %v2654 = vpop.f32.mrf.mxu0
        %v2655 = vadd.f32 %v1460, %v2654
        %2656 = vmatmul.f32.gmra.mxu0 %v2216
        %v2657 = vpop.f32.mrf.mxu0
        %v2658 = vadd.f32 %v1460, %v2657
        %2659 = vdwg.mxu0
        %2660 = vmatpush.msra.mxu0 %v1001
        %2661 = vmatpush.msra.mxu0 %v999
        %2662 = vmatpush.msra.mxu0 %v997
        %2663 = vmatpush.msra.mxu0 %v995
        %2664 = vmatpush.msra.mxu0 %v993
        %2665 = vmatpush.msra.mxu0 %v991
        %2666 = vmatpush.msra.mxu0 %v989
        %2667 = vmatpush.msra.mxu0 %v987
        %2668 = vmatpush.msra.mxu0 %v985
        %2669 = vmatpush.msra.mxu0 %v983
        %2670 = vmatpush.msra.mxu0 %v981
        %2671 = vmatpush.msra.mxu0 %v979
        %2672 = vmatpush.msra.mxu0 %v977
        %2673 = vmatpush.msra.mxu0 %v975
        %2674 = vmatpush.msra.mxu0 %v973
        %2675 = vmatpush.msra.mxu0 %v971
        %2676 = vmatmul.f32.gmra.mxu0 %v2215
        %v2677 = vpop.f32.mrf.mxu0
        %v2678 = vadd.f32 %v1461, %v2677
        %2679 = vmatmul.f32.gmra.mxu0 %v2216
        %v2680 = vpop.f32.mrf.mxu0
        %v2681 = vadd.f32 %v1461, %v2680
        %2682 = vdwg.mxu0
        %v2683 = vadd.f32 %v2655, %v2631
        %v2684 = vadd.f32 %v2678, %v2632
        %v2685 = vadd.f32 %v2658, %v2634
        %v2686 = vadd.f32 %v2681, %v2635
        %v2687 = vxor.u32 %v2683, 2147483648
        %v2688 = vxor.u32 %v2684, 2147483648
        %v2689 = vxor.u32 %v2685, 2147483648
        %v2690 = vxor.u32 %v2686, 2147483648
        %v2691 = vmul.f32 %v2687, 1.442695
        %v2692 = vpow.pop %v2691
        %v2693 = vmul.f32 %v2688, 1.442695
        %v2694 = vpow.pop %v2693
        %v2695 = vmul.f32 %v2689, 1.442695
        %v2696 = vpow.pop %v2695
        %v2697 = vmul.f32 %v2690, 1.442695
        %v2698 = vpow.pop %v2697
        %v2699 = vadd.f32 %v2692, 1.0
        %v2700 = vadd.f32 %v2694, 1.0
        %v2701 = vadd.f32 %v2696, 1.0
        %v2702 = vadd.f32 %v2698, 1.0
        %v2703 = vrcp.pop %v2699
        %v2704 = vmul.f32 %v2699, %v2703
        %v2705 = vsub.f32 1.0, %v2704
        %v2706 = vmul.f32 %v2703, %v2705
        %v2707 = vadd.f32 %v2703, %v2706
        %vm2708 = vweird.f32 %v2699
        %vm2709 = vweird.f32 %v2703
        %vm2710 = vmor %vm2708, %vm2709
        %v2711 = vsel %vm2710, %v2703, %v2707
        %v2712 = vand.u32 2147483647, %v2699
        %vm2713 = vcmp.eq.f32.partialorder %v2712, 8.507059e+37
        %v2714 = vand.u32 %v2699, 2147483648
        %v2715 = vor.u32 1.1754944e-38, %v2714
        %v2716 = vsel %vm2713, %v2715, %v2711
        %v2717 = vmul.f32 1.0, %v2716
        %v2718 = vrcp.pop %v2700
        %v2719 = vmul.f32 %v2700, %v2718
        %v2720 = vsub.f32 1.0, %v2719
        %v2721 = vmul.f32 %v2718, %v2720
        %v2722 = vadd.f32 %v2718, %v2721
        %vm2723 = vweird.f32 %v2700
        %vm2724 = vweird.f32 %v2718
        %vm2725 = vmor %vm2723, %vm2724
        %v2726 = vsel %vm2725, %v2718, %v2722
        %v2727 = vand.u32 2147483647, %v2700
        %vm2728 = vcmp.eq.f32.partialorder %v2727, 8.507059e+37
        %v2729 = vand.u32 %v2700, 2147483648
        %v2730 = vor.u32 1.1754944e-38, %v2729
        %v2731 = vsel %vm2728, %v2730, %v2726
        %v2732 = vmul.f32 1.0, %v2731
        %v2733 = vrcp.pop %v2701
        %v2734 = vmul.f32 %v2701, %v2733
        %v2735 = vsub.f32 1.0, %v2734
        %v2736 = vmul.f32 %v2733, %v2735
        %v2737 = vadd.f32 %v2733, %v2736
        %vm2738 = vweird.f32 %v2701
        %vm2739 = vweird.f32 %v2733
        %vm2740 = vmor %vm2738, %vm2739
        %v2741 = vsel %vm2740, %v2733, %v2737
        %v2742 = vand.u32 2147483647, %v2701
        %vm2743 = vcmp.eq.f32.partialorder %v2742, 8.507059e+37
        %v2744 = vand.u32 %v2701, 2147483648
        %v2745 = vor.u32 1.1754944e-38, %v2744
        %v2746 = vsel %vm2743, %v2745, %v2741
        %v2747 = vmul.f32 1.0, %v2746
        %v2748 = vrcp.pop %v2702
        %v2749 = vmul.f32 %v2702, %v2748
        %v2750 = vsub.f32 1.0, %v2749
        %v2751 = vmul.f32 %v2748, %v2750
        %v2752 = vadd.f32 %v2748, %v2751
        %vm2753 = vweird.f32 %v2702
        %vm2754 = vweird.f32 %v2748
        %vm2755 = vmor %vm2753, %vm2754
        %v2756 = vsel %vm2755, %v2748, %v2752
        %v2757 = vand.u32 2147483647, %v2702
        %vm2758 = vcmp.eq.f32.partialorder %v2757, 8.507059e+37
        %v2759 = vand.u32 %v2702, 2147483648
        %v2760 = vor.u32 1.1754944e-38, %v2759
        %v2761 = vsel %vm2758, %v2760, %v2756
        %v2762 = vmul.f32 1.0, %v2761
        %v2763 = vmul.f32 %v2732, %v2215
        %v2764 = vmul.f32 %v2762, %v2216
        %2765 = vmatpush.msra.mxu0 %v1017
        %2766 = vmatpush.msra.mxu0 %v1016
        %2767 = vmatpush.msra.mxu0 %v1015
        %2768 = vmatpush.msra.mxu0 %v1014
        %2769 = vmatpush.msra.mxu0 %v1013
        %2770 = vmatpush.msra.mxu0 %v1012
        %2771 = vmatpush.msra.mxu0 %v1011
        %2772 = vmatpush.msra.mxu0 %v1010
        %2773 = vmatpush.msra.mxu0 %v1009
        %2774 = vmatpush.msra.mxu0 %v1008
        %2775 = vmatpush.msra.mxu0 %v1007
        %2776 = vmatpush.msra.mxu0 %v1006
        %2777 = vmatpush.msra.mxu0 %v1005
        %2778 = vmatpush.msra.mxu0 %v1004
        %2779 = vmatpush.msra.mxu0 %v1003
        %2780 = vmatpush.msra.mxu0 %v1002
        %2781 = vmatmul.f32.gmra.mxu0 %v2763
        %v2782 = vpop.f32.mrf.mxu0
        %v2783 = vadd.f32 0.0, %v2782
        %2784 = vmatmul.f32.gmra.mxu0 %v2764
        %v2785 = vpop.f32.mrf.mxu0
        %v2786 = vadd.f32 0.0, %v2785
        %2787 = vdwg.mxu0
        %v2788 = vadd.f32 %v2633, %v2783
        %v2789 = vadd.f32 %v2636, %v2786
        %v2790 = vadd.f32 %v2788, %v1618
        %v2791 = vadd.f32 %v2789, %v1618
        %v2792 = vtanh.pop %v2790
        %v2793 = vtanh.pop %v2791
        %v2794 = vsub.f32 1.0, %v2717
        %v2795 = vsub.f32 1.0, %v2747
        %v2796 = vmul.f32 %v2794, %v2215
        %v2797 = vmul.f32 %v2795, %v2216
        %v2798 = vmul.f32 %v2717, %v2792
        %v2799 = vmul.f32 %v2747, %v2793
        %v2800 = vadd.f32 %v2796, %v2798
        %v2801 = vadd.f32 %v2797, %v2799
        %2802 = vmatpush.msra.mxu0 %v961
        %2803 = vmatpush.msra.mxu0 %v952
        %2804 = vmatpush.msra.mxu0 %v943
        %2805 = vmatpush.msra.mxu0 %v934
        %2806 = vmatpush.msra.mxu0 %v925
        %2807 = vmatpush.msra.mxu0 %v916
        %2808 = vmatpush.msra.mxu0 %v907
        %2809 = vmatpush.msra.mxu0 %v898
        %2810 = vmatpush.msra.mxu0 %v889
        %2811 = vmatpush.msra.mxu0 %v880
        %2812 = vmatpush.msra.mxu0 %v871
        %2813 = vmatpush.msra.mxu0 %v862
        %2814 = vmatpush.msra.mxu0 %v853
        %2815 = vmatpush.msra.mxu0 %v844
        %2816 = vmatpush.msra.mxu0 %v835
        %2817 = vmatpush.msra.mxu0 %v826
        %2818 = vmatmul.f32.gmra.mxu0 %v2800
        %v2819 = vpop.f32.mrf.mxu0
        %v2820 = vadd.f32 0.0, %v2819
        %2821 = vmatmul.f32.gmra.mxu0 %v2801
        %v2822 = vpop.f32.mrf.mxu0
        %v2823 = vadd.f32 0.0, %v2822
        %2824 = vdwg.mxu0
        %2825 = vmatpush.msra.mxu0 %v962
        %2826 = vmatpush.msra.mxu0 %v953
        %2827 = vmatpush.msra.mxu0 %v944
        %2828 = vmatpush.msra.mxu0 %v935
        %2829 = vmatpush.msra.mxu0 %v926
        %2830 = vmatpush.msra.mxu0 %v917
        %2831 = vmatpush.msra.mxu0 %v908
        %2832 = vmatpush.msra.mxu0 %v899
        %2833 = vmatpush.msra.mxu0 %v890
        %2834 = vmatpush.msra.mxu0 %v881
        %2835 = vmatpush.msra.mxu0 %v872
        %2836 = vmatpush.msra.mxu0 %v863
        %2837 = vmatpush.msra.mxu0 %v854
        %2838 = vmatpush.msra.mxu0 %v845
        %2839 = vmatpush.msra.mxu0 %v836
        %2840 = vmatpush.msra.mxu0 %v827
        %2841 = vmatmul.f32.gmra.mxu0 %v2800
        %v2842 = vpop.f32.mrf.mxu0
        %v2843 = vadd.f32 0.0, %v2842
        %2844 = vmatmul.f32.gmra.mxu0 %v2801
        %v2845 = vpop.f32.mrf.mxu0
        %v2846 = vadd.f32 0.0, %v2845
        %2847 = vdwg.mxu0
        %2848 = vmatpush.msra.mxu0 %v963
        %2849 = vmatpush.msra.mxu0 %v954
        %2850 = vmatpush.msra.mxu0 %v945
        %2851 = vmatpush.msra.mxu0 %v936
        %2852 = vmatpush.msra.mxu0 %v927
        %2853 = vmatpush.msra.mxu0 %v918
        %2854 = vmatpush.msra.mxu0 %v909
        %2855 = vmatpush.msra.mxu0 %v900
        %2856 = vmatpush.msra.mxu0 %v891
        %2857 = vmatpush.msra.mxu0 %v882
        %2858 = vmatpush.msra.mxu0 %v873
        %2859 = vmatpush.msra.mxu0 %v864
        %2860 = vmatpush.msra.mxu0 %v855
        %2861 = vmatpush.msra.mxu0 %v846
        %2862 = vmatpush.msra.mxu0 %v837
        %2863 = vmatpush.msra.mxu0 %v828
        %2864 = vmatmul.f32.gmra.mxu0 %v2800
        %v2865 = vpop.f32.mrf.mxu0
        %v2866 = vadd.f32 0.0, %v2865
        %2867 = vmatmul.f32.gmra.mxu0 %v2801
        %v2868 = vpop.f32.mrf.mxu0
        %v2869 = vadd.f32 0.0, %v2868
        %2870 = vdwg.mxu0
        %2871 = vmatpush.msra.mxu0 %v964
        %2872 = vmatpush.msra.mxu0 %v955
        %2873 = vmatpush.msra.mxu0 %v946
        %2874 = vmatpush.msra.mxu0 %v937
        %2875 = vmatpush.msra.mxu0 %v928
        %2876 = vmatpush.msra.mxu0 %v919
        %2877 = vmatpush.msra.mxu0 %v910
        %2878 = vmatpush.msra.mxu0 %v901
        %2879 = vmatpush.msra.mxu0 %v892
        %2880 = vmatpush.msra.mxu0 %v883
        %2881 = vmatpush.msra.mxu0 %v874
        %2882 = vmatpush.msra.mxu0 %v865
        %2883 = vmatpush.msra.mxu0 %v856
        %2884 = vmatpush.msra.mxu0 %v847
        %2885 = vmatpush.msra.mxu0 %v838
        %2886 = vmatpush.msra.mxu0 %v829
        %2887 = vmatmul.f32.gmra.mxu0 %v2800
        %v2888 = vpop.f32.mrf.mxu0
        %v2889 = vadd.f32 0.0, %v2888
        %2890 = vmatmul.f32.gmra.mxu0 %v2801
        %v2891 = vpop.f32.mrf.mxu0
        %v2892 = vadd.f32 0.0, %v2891
        %2893 = vdwg.mxu0
        %2894 = vmatpush.msra.mxu0 %v965
        %2895 = vmatpush.msra.mxu0 %v956
        %2896 = vmatpush.msra.mxu0 %v947
        %2897 = vmatpush.msra.mxu0 %v938
        %2898 = vmatpush.msra.mxu0 %v929
        %2899 = vmatpush.msra.mxu0 %v920
        %2900 = vmatpush.msra.mxu0 %v911
        %2901 = vmatpush.msra.mxu0 %v902
        %2902 = vmatpush.msra.mxu0 %v893
        %2903 = vmatpush.msra.mxu0 %v884
        %2904 = vmatpush.msra.mxu0 %v875
        %2905 = vmatpush.msra.mxu0 %v866
        %2906 = vmatpush.msra.mxu0 %v857
        %2907 = vmatpush.msra.mxu0 %v848
        %2908 = vmatpush.msra.mxu0 %v839
        %2909 = vmatpush.msra.mxu0 %v830
        %2910 = vmatmul.f32.gmra.mxu0 %v2800
        %v2911 = vpop.f32.mrf.mxu0
        %v2912 = vadd.f32 0.0, %v2911
        %2913 = vmatmul.f32.gmra.mxu0 %v2801
        %v2914 = vpop.f32.mrf.mxu0
        %v2915 = vadd.f32 0.0, %v2914
        %2916 = vdwg.mxu0
        %2917 = vmatpush.msra.mxu0 %v966
        %2918 = vmatpush.msra.mxu0 %v957
        %2919 = vmatpush.msra.mxu0 %v948
        %2920 = vmatpush.msra.mxu0 %v939
        %2921 = vmatpush.msra.mxu0 %v930
        %2922 = vmatpush.msra.mxu0 %v921
        %2923 = vmatpush.msra.mxu0 %v912
        %2924 = vmatpush.msra.mxu0 %v903
        %2925 = vmatpush.msra.mxu0 %v894
        %2926 = vmatpush.msra.mxu0 %v885
        %2927 = vmatpush.msra.mxu0 %v876
        %2928 = vmatpush.msra.mxu0 %v867
        %2929 = vmatpush.msra.mxu0 %v858
        %2930 = vmatpush.msra.mxu0 %v849
        %2931 = vmatpush.msra.mxu0 %v840
        %2932 = vmatpush.msra.mxu0 %v831
        %2933 = vmatmul.f32.gmra.mxu0 %v2800
        %v2934 = vpop.f32.mrf.mxu0
        %v2935 = vadd.f32 0.0, %v2934
        %2936 = vmatmul.f32.gmra.mxu0 %v2801
        %v2937 = vpop.f32.mrf.mxu0
        %v2938 = vadd.f32 0.0, %v2937
        %2939 = vdwg.mxu0
        %2940 = vmatpush.msra.mxu0 %v967
        %2941 = vmatpush.msra.mxu0 %v958
        %2942 = vmatpush.msra.mxu0 %v949
        %2943 = vmatpush.msra.mxu0 %v940
        %2944 = vmatpush.msra.mxu0 %v931
        %2945 = vmatpush.msra.mxu0 %v922
        %2946 = vmatpush.msra.mxu0 %v913
        %2947 = vmatpush.msra.mxu0 %v904
        %2948 = vmatpush.msra.mxu0 %v895
        %2949 = vmatpush.msra.mxu0 %v886
        %2950 = vmatpush.msra.mxu0 %v877
        %2951 = vmatpush.msra.mxu0 %v868
        %2952 = vmatpush.msra.mxu0 %v859
        %2953 = vmatpush.msra.mxu0 %v850
        %2954 = vmatpush.msra.mxu0 %v841
        %2955 = vmatpush.msra.mxu0 %v832
        %2956 = vmatmul.f32.gmra.mxu0 %v2800
        %v2957 = vpop.f32.mrf.mxu0
        %v2958 = vadd.f32 0.0, %v2957
        %2959 = vmatmul.f32.gmra.mxu0 %v2801
        %v2960 = vpop.f32.mrf.mxu0
        %v2961 = vadd.f32 0.0, %v2960
        %2962 = vdwg.mxu0
        %2963 = vmatpush.msra.mxu0 %v968
        %2964 = vmatpush.msra.mxu0 %v959
        %2965 = vmatpush.msra.mxu0 %v950
        %2966 = vmatpush.msra.mxu0 %v941
        %2967 = vmatpush.msra.mxu0 %v932
        %2968 = vmatpush.msra.mxu0 %v923
        %2969 = vmatpush.msra.mxu0 %v914
        %2970 = vmatpush.msra.mxu0 %v905
        %2971 = vmatpush.msra.mxu0 %v896
        %2972 = vmatpush.msra.mxu0 %v887
        %2973 = vmatpush.msra.mxu0 %v878
        %2974 = vmatpush.msra.mxu0 %v869
        %2975 = vmatpush.msra.mxu0 %v860
        %2976 = vmatpush.msra.mxu0 %v851
        %2977 = vmatpush.msra.mxu0 %v842
        %2978 = vmatpush.msra.mxu0 %v833
        %2979 = vmatmul.f32.gmra.mxu0 %v2800
        %v2980 = vpop.f32.mrf.mxu0
        %v2981 = vadd.f32 0.0, %v2980
        %2982 = vmatmul.f32.gmra.mxu0 %v2801
        %v2983 = vpop.f32.mrf.mxu0
        %v2984 = vadd.f32 0.0, %v2983
        %2985 = vdwg.mxu0
        %2986 = vmatpush.msra.mxu0 %v969
        %2987 = vmatpush.msra.mxu0 %v960
        %2988 = vmatpush.msra.mxu0 %v951
        %2989 = vmatpush.msra.mxu0 %v942
        %2990 = vmatpush.msra.mxu0 %v933
        %2991 = vmatpush.msra.mxu0 %v924
        %2992 = vmatpush.msra.mxu0 %v915
        %2993 = vmatpush.msra.mxu0 %v906
        %2994 = vmatpush.msra.mxu0 %v897
        %2995 = vmatpush.msra.mxu0 %v888
        %2996 = vmatpush.msra.mxu0 %v879
        %2997 = vmatpush.msra.mxu0 %v870
        %2998 = vmatpush.msra.mxu0 %v861
        %2999 = vmatpush.msra.mxu0 %v852
        %3000 = vmatpush.msra.mxu0 %v843
        %3001 = vmatpush.msra.mxu0 %v834
        %3002 = vmatmul.f32.gmra.mxu0 %v2800
        %v3003 = vpop.f32.mrf.mxu0
        %v3004 = vadd.f32 0.0, %v3003
        %3005 = vmatmul.f32.gmra.mxu0 %v2801
        %v3006 = vpop.f32.mrf.mxu0
        %v3007 = vadd.f32 0.0, %v3006
        %3008 = vdwg.mxu0
        %3009 = vmatpush.msra.mxu0 0.0
        %3010 = vmatpush.msra.mxu0 0.0
        %3011 = vmatpush.msra.mxu0 0.0
        %3012 = vmatpush.msra.mxu0 0.0
        %3013 = vmatpush.msra.mxu0 0.0
        %3014 = vmatpush.msra.mxu0 0.0
        %3015 = vmatpush.msra.mxu0 0.0
        %3016 = vmatpush.msra.mxu0 0.0
        %3017 = vmatpush.msra.mxu0 0.0
        %3018 = vmatpush.msra.mxu0 0.0
        %3019 = vmatpush.msra.mxu0 0.0
        %3020 = vmatpush.msra.mxu0 0.0
        %3021 = vmatpush.msra.mxu0 0.0
        %3022 = vmatpush.msra.mxu0 0.0
        %3023 = vmatpush.msra.mxu0 %v2892
        %3024 = vmatpush.msra.mxu0 %v2889
        %3025 = vmatmul.f32.gmra.mxu0 %v1229
        %v3026 = vpop.f32.mrf.mxu0
        %v3027 = vadd.f32 0.0, %v3026
        %3028 = vmatmul.f32.gmra.mxu0 %v1232
        %v3029 = vpop.f32.mrf.mxu0
        %v3030 = vadd.f32 0.0, %v3029
        %3031 = vdwg.mxu0
        %3032 = vmatpush.msra.mxu0 0.0
        %3033 = vmatpush.msra.mxu0 0.0
        %3034 = vmatpush.msra.mxu0 0.0
        %3035 = vmatpush.msra.mxu0 0.0
        %3036 = vmatpush.msra.mxu0 0.0
        %3037 = vmatpush.msra.mxu0 0.0
        %3038 = vmatpush.msra.mxu0 0.0
        %3039 = vmatpush.msra.mxu0 0.0
        %3040 = vmatpush.msra.mxu0 0.0
        %3041 = vmatpush.msra.mxu0 0.0
        %3042 = vmatpush.msra.mxu0 0.0
        %3043 = vmatpush.msra.mxu0 0.0
        %3044 = vmatpush.msra.mxu0 0.0
        %3045 = vmatpush.msra.mxu0 0.0
        %3046 = vmatpush.msra.mxu0 %v2915
        %3047 = vmatpush.msra.mxu0 %v2912
        %3048 = vmatmul.f32.gmra.mxu0 %v1229
        %v3049 = vpop.f32.mrf.mxu0
        %v3050 = vadd.f32 0.0, %v3049
        %3051 = vmatmul.f32.gmra.mxu0 %v1232
        %v3052 = vpop.f32.mrf.mxu0
        %v3053 = vadd.f32 0.0, %v3052
        %3054 = vdwg.mxu0
        %3055 = vmatpush.msra.mxu0 0.0
        %3056 = vmatpush.msra.mxu0 0.0
        %3057 = vmatpush.msra.mxu0 0.0
        %3058 = vmatpush.msra.mxu0 0.0
        %3059 = vmatpush.msra.mxu0 0.0
        %3060 = vmatpush.msra.mxu0 0.0
        %3061 = vmatpush.msra.mxu0 0.0
        %3062 = vmatpush.msra.mxu0 0.0
        %3063 = vmatpush.msra.mxu0 0.0
        %3064 = vmatpush.msra.mxu0 0.0
        %3065 = vmatpush.msra.mxu0 0.0
        %3066 = vmatpush.msra.mxu0 0.0
        %3067 = vmatpush.msra.mxu0 0.0
        %3068 = vmatpush.msra.mxu0 0.0
        %3069 = vmatpush.msra.mxu0 %v2938
        %3070 = vmatpush.msra.mxu0 %v2935
        %3071 = vmatmul.f32.gmra.mxu0 %v1229
        %v3072 = vpop.f32.mrf.mxu0
        %v3073 = vadd.f32 0.0, %v3072
        %3074 = vmatmul.f32.gmra.mxu0 %v1232
        %v3075 = vpop.f32.mrf.mxu0
        %v3076 = vadd.f32 0.0, %v3075
        %3077 = vdwg.mxu0
        %3078 = vmatpush.msra.mxu0 0.0
        %3079 = vmatpush.msra.mxu0 0.0
        %3080 = vmatpush.msra.mxu0 0.0
        %3081 = vmatpush.msra.mxu0 0.0
        %3082 = vmatpush.msra.mxu0 0.0
        %3083 = vmatpush.msra.mxu0 0.0
        %3084 = vmatpush.msra.mxu0 0.0
        %3085 = vmatpush.msra.mxu0 0.0
        %3086 = vmatpush.msra.mxu0 0.0
        %3087 = vmatpush.msra.mxu0 0.0
        %3088 = vmatpush.msra.mxu0 0.0
        %3089 = vmatpush.msra.mxu0 0.0
        %3090 = vmatpush.msra.mxu0 0.0
        %3091 = vmatpush.msra.mxu0 0.0
        %3092 = vmatpush.msra.mxu0 %v2823
        %3093 = vmatpush.msra.mxu0 %v2820
        %3094 = vmatmul.f32.gmra.mxu0 %v1304
        %v3095 = vpop.f32.mrf.mxu0
        %v3096 = vadd.f32 %v3027, %v3095
        %3097 = vmatmul.f32.gmra.mxu0 %v1307
        %v3098 = vpop.f32.mrf.mxu0
        %v3099 = vadd.f32 %v3030, %v3098
        %3100 = vdwg.mxu0
        %3101 = vmatpush.msra.mxu0 0.0
        %3102 = vmatpush.msra.mxu0 0.0
        %3103 = vmatpush.msra.mxu0 0.0
        %3104 = vmatpush.msra.mxu0 0.0
        %3105 = vmatpush.msra.mxu0 0.0
        %3106 = vmatpush.msra.mxu0 0.0
        %3107 = vmatpush.msra.mxu0 0.0
        %3108 = vmatpush.msra.mxu0 0.0
        %3109 = vmatpush.msra.mxu0 0.0
        %3110 = vmatpush.msra.mxu0 0.0
        %3111 = vmatpush.msra.mxu0 0.0
        %3112 = vmatpush.msra.mxu0 0.0
        %3113 = vmatpush.msra.mxu0 0.0
        %3114 = vmatpush.msra.mxu0 0.0
        %3115 = vmatpush.msra.mxu0 %v2846
        %3116 = vmatpush.msra.mxu0 %v2843
        %3117 = vmatmul.f32.gmra.mxu0 %v1304
        %v3118 = vpop.f32.mrf.mxu0
        %v3119 = vadd.f32 %v3050, %v3118
        %3120 = vmatmul.f32.gmra.mxu0 %v1307
        %v3121 = vpop.f32.mrf.mxu0
        %v3122 = vadd.f32 %v3053, %v3121
        %3123 = vdwg.mxu0
        %3124 = vmatpush.msra.mxu0 0.0
        %3125 = vmatpush.msra.mxu0 0.0
        %3126 = vmatpush.msra.mxu0 0.0
        %3127 = vmatpush.msra.mxu0 0.0
        %3128 = vmatpush.msra.mxu0 0.0
        %3129 = vmatpush.msra.mxu0 0.0
        %3130 = vmatpush.msra.mxu0 0.0
        %3131 = vmatpush.msra.mxu0 0.0
        %3132 = vmatpush.msra.mxu0 0.0
        %3133 = vmatpush.msra.mxu0 0.0
        %3134 = vmatpush.msra.mxu0 0.0
        %3135 = vmatpush.msra.mxu0 0.0
        %3136 = vmatpush.msra.mxu0 0.0
        %3137 = vmatpush.msra.mxu0 0.0
        %3138 = vmatpush.msra.mxu0 %v2869
        %3139 = vmatpush.msra.mxu0 %v2866
        %3140 = vmatmul.f32.gmra.mxu0 %v1304
        %v3141 = vpop.f32.mrf.mxu0
        %v3142 = vadd.f32 %v3073, %v3141
        %3143 = vmatmul.f32.gmra.mxu0 %v1307
        %v3144 = vpop.f32.mrf.mxu0
        %v3145 = vadd.f32 %v3076, %v3144
        %3146 = vdwg.mxu0
        %3147 = vmatpush.msra.mxu0 0.0
        %3148 = vmatpush.msra.mxu0 0.0
        %3149 = vmatpush.msra.mxu0 0.0
        %3150 = vmatpush.msra.mxu0 0.0
        %3151 = vmatpush.msra.mxu0 0.0
        %3152 = vmatpush.msra.mxu0 0.0
        %3153 = vmatpush.msra.mxu0 0.0
        %3154 = vmatpush.msra.mxu0 0.0
        %3155 = vmatpush.msra.mxu0 0.0
        %3156 = vmatpush.msra.mxu0 0.0
        %3157 = vmatpush.msra.mxu0 0.0
        %3158 = vmatpush.msra.mxu0 0.0
        %3159 = vmatpush.msra.mxu0 0.0
        %3160 = vmatpush.msra.mxu0 0.0
        %3161 = vmatpush.msra.mxu0 %v2961
        %3162 = vmatpush.msra.mxu0 %v2958
        %3163 = vmatmul.f32.gmra.mxu0 %v1379
        %v3164 = vpop.f32.mrf.mxu0
        %v3165 = vadd.f32 0.0, %v3164
        %3166 = vmatmul.f32.gmra.mxu0 %v1382
        %v3167 = vpop.f32.mrf.mxu0
        %v3168 = vadd.f32 0.0, %v3167
        %3169 = vdwg.mxu0
        %3170 = vmatpush.msra.mxu0 0.0
        %3171 = vmatpush.msra.mxu0 0.0
        %3172 = vmatpush.msra.mxu0 0.0
        %3173 = vmatpush.msra.mxu0 0.0
        %3174 = vmatpush.msra.mxu0 0.0
        %3175 = vmatpush.msra.mxu0 0.0
        %3176 = vmatpush.msra.mxu0 0.0
        %3177 = vmatpush.msra.mxu0 0.0
        %3178 = vmatpush.msra.mxu0 0.0
        %3179 = vmatpush.msra.mxu0 0.0
        %3180 = vmatpush.msra.mxu0 0.0
        %3181 = vmatpush.msra.mxu0 0.0
        %3182 = vmatpush.msra.mxu0 0.0
        %3183 = vmatpush.msra.mxu0 0.0
        %3184 = vmatpush.msra.mxu0 %v2984
        %3185 = vmatpush.msra.mxu0 %v2981
        %3186 = vmatmul.f32.gmra.mxu0 %v1379
        %v3187 = vpop.f32.mrf.mxu0
        %v3188 = vadd.f32 0.0, %v3187
        %3189 = vmatmul.f32.gmra.mxu0 %v1382
        %v3190 = vpop.f32.mrf.mxu0
        %v3191 = vadd.f32 0.0, %v3190
        %3192 = vdwg.mxu0
        %3193 = vmatpush.msra.mxu0 0.0
        %3194 = vmatpush.msra.mxu0 0.0
        %3195 = vmatpush.msra.mxu0 0.0
        %3196 = vmatpush.msra.mxu0 0.0
        %3197 = vmatpush.msra.mxu0 0.0
        %3198 = vmatpush.msra.mxu0 0.0
        %3199 = vmatpush.msra.mxu0 0.0
        %3200 = vmatpush.msra.mxu0 0.0
        %3201 = vmatpush.msra.mxu0 0.0
        %3202 = vmatpush.msra.mxu0 0.0
        %3203 = vmatpush.msra.mxu0 0.0
        %3204 = vmatpush.msra.mxu0 0.0
        %3205 = vmatpush.msra.mxu0 0.0
        %3206 = vmatpush.msra.mxu0 0.0
        %3207 = vmatpush.msra.mxu0 %v3007
        %3208 = vmatpush.msra.mxu0 %v3004
        %3209 = vmatmul.f32.gmra.mxu0 %v1379
        %v3210 = vpop.f32.mrf.mxu0
        %v3211 = vadd.f32 0.0, %v3210
        %3212 = vmatmul.f32.gmra.mxu0 %v1382
        %v3213 = vpop.f32.mrf.mxu0
        %v3214 = vadd.f32 0.0, %v3213
        %3215 = vdwg.mxu0
        %v3216 = vadd.f32 %v3096, %v3165
        %v3217 = vadd.f32 %v3119, %v3188
        %v3218 = vadd.f32 %v3142, %v3211
        %v3219 = vadd.f32 %v3099, %v3168
        %v3220 = vadd.f32 %v3122, %v3191
        %v3221 = vadd.f32 %v3145, %v3214
        %3222 = vmatpush.msra.mxu0 %v1000
        %3223 = vmatpush.msra.mxu0 %v998
        %3224 = vmatpush.msra.mxu0 %v996
        %3225 = vmatpush.msra.mxu0 %v994
        %3226 = vmatpush.msra.mxu0 %v992
        %3227 = vmatpush.msra.mxu0 %v990
        %3228 = vmatpush.msra.mxu0 %v988
        %3229 = vmatpush.msra.mxu0 %v986
        %3230 = vmatpush.msra.mxu0 %v984
        %3231 = vmatpush.msra.mxu0 %v982
        %3232 = vmatpush.msra.mxu0 %v980
        %3233 = vmatpush.msra.mxu0 %v978
        %3234 = vmatpush.msra.mxu0 %v976
        %3235 = vmatpush.msra.mxu0 %v974
        %3236 = vmatpush.msra.mxu0 %v972
        %3237 = vmatpush.msra.mxu0 %v970
        %3238 = vmatmul.f32.gmra.mxu0 %v2800
        %v3239 = vpop.f32.mrf.mxu0
        %v3240 = vadd.f32 %v1460, %v3239
        %3241 = vmatmul.f32.gmra.mxu0 %v2801
        %v3242 = vpop.f32.mrf.mxu0
        %v3243 = vadd.f32 %v1460, %v3242
        %3244 = vdwg.mxu0
        %3245 = vmatpush.msra.mxu0 %v1001
        %3246 = vmatpush.msra.mxu0 %v999
        %3247 = vmatpush.msra.mxu0 %v997
        %3248 = vmatpush.msra.mxu0 %v995
        %3249 = vmatpush.msra.mxu0 %v993
        %3250 = vmatpush.msra.mxu0 %v991
        %3251 = vmatpush.msra.mxu0 %v989
        %3252 = vmatpush.msra.mxu0 %v987
        %3253 = vmatpush.msra.mxu0 %v985
        %3254 = vmatpush.msra.mxu0 %v983
        %3255 = vmatpush.msra.mxu0 %v981
        %3256 = vmatpush.msra.mxu0 %v979
        %3257 = vmatpush.msra.mxu0 %v977
        %3258 = vmatpush.msra.mxu0 %v975
        %3259 = vmatpush.msra.mxu0 %v973
        %3260 = vmatpush.msra.mxu0 %v971
        %3261 = vmatmul.f32.gmra.mxu0 %v2800
        %v3262 = vpop.f32.mrf.mxu0
        %v3263 = vadd.f32 %v1461, %v3262
        %3264 = vmatmul.f32.gmra.mxu0 %v2801
        %v3265 = vpop.f32.mrf.mxu0
        %v3266 = vadd.f32 %v1461, %v3265
        %3267 = vdwg.mxu0
        %v3268 = vadd.f32 %v3240, %v3216
        %v3269 = vadd.f32 %v3263, %v3217
        %v3270 = vadd.f32 %v3243, %v3219
        %v3271 = vadd.f32 %v3266, %v3220
        %v3272 = vxor.u32 %v3268, 2147483648
        %v3273 = vxor.u32 %v3269, 2147483648
        %v3274 = vxor.u32 %v3270, 2147483648
        %v3275 = vxor.u32 %v3271, 2147483648
        %v3276 = vmul.f32 %v3272, 1.442695
        %v3277 = vpow.pop %v3276
        %v3278 = vmul.f32 %v3273, 1.442695
        %v3279 = vpow.pop %v3278
        %v3280 = vmul.f32 %v3274, 1.442695
        %v3281 = vpow.pop %v3280
        %v3282 = vmul.f32 %v3275, 1.442695
        %v3283 = vpow.pop %v3282
        %v3284 = vadd.f32 %v3277, 1.0
        %v3285 = vadd.f32 %v3279, 1.0
        %v3286 = vadd.f32 %v3281, 1.0
        %v3287 = vadd.f32 %v3283, 1.0
        %v3288 = vrcp.pop %v3284
        %v3289 = vmul.f32 %v3284, %v3288
        %v3290 = vsub.f32 1.0, %v3289
        %v3291 = vmul.f32 %v3288, %v3290
        %v3292 = vadd.f32 %v3288, %v3291
        %vm3293 = vweird.f32 %v3284
        %vm3294 = vweird.f32 %v3288
        %vm3295 = vmor %vm3293, %vm3294
        %v3296 = vsel %vm3295, %v3288, %v3292
        %v3297 = vand.u32 2147483647, %v3284
        %vm3298 = vcmp.eq.f32.partialorder %v3297, 8.507059e+37
        %v3299 = vand.u32 %v3284, 2147483648
        %v3300 = vor.u32 1.1754944e-38, %v3299
        %v3301 = vsel %vm3298, %v3300, %v3296
        %v3302 = vmul.f32 1.0, %v3301
        %v3303 = vrcp.pop %v3285
        %v3304 = vmul.f32 %v3285, %v3303
        %v3305 = vsub.f32 1.0, %v3304
        %v3306 = vmul.f32 %v3303, %v3305
        %v3307 = vadd.f32 %v3303, %v3306
        %vm3308 = vweird.f32 %v3285
        %vm3309 = vweird.f32 %v3303
        %vm3310 = vmor %vm3308, %vm3309
        %v3311 = vsel %vm3310, %v3303, %v3307
        %v3312 = vand.u32 2147483647, %v3285
        %vm3313 = vcmp.eq.f32.partialorder %v3312, 8.507059e+37
        %v3314 = vand.u32 %v3285, 2147483648
        %v3315 = vor.u32 1.1754944e-38, %v3314
        %v3316 = vsel %vm3313, %v3315, %v3311
        %v3317 = vmul.f32 1.0, %v3316
        %v3318 = vrcp.pop %v3286
        %v3319 = vmul.f32 %v3286, %v3318
        %v3320 = vsub.f32 1.0, %v3319
        %v3321 = vmul.f32 %v3318, %v3320
        %v3322 = vadd.f32 %v3318, %v3321
        %vm3323 = vweird.f32 %v3286
        %vm3324 = vweird.f32 %v3318
        %vm3325 = vmor %vm3323, %vm3324
        %v3326 = vsel %vm3325, %v3318, %v3322
        %v3327 = vand.u32 2147483647, %v3286
        %vm3328 = vcmp.eq.f32.partialorder %v3327, 8.507059e+37
        %v3329 = vand.u32 %v3286, 2147483648
        %v3330 = vor.u32 1.1754944e-38, %v3329
        %v3331 = vsel %vm3328, %v3330, %v3326
        %v3332 = vmul.f32 1.0, %v3331
        %v3333 = vrcp.pop %v3287
        %v3334 = vmul.f32 %v3287, %v3333
        %v3335 = vsub.f32 1.0, %v3334
        %v3336 = vmul.f32 %v3333, %v3335
        %v3337 = vadd.f32 %v3333, %v3336
        %vm3338 = vweird.f32 %v3287
        %vm3339 = vweird.f32 %v3333
        %vm3340 = vmor %vm3338, %vm3339
        %v3341 = vsel %vm3340, %v3333, %v3337
        %v3342 = vand.u32 2147483647, %v3287
        %vm3343 = vcmp.eq.f32.partialorder %v3342, 8.507059e+37
        %v3344 = vand.u32 %v3287, 2147483648
        %v3345 = vor.u32 1.1754944e-38, %v3344
        %v3346 = vsel %vm3343, %v3345, %v3341
        %v3347 = vmul.f32 1.0, %v3346
        %v3348 = vmul.f32 %v3317, %v2800
        %v3349 = vmul.f32 %v3347, %v2801
        %3350 = vmatpush.msra.mxu0 %v1017
        %3351 = vmatpush.msra.mxu0 %v1016
        %3352 = vmatpush.msra.mxu0 %v1015
        %3353 = vmatpush.msra.mxu0 %v1014
        %3354 = vmatpush.msra.mxu0 %v1013
        %3355 = vmatpush.msra.mxu0 %v1012
        %3356 = vmatpush.msra.mxu0 %v1011
        %3357 = vmatpush.msra.mxu0 %v1010
        %3358 = vmatpush.msra.mxu0 %v1009
        %3359 = vmatpush.msra.mxu0 %v1008
        %3360 = vmatpush.msra.mxu0 %v1007
        %3361 = vmatpush.msra.mxu0 %v1006
        %3362 = vmatpush.msra.mxu0 %v1005
        %3363 = vmatpush.msra.mxu0 %v1004
        %3364 = vmatpush.msra.mxu0 %v1003
        %3365 = vmatpush.msra.mxu0 %v1002
        %3366 = vmatmul.f32.gmra.mxu0 %v3348
        %v3367 = vpop.f32.mrf.mxu0
        %v3368 = vadd.f32 0.0, %v3367
        %3369 = vmatmul.f32.gmra.mxu0 %v3349
        %v3370 = vpop.f32.mrf.mxu0
        %v3371 = vadd.f32 0.0, %v3370
        %3372 = vdwg.mxu0
        %v3373 = vadd.f32 %v3218, %v3368
        %v3374 = vadd.f32 %v3221, %v3371
        %v3375 = vadd.f32 %v3373, %v1618
        %v3376 = vadd.f32 %v3374, %v1618
        %v3377 = vtanh.pop %v3375
        %v3378 = vtanh.pop %v3376
        %v3379 = vsub.f32 1.0, %v3302
        %v3380 = vsub.f32 1.0, %v3332
        %v3381 = vmul.f32 %v3379, %v2800
        %v3382 = vmul.f32 %v3380, %v2801
        %v3383 = vmul.f32 %v3302, %v3377
        %v3384 = vmul.f32 %v3332, %v3378
        %v3385 = vadd.f32 %v3381, %v3383
        %v3386 = vadd.f32 %v3382, %v3384
        %3387 = vmatpush.msra.mxu0 %v961
        %3388 = vmatpush.msra.mxu0 %v952
        %3389 = vmatpush.msra.mxu0 %v943
        %3390 = vmatpush.msra.mxu0 %v934
        %3391 = vmatpush.msra.mxu0 %v925
        %3392 = vmatpush.msra.mxu0 %v916
        %3393 = vmatpush.msra.mxu0 %v907
        %3394 = vmatpush.msra.mxu0 %v898
        %3395 = vmatpush.msra.mxu0 %v889
        %3396 = vmatpush.msra.mxu0 %v880
        %3397 = vmatpush.msra.mxu0 %v871
        %3398 = vmatpush.msra.mxu0 %v862
        %3399 = vmatpush.msra.mxu0 %v853
        %3400 = vmatpush.msra.mxu0 %v844
        %3401 = vmatpush.msra.mxu0 %v835
        %3402 = vmatpush.msra.mxu0 %v826
        %3403 = vmatmul.f32.gmra.mxu0 %v3385
        %v3404 = vpop.f32.mrf.mxu0
        %v3405 = vadd.f32 0.0, %v3404
        %3406 = vmatmul.f32.gmra.mxu0 %v3386
        %v3407 = vpop.f32.mrf.mxu0
        %v3408 = vadd.f32 0.0, %v3407
        %3409 = vdwg.mxu0
        %3410 = vmatpush.msra.mxu0 %v962
        %3411 = vmatpush.msra.mxu0 %v953
        %3412 = vmatpush.msra.mxu0 %v944
        %3413 = vmatpush.msra.mxu0 %v935
        %3414 = vmatpush.msra.mxu0 %v926
        %3415 = vmatpush.msra.mxu0 %v917
        %3416 = vmatpush.msra.mxu0 %v908
        %3417 = vmatpush.msra.mxu0 %v899
        %3418 = vmatpush.msra.mxu0 %v890
        %3419 = vmatpush.msra.mxu0 %v881
        %3420 = vmatpush.msra.mxu0 %v872
        %3421 = vmatpush.msra.mxu0 %v863
        %3422 = vmatpush.msra.mxu0 %v854
        %3423 = vmatpush.msra.mxu0 %v845
        %3424 = vmatpush.msra.mxu0 %v836
        %3425 = vmatpush.msra.mxu0 %v827
        %3426 = vmatmul.f32.gmra.mxu0 %v3385
        %v3427 = vpop.f32.mrf.mxu0
        %v3428 = vadd.f32 0.0, %v3427
        %3429 = vmatmul.f32.gmra.mxu0 %v3386
        %v3430 = vpop.f32.mrf.mxu0
        %v3431 = vadd.f32 0.0, %v3430
        %3432 = vdwg.mxu0
        %3433 = vmatpush.msra.mxu0 %v963
        %3434 = vmatpush.msra.mxu0 %v954
        %3435 = vmatpush.msra.mxu0 %v945
        %3436 = vmatpush.msra.mxu0 %v936
        %3437 = vmatpush.msra.mxu0 %v927
        %3438 = vmatpush.msra.mxu0 %v918
        %3439 = vmatpush.msra.mxu0 %v909
        %3440 = vmatpush.msra.mxu0 %v900
        %3441 = vmatpush.msra.mxu0 %v891
        %3442 = vmatpush.msra.mxu0 %v882
        %3443 = vmatpush.msra.mxu0 %v873
        %3444 = vmatpush.msra.mxu0 %v864
        %3445 = vmatpush.msra.mxu0 %v855
        %3446 = vmatpush.msra.mxu0 %v846
        %3447 = vmatpush.msra.mxu0 %v837
        %3448 = vmatpush.msra.mxu0 %v828
        %3449 = vmatmul.f32.gmra.mxu0 %v3385
        %v3450 = vpop.f32.mrf.mxu0
        %v3451 = vadd.f32 0.0, %v3450
        %3452 = vmatmul.f32.gmra.mxu0 %v3386
        %v3453 = vpop.f32.mrf.mxu0
        %v3454 = vadd.f32 0.0, %v3453
        %3455 = vdwg.mxu0
        %3456 = vmatpush.msra.mxu0 %v964
        %3457 = vmatpush.msra.mxu0 %v955
        %3458 = vmatpush.msra.mxu0 %v946
        %3459 = vmatpush.msra.mxu0 %v937
        %3460 = vmatpush.msra.mxu0 %v928
        %3461 = vmatpush.msra.mxu0 %v919
        %3462 = vmatpush.msra.mxu0 %v910
        %3463 = vmatpush.msra.mxu0 %v901
        %3464 = vmatpush.msra.mxu0 %v892
        %3465 = vmatpush.msra.mxu0 %v883
        %3466 = vmatpush.msra.mxu0 %v874
        %3467 = vmatpush.msra.mxu0 %v865
        %3468 = vmatpush.msra.mxu0 %v856
        %3469 = vmatpush.msra.mxu0 %v847
        %3470 = vmatpush.msra.mxu0 %v838
        %3471 = vmatpush.msra.mxu0 %v829
        %3472 = vmatmul.f32.gmra.mxu0 %v3385
        %v3473 = vpop.f32.mrf.mxu0
        %v3474 = vadd.f32 0.0, %v3473
        %3475 = vmatmul.f32.gmra.mxu0 %v3386
        %v3476 = vpop.f32.mrf.mxu0
        %v3477 = vadd.f32 0.0, %v3476
        %3478 = vdwg.mxu0
        %3479 = vmatpush.msra.mxu0 %v965
        %3480 = vmatpush.msra.mxu0 %v956
        %3481 = vmatpush.msra.mxu0 %v947
        %3482 = vmatpush.msra.mxu0 %v938
        %3483 = vmatpush.msra.mxu0 %v929
        %3484 = vmatpush.msra.mxu0 %v920
        %3485 = vmatpush.msra.mxu0 %v911
        %3486 = vmatpush.msra.mxu0 %v902
        %3487 = vmatpush.msra.mxu0 %v893
        %3488 = vmatpush.msra.mxu0 %v884
        %3489 = vmatpush.msra.mxu0 %v875
        %3490 = vmatpush.msra.mxu0 %v866
        %3491 = vmatpush.msra.mxu0 %v857
        %3492 = vmatpush.msra.mxu0 %v848
        %3493 = vmatpush.msra.mxu0 %v839
        %3494 = vmatpush.msra.mxu0 %v830
        %3495 = vmatmul.f32.gmra.mxu0 %v3385
        %v3496 = vpop.f32.mrf.mxu0
        %v3497 = vadd.f32 0.0, %v3496
        %3498 = vmatmul.f32.gmra.mxu0 %v3386
        %v3499 = vpop.f32.mrf.mxu0
        %v3500 = vadd.f32 0.0, %v3499
        %3501 = vdwg.mxu0
        %3502 = vmatpush.msra.mxu0 %v966
        %3503 = vmatpush.msra.mxu0 %v957
        %3504 = vmatpush.msra.mxu0 %v948
        %3505 = vmatpush.msra.mxu0 %v939
        %3506 = vmatpush.msra.mxu0 %v930
        %3507 = vmatpush.msra.mxu0 %v921
        %3508 = vmatpush.msra.mxu0 %v912
        %3509 = vmatpush.msra.mxu0 %v903
        %3510 = vmatpush.msra.mxu0 %v894
        %3511 = vmatpush.msra.mxu0 %v885
        %3512 = vmatpush.msra.mxu0 %v876
        %3513 = vmatpush.msra.mxu0 %v867
        %3514 = vmatpush.msra.mxu0 %v858
        %3515 = vmatpush.msra.mxu0 %v849
        %3516 = vmatpush.msra.mxu0 %v840
        %3517 = vmatpush.msra.mxu0 %v831
        %3518 = vmatmul.f32.gmra.mxu0 %v3385
        %v3519 = vpop.f32.mrf.mxu0
        %v3520 = vadd.f32 0.0, %v3519
        %3521 = vmatmul.f32.gmra.mxu0 %v3386
        %v3522 = vpop.f32.mrf.mxu0
        %v3523 = vadd.f32 0.0, %v3522
        %3524 = vdwg.mxu0
        %3525 = vmatpush.msra.mxu0 %v967
        %3526 = vmatpush.msra.mxu0 %v958
        %3527 = vmatpush.msra.mxu0 %v949
        %3528 = vmatpush.msra.mxu0 %v940
        %3529 = vmatpush.msra.mxu0 %v931
        %3530 = vmatpush.msra.mxu0 %v922
        %3531 = vmatpush.msra.mxu0 %v913
        %3532 = vmatpush.msra.mxu0 %v904
        %3533 = vmatpush.msra.mxu0 %v895
        %3534 = vmatpush.msra.mxu0 %v886
        %3535 = vmatpush.msra.mxu0 %v877
        %3536 = vmatpush.msra.mxu0 %v868
        %3537 = vmatpush.msra.mxu0 %v859
        %3538 = vmatpush.msra.mxu0 %v850
        %3539 = vmatpush.msra.mxu0 %v841
        %3540 = vmatpush.msra.mxu0 %v832
        %3541 = vmatmul.f32.gmra.mxu0 %v3385
        %v3542 = vpop.f32.mrf.mxu0
        %v3543 = vadd.f32 0.0, %v3542
        %3544 = vmatmul.f32.gmra.mxu0 %v3386
        %v3545 = vpop.f32.mrf.mxu0
        %v3546 = vadd.f32 0.0, %v3545
        %3547 = vdwg.mxu0
        %3548 = vmatpush.msra.mxu0 %v968
        %3549 = vmatpush.msra.mxu0 %v959
        %3550 = vmatpush.msra.mxu0 %v950
        %3551 = vmatpush.msra.mxu0 %v941
        %3552 = vmatpush.msra.mxu0 %v932
        %3553 = vmatpush.msra.mxu0 %v923
        %3554 = vmatpush.msra.mxu0 %v914
        %3555 = vmatpush.msra.mxu0 %v905
        %3556 = vmatpush.msra.mxu0 %v896
        %3557 = vmatpush.msra.mxu0 %v887
        %3558 = vmatpush.msra.mxu0 %v878
        %3559 = vmatpush.msra.mxu0 %v869
        %3560 = vmatpush.msra.mxu0 %v860
        %3561 = vmatpush.msra.mxu0 %v851
        %3562 = vmatpush.msra.mxu0 %v842
        %3563 = vmatpush.msra.mxu0 %v833
        %3564 = vmatmul.f32.gmra.mxu0 %v3385
        %v3565 = vpop.f32.mrf.mxu0
        %v3566 = vadd.f32 0.0, %v3565
        %3567 = vmatmul.f32.gmra.mxu0 %v3386
        %v3568 = vpop.f32.mrf.mxu0
        %v3569 = vadd.f32 0.0, %v3568
        %3570 = vdwg.mxu0
        %3571 = vmatpush.msra.mxu0 %v969
        %3572 = vmatpush.msra.mxu0 %v960
        %3573 = vmatpush.msra.mxu0 %v951
        %3574 = vmatpush.msra.mxu0 %v942
        %3575 = vmatpush.msra.mxu0 %v933
        %3576 = vmatpush.msra.mxu0 %v924
        %3577 = vmatpush.msra.mxu0 %v915
        %3578 = vmatpush.msra.mxu0 %v906
        %3579 = vmatpush.msra.mxu0 %v897
        %3580 = vmatpush.msra.mxu0 %v888
        %3581 = vmatpush.msra.mxu0 %v879
        %3582 = vmatpush.msra.mxu0 %v870
        %3583 = vmatpush.msra.mxu0 %v861
        %3584 = vmatpush.msra.mxu0 %v852
        %3585 = vmatpush.msra.mxu0 %v843
        %3586 = vmatpush.msra.mxu0 %v834
        %3587 = vmatmul.f32.gmra.mxu0 %v3385
        %v3588 = vpop.f32.mrf.mxu0
        %v3589 = vadd.f32 0.0, %v3588
        %3590 = vmatmul.f32.gmra.mxu0 %v3386
        %v3591 = vpop.f32.mrf.mxu0
        %v3592 = vadd.f32 0.0, %v3591
        %3593 = vdwg.mxu0
        %3594 = vmatpush.msra.mxu0 0.0
        %3595 = vmatpush.msra.mxu0 0.0
        %3596 = vmatpush.msra.mxu0 0.0
        %3597 = vmatpush.msra.mxu0 0.0
        %3598 = vmatpush.msra.mxu0 0.0
        %3599 = vmatpush.msra.mxu0 0.0
        %3600 = vmatpush.msra.mxu0 0.0
        %3601 = vmatpush.msra.mxu0 0.0
        %3602 = vmatpush.msra.mxu0 0.0
        %3603 = vmatpush.msra.mxu0 0.0
        %3604 = vmatpush.msra.mxu0 0.0
        %3605 = vmatpush.msra.mxu0 0.0
        %3606 = vmatpush.msra.mxu0 0.0
        %3607 = vmatpush.msra.mxu0 0.0
        %3608 = vmatpush.msra.mxu0 %v3477
        %3609 = vmatpush.msra.mxu0 %v3474
        %3610 = vmatmul.f32.gmra.mxu0 %v1229
        %v3611 = vpop.f32.mrf.mxu0
        %v3612 = vadd.f32 0.0, %v3611
        %3613 = vmatmul.f32.gmra.mxu0 %v1232
        %v3614 = vpop.f32.mrf.mxu0
        %v3615 = vadd.f32 0.0, %v3614
        %3616 = vdwg.mxu0
        %3617 = vmatpush.msra.mxu0 0.0
        %3618 = vmatpush.msra.mxu0 0.0
        %3619 = vmatpush.msra.mxu0 0.0
        %3620 = vmatpush.msra.mxu0 0.0
        %3621 = vmatpush.msra.mxu0 0.0
        %3622 = vmatpush.msra.mxu0 0.0
        %3623 = vmatpush.msra.mxu0 0.0
        %3624 = vmatpush.msra.mxu0 0.0
        %3625 = vmatpush.msra.mxu0 0.0
        %3626 = vmatpush.msra.mxu0 0.0
        %3627 = vmatpush.msra.mxu0 0.0
        %3628 = vmatpush.msra.mxu0 0.0
        %3629 = vmatpush.msra.mxu0 0.0
        %3630 = vmatpush.msra.mxu0 0.0
        %3631 = vmatpush.msra.mxu0 %v3500
        %3632 = vmatpush.msra.mxu0 %v3497
        %3633 = vmatmul.f32.gmra.mxu0 %v1229
        %v3634 = vpop.f32.mrf.mxu0
        %v3635 = vadd.f32 0.0, %v3634
        %3636 = vmatmul.f32.gmra.mxu0 %v1232
        %v3637 = vpop.f32.mrf.mxu0
        %v3638 = vadd.f32 0.0, %v3637
        %3639 = vdwg.mxu0
        %3640 = vmatpush.msra.mxu0 0.0
        %3641 = vmatpush.msra.mxu0 0.0
        %3642 = vmatpush.msra.mxu0 0.0
        %3643 = vmatpush.msra.mxu0 0.0
        %3644 = vmatpush.msra.mxu0 0.0
        %3645 = vmatpush.msra.mxu0 0.0
        %3646 = vmatpush.msra.mxu0 0.0
        %3647 = vmatpush.msra.mxu0 0.0
        %3648 = vmatpush.msra.mxu0 0.0
        %3649 = vmatpush.msra.mxu0 0.0
        %3650 = vmatpush.msra.mxu0 0.0
        %3651 = vmatpush.msra.mxu0 0.0
        %3652 = vmatpush.msra.mxu0 0.0
        %3653 = vmatpush.msra.mxu0 0.0
        %3654 = vmatpush.msra.mxu0 %v3523
        %3655 = vmatpush.msra.mxu0 %v3520
        %3656 = vmatmul.f32.gmra.mxu0 %v1229
        %v3657 = vpop.f32.mrf.mxu0
        %v3658 = vadd.f32 0.0, %v3657
        %3659 = vmatmul.f32.gmra.mxu0 %v1232
        %v3660 = vpop.f32.mrf.mxu0
        %v3661 = vadd.f32 0.0, %v3660
        %3662 = vdwg.mxu0
        %3663 = vmatpush.msra.mxu0 0.0
        %3664 = vmatpush.msra.mxu0 0.0
        %3665 = vmatpush.msra.mxu0 0.0
        %3666 = vmatpush.msra.mxu0 0.0
        %3667 = vmatpush.msra.mxu0 0.0
        %3668 = vmatpush.msra.mxu0 0.0
        %3669 = vmatpush.msra.mxu0 0.0
        %3670 = vmatpush.msra.mxu0 0.0
        %3671 = vmatpush.msra.mxu0 0.0
        %3672 = vmatpush.msra.mxu0 0.0
        %3673 = vmatpush.msra.mxu0 0.0
        %3674 = vmatpush.msra.mxu0 0.0
        %3675 = vmatpush.msra.mxu0 0.0
        %3676 = vmatpush.msra.mxu0 0.0
        %3677 = vmatpush.msra.mxu0 %v3408
        %3678 = vmatpush.msra.mxu0 %v3405
        %3679 = vmatmul.f32.gmra.mxu0 %v1304
        %v3680 = vpop.f32.mrf.mxu0
        %v3681 = vadd.f32 %v3612, %v3680
        %3682 = vmatmul.f32.gmra.mxu0 %v1307
        %v3683 = vpop.f32.mrf.mxu0
        %v3684 = vadd.f32 %v3615, %v3683
        %3685 = vdwg.mxu0
        %3686 = vmatpush.msra.mxu0 0.0
        %3687 = vmatpush.msra.mxu0 0.0
        %3688 = vmatpush.msra.mxu0 0.0
        %3689 = vmatpush.msra.mxu0 0.0
        %3690 = vmatpush.msra.mxu0 0.0
        %3691 = vmatpush.msra.mxu0 0.0
        %3692 = vmatpush.msra.mxu0 0.0
        %3693 = vmatpush.msra.mxu0 0.0
        %3694 = vmatpush.msra.mxu0 0.0
        %3695 = vmatpush.msra.mxu0 0.0
        %3696 = vmatpush.msra.mxu0 0.0
        %3697 = vmatpush.msra.mxu0 0.0
        %3698 = vmatpush.msra.mxu0 0.0
        %3699 = vmatpush.msra.mxu0 0.0
        %3700 = vmatpush.msra.mxu0 %v3431
        %3701 = vmatpush.msra.mxu0 %v3428
        %3702 = vmatmul.f32.gmra.mxu0 %v1304
        %v3703 = vpop.f32.mrf.mxu0
        %v3704 = vadd.f32 %v3635, %v3703
        %3705 = vmatmul.f32.gmra.mxu0 %v1307
        %v3706 = vpop.f32.mrf.mxu0
        %v3707 = vadd.f32 %v3638, %v3706
        %3708 = vdwg.mxu0
        %3709 = vmatpush.msra.mxu0 0.0
        %3710 = vmatpush.msra.mxu0 0.0
        %3711 = vmatpush.msra.mxu0 0.0
        %3712 = vmatpush.msra.mxu0 0.0
        %3713 = vmatpush.msra.mxu0 0.0
        %3714 = vmatpush.msra.mxu0 0.0
        %3715 = vmatpush.msra.mxu0 0.0
        %3716 = vmatpush.msra.mxu0 0.0
        %3717 = vmatpush.msra.mxu0 0.0
        %3718 = vmatpush.msra.mxu0 0.0
        %3719 = vmatpush.msra.mxu0 0.0
        %3720 = vmatpush.msra.mxu0 0.0
        %3721 = vmatpush.msra.mxu0 0.0
        %3722 = vmatpush.msra.mxu0 0.0
        %3723 = vmatpush.msra.mxu0 %v3454
        %3724 = vmatpush.msra.mxu0 %v3451
        %3725 = vmatmul.f32.gmra.mxu0 %v1304
        %v3726 = vpop.f32.mrf.mxu0
        %v3727 = vadd.f32 %v3658, %v3726
        %3728 = vmatmul.f32.gmra.mxu0 %v1307
        %v3729 = vpop.f32.mrf.mxu0
        %v3730 = vadd.f32 %v3661, %v3729
        %3731 = vdwg.mxu0
        %3732 = vmatpush.msra.mxu0 0.0
        %3733 = vmatpush.msra.mxu0 0.0
        %3734 = vmatpush.msra.mxu0 0.0
        %3735 = vmatpush.msra.mxu0 0.0
        %3736 = vmatpush.msra.mxu0 0.0
        %3737 = vmatpush.msra.mxu0 0.0
        %3738 = vmatpush.msra.mxu0 0.0
        %3739 = vmatpush.msra.mxu0 0.0
        %3740 = vmatpush.msra.mxu0 0.0
        %3741 = vmatpush.msra.mxu0 0.0
        %3742 = vmatpush.msra.mxu0 0.0
        %3743 = vmatpush.msra.mxu0 0.0
        %3744 = vmatpush.msra.mxu0 0.0
        %3745 = vmatpush.msra.mxu0 0.0
        %3746 = vmatpush.msra.mxu0 %v3546
        %3747 = vmatpush.msra.mxu0 %v3543
        %3748 = vmatmul.f32.gmra.mxu0 %v1379
        %v3749 = vpop.f32.mrf.mxu0
        %v3750 = vadd.f32 0.0, %v3749
        %3751 = vmatmul.f32.gmra.mxu0 %v1382
        %v3752 = vpop.f32.mrf.mxu0
        %v3753 = vadd.f32 0.0, %v3752
        %3754 = vdwg.mxu0
        %3755 = vmatpush.msra.mxu0 0.0
        %3756 = vmatpush.msra.mxu0 0.0
        %3757 = vmatpush.msra.mxu0 0.0
        %3758 = vmatpush.msra.mxu0 0.0
        %3759 = vmatpush.msra.mxu0 0.0
        %3760 = vmatpush.msra.mxu0 0.0
        %3761 = vmatpush.msra.mxu0 0.0
        %3762 = vmatpush.msra.mxu0 0.0
        %3763 = vmatpush.msra.mxu0 0.0
        %3764 = vmatpush.msra.mxu0 0.0
        %3765 = vmatpush.msra.mxu0 0.0
        %3766 = vmatpush.msra.mxu0 0.0
        %3767 = vmatpush.msra.mxu0 0.0
        %3768 = vmatpush.msra.mxu0 0.0
        %3769 = vmatpush.msra.mxu0 %v3569
        %3770 = vmatpush.msra.mxu0 %v3566
        %3771 = vmatmul.f32.gmra.mxu0 %v1379
        %v3772 = vpop.f32.mrf.mxu0
        %v3773 = vadd.f32 0.0, %v3772
        %3774 = vmatmul.f32.gmra.mxu0 %v1382
        %v3775 = vpop.f32.mrf.mxu0
        %v3776 = vadd.f32 0.0, %v3775
        %3777 = vdwg.mxu0
        %3778 = vmatpush.msra.mxu0 0.0
        %3779 = vmatpush.msra.mxu0 0.0
        %3780 = vmatpush.msra.mxu0 0.0
        %3781 = vmatpush.msra.mxu0 0.0
        %3782 = vmatpush.msra.mxu0 0.0
        %3783 = vmatpush.msra.mxu0 0.0
        %3784 = vmatpush.msra.mxu0 0.0
        %3785 = vmatpush.msra.mxu0 0.0
        %3786 = vmatpush.msra.mxu0 0.0
        %3787 = vmatpush.msra.mxu0 0.0
        %3788 = vmatpush.msra.mxu0 0.0
        %3789 = vmatpush.msra.mxu0 0.0
        %3790 = vmatpush.msra.mxu0 0.0
        %3791 = vmatpush.msra.mxu0 0.0
        %3792 = vmatpush.msra.mxu0 %v3592
        %3793 = vmatpush.msra.mxu0 %v3589
        %3794 = vmatmul.f32.gmra.mxu0 %v1379
        %v3795 = vpop.f32.mrf.mxu0
        %v3796 = vadd.f32 0.0, %v3795
        %3797 = vmatmul.f32.gmra.mxu0 %v1382
        %v3798 = vpop.f32.mrf.mxu0
        %v3799 = vadd.f32 0.0, %v3798
        %3800 = vdwg.mxu0
        %v3801 = vadd.f32 %v3681, %v3750
        %v3802 = vadd.f32 %v3704, %v3773
        %v3803 = vadd.f32 %v3727, %v3796
        %v3804 = vadd.f32 %v3684, %v3753
        %v3805 = vadd.f32 %v3707, %v3776
        %v3806 = vadd.f32 %v3730, %v3799
        %3807 = vmatpush.msra.mxu0 %v1000
        %3808 = vmatpush.msra.mxu0 %v998
        %3809 = vmatpush.msra.mxu0 %v996
        %3810 = vmatpush.msra.mxu0 %v994
        %3811 = vmatpush.msra.mxu0 %v992
        %3812 = vmatpush.msra.mxu0 %v990
        %3813 = vmatpush.msra.mxu0 %v988
        %3814 = vmatpush.msra.mxu0 %v986
        %3815 = vmatpush.msra.mxu0 %v984
        %3816 = vmatpush.msra.mxu0 %v982
        %3817 = vmatpush.msra.mxu0 %v980
        %3818 = vmatpush.msra.mxu0 %v978
        %3819 = vmatpush.msra.mxu0 %v976
        %3820 = vmatpush.msra.mxu0 %v974
        %3821 = vmatpush.msra.mxu0 %v972
        %3822 = vmatpush.msra.mxu0 %v970
        %3823 = vmatmul.f32.gmra.mxu0 %v3385
        %v3824 = vpop.f32.mrf.mxu0
        %v3825 = vadd.f32 %v1460, %v3824
        %3826 = vmatmul.f32.gmra.mxu0 %v3386
        %v3827 = vpop.f32.mrf.mxu0
        %v3828 = vadd.f32 %v1460, %v3827
        %3829 = vdwg.mxu0
        %3830 = vmatpush.msra.mxu0 %v1001
        %3831 = vmatpush.msra.mxu0 %v999
        %3832 = vmatpush.msra.mxu0 %v997
        %3833 = vmatpush.msra.mxu0 %v995
        %3834 = vmatpush.msra.mxu0 %v993
        %3835 = vmatpush.msra.mxu0 %v991
        %3836 = vmatpush.msra.mxu0 %v989
        %3837 = vmatpush.msra.mxu0 %v987
        %3838 = vmatpush.msra.mxu0 %v985
        %3839 = vmatpush.msra.mxu0 %v983
        %3840 = vmatpush.msra.mxu0 %v981
        %3841 = vmatpush.msra.mxu0 %v979
        %3842 = vmatpush.msra.mxu0 %v977
        %3843 = vmatpush.msra.mxu0 %v975
        %3844 = vmatpush.msra.mxu0 %v973
        %3845 = vmatpush.msra.mxu0 %v971
        %3846 = vmatmul.f32.gmra.mxu0 %v3385
        %v3847 = vpop.f32.mrf.mxu0
        %v3848 = vadd.f32 %v1461, %v3847
        %3849 = vmatmul.f32.gmra.mxu0 %v3386
        %v3850 = vpop.f32.mrf.mxu0
        %v3851 = vadd.f32 %v1461, %v3850
        %3852 = vdwg.mxu0
        %v3853 = vadd.f32 %v3825, %v3801
        %v3854 = vadd.f32 %v3848, %v3802
        %v3855 = vadd.f32 %v3828, %v3804
        %v3856 = vadd.f32 %v3851, %v3805
        %v3857 = vxor.u32 %v3853, 2147483648
        %v3858 = vxor.u32 %v3854, 2147483648
        %v3859 = vxor.u32 %v3855, 2147483648
        %v3860 = vxor.u32 %v3856, 2147483648
        %v3861 = vmul.f32 %v3857, 1.442695
        %v3862 = vpow.pop %v3861
        %v3863 = vmul.f32 %v3858, 1.442695
        %v3864 = vpow.pop %v3863
        %v3865 = vmul.f32 %v3859, 1.442695
        %v3866 = vpow.pop %v3865
        %v3867 = vmul.f32 %v3860, 1.442695
        %v3868 = vpow.pop %v3867
        %v3869 = vadd.f32 %v3862, 1.0
        %v3870 = vadd.f32 %v3864, 1.0
        %v3871 = vadd.f32 %v3866, 1.0
        %v3872 = vadd.f32 %v3868, 1.0
        %v3873 = vrcp.pop %v3869
        %v3874 = vmul.f32 %v3869, %v3873
        %v3875 = vsub.f32 1.0, %v3874
        %v3876 = vmul.f32 %v3873, %v3875
        %v3877 = vadd.f32 %v3873, %v3876
        %vm3878 = vweird.f32 %v3869
        %vm3879 = vweird.f32 %v3873
        %vm3880 = vmor %vm3878, %vm3879
        %v3881 = vsel %vm3880, %v3873, %v3877
        %v3882 = vand.u32 2147483647, %v3869
        %vm3883 = vcmp.eq.f32.partialorder %v3882, 8.507059e+37
        %v3884 = vand.u32 %v3869, 2147483648
        %v3885 = vor.u32 1.1754944e-38, %v3884
        %v3886 = vsel %vm3883, %v3885, %v3881
        %v3887 = vmul.f32 1.0, %v3886
        %v3888 = vrcp.pop %v3870
        %v3889 = vmul.f32 %v3870, %v3888
        %v3890 = vsub.f32 1.0, %v3889
        %v3891 = vmul.f32 %v3888, %v3890
        %v3892 = vadd.f32 %v3888, %v3891
        %vm3893 = vweird.f32 %v3870
        %vm3894 = vweird.f32 %v3888
        %vm3895 = vmor %vm3893, %vm3894
        %v3896 = vsel %vm3895, %v3888, %v3892
        %v3897 = vand.u32 2147483647, %v3870
        %vm3898 = vcmp.eq.f32.partialorder %v3897, 8.507059e+37
        %v3899 = vand.u32 %v3870, 2147483648
        %v3900 = vor.u32 1.1754944e-38, %v3899
        %v3901 = vsel %vm3898, %v3900, %v3896
        %v3902 = vmul.f32 1.0, %v3901
        %v3903 = vrcp.pop %v3871
        %v3904 = vmul.f32 %v3871, %v3903
        %v3905 = vsub.f32 1.0, %v3904
        %v3906 = vmul.f32 %v3903, %v3905
        %v3907 = vadd.f32 %v3903, %v3906
        %vm3908 = vweird.f32 %v3871
        %vm3909 = vweird.f32 %v3903
        %vm3910 = vmor %vm3908, %vm3909
        %v3911 = vsel %vm3910, %v3903, %v3907
        %v3912 = vand.u32 2147483647, %v3871
        %vm3913 = vcmp.eq.f32.partialorder %v3912, 8.507059e+37
        %v3914 = vand.u32 %v3871, 2147483648
        %v3915 = vor.u32 1.1754944e-38, %v3914
        %v3916 = vsel %vm3913, %v3915, %v3911
        %v3917 = vmul.f32 1.0, %v3916
        %v3918 = vrcp.pop %v3872
        %v3919 = vmul.f32 %v3872, %v3918
        %v3920 = vsub.f32 1.0, %v3919
        %v3921 = vmul.f32 %v3918, %v3920
        %v3922 = vadd.f32 %v3918, %v3921
        %vm3923 = vweird.f32 %v3872
        %vm3924 = vweird.f32 %v3918
        %vm3925 = vmor %vm3923, %vm3924
        %v3926 = vsel %vm3925, %v3918, %v3922
        %v3927 = vand.u32 2147483647, %v3872
        %vm3928 = vcmp.eq.f32.partialorder %v3927, 8.507059e+37
        %v3929 = vand.u32 %v3872, 2147483648
        %v3930 = vor.u32 1.1754944e-38, %v3929
        %v3931 = vsel %vm3928, %v3930, %v3926
        %v3932 = vmul.f32 1.0, %v3931
        %v3933 = vmul.f32 %v3902, %v3385
        %v3934 = vmul.f32 %v3932, %v3386
        %3935 = vmatpush.msra.mxu0 %v1017
        %3936 = vmatpush.msra.mxu0 %v1016
        %3937 = vmatpush.msra.mxu0 %v1015
        %3938 = vmatpush.msra.mxu0 %v1014
        %3939 = vmatpush.msra.mxu0 %v1013
        %3940 = vmatpush.msra.mxu0 %v1012
        %3941 = vmatpush.msra.mxu0 %v1011
        %3942 = vmatpush.msra.mxu0 %v1010
        %3943 = vmatpush.msra.mxu0 %v1009
        %3944 = vmatpush.msra.mxu0 %v1008
        %3945 = vmatpush.msra.mxu0 %v1007
        %3946 = vmatpush.msra.mxu0 %v1006
        %3947 = vmatpush.msra.mxu0 %v1005
        %3948 = vmatpush.msra.mxu0 %v1004
        %3949 = vmatpush.msra.mxu0 %v1003
        %3950 = vmatpush.msra.mxu0 %v1002
        %3951 = vmatmul.f32.gmra.mxu0 %v3933
        %v3952 = vpop.f32.mrf.mxu0
        %v3953 = vadd.f32 0.0, %v3952
        %3954 = vmatmul.f32.gmra.mxu0 %v3934
        %v3955 = vpop.f32.mrf.mxu0
        %v3956 = vadd.f32 0.0, %v3955
        %3957 = vdwg.mxu0
        %v3958 = vadd.f32 %v3803, %v3953
        %v3959 = vadd.f32 %v3806, %v3956
        %v3960 = vadd.f32 %v3958, %v1618
        %v3961 = vadd.f32 %v3959, %v1618
        %v3962 = vtanh.pop %v3960
        %v3963 = vtanh.pop %v3961
        %v3964 = vsub.f32 1.0, %v3887
        %v3965 = vsub.f32 1.0, %v3917
        %v3966 = vmul.f32 %v3964, %v3385
        %v3967 = vmul.f32 %v3965, %v3386
        %v3968 = vmul.f32 %v3887, %v3962
        %v3969 = vmul.f32 %v3917, %v3963
        %v3970 = vadd.f32 %v3966, %v3968
        %v3971 = vadd.f32 %v3967, %v3969
        %3972 = vmatpush.msra.mxu0 %v961
        %3973 = vmatpush.msra.mxu0 %v952
        %3974 = vmatpush.msra.mxu0 %v943
        %3975 = vmatpush.msra.mxu0 %v934
        %3976 = vmatpush.msra.mxu0 %v925
        %3977 = vmatpush.msra.mxu0 %v916
        %3978 = vmatpush.msra.mxu0 %v907
        %3979 = vmatpush.msra.mxu0 %v898
        %3980 = vmatpush.msra.mxu0 %v889
        %3981 = vmatpush.msra.mxu0 %v880
        %3982 = vmatpush.msra.mxu0 %v871
        %3983 = vmatpush.msra.mxu0 %v862
        %3984 = vmatpush.msra.mxu0 %v853
        %3985 = vmatpush.msra.mxu0 %v844
        %3986 = vmatpush.msra.mxu0 %v835
        %3987 = vmatpush.msra.mxu0 %v826
        %3988 = vmatmul.f32.gmra.mxu0 %v3970
        %v3989 = vpop.f32.mrf.mxu0
        %v3990 = vadd.f32 0.0, %v3989
        %3991 = vmatmul.f32.gmra.mxu0 %v3971
        %v3992 = vpop.f32.mrf.mxu0
        %v3993 = vadd.f32 0.0, %v3992
        %3994 = vdwg.mxu0
        %3995 = vmatpush.msra.mxu0 %v962
        %3996 = vmatpush.msra.mxu0 %v953
        %3997 = vmatpush.msra.mxu0 %v944
        %3998 = vmatpush.msra.mxu0 %v935
        %3999 = vmatpush.msra.mxu0 %v926
        %4000 = vmatpush.msra.mxu0 %v917
        %4001 = vmatpush.msra.mxu0 %v908
        %4002 = vmatpush.msra.mxu0 %v899
        %4003 = vmatpush.msra.mxu0 %v890
        %4004 = vmatpush.msra.mxu0 %v881
        %4005 = vmatpush.msra.mxu0 %v872
        %4006 = vmatpush.msra.mxu0 %v863
        %4007 = vmatpush.msra.mxu0 %v854
        %4008 = vmatpush.msra.mxu0 %v845
        %4009 = vmatpush.msra.mxu0 %v836
        %4010 = vmatpush.msra.mxu0 %v827
        %4011 = vmatmul.f32.gmra.mxu0 %v3970
        %v4012 = vpop.f32.mrf.mxu0
        %v4013 = vadd.f32 0.0, %v4012
        %4014 = vmatmul.f32.gmra.mxu0 %v3971
        %v4015 = vpop.f32.mrf.mxu0
        %v4016 = vadd.f32 0.0, %v4015
        %4017 = vdwg.mxu0
        %4018 = vmatpush.msra.mxu0 %v963
        %4019 = vmatpush.msra.mxu0 %v954
        %4020 = vmatpush.msra.mxu0 %v945
        %4021 = vmatpush.msra.mxu0 %v936
        %4022 = vmatpush.msra.mxu0 %v927
        %4023 = vmatpush.msra.mxu0 %v918
        %4024 = vmatpush.msra.mxu0 %v909
        %4025 = vmatpush.msra.mxu0 %v900
        %4026 = vmatpush.msra.mxu0 %v891
        %4027 = vmatpush.msra.mxu0 %v882
        %4028 = vmatpush.msra.mxu0 %v873
        %4029 = vmatpush.msra.mxu0 %v864
        %4030 = vmatpush.msra.mxu0 %v855
        %4031 = vmatpush.msra.mxu0 %v846
        %4032 = vmatpush.msra.mxu0 %v837
        %4033 = vmatpush.msra.mxu0 %v828
        %4034 = vmatmul.f32.gmra.mxu0 %v3970
        %v4035 = vpop.f32.mrf.mxu0
        %v4036 = vadd.f32 0.0, %v4035
        %4037 = vmatmul.f32.gmra.mxu0 %v3971
        %v4038 = vpop.f32.mrf.mxu0
        %v4039 = vadd.f32 0.0, %v4038
        %4040 = vdwg.mxu0
        %4041 = vmatpush.msra.mxu0 %v964
        %4042 = vmatpush.msra.mxu0 %v955
        %4043 = vmatpush.msra.mxu0 %v946
        %4044 = vmatpush.msra.mxu0 %v937
        %4045 = vmatpush.msra.mxu0 %v928
        %4046 = vmatpush.msra.mxu0 %v919
        %4047 = vmatpush.msra.mxu0 %v910
        %4048 = vmatpush.msra.mxu0 %v901
        %4049 = vmatpush.msra.mxu0 %v892
        %4050 = vmatpush.msra.mxu0 %v883
        %4051 = vmatpush.msra.mxu0 %v874
        %4052 = vmatpush.msra.mxu0 %v865
        %4053 = vmatpush.msra.mxu0 %v856
        %4054 = vmatpush.msra.mxu0 %v847
        %4055 = vmatpush.msra.mxu0 %v838
        %4056 = vmatpush.msra.mxu0 %v829
        %4057 = vmatmul.f32.gmra.mxu0 %v3970
        %v4058 = vpop.f32.mrf.mxu0
        %v4059 = vadd.f32 0.0, %v4058
        %4060 = vmatmul.f32.gmra.mxu0 %v3971
        %v4061 = vpop.f32.mrf.mxu0
        %v4062 = vadd.f32 0.0, %v4061
        %4063 = vdwg.mxu0
        %4064 = vmatpush.msra.mxu0 %v965
        %4065 = vmatpush.msra.mxu0 %v956
        %4066 = vmatpush.msra.mxu0 %v947
        %4067 = vmatpush.msra.mxu0 %v938
        %4068 = vmatpush.msra.mxu0 %v929
        %4069 = vmatpush.msra.mxu0 %v920
        %4070 = vmatpush.msra.mxu0 %v911
        %4071 = vmatpush.msra.mxu0 %v902
        %4072 = vmatpush.msra.mxu0 %v893
        %4073 = vmatpush.msra.mxu0 %v884
        %4074 = vmatpush.msra.mxu0 %v875
        %4075 = vmatpush.msra.mxu0 %v866
        %4076 = vmatpush.msra.mxu0 %v857
        %4077 = vmatpush.msra.mxu0 %v848
        %4078 = vmatpush.msra.mxu0 %v839
        %4079 = vmatpush.msra.mxu0 %v830
        %4080 = vmatmul.f32.gmra.mxu0 %v3970
        %v4081 = vpop.f32.mrf.mxu0
        %v4082 = vadd.f32 0.0, %v4081
        %4083 = vmatmul.f32.gmra.mxu0 %v3971
        %v4084 = vpop.f32.mrf.mxu0
        %v4085 = vadd.f32 0.0, %v4084
        %4086 = vdwg.mxu0
        %4087 = vmatpush.msra.mxu0 %v966
        %4088 = vmatpush.msra.mxu0 %v957
        %4089 = vmatpush.msra.mxu0 %v948
        %4090 = vmatpush.msra.mxu0 %v939
        %4091 = vmatpush.msra.mxu0 %v930
        %4092 = vmatpush.msra.mxu0 %v921
        %4093 = vmatpush.msra.mxu0 %v912
        %4094 = vmatpush.msra.mxu0 %v903
        %4095 = vmatpush.msra.mxu0 %v894
        %4096 = vmatpush.msra.mxu0 %v885
        %4097 = vmatpush.msra.mxu0 %v876
        %4098 = vmatpush.msra.mxu0 %v867
        %4099 = vmatpush.msra.mxu0 %v858
        %4100 = vmatpush.msra.mxu0 %v849
        %4101 = vmatpush.msra.mxu0 %v840
        %4102 = vmatpush.msra.mxu0 %v831
        %4103 = vmatmul.f32.gmra.mxu0 %v3970
        %v4104 = vpop.f32.mrf.mxu0
        %v4105 = vadd.f32 0.0, %v4104
        %4106 = vmatmul.f32.gmra.mxu0 %v3971
        %v4107 = vpop.f32.mrf.mxu0
        %v4108 = vadd.f32 0.0, %v4107
        %4109 = vdwg.mxu0
        %4110 = vmatpush.msra.mxu0 %v967
        %4111 = vmatpush.msra.mxu0 %v958
        %4112 = vmatpush.msra.mxu0 %v949
        %4113 = vmatpush.msra.mxu0 %v940
        %4114 = vmatpush.msra.mxu0 %v931
        %4115 = vmatpush.msra.mxu0 %v922
        %4116 = vmatpush.msra.mxu0 %v913
        %4117 = vmatpush.msra.mxu0 %v904
        %4118 = vmatpush.msra.mxu0 %v895
        %4119 = vmatpush.msra.mxu0 %v886
        %4120 = vmatpush.msra.mxu0 %v877
        %4121 = vmatpush.msra.mxu0 %v868
        %4122 = vmatpush.msra.mxu0 %v859
        %4123 = vmatpush.msra.mxu0 %v850
        %4124 = vmatpush.msra.mxu0 %v841
        %4125 = vmatpush.msra.mxu0 %v832
        %4126 = vmatmul.f32.gmra.mxu0 %v3970
        %v4127 = vpop.f32.mrf.mxu0
        %v4128 = vadd.f32 0.0, %v4127
        %4129 = vmatmul.f32.gmra.mxu0 %v3971
        %v4130 = vpop.f32.mrf.mxu0
        %v4131 = vadd.f32 0.0, %v4130
        %4132 = vdwg.mxu0
        %4133 = vmatpush.msra.mxu0 %v968
        %4134 = vmatpush.msra.mxu0 %v959
        %4135 = vmatpush.msra.mxu0 %v950
        %4136 = vmatpush.msra.mxu0 %v941
        %4137 = vmatpush.msra.mxu0 %v932
        %4138 = vmatpush.msra.mxu0 %v923
        %4139 = vmatpush.msra.mxu0 %v914
        %4140 = vmatpush.msra.mxu0 %v905
        %4141 = vmatpush.msra.mxu0 %v896
        %4142 = vmatpush.msra.mxu0 %v887
        %4143 = vmatpush.msra.mxu0 %v878
        %4144 = vmatpush.msra.mxu0 %v869
        %4145 = vmatpush.msra.mxu0 %v860
        %4146 = vmatpush.msra.mxu0 %v851
        %4147 = vmatpush.msra.mxu0 %v842
        %4148 = vmatpush.msra.mxu0 %v833
        %4149 = vmatmul.f32.gmra.mxu0 %v3970
        %v4150 = vpop.f32.mrf.mxu0
        %v4151 = vadd.f32 0.0, %v4150
        %4152 = vmatmul.f32.gmra.mxu0 %v3971
        %v4153 = vpop.f32.mrf.mxu0
        %v4154 = vadd.f32 0.0, %v4153
        %4155 = vdwg.mxu0
        %4156 = vmatpush.msra.mxu0 %v969
        %4157 = vmatpush.msra.mxu0 %v960
        %4158 = vmatpush.msra.mxu0 %v951
        %4159 = vmatpush.msra.mxu0 %v942
        %4160 = vmatpush.msra.mxu0 %v933
        %4161 = vmatpush.msra.mxu0 %v924
        %4162 = vmatpush.msra.mxu0 %v915
        %4163 = vmatpush.msra.mxu0 %v906
        %4164 = vmatpush.msra.mxu0 %v897
        %4165 = vmatpush.msra.mxu0 %v888
        %4166 = vmatpush.msra.mxu0 %v879
        %4167 = vmatpush.msra.mxu0 %v870
        %4168 = vmatpush.msra.mxu0 %v861
        %4169 = vmatpush.msra.mxu0 %v852
        %4170 = vmatpush.msra.mxu0 %v843
        %4171 = vmatpush.msra.mxu0 %v834
        %4172 = vmatmul.f32.gmra.mxu0 %v3970
        %v4173 = vpop.f32.mrf.mxu0
        %v4174 = vadd.f32 0.0, %v4173
        %4175 = vmatmul.f32.gmra.mxu0 %v3971
        %v4176 = vpop.f32.mrf.mxu0
        %v4177 = vadd.f32 0.0, %v4176
        %4178 = vdwg.mxu0
        %4179 = vmatpush.msra.mxu0 0.0
        %4180 = vmatpush.msra.mxu0 0.0
        %4181 = vmatpush.msra.mxu0 0.0
        %4182 = vmatpush.msra.mxu0 0.0
        %4183 = vmatpush.msra.mxu0 0.0
        %4184 = vmatpush.msra.mxu0 0.0
        %4185 = vmatpush.msra.mxu0 0.0
        %4186 = vmatpush.msra.mxu0 0.0
        %4187 = vmatpush.msra.mxu0 0.0
        %4188 = vmatpush.msra.mxu0 0.0
        %4189 = vmatpush.msra.mxu0 0.0
        %4190 = vmatpush.msra.mxu0 0.0
        %4191 = vmatpush.msra.mxu0 0.0
        %4192 = vmatpush.msra.mxu0 0.0
        %4193 = vmatpush.msra.mxu0 %v4062
        %4194 = vmatpush.msra.mxu0 %v4059
        %4195 = vmatmul.f32.gmra.mxu0 %v1229
        %v4196 = vpop.f32.mrf.mxu0
        %v4197 = vadd.f32 0.0, %v4196
        %4198 = vmatmul.f32.gmra.mxu0 %v1232
        %v4199 = vpop.f32.mrf.mxu0
        %v4200 = vadd.f32 0.0, %v4199
        %4201 = vdwg.mxu0
        %4202 = vmatpush.msra.mxu0 0.0
        %4203 = vmatpush.msra.mxu0 0.0
        %4204 = vmatpush.msra.mxu0 0.0
        %4205 = vmatpush.msra.mxu0 0.0
        %4206 = vmatpush.msra.mxu0 0.0
        %4207 = vmatpush.msra.mxu0 0.0
        %4208 = vmatpush.msra.mxu0 0.0
        %4209 = vmatpush.msra.mxu0 0.0
        %4210 = vmatpush.msra.mxu0 0.0
        %4211 = vmatpush.msra.mxu0 0.0
        %4212 = vmatpush.msra.mxu0 0.0
        %4213 = vmatpush.msra.mxu0 0.0
        %4214 = vmatpush.msra.mxu0 0.0
        %4215 = vmatpush.msra.mxu0 0.0
        %4216 = vmatpush.msra.mxu0 %v4085
        %4217 = vmatpush.msra.mxu0 %v4082
        %4218 = vmatmul.f32.gmra.mxu0 %v1229
        %v4219 = vpop.f32.mrf.mxu0
        %v4220 = vadd.f32 0.0, %v4219
        %4221 = vmatmul.f32.gmra.mxu0 %v1232
        %v4222 = vpop.f32.mrf.mxu0
        %v4223 = vadd.f32 0.0, %v4222
        %4224 = vdwg.mxu0
        %4225 = vmatpush.msra.mxu0 0.0
        %4226 = vmatpush.msra.mxu0 0.0
        %4227 = vmatpush.msra.mxu0 0.0
        %4228 = vmatpush.msra.mxu0 0.0
        %4229 = vmatpush.msra.mxu0 0.0
        %4230 = vmatpush.msra.mxu0 0.0
        %4231 = vmatpush.msra.mxu0 0.0
        %4232 = vmatpush.msra.mxu0 0.0
        %4233 = vmatpush.msra.mxu0 0.0
        %4234 = vmatpush.msra.mxu0 0.0
        %4235 = vmatpush.msra.mxu0 0.0
        %4236 = vmatpush.msra.mxu0 0.0
        %4237 = vmatpush.msra.mxu0 0.0
        %4238 = vmatpush.msra.mxu0 0.0
        %4239 = vmatpush.msra.mxu0 %v4108
        %4240 = vmatpush.msra.mxu0 %v4105
        %4241 = vmatmul.f32.gmra.mxu0 %v1229
        %v4242 = vpop.f32.mrf.mxu0
        %v4243 = vadd.f32 0.0, %v4242
        %4244 = vmatmul.f32.gmra.mxu0 %v1232
        %v4245 = vpop.f32.mrf.mxu0
        %v4246 = vadd.f32 0.0, %v4245
        %4247 = vdwg.mxu0
        %4248 = vmatpush.msra.mxu0 0.0
        %4249 = vmatpush.msra.mxu0 0.0
        %4250 = vmatpush.msra.mxu0 0.0
        %4251 = vmatpush.msra.mxu0 0.0
        %4252 = vmatpush.msra.mxu0 0.0
        %4253 = vmatpush.msra.mxu0 0.0
        %4254 = vmatpush.msra.mxu0 0.0
        %4255 = vmatpush.msra.mxu0 0.0
        %4256 = vmatpush.msra.mxu0 0.0
        %4257 = vmatpush.msra.mxu0 0.0
        %4258 = vmatpush.msra.mxu0 0.0
        %4259 = vmatpush.msra.mxu0 0.0
        %4260 = vmatpush.msra.mxu0 0.0
        %4261 = vmatpush.msra.mxu0 0.0
        %4262 = vmatpush.msra.mxu0 %v3993
        %4263 = vmatpush.msra.mxu0 %v3990
        %4264 = vmatmul.f32.gmra.mxu0 %v1304
        %v4265 = vpop.f32.mrf.mxu0
        %v4266 = vadd.f32 %v4197, %v4265
        %4267 = vmatmul.f32.gmra.mxu0 %v1307
        %v4268 = vpop.f32.mrf.mxu0
        %v4269 = vadd.f32 %v4200, %v4268
        %4270 = vdwg.mxu0
        %4271 = vmatpush.msra.mxu0 0.0
        %4272 = vmatpush.msra.mxu0 0.0
        %4273 = vmatpush.msra.mxu0 0.0
        %4274 = vmatpush.msra.mxu0 0.0
        %4275 = vmatpush.msra.mxu0 0.0
        %4276 = vmatpush.msra.mxu0 0.0
        %4277 = vmatpush.msra.mxu0 0.0
        %4278 = vmatpush.msra.mxu0 0.0
        %4279 = vmatpush.msra.mxu0 0.0
        %4280 = vmatpush.msra.mxu0 0.0
        %4281 = vmatpush.msra.mxu0 0.0
        %4282 = vmatpush.msra.mxu0 0.0
        %4283 = vmatpush.msra.mxu0 0.0
        %4284 = vmatpush.msra.mxu0 0.0
        %4285 = vmatpush.msra.mxu0 %v4016
        %4286 = vmatpush.msra.mxu0 %v4013
        %4287 = vmatmul.f32.gmra.mxu0 %v1304
        %v4288 = vpop.f32.mrf.mxu0
        %v4289 = vadd.f32 %v4220, %v4288
        %4290 = vmatmul.f32.gmra.mxu0 %v1307
        %v4291 = vpop.f32.mrf.mxu0
        %v4292 = vadd.f32 %v4223, %v4291
        %4293 = vdwg.mxu0
        %4294 = vmatpush.msra.mxu0 0.0
        %4295 = vmatpush.msra.mxu0 0.0
        %4296 = vmatpush.msra.mxu0 0.0
        %4297 = vmatpush.msra.mxu0 0.0
        %4298 = vmatpush.msra.mxu0 0.0
        %4299 = vmatpush.msra.mxu0 0.0
        %4300 = vmatpush.msra.mxu0 0.0
        %4301 = vmatpush.msra.mxu0 0.0
        %4302 = vmatpush.msra.mxu0 0.0
        %4303 = vmatpush.msra.mxu0 0.0
        %4304 = vmatpush.msra.mxu0 0.0
        %4305 = vmatpush.msra.mxu0 0.0
        %4306 = vmatpush.msra.mxu0 0.0
        %4307 = vmatpush.msra.mxu0 0.0
        %4308 = vmatpush.msra.mxu0 %v4039
        %4309 = vmatpush.msra.mxu0 %v4036
        %4310 = vmatmul.f32.gmra.mxu0 %v1304
        %v4311 = vpop.f32.mrf.mxu0
        %v4312 = vadd.f32 %v4243, %v4311
        %4313 = vmatmul.f32.gmra.mxu0 %v1307
        %v4314 = vpop.f32.mrf.mxu0
        %v4315 = vadd.f32 %v4246, %v4314
        %4316 = vdwg.mxu0
        %4317 = vmatpush.msra.mxu0 0.0
        %4318 = vmatpush.msra.mxu0 0.0
        %4319 = vmatpush.msra.mxu0 0.0
        %4320 = vmatpush.msra.mxu0 0.0
        %4321 = vmatpush.msra.mxu0 0.0
        %4322 = vmatpush.msra.mxu0 0.0
        %4323 = vmatpush.msra.mxu0 0.0
        %4324 = vmatpush.msra.mxu0 0.0
        %4325 = vmatpush.msra.mxu0 0.0
        %4326 = vmatpush.msra.mxu0 0.0
        %4327 = vmatpush.msra.mxu0 0.0
        %4328 = vmatpush.msra.mxu0 0.0
        %4329 = vmatpush.msra.mxu0 0.0
        %4330 = vmatpush.msra.mxu0 0.0
        %4331 = vmatpush.msra.mxu0 %v4131
        %4332 = vmatpush.msra.mxu0 %v4128
        %4333 = vmatmul.f32.gmra.mxu0 %v1379
        %v4334 = vpop.f32.mrf.mxu0
        %v4335 = vadd.f32 0.0, %v4334
        %4336 = vmatmul.f32.gmra.mxu0 %v1382
        %v4337 = vpop.f32.mrf.mxu0
        %v4338 = vadd.f32 0.0, %v4337
        %4339 = vdwg.mxu0
        %4340 = vmatpush.msra.mxu0 0.0
        %4341 = vmatpush.msra.mxu0 0.0
        %4342 = vmatpush.msra.mxu0 0.0
        %4343 = vmatpush.msra.mxu0 0.0
        %4344 = vmatpush.msra.mxu0 0.0
        %4345 = vmatpush.msra.mxu0 0.0
        %4346 = vmatpush.msra.mxu0 0.0
        %4347 = vmatpush.msra.mxu0 0.0
        %4348 = vmatpush.msra.mxu0 0.0
        %4349 = vmatpush.msra.mxu0 0.0
        %4350 = vmatpush.msra.mxu0 0.0
        %4351 = vmatpush.msra.mxu0 0.0
        %4352 = vmatpush.msra.mxu0 0.0
        %4353 = vmatpush.msra.mxu0 0.0
        %4354 = vmatpush.msra.mxu0 %v4154
        %4355 = vmatpush.msra.mxu0 %v4151
        %4356 = vmatmul.f32.gmra.mxu0 %v1379
        %v4357 = vpop.f32.mrf.mxu0
        %v4358 = vadd.f32 0.0, %v4357
        %4359 = vmatmul.f32.gmra.mxu0 %v1382
        %v4360 = vpop.f32.mrf.mxu0
        %v4361 = vadd.f32 0.0, %v4360
        %4362 = vdwg.mxu0
        %4363 = vmatpush.msra.mxu0 0.0
        %4364 = vmatpush.msra.mxu0 0.0
        %4365 = vmatpush.msra.mxu0 0.0
        %4366 = vmatpush.msra.mxu0 0.0
        %4367 = vmatpush.msra.mxu0 0.0
        %4368 = vmatpush.msra.mxu0 0.0
        %4369 = vmatpush.msra.mxu0 0.0
        %4370 = vmatpush.msra.mxu0 0.0
        %4371 = vmatpush.msra.mxu0 0.0
        %4372 = vmatpush.msra.mxu0 0.0
        %4373 = vmatpush.msra.mxu0 0.0
        %4374 = vmatpush.msra.mxu0 0.0
        %4375 = vmatpush.msra.mxu0 0.0
        %4376 = vmatpush.msra.mxu0 0.0
        %4377 = vmatpush.msra.mxu0 %v4177
        %4378 = vmatpush.msra.mxu0 %v4174
        %4379 = vmatmul.f32.gmra.mxu0 %v1379
        %v4380 = vpop.f32.mrf.mxu0
        %v4381 = vadd.f32 0.0, %v4380
        %4382 = vmatmul.f32.gmra.mxu0 %v1382
        %v4383 = vpop.f32.mrf.mxu0
        %v4384 = vadd.f32 0.0, %v4383
        %4385 = vdwg.mxu0
        %v4386 = vadd.f32 %v4266, %v4335
        %v4387 = vadd.f32 %v4289, %v4358
        %v4388 = vadd.f32 %v4312, %v4381
        %v4389 = vadd.f32 %v4269, %v4338
        %v4390 = vadd.f32 %v4292, %v4361
        %v4391 = vadd.f32 %v4315, %v4384
        %4392 = vmatpush.msra.mxu0 %v1000
        %4393 = vmatpush.msra.mxu0 %v998
        %4394 = vmatpush.msra.mxu0 %v996
        %4395 = vmatpush.msra.mxu0 %v994
        %4396 = vmatpush.msra.mxu0 %v992
        %4397 = vmatpush.msra.mxu0 %v990
        %4398 = vmatpush.msra.mxu0 %v988
        %4399 = vmatpush.msra.mxu0 %v986
        %4400 = vmatpush.msra.mxu0 %v984
        %4401 = vmatpush.msra.mxu0 %v982
        %4402 = vmatpush.msra.mxu0 %v980
        %4403 = vmatpush.msra.mxu0 %v978
        %4404 = vmatpush.msra.mxu0 %v976
        %4405 = vmatpush.msra.mxu0 %v974
        %4406 = vmatpush.msra.mxu0 %v972
        %4407 = vmatpush.msra.mxu0 %v970
        %4408 = vmatmul.f32.gmra.mxu0 %v3970
        %v4409 = vpop.f32.mrf.mxu0
        %v4410 = vadd.f32 %v1460, %v4409
        %4411 = vmatmul.f32.gmra.mxu0 %v3971
        %v4412 = vpop.f32.mrf.mxu0
        %v4413 = vadd.f32 %v1460, %v4412
        %4414 = vdwg.mxu0
        %4415 = vmatpush.msra.mxu0 %v1001
        %4416 = vmatpush.msra.mxu0 %v999
        %4417 = vmatpush.msra.mxu0 %v997
        %4418 = vmatpush.msra.mxu0 %v995
        %4419 = vmatpush.msra.mxu0 %v993
        %4420 = vmatpush.msra.mxu0 %v991
        %4421 = vmatpush.msra.mxu0 %v989
        %4422 = vmatpush.msra.mxu0 %v987
        %4423 = vmatpush.msra.mxu0 %v985
        %4424 = vmatpush.msra.mxu0 %v983
        %4425 = vmatpush.msra.mxu0 %v981
        %4426 = vmatpush.msra.mxu0 %v979
        %4427 = vmatpush.msra.mxu0 %v977
        %4428 = vmatpush.msra.mxu0 %v975
        %4429 = vmatpush.msra.mxu0 %v973
        %4430 = vmatpush.msra.mxu0 %v971
        %4431 = vmatmul.f32.gmra.mxu0 %v3970
        %v4432 = vpop.f32.mrf.mxu0
        %v4433 = vadd.f32 %v1461, %v4432
        %4434 = vmatmul.f32.gmra.mxu0 %v3971
        %v4435 = vpop.f32.mrf.mxu0
        %v4436 = vadd.f32 %v1461, %v4435
        %4437 = vdwg.mxu0
        %v4438 = vadd.f32 %v4410, %v4386
        %v4439 = vadd.f32 %v4433, %v4387
        %v4440 = vadd.f32 %v4413, %v4389
        %v4441 = vadd.f32 %v4436, %v4390
        %v4442 = vxor.u32 %v4438, 2147483648
        %v4443 = vxor.u32 %v4439, 2147483648
        %v4444 = vxor.u32 %v4440, 2147483648
        %v4445 = vxor.u32 %v4441, 2147483648
        %v4446 = vmul.f32 %v4442, 1.442695
        %v4447 = vpow.pop %v4446
        %v4448 = vmul.f32 %v4443, 1.442695
        %v4449 = vpow.pop %v4448
        %v4450 = vmul.f32 %v4444, 1.442695
        %v4451 = vpow.pop %v4450
        %v4452 = vmul.f32 %v4445, 1.442695
        %v4453 = vpow.pop %v4452
        %v4454 = vadd.f32 %v4447, 1.0
        %v4455 = vadd.f32 %v4449, 1.0
        %v4456 = vadd.f32 %v4451, 1.0
        %v4457 = vadd.f32 %v4453, 1.0
        %v4458 = vrcp.pop %v4454
        %v4459 = vmul.f32 %v4454, %v4458
        %v4460 = vsub.f32 1.0, %v4459
        %v4461 = vmul.f32 %v4458, %v4460
        %v4462 = vadd.f32 %v4458, %v4461
        %vm4463 = vweird.f32 %v4454
        %vm4464 = vweird.f32 %v4458
        %vm4465 = vmor %vm4463, %vm4464
        %v4466 = vsel %vm4465, %v4458, %v4462
        %v4467 = vand.u32 2147483647, %v4454
        %vm4468 = vcmp.eq.f32.partialorder %v4467, 8.507059e+37
        %v4469 = vand.u32 %v4454, 2147483648
        %v4470 = vor.u32 1.1754944e-38, %v4469
        %v4471 = vsel %vm4468, %v4470, %v4466
        %v4472 = vmul.f32 1.0, %v4471
        %v4473 = vrcp.pop %v4455
        %v4474 = vmul.f32 %v4455, %v4473
        %v4475 = vsub.f32 1.0, %v4474
        %v4476 = vmul.f32 %v4473, %v4475
        %v4477 = vadd.f32 %v4473, %v4476
        %vm4478 = vweird.f32 %v4455
        %vm4479 = vweird.f32 %v4473
        %vm4480 = vmor %vm4478, %vm4479
        %v4481 = vsel %vm4480, %v4473, %v4477
        %v4482 = vand.u32 2147483647, %v4455
        %vm4483 = vcmp.eq.f32.partialorder %v4482, 8.507059e+37
        %v4484 = vand.u32 %v4455, 2147483648
        %v4485 = vor.u32 1.1754944e-38, %v4484
        %v4486 = vsel %vm4483, %v4485, %v4481
        %v4487 = vmul.f32 1.0, %v4486
        %v4488 = vrcp.pop %v4456
        %v4489 = vmul.f32 %v4456, %v4488
        %v4490 = vsub.f32 1.0, %v4489
        %v4491 = vmul.f32 %v4488, %v4490
        %v4492 = vadd.f32 %v4488, %v4491
        %vm4493 = vweird.f32 %v4456
        %vm4494 = vweird.f32 %v4488
        %vm4495 = vmor %vm4493, %vm4494
        %v4496 = vsel %vm4495, %v4488, %v4492
        %v4497 = vand.u32 2147483647, %v4456
        %vm4498 = vcmp.eq.f32.partialorder %v4497, 8.507059e+37
        %v4499 = vand.u32 %v4456, 2147483648
        %v4500 = vor.u32 1.1754944e-38, %v4499
        %v4501 = vsel %vm4498, %v4500, %v4496
        %v4502 = vmul.f32 1.0, %v4501
        %v4503 = vrcp.pop %v4457
        %v4504 = vmul.f32 %v4457, %v4503
        %v4505 = vsub.f32 1.0, %v4504
        %v4506 = vmul.f32 %v4503, %v4505
        %v4507 = vadd.f32 %v4503, %v4506
        %vm4508 = vweird.f32 %v4457
        %vm4509 = vweird.f32 %v4503
        %vm4510 = vmor %vm4508, %vm4509
        %v4511 = vsel %vm4510, %v4503, %v4507
        %v4512 = vand.u32 2147483647, %v4457
        %vm4513 = vcmp.eq.f32.partialorder %v4512, 8.507059e+37
        %v4514 = vand.u32 %v4457, 2147483648
        %v4515 = vor.u32 1.1754944e-38, %v4514
        %v4516 = vsel %vm4513, %v4515, %v4511
        %v4517 = vmul.f32 1.0, %v4516
        %v4518 = vmul.f32 %v4487, %v3970
        %v4519 = vmul.f32 %v4517, %v3971
        %4520 = vmatpush.msra.mxu0 %v1017
        %4521 = vmatpush.msra.mxu0 %v1016
        %4522 = vmatpush.msra.mxu0 %v1015
        %4523 = vmatpush.msra.mxu0 %v1014
        %4524 = vmatpush.msra.mxu0 %v1013
        %4525 = vmatpush.msra.mxu0 %v1012
        %4526 = vmatpush.msra.mxu0 %v1011
        %4527 = vmatpush.msra.mxu0 %v1010
        %4528 = vmatpush.msra.mxu0 %v1009
        %4529 = vmatpush.msra.mxu0 %v1008
        %4530 = vmatpush.msra.mxu0 %v1007
        %4531 = vmatpush.msra.mxu0 %v1006
        %4532 = vmatpush.msra.mxu0 %v1005
        %4533 = vmatpush.msra.mxu0 %v1004
        %4534 = vmatpush.msra.mxu0 %v1003
        %4535 = vmatpush.msra.mxu0 %v1002
        %4536 = vmatmul.f32.gmra.mxu0 %v4518
        %v4537 = vpop.f32.mrf.mxu0
        %v4538 = vadd.f32 0.0, %v4537
        %4539 = vmatmul.f32.gmra.mxu0 %v4519
        %v4540 = vpop.f32.mrf.mxu0
        %v4541 = vadd.f32 0.0, %v4540
        %4542 = vdwg.mxu0
        %v4543 = vadd.f32 %v4388, %v4538
        %v4544 = vadd.f32 %v4391, %v4541
        %v4545 = vadd.f32 %v4543, %v1618
        %v4546 = vadd.f32 %v4544, %v1618
        %v4547 = vtanh.pop %v4545
        %v4548 = vtanh.pop %v4546
        %v4549 = vsub.f32 1.0, %v4472
        %v4550 = vsub.f32 1.0, %v4502
        %v4551 = vmul.f32 %v4549, %v3970
        %v4552 = vmul.f32 %v4550, %v3971
        %v4553 = vmul.f32 %v4472, %v4547
        %v4554 = vmul.f32 %v4502, %v4548
        %v4555 = vadd.f32 %v4551, %v4553
        %v4556 = vadd.f32 %v4552, %v4554
        %4557 = vmatpush.msra.mxu0 %v961
        %4558 = vmatpush.msra.mxu0 %v952
        %4559 = vmatpush.msra.mxu0 %v943
        %4560 = vmatpush.msra.mxu0 %v934
        %4561 = vmatpush.msra.mxu0 %v925
        %4562 = vmatpush.msra.mxu0 %v916
        %4563 = vmatpush.msra.mxu0 %v907
        %4564 = vmatpush.msra.mxu0 %v898
        %4565 = vmatpush.msra.mxu0 %v889
        %4566 = vmatpush.msra.mxu0 %v880
        %4567 = vmatpush.msra.mxu0 %v871
        %4568 = vmatpush.msra.mxu0 %v862
        %4569 = vmatpush.msra.mxu0 %v853
        %4570 = vmatpush.msra.mxu0 %v844
        %4571 = vmatpush.msra.mxu0 %v835
        %4572 = vmatpush.msra.mxu0 %v826
        %4573 = vmatmul.f32.gmra.mxu0 %v4555
        %v4574 = vpop.f32.mrf.mxu0
        %v4575 = vadd.f32 0.0, %v4574
        %4576 = vmatmul.f32.gmra.mxu0 %v4556
        %v4577 = vpop.f32.mrf.mxu0
        %v4578 = vadd.f32 0.0, %v4577
        %4579 = vdwg.mxu0
        %4580 = vmatpush.msra.mxu0 %v962
        %4581 = vmatpush.msra.mxu0 %v953
        %4582 = vmatpush.msra.mxu0 %v944
        %4583 = vmatpush.msra.mxu0 %v935
        %4584 = vmatpush.msra.mxu0 %v926
        %4585 = vmatpush.msra.mxu0 %v917
        %4586 = vmatpush.msra.mxu0 %v908
        %4587 = vmatpush.msra.mxu0 %v899
        %4588 = vmatpush.msra.mxu0 %v890
        %4589 = vmatpush.msra.mxu0 %v881
        %4590 = vmatpush.msra.mxu0 %v872
        %4591 = vmatpush.msra.mxu0 %v863
        %4592 = vmatpush.msra.mxu0 %v854
        %4593 = vmatpush.msra.mxu0 %v845
        %4594 = vmatpush.msra.mxu0 %v836
        %4595 = vmatpush.msra.mxu0 %v827
        %4596 = vmatmul.f32.gmra.mxu0 %v4555
        %v4597 = vpop.f32.mrf.mxu0
        %v4598 = vadd.f32 0.0, %v4597
        %4599 = vmatmul.f32.gmra.mxu0 %v4556
        %v4600 = vpop.f32.mrf.mxu0
        %v4601 = vadd.f32 0.0, %v4600
        %4602 = vdwg.mxu0
        %4603 = vmatpush.msra.mxu0 %v963
        %4604 = vmatpush.msra.mxu0 %v954
        %4605 = vmatpush.msra.mxu0 %v945
        %4606 = vmatpush.msra.mxu0 %v936
        %4607 = vmatpush.msra.mxu0 %v927
        %4608 = vmatpush.msra.mxu0 %v918
        %4609 = vmatpush.msra.mxu0 %v909
        %4610 = vmatpush.msra.mxu0 %v900
        %4611 = vmatpush.msra.mxu0 %v891
        %4612 = vmatpush.msra.mxu0 %v882
        %4613 = vmatpush.msra.mxu0 %v873
        %4614 = vmatpush.msra.mxu0 %v864
        %4615 = vmatpush.msra.mxu0 %v855
        %4616 = vmatpush.msra.mxu0 %v846
        %4617 = vmatpush.msra.mxu0 %v837
        %4618 = vmatpush.msra.mxu0 %v828
        %4619 = vmatmul.f32.gmra.mxu0 %v4555
        %v4620 = vpop.f32.mrf.mxu0
        %v4621 = vadd.f32 0.0, %v4620
        %4622 = vmatmul.f32.gmra.mxu0 %v4556
        %v4623 = vpop.f32.mrf.mxu0
        %v4624 = vadd.f32 0.0, %v4623
        %4625 = vdwg.mxu0
        %4626 = vmatpush.msra.mxu0 %v964
        %4627 = vmatpush.msra.mxu0 %v955
        %4628 = vmatpush.msra.mxu0 %v946
        %4629 = vmatpush.msra.mxu0 %v937
        %4630 = vmatpush.msra.mxu0 %v928
        %4631 = vmatpush.msra.mxu0 %v919
        %4632 = vmatpush.msra.mxu0 %v910
        %4633 = vmatpush.msra.mxu0 %v901
        %4634 = vmatpush.msra.mxu0 %v892
        %4635 = vmatpush.msra.mxu0 %v883
        %4636 = vmatpush.msra.mxu0 %v874
        %4637 = vmatpush.msra.mxu0 %v865
        %4638 = vmatpush.msra.mxu0 %v856
        %4639 = vmatpush.msra.mxu0 %v847
        %4640 = vmatpush.msra.mxu0 %v838
        %4641 = vmatpush.msra.mxu0 %v829
        %4642 = vmatmul.f32.gmra.mxu0 %v4555
        %v4643 = vpop.f32.mrf.mxu0
        %v4644 = vadd.f32 0.0, %v4643
        %4645 = vmatmul.f32.gmra.mxu0 %v4556
        %v4646 = vpop.f32.mrf.mxu0
        %v4647 = vadd.f32 0.0, %v4646
        %4648 = vdwg.mxu0
        %4649 = vmatpush.msra.mxu0 %v965
        %4650 = vmatpush.msra.mxu0 %v956
        %4651 = vmatpush.msra.mxu0 %v947
        %4652 = vmatpush.msra.mxu0 %v938
        %4653 = vmatpush.msra.mxu0 %v929
        %4654 = vmatpush.msra.mxu0 %v920
        %4655 = vmatpush.msra.mxu0 %v911
        %4656 = vmatpush.msra.mxu0 %v902
        %4657 = vmatpush.msra.mxu0 %v893
        %4658 = vmatpush.msra.mxu0 %v884
        %4659 = vmatpush.msra.mxu0 %v875
        %4660 = vmatpush.msra.mxu0 %v866
        %4661 = vmatpush.msra.mxu0 %v857
        %4662 = vmatpush.msra.mxu0 %v848
        %4663 = vmatpush.msra.mxu0 %v839
        %4664 = vmatpush.msra.mxu0 %v830
        %4665 = vmatmul.f32.gmra.mxu0 %v4555
        %v4666 = vpop.f32.mrf.mxu0
        %v4667 = vadd.f32 0.0, %v4666
        %4668 = vmatmul.f32.gmra.mxu0 %v4556
        %v4669 = vpop.f32.mrf.mxu0
        %v4670 = vadd.f32 0.0, %v4669
        %4671 = vdwg.mxu0
        %4672 = vmatpush.msra.mxu0 %v966
        %4673 = vmatpush.msra.mxu0 %v957
        %4674 = vmatpush.msra.mxu0 %v948
        %4675 = vmatpush.msra.mxu0 %v939
        %4676 = vmatpush.msra.mxu0 %v930
        %4677 = vmatpush.msra.mxu0 %v921
        %4678 = vmatpush.msra.mxu0 %v912
        %4679 = vmatpush.msra.mxu0 %v903
        %4680 = vmatpush.msra.mxu0 %v894
        %4681 = vmatpush.msra.mxu0 %v885
        %4682 = vmatpush.msra.mxu0 %v876
        %4683 = vmatpush.msra.mxu0 %v867
        %4684 = vmatpush.msra.mxu0 %v858
        %4685 = vmatpush.msra.mxu0 %v849
        %4686 = vmatpush.msra.mxu0 %v840
        %4687 = vmatpush.msra.mxu0 %v831
        %4688 = vmatmul.f32.gmra.mxu0 %v4555
        %v4689 = vpop.f32.mrf.mxu0
        %v4690 = vadd.f32 0.0, %v4689
        %4691 = vmatmul.f32.gmra.mxu0 %v4556
        %v4692 = vpop.f32.mrf.mxu0
        %v4693 = vadd.f32 0.0, %v4692
        %4694 = vdwg.mxu0
        %4695 = vmatpush.msra.mxu0 %v967
        %4696 = vmatpush.msra.mxu0 %v958
        %4697 = vmatpush.msra.mxu0 %v949
        %4698 = vmatpush.msra.mxu0 %v940
        %4699 = vmatpush.msra.mxu0 %v931
        %4700 = vmatpush.msra.mxu0 %v922
        %4701 = vmatpush.msra.mxu0 %v913
        %4702 = vmatpush.msra.mxu0 %v904
        %4703 = vmatpush.msra.mxu0 %v895
        %4704 = vmatpush.msra.mxu0 %v886
        %4705 = vmatpush.msra.mxu0 %v877
        %4706 = vmatpush.msra.mxu0 %v868
        %4707 = vmatpush.msra.mxu0 %v859
        %4708 = vmatpush.msra.mxu0 %v850
        %4709 = vmatpush.msra.mxu0 %v841
        %4710 = vmatpush.msra.mxu0 %v832
        %4711 = vmatmul.f32.gmra.mxu0 %v4555
        %v4712 = vpop.f32.mrf.mxu0
        %v4713 = vadd.f32 0.0, %v4712
        %4714 = vmatmul.f32.gmra.mxu0 %v4556
        %v4715 = vpop.f32.mrf.mxu0
        %v4716 = vadd.f32 0.0, %v4715
        %4717 = vdwg.mxu0
        %4718 = vmatpush.msra.mxu0 %v968
        %4719 = vmatpush.msra.mxu0 %v959
        %4720 = vmatpush.msra.mxu0 %v950
        %4721 = vmatpush.msra.mxu0 %v941
        %4722 = vmatpush.msra.mxu0 %v932
        %4723 = vmatpush.msra.mxu0 %v923
        %4724 = vmatpush.msra.mxu0 %v914
        %4725 = vmatpush.msra.mxu0 %v905
        %4726 = vmatpush.msra.mxu0 %v896
        %4727 = vmatpush.msra.mxu0 %v887
        %4728 = vmatpush.msra.mxu0 %v878
        %4729 = vmatpush.msra.mxu0 %v869
        %4730 = vmatpush.msra.mxu0 %v860
        %4731 = vmatpush.msra.mxu0 %v851
        %4732 = vmatpush.msra.mxu0 %v842
        %4733 = vmatpush.msra.mxu0 %v833
        %4734 = vmatmul.f32.gmra.mxu0 %v4555
        %v4735 = vpop.f32.mrf.mxu0
        %v4736 = vadd.f32 0.0, %v4735
        %4737 = vmatmul.f32.gmra.mxu0 %v4556
        %v4738 = vpop.f32.mrf.mxu0
        %v4739 = vadd.f32 0.0, %v4738
        %4740 = vdwg.mxu0
        %4741 = vmatpush.msra.mxu0 %v969
        %4742 = vmatpush.msra.mxu0 %v960
        %4743 = vmatpush.msra.mxu0 %v951
        %4744 = vmatpush.msra.mxu0 %v942
        %4745 = vmatpush.msra.mxu0 %v933
        %4746 = vmatpush.msra.mxu0 %v924
        %4747 = vmatpush.msra.mxu0 %v915
        %4748 = vmatpush.msra.mxu0 %v906
        %4749 = vmatpush.msra.mxu0 %v897
        %4750 = vmatpush.msra.mxu0 %v888
        %4751 = vmatpush.msra.mxu0 %v879
        %4752 = vmatpush.msra.mxu0 %v870
        %4753 = vmatpush.msra.mxu0 %v861
        %4754 = vmatpush.msra.mxu0 %v852
        %4755 = vmatpush.msra.mxu0 %v843
        %4756 = vmatpush.msra.mxu0 %v834
        %4757 = vmatmul.f32.gmra.mxu0 %v4555
        %v4758 = vpop.f32.mrf.mxu0
        %v4759 = vadd.f32 0.0, %v4758
        %4760 = vmatmul.f32.gmra.mxu0 %v4556
        %v4761 = vpop.f32.mrf.mxu0
        %v4762 = vadd.f32 0.0, %v4761
        %4763 = vdwg.mxu0
        %4764 = vmatpush.msra.mxu0 0.0
        %4765 = vmatpush.msra.mxu0 0.0
        %4766 = vmatpush.msra.mxu0 0.0
        %4767 = vmatpush.msra.mxu0 0.0
        %4768 = vmatpush.msra.mxu0 0.0
        %4769 = vmatpush.msra.mxu0 0.0
        %4770 = vmatpush.msra.mxu0 0.0
        %4771 = vmatpush.msra.mxu0 0.0
        %4772 = vmatpush.msra.mxu0 0.0
        %4773 = vmatpush.msra.mxu0 0.0
        %4774 = vmatpush.msra.mxu0 0.0
        %4775 = vmatpush.msra.mxu0 0.0
        %4776 = vmatpush.msra.mxu0 0.0
        %4777 = vmatpush.msra.mxu0 0.0
        %4778 = vmatpush.msra.mxu0 %v4647
        %4779 = vmatpush.msra.mxu0 %v4644
        %4780 = vmatmul.f32.gmra.mxu0 %v1229
        %v4781 = vpop.f32.mrf.mxu0
        %v4782 = vadd.f32 0.0, %v4781
        %4783 = vmatmul.f32.gmra.mxu0 %v1232
        %v4784 = vpop.f32.mrf.mxu0
        %v4785 = vadd.f32 0.0, %v4784
        %4786 = vdwg.mxu0
        %4787 = vmatpush.msra.mxu0 0.0
        %4788 = vmatpush.msra.mxu0 0.0
        %4789 = vmatpush.msra.mxu0 0.0
        %4790 = vmatpush.msra.mxu0 0.0
        %4791 = vmatpush.msra.mxu0 0.0
        %4792 = vmatpush.msra.mxu0 0.0
        %4793 = vmatpush.msra.mxu0 0.0
        %4794 = vmatpush.msra.mxu0 0.0
        %4795 = vmatpush.msra.mxu0 0.0
        %4796 = vmatpush.msra.mxu0 0.0
        %4797 = vmatpush.msra.mxu0 0.0
        %4798 = vmatpush.msra.mxu0 0.0
        %4799 = vmatpush.msra.mxu0 0.0
        %4800 = vmatpush.msra.mxu0 0.0
        %4801 = vmatpush.msra.mxu0 %v4670
        %4802 = vmatpush.msra.mxu0 %v4667
        %4803 = vmatmul.f32.gmra.mxu0 %v1229
        %v4804 = vpop.f32.mrf.mxu0
        %v4805 = vadd.f32 0.0, %v4804
        %4806 = vmatmul.f32.gmra.mxu0 %v1232
        %v4807 = vpop.f32.mrf.mxu0
        %v4808 = vadd.f32 0.0, %v4807
        %4809 = vdwg.mxu0
        %4810 = vmatpush.msra.mxu0 0.0
        %4811 = vmatpush.msra.mxu0 0.0
        %4812 = vmatpush.msra.mxu0 0.0
        %4813 = vmatpush.msra.mxu0 0.0
        %4814 = vmatpush.msra.mxu0 0.0
        %4815 = vmatpush.msra.mxu0 0.0
        %4816 = vmatpush.msra.mxu0 0.0
        %4817 = vmatpush.msra.mxu0 0.0
        %4818 = vmatpush.msra.mxu0 0.0
        %4819 = vmatpush.msra.mxu0 0.0
        %4820 = vmatpush.msra.mxu0 0.0
        %4821 = vmatpush.msra.mxu0 0.0
        %4822 = vmatpush.msra.mxu0 0.0
        %4823 = vmatpush.msra.mxu0 0.0
        %4824 = vmatpush.msra.mxu0 %v4693
        %4825 = vmatpush.msra.mxu0 %v4690
        %4826 = vmatmul.f32.gmra.mxu0 %v1229
        %v4827 = vpop.f32.mrf.mxu0
        %v4828 = vadd.f32 0.0, %v4827
        %4829 = vmatmul.f32.gmra.mxu0 %v1232
        %v4830 = vpop.f32.mrf.mxu0
        %v4831 = vadd.f32 0.0, %v4830
        %4832 = vdwg.mxu0
        %4833 = vmatpush.msra.mxu0 0.0
        %4834 = vmatpush.msra.mxu0 0.0
        %4835 = vmatpush.msra.mxu0 0.0
        %4836 = vmatpush.msra.mxu0 0.0
        %4837 = vmatpush.msra.mxu0 0.0
        %4838 = vmatpush.msra.mxu0 0.0
        %4839 = vmatpush.msra.mxu0 0.0
        %4840 = vmatpush.msra.mxu0 0.0
        %4841 = vmatpush.msra.mxu0 0.0
        %4842 = vmatpush.msra.mxu0 0.0
        %4843 = vmatpush.msra.mxu0 0.0
        %4844 = vmatpush.msra.mxu0 0.0
        %4845 = vmatpush.msra.mxu0 0.0
        %4846 = vmatpush.msra.mxu0 0.0
        %4847 = vmatpush.msra.mxu0 %v4578
        %4848 = vmatpush.msra.mxu0 %v4575
        %4849 = vmatmul.f32.gmra.mxu0 %v1304
        %v4850 = vpop.f32.mrf.mxu0
        %v4851 = vadd.f32 %v4782, %v4850
        %4852 = vmatmul.f32.gmra.mxu0 %v1307
        %v4853 = vpop.f32.mrf.mxu0
        %v4854 = vadd.f32 %v4785, %v4853
        %4855 = vdwg.mxu0
        %4856 = vmatpush.msra.mxu0 0.0
        %4857 = vmatpush.msra.mxu0 0.0
        %4858 = vmatpush.msra.mxu0 0.0
        %4859 = vmatpush.msra.mxu0 0.0
        %4860 = vmatpush.msra.mxu0 0.0
        %4861 = vmatpush.msra.mxu0 0.0
        %4862 = vmatpush.msra.mxu0 0.0
        %4863 = vmatpush.msra.mxu0 0.0
        %4864 = vmatpush.msra.mxu0 0.0
        %4865 = vmatpush.msra.mxu0 0.0
        %4866 = vmatpush.msra.mxu0 0.0
        %4867 = vmatpush.msra.mxu0 0.0
        %4868 = vmatpush.msra.mxu0 0.0
        %4869 = vmatpush.msra.mxu0 0.0
        %4870 = vmatpush.msra.mxu0 %v4601
        %4871 = vmatpush.msra.mxu0 %v4598
        %4872 = vmatmul.f32.gmra.mxu0 %v1304
        %v4873 = vpop.f32.mrf.mxu0
        %v4874 = vadd.f32 %v4805, %v4873
        %4875 = vmatmul.f32.gmra.mxu0 %v1307
        %v4876 = vpop.f32.mrf.mxu0
        %v4877 = vadd.f32 %v4808, %v4876
        %4878 = vdwg.mxu0
        %4879 = vmatpush.msra.mxu0 0.0
        %4880 = vmatpush.msra.mxu0 0.0
        %4881 = vmatpush.msra.mxu0 0.0
        %4882 = vmatpush.msra.mxu0 0.0
        %4883 = vmatpush.msra.mxu0 0.0
        %4884 = vmatpush.msra.mxu0 0.0
        %4885 = vmatpush.msra.mxu0 0.0
        %4886 = vmatpush.msra.mxu0 0.0
        %4887 = vmatpush.msra.mxu0 0.0
        %4888 = vmatpush.msra.mxu0 0.0
        %4889 = vmatpush.msra.mxu0 0.0
        %4890 = vmatpush.msra.mxu0 0.0
        %4891 = vmatpush.msra.mxu0 0.0
        %4892 = vmatpush.msra.mxu0 0.0
        %4893 = vmatpush.msra.mxu0 %v4624
        %4894 = vmatpush.msra.mxu0 %v4621
        %4895 = vmatmul.f32.gmra.mxu0 %v1304
        %v4896 = vpop.f32.mrf.mxu0
        %v4897 = vadd.f32 %v4828, %v4896
        %4898 = vmatmul.f32.gmra.mxu0 %v1307
        %v4899 = vpop.f32.mrf.mxu0
        %v4900 = vadd.f32 %v4831, %v4899
        %4901 = vdwg.mxu0
        %4902 = vmatpush.msra.mxu0 0.0
        %4903 = vmatpush.msra.mxu0 0.0
        %4904 = vmatpush.msra.mxu0 0.0
        %4905 = vmatpush.msra.mxu0 0.0
        %4906 = vmatpush.msra.mxu0 0.0
        %4907 = vmatpush.msra.mxu0 0.0
        %4908 = vmatpush.msra.mxu0 0.0
        %4909 = vmatpush.msra.mxu0 0.0
        %4910 = vmatpush.msra.mxu0 0.0
        %4911 = vmatpush.msra.mxu0 0.0
        %4912 = vmatpush.msra.mxu0 0.0
        %4913 = vmatpush.msra.mxu0 0.0
        %4914 = vmatpush.msra.mxu0 0.0
        %4915 = vmatpush.msra.mxu0 0.0
        %4916 = vmatpush.msra.mxu0 %v4716
        %4917 = vmatpush.msra.mxu0 %v4713
        %4918 = vmatmul.f32.gmra.mxu0 %v1379
        %v4919 = vpop.f32.mrf.mxu0
        %v4920 = vadd.f32 0.0, %v4919
        %4921 = vmatmul.f32.gmra.mxu0 %v1382
        %v4922 = vpop.f32.mrf.mxu0
        %v4923 = vadd.f32 0.0, %v4922
        %4924 = vdwg.mxu0
        %4925 = vmatpush.msra.mxu0 0.0
        %4926 = vmatpush.msra.mxu0 0.0
        %4927 = vmatpush.msra.mxu0 0.0
        %4928 = vmatpush.msra.mxu0 0.0
        %4929 = vmatpush.msra.mxu0 0.0
        %4930 = vmatpush.msra.mxu0 0.0
        %4931 = vmatpush.msra.mxu0 0.0
        %4932 = vmatpush.msra.mxu0 0.0
        %4933 = vmatpush.msra.mxu0 0.0
        %4934 = vmatpush.msra.mxu0 0.0
        %4935 = vmatpush.msra.mxu0 0.0
        %4936 = vmatpush.msra.mxu0 0.0
        %4937 = vmatpush.msra.mxu0 0.0
        %4938 = vmatpush.msra.mxu0 0.0
        %4939 = vmatpush.msra.mxu0 %v4739
        %4940 = vmatpush.msra.mxu0 %v4736
        %4941 = vmatmul.f32.gmra.mxu0 %v1379
        %v4942 = vpop.f32.mrf.mxu0
        %v4943 = vadd.f32 0.0, %v4942
        %4944 = vmatmul.f32.gmra.mxu0 %v1382
        %v4945 = vpop.f32.mrf.mxu0
        %v4946 = vadd.f32 0.0, %v4945
        %4947 = vdwg.mxu0
        %4948 = vmatpush.msra.mxu0 0.0
        %4949 = vmatpush.msra.mxu0 0.0
        %4950 = vmatpush.msra.mxu0 0.0
        %4951 = vmatpush.msra.mxu0 0.0
        %4952 = vmatpush.msra.mxu0 0.0
        %4953 = vmatpush.msra.mxu0 0.0
        %4954 = vmatpush.msra.mxu0 0.0
        %4955 = vmatpush.msra.mxu0 0.0
        %4956 = vmatpush.msra.mxu0 0.0
        %4957 = vmatpush.msra.mxu0 0.0
        %4958 = vmatpush.msra.mxu0 0.0
        %4959 = vmatpush.msra.mxu0 0.0
        %4960 = vmatpush.msra.mxu0 0.0
        %4961 = vmatpush.msra.mxu0 0.0
        %4962 = vmatpush.msra.mxu0 %v4762
        %4963 = vmatpush.msra.mxu0 %v4759
        %4964 = vmatmul.f32.gmra.mxu0 %v1379
        %v4965 = vpop.f32.mrf.mxu0
        %v4966 = vadd.f32 0.0, %v4965
        %4967 = vmatmul.f32.gmra.mxu0 %v1382
        %v4968 = vpop.f32.mrf.mxu0
        %v4969 = vadd.f32 0.0, %v4968
        %4970 = vdwg.mxu0
        %v4971 = vadd.f32 %v4851, %v4920
        %v4972 = vadd.f32 %v4874, %v4943
        %v4973 = vadd.f32 %v4897, %v4966
        %v4974 = vadd.f32 %v4854, %v4923
        %v4975 = vadd.f32 %v4877, %v4946
        %v4976 = vadd.f32 %v4900, %v4969
        %4977 = vmatpush.msra.mxu0 %v1000
        %4978 = vmatpush.msra.mxu0 %v998
        %4979 = vmatpush.msra.mxu0 %v996
        %4980 = vmatpush.msra.mxu0 %v994
        %4981 = vmatpush.msra.mxu0 %v992
        %4982 = vmatpush.msra.mxu0 %v990
        %4983 = vmatpush.msra.mxu0 %v988
        %4984 = vmatpush.msra.mxu0 %v986
        %4985 = vmatpush.msra.mxu0 %v984
        %4986 = vmatpush.msra.mxu0 %v982
        %4987 = vmatpush.msra.mxu0 %v980
        %4988 = vmatpush.msra.mxu0 %v978
        %4989 = vmatpush.msra.mxu0 %v976
        %4990 = vmatpush.msra.mxu0 %v974
        %4991 = vmatpush.msra.mxu0 %v972
        %4992 = vmatpush.msra.mxu0 %v970
        %4993 = vmatmul.f32.gmra.mxu0 %v4555
        %v4994 = vpop.f32.mrf.mxu0
        %v4995 = vadd.f32 %v1460, %v4994
        %4996 = vmatmul.f32.gmra.mxu0 %v4556
        %v4997 = vpop.f32.mrf.mxu0
        %v4998 = vadd.f32 %v1460, %v4997
        %4999 = vdwg.mxu0
        %5000 = vmatpush.msra.mxu0 %v1001
        %5001 = vmatpush.msra.mxu0 %v999
        %5002 = vmatpush.msra.mxu0 %v997
        %5003 = vmatpush.msra.mxu0 %v995
        %5004 = vmatpush.msra.mxu0 %v993
        %5005 = vmatpush.msra.mxu0 %v991
        %5006 = vmatpush.msra.mxu0 %v989
        %5007 = vmatpush.msra.mxu0 %v987
        %5008 = vmatpush.msra.mxu0 %v985
        %5009 = vmatpush.msra.mxu0 %v983
        %5010 = vmatpush.msra.mxu0 %v981
        %5011 = vmatpush.msra.mxu0 %v979
        %5012 = vmatpush.msra.mxu0 %v977
        %5013 = vmatpush.msra.mxu0 %v975
        %5014 = vmatpush.msra.mxu0 %v973
        %5015 = vmatpush.msra.mxu0 %v971
        %5016 = vmatmul.f32.gmra.mxu0 %v4555
        %v5017 = vpop.f32.mrf.mxu0
        %v5018 = vadd.f32 %v1461, %v5017
        %5019 = vmatmul.f32.gmra.mxu0 %v4556
        %v5020 = vpop.f32.mrf.mxu0
        %v5021 = vadd.f32 %v1461, %v5020
        %5022 = vdwg.mxu0
        %v5023 = vadd.f32 %v4995, %v4971
        %v5024 = vadd.f32 %v5018, %v4972
        %v5025 = vadd.f32 %v4998, %v4974
        %v5026 = vadd.f32 %v5021, %v4975
        %v5027 = vxor.u32 %v5023, 2147483648
        %v5028 = vxor.u32 %v5024, 2147483648
        %v5029 = vxor.u32 %v5025, 2147483648
        %v5030 = vxor.u32 %v5026, 2147483648
        %v5031 = vmul.f32 %v5027, 1.442695
        %v5032 = vpow.pop %v5031
        %v5033 = vmul.f32 %v5028, 1.442695
        %v5034 = vpow.pop %v5033
        %v5035 = vmul.f32 %v5029, 1.442695
        %v5036 = vpow.pop %v5035
        %v5037 = vmul.f32 %v5030, 1.442695
        %v5038 = vpow.pop %v5037
        %v5039 = vadd.f32 %v5032, 1.0
        %v5040 = vadd.f32 %v5034, 1.0
        %v5041 = vadd.f32 %v5036, 1.0
        %v5042 = vadd.f32 %v5038, 1.0
        %v5043 = vrcp.pop %v5039
        %v5044 = vmul.f32 %v5039, %v5043
        %v5045 = vsub.f32 1.0, %v5044
        %v5046 = vmul.f32 %v5043, %v5045
        %v5047 = vadd.f32 %v5043, %v5046
        %vm5048 = vweird.f32 %v5039
        %vm5049 = vweird.f32 %v5043
        %vm5050 = vmor %vm5048, %vm5049
        %v5051 = vsel %vm5050, %v5043, %v5047
        %v5052 = vand.u32 2147483647, %v5039
        %vm5053 = vcmp.eq.f32.partialorder %v5052, 8.507059e+37
        %v5054 = vand.u32 %v5039, 2147483648
        %v5055 = vor.u32 1.1754944e-38, %v5054
        %v5056 = vsel %vm5053, %v5055, %v5051
        %v5057 = vmul.f32 1.0, %v5056
        %v5058 = vrcp.pop %v5040
        %v5059 = vmul.f32 %v5040, %v5058
        %v5060 = vsub.f32 1.0, %v5059
        %v5061 = vmul.f32 %v5058, %v5060
        %v5062 = vadd.f32 %v5058, %v5061
        %vm5063 = vweird.f32 %v5040
        %vm5064 = vweird.f32 %v5058
        %vm5065 = vmor %vm5063, %vm5064
        %v5066 = vsel %vm5065, %v5058, %v5062
        %v5067 = vand.u32 2147483647, %v5040
        %vm5068 = vcmp.eq.f32.partialorder %v5067, 8.507059e+37
        %v5069 = vand.u32 %v5040, 2147483648
        %v5070 = vor.u32 1.1754944e-38, %v5069
        %v5071 = vsel %vm5068, %v5070, %v5066
        %v5072 = vmul.f32 1.0, %v5071
        %v5073 = vrcp.pop %v5041
        %v5074 = vmul.f32 %v5041, %v5073
        %v5075 = vsub.f32 1.0, %v5074
        %v5076 = vmul.f32 %v5073, %v5075
        %v5077 = vadd.f32 %v5073, %v5076
        %vm5078 = vweird.f32 %v5041
        %vm5079 = vweird.f32 %v5073
        %vm5080 = vmor %vm5078, %vm5079
        %v5081 = vsel %vm5080, %v5073, %v5077
        %v5082 = vand.u32 2147483647, %v5041
        %vm5083 = vcmp.eq.f32.partialorder %v5082, 8.507059e+37
        %v5084 = vand.u32 %v5041, 2147483648
        %v5085 = vor.u32 1.1754944e-38, %v5084
        %v5086 = vsel %vm5083, %v5085, %v5081
        %v5087 = vmul.f32 1.0, %v5086
        %v5088 = vrcp.pop %v5042
        %v5089 = vmul.f32 %v5042, %v5088
        %v5090 = vsub.f32 1.0, %v5089
        %v5091 = vmul.f32 %v5088, %v5090
        %v5092 = vadd.f32 %v5088, %v5091
        %vm5093 = vweird.f32 %v5042
        %vm5094 = vweird.f32 %v5088
        %vm5095 = vmor %vm5093, %vm5094
        %v5096 = vsel %vm5095, %v5088, %v5092
        %v5097 = vand.u32 2147483647, %v5042
        %vm5098 = vcmp.eq.f32.partialorder %v5097, 8.507059e+37
        %v5099 = vand.u32 %v5042, 2147483648
        %v5100 = vor.u32 1.1754944e-38, %v5099
        %v5101 = vsel %vm5098, %v5100, %v5096
        %v5102 = vmul.f32 1.0, %v5101
        %v5103 = vmul.f32 %v5072, %v4555
        %v5104 = vmul.f32 %v5102, %v4556
        %5105 = vmatpush.msra.mxu0 %v1017
        %5106 = vmatpush.msra.mxu0 %v1016
        %5107 = vmatpush.msra.mxu0 %v1015
        %5108 = vmatpush.msra.mxu0 %v1014
        %5109 = vmatpush.msra.mxu0 %v1013
        %5110 = vmatpush.msra.mxu0 %v1012
        %5111 = vmatpush.msra.mxu0 %v1011
        %5112 = vmatpush.msra.mxu0 %v1010
        %5113 = vmatpush.msra.mxu0 %v1009
        %5114 = vmatpush.msra.mxu0 %v1008
        %5115 = vmatpush.msra.mxu0 %v1007
        %5116 = vmatpush.msra.mxu0 %v1006
        %5117 = vmatpush.msra.mxu0 %v1005
        %5118 = vmatpush.msra.mxu0 %v1004
        %5119 = vmatpush.msra.mxu0 %v1003
        %5120 = vmatpush.msra.mxu0 %v1002
        %5121 = vmatmul.f32.gmra.mxu0 %v5103
        %v5122 = vpop.f32.mrf.mxu0
        %v5123 = vadd.f32 0.0, %v5122
        %5124 = vmatmul.f32.gmra.mxu0 %v5104
        %v5125 = vpop.f32.mrf.mxu0
        %v5126 = vadd.f32 0.0, %v5125
        %5127 = vdwg.mxu0
        %v5128 = vadd.f32 %v4973, %v5123
        %v5129 = vadd.f32 %v4976, %v5126
        %v5130 = vadd.f32 %v5128, %v1618
        %v5131 = vadd.f32 %v5129, %v1618
        %v5132 = vtanh.pop %v5130
        %v5133 = vtanh.pop %v5131
        %v5134 = vsub.f32 1.0, %v5057
        %v5135 = vsub.f32 1.0, %v5087
        %v5136 = vmul.f32 %v5134, %v4555
        %v5137 = vmul.f32 %v5135, %v4556
        %v5138 = vmul.f32 %v5057, %v5132
        %v5139 = vmul.f32 %v5087, %v5133
        %v5140 = vadd.f32 %v5136, %v5138
        %v5141 = vadd.f32 %v5137, %v5139
        %5142 = vmatpush.msra.mxu0 %v961
        %5143 = vmatpush.msra.mxu0 %v952
        %5144 = vmatpush.msra.mxu0 %v943
        %5145 = vmatpush.msra.mxu0 %v934
        %5146 = vmatpush.msra.mxu0 %v925
        %5147 = vmatpush.msra.mxu0 %v916
        %5148 = vmatpush.msra.mxu0 %v907
        %5149 = vmatpush.msra.mxu0 %v898
        %5150 = vmatpush.msra.mxu0 %v889
        %5151 = vmatpush.msra.mxu0 %v880
        %5152 = vmatpush.msra.mxu0 %v871
        %5153 = vmatpush.msra.mxu0 %v862
        %5154 = vmatpush.msra.mxu0 %v853
        %5155 = vmatpush.msra.mxu0 %v844
        %5156 = vmatpush.msra.mxu0 %v835
        %5157 = vmatpush.msra.mxu0 %v826
        %5158 = vmatmul.f32.gmra.mxu0 %v5140
        %v5159 = vpop.f32.mrf.mxu0
        %v5160 = vadd.f32 0.0, %v5159
        %5161 = vmatmul.f32.gmra.mxu0 %v5141
        %v5162 = vpop.f32.mrf.mxu0
        %v5163 = vadd.f32 0.0, %v5162
        %5164 = vdwg.mxu0
        %5165 = vmatpush.msra.mxu0 %v962
        %5166 = vmatpush.msra.mxu0 %v953
        %5167 = vmatpush.msra.mxu0 %v944
        %5168 = vmatpush.msra.mxu0 %v935
        %5169 = vmatpush.msra.mxu0 %v926
        %5170 = vmatpush.msra.mxu0 %v917
        %5171 = vmatpush.msra.mxu0 %v908
        %5172 = vmatpush.msra.mxu0 %v899
        %5173 = vmatpush.msra.mxu0 %v890
        %5174 = vmatpush.msra.mxu0 %v881
        %5175 = vmatpush.msra.mxu0 %v872
        %5176 = vmatpush.msra.mxu0 %v863
        %5177 = vmatpush.msra.mxu0 %v854
        %5178 = vmatpush.msra.mxu0 %v845
        %5179 = vmatpush.msra.mxu0 %v836
        %5180 = vmatpush.msra.mxu0 %v827
        %5181 = vmatmul.f32.gmra.mxu0 %v5140
        %v5182 = vpop.f32.mrf.mxu0
        %v5183 = vadd.f32 0.0, %v5182
        %5184 = vmatmul.f32.gmra.mxu0 %v5141
        %v5185 = vpop.f32.mrf.mxu0
        %v5186 = vadd.f32 0.0, %v5185
        %5187 = vdwg.mxu0
        %5188 = vmatpush.msra.mxu0 %v963
        %5189 = vmatpush.msra.mxu0 %v954
        %5190 = vmatpush.msra.mxu0 %v945
        %5191 = vmatpush.msra.mxu0 %v936
        %5192 = vmatpush.msra.mxu0 %v927
        %5193 = vmatpush.msra.mxu0 %v918
        %5194 = vmatpush.msra.mxu0 %v909
        %5195 = vmatpush.msra.mxu0 %v900
        %5196 = vmatpush.msra.mxu0 %v891
        %5197 = vmatpush.msra.mxu0 %v882
        %5198 = vmatpush.msra.mxu0 %v873
        %5199 = vmatpush.msra.mxu0 %v864
        %5200 = vmatpush.msra.mxu0 %v855
        %5201 = vmatpush.msra.mxu0 %v846
        %5202 = vmatpush.msra.mxu0 %v837
        %5203 = vmatpush.msra.mxu0 %v828
        %5204 = vmatmul.f32.gmra.mxu0 %v5140
        %v5205 = vpop.f32.mrf.mxu0
        %v5206 = vadd.f32 0.0, %v5205
        %5207 = vmatmul.f32.gmra.mxu0 %v5141
        %v5208 = vpop.f32.mrf.mxu0
        %v5209 = vadd.f32 0.0, %v5208
        %5210 = vdwg.mxu0
        %5211 = vmatpush.msra.mxu0 %v964
        %5212 = vmatpush.msra.mxu0 %v955
        %5213 = vmatpush.msra.mxu0 %v946
        %5214 = vmatpush.msra.mxu0 %v937
        %5215 = vmatpush.msra.mxu0 %v928
        %5216 = vmatpush.msra.mxu0 %v919
        %5217 = vmatpush.msra.mxu0 %v910
        %5218 = vmatpush.msra.mxu0 %v901
        %5219 = vmatpush.msra.mxu0 %v892
        %5220 = vmatpush.msra.mxu0 %v883
        %5221 = vmatpush.msra.mxu0 %v874
        %5222 = vmatpush.msra.mxu0 %v865
        %5223 = vmatpush.msra.mxu0 %v856
        %5224 = vmatpush.msra.mxu0 %v847
        %5225 = vmatpush.msra.mxu0 %v838
        %5226 = vmatpush.msra.mxu0 %v829
        %5227 = vmatmul.f32.gmra.mxu0 %v5140
        %v5228 = vpop.f32.mrf.mxu0
        %v5229 = vadd.f32 0.0, %v5228
        %5230 = vmatmul.f32.gmra.mxu0 %v5141
        %v5231 = vpop.f32.mrf.mxu0
        %v5232 = vadd.f32 0.0, %v5231
        %5233 = vdwg.mxu0
        %5234 = vmatpush.msra.mxu0 %v965
        %5235 = vmatpush.msra.mxu0 %v956
        %5236 = vmatpush.msra.mxu0 %v947
        %5237 = vmatpush.msra.mxu0 %v938
        %5238 = vmatpush.msra.mxu0 %v929
        %5239 = vmatpush.msra.mxu0 %v920
        %5240 = vmatpush.msra.mxu0 %v911
        %5241 = vmatpush.msra.mxu0 %v902
        %5242 = vmatpush.msra.mxu0 %v893
        %5243 = vmatpush.msra.mxu0 %v884
        %5244 = vmatpush.msra.mxu0 %v875
        %5245 = vmatpush.msra.mxu0 %v866
        %5246 = vmatpush.msra.mxu0 %v857
        %5247 = vmatpush.msra.mxu0 %v848
        %5248 = vmatpush.msra.mxu0 %v839
        %5249 = vmatpush.msra.mxu0 %v830
        %5250 = vmatmul.f32.gmra.mxu0 %v5140
        %v5251 = vpop.f32.mrf.mxu0
        %v5252 = vadd.f32 0.0, %v5251
        %5253 = vmatmul.f32.gmra.mxu0 %v5141
        %v5254 = vpop.f32.mrf.mxu0
        %v5255 = vadd.f32 0.0, %v5254
        %5256 = vdwg.mxu0
        %5257 = vmatpush.msra.mxu0 %v966
        %5258 = vmatpush.msra.mxu0 %v957
        %5259 = vmatpush.msra.mxu0 %v948
        %5260 = vmatpush.msra.mxu0 %v939
        %5261 = vmatpush.msra.mxu0 %v930
        %5262 = vmatpush.msra.mxu0 %v921
        %5263 = vmatpush.msra.mxu0 %v912
        %5264 = vmatpush.msra.mxu0 %v903
        %5265 = vmatpush.msra.mxu0 %v894
        %5266 = vmatpush.msra.mxu0 %v885
        %5267 = vmatpush.msra.mxu0 %v876
        %5268 = vmatpush.msra.mxu0 %v867
        %5269 = vmatpush.msra.mxu0 %v858
        %5270 = vmatpush.msra.mxu0 %v849
        %5271 = vmatpush.msra.mxu0 %v840
        %5272 = vmatpush.msra.mxu0 %v831
        %5273 = vmatmul.f32.gmra.mxu0 %v5140
        %v5274 = vpop.f32.mrf.mxu0
        %v5275 = vadd.f32 0.0, %v5274
        %5276 = vmatmul.f32.gmra.mxu0 %v5141
        %v5277 = vpop.f32.mrf.mxu0
        %v5278 = vadd.f32 0.0, %v5277
        %5279 = vdwg.mxu0
        %5280 = vmatpush.msra.mxu0 %v967
        %5281 = vmatpush.msra.mxu0 %v958
        %5282 = vmatpush.msra.mxu0 %v949
        %5283 = vmatpush.msra.mxu0 %v940
        %5284 = vmatpush.msra.mxu0 %v931
        %5285 = vmatpush.msra.mxu0 %v922
        %5286 = vmatpush.msra.mxu0 %v913
        %5287 = vmatpush.msra.mxu0 %v904
        %5288 = vmatpush.msra.mxu0 %v895
        %5289 = vmatpush.msra.mxu0 %v886
        %5290 = vmatpush.msra.mxu0 %v877
        %5291 = vmatpush.msra.mxu0 %v868
        %5292 = vmatpush.msra.mxu0 %v859
        %5293 = vmatpush.msra.mxu0 %v850
        %5294 = vmatpush.msra.mxu0 %v841
        %5295 = vmatpush.msra.mxu0 %v832
        %5296 = vmatmul.f32.gmra.mxu0 %v5140
        %v5297 = vpop.f32.mrf.mxu0
        %v5298 = vadd.f32 0.0, %v5297
        %5299 = vmatmul.f32.gmra.mxu0 %v5141
        %v5300 = vpop.f32.mrf.mxu0
        %v5301 = vadd.f32 0.0, %v5300
        %5302 = vdwg.mxu0
        %5303 = vmatpush.msra.mxu0 %v968
        %5304 = vmatpush.msra.mxu0 %v959
        %5305 = vmatpush.msra.mxu0 %v950
        %5306 = vmatpush.msra.mxu0 %v941
        %5307 = vmatpush.msra.mxu0 %v932
        %5308 = vmatpush.msra.mxu0 %v923
        %5309 = vmatpush.msra.mxu0 %v914
        %5310 = vmatpush.msra.mxu0 %v905
        %5311 = vmatpush.msra.mxu0 %v896
        %5312 = vmatpush.msra.mxu0 %v887
        %5313 = vmatpush.msra.mxu0 %v878
        %5314 = vmatpush.msra.mxu0 %v869
        %5315 = vmatpush.msra.mxu0 %v860
        %5316 = vmatpush.msra.mxu0 %v851
        %5317 = vmatpush.msra.mxu0 %v842
        %5318 = vmatpush.msra.mxu0 %v833
        %5319 = vmatmul.f32.gmra.mxu0 %v5140
        %v5320 = vpop.f32.mrf.mxu0
        %v5321 = vadd.f32 0.0, %v5320
        %5322 = vmatmul.f32.gmra.mxu0 %v5141
        %v5323 = vpop.f32.mrf.mxu0
        %v5324 = vadd.f32 0.0, %v5323
        %5325 = vdwg.mxu0
        %5326 = vmatpush.msra.mxu0 %v969
        %5327 = vmatpush.msra.mxu0 %v960
        %5328 = vmatpush.msra.mxu0 %v951
        %5329 = vmatpush.msra.mxu0 %v942
        %5330 = vmatpush.msra.mxu0 %v933
        %5331 = vmatpush.msra.mxu0 %v924
        %5332 = vmatpush.msra.mxu0 %v915
        %5333 = vmatpush.msra.mxu0 %v906
        %5334 = vmatpush.msra.mxu0 %v897
        %5335 = vmatpush.msra.mxu0 %v888
        %5336 = vmatpush.msra.mxu0 %v879
        %5337 = vmatpush.msra.mxu0 %v870
        %5338 = vmatpush.msra.mxu0 %v861
        %5339 = vmatpush.msra.mxu0 %v852
        %5340 = vmatpush.msra.mxu0 %v843
        %5341 = vmatpush.msra.mxu0 %v834
        %5342 = vmatmul.f32.gmra.mxu0 %v5140
        %v5343 = vpop.f32.mrf.mxu0
        %v5344 = vadd.f32 0.0, %v5343
        %5345 = vmatmul.f32.gmra.mxu0 %v5141
        %v5346 = vpop.f32.mrf.mxu0
        %v5347 = vadd.f32 0.0, %v5346
        %5348 = vdwg.mxu0
        %5349 = vmatpush.msra.mxu0 0.0
        %5350 = vmatpush.msra.mxu0 0.0
        %5351 = vmatpush.msra.mxu0 0.0
        %5352 = vmatpush.msra.mxu0 0.0
        %5353 = vmatpush.msra.mxu0 0.0
        %5354 = vmatpush.msra.mxu0 0.0
        %5355 = vmatpush.msra.mxu0 0.0
        %5356 = vmatpush.msra.mxu0 0.0
        %5357 = vmatpush.msra.mxu0 0.0
        %5358 = vmatpush.msra.mxu0 0.0
        %5359 = vmatpush.msra.mxu0 0.0
        %5360 = vmatpush.msra.mxu0 0.0
        %5361 = vmatpush.msra.mxu0 0.0
        %5362 = vmatpush.msra.mxu0 0.0
        %5363 = vmatpush.msra.mxu0 %v5232
        %5364 = vmatpush.msra.mxu0 %v5229
        %5365 = vmatmul.f32.gmra.mxu0 %v1229
        %v5366 = vpop.f32.mrf.mxu0
        %v5367 = vadd.f32 0.0, %v5366
        %5368 = vmatmul.f32.gmra.mxu0 %v1232
        %v5369 = vpop.f32.mrf.mxu0
        %v5370 = vadd.f32 0.0, %v5369
        %5371 = vdwg.mxu0
        %5372 = vmatpush.msra.mxu0 0.0
        %5373 = vmatpush.msra.mxu0 0.0
        %5374 = vmatpush.msra.mxu0 0.0
        %5375 = vmatpush.msra.mxu0 0.0
        %5376 = vmatpush.msra.mxu0 0.0
        %5377 = vmatpush.msra.mxu0 0.0
        %5378 = vmatpush.msra.mxu0 0.0
        %5379 = vmatpush.msra.mxu0 0.0
        %5380 = vmatpush.msra.mxu0 0.0
        %5381 = vmatpush.msra.mxu0 0.0
        %5382 = vmatpush.msra.mxu0 0.0
        %5383 = vmatpush.msra.mxu0 0.0
        %5384 = vmatpush.msra.mxu0 0.0
        %5385 = vmatpush.msra.mxu0 0.0
        %5386 = vmatpush.msra.mxu0 %v5255
        %5387 = vmatpush.msra.mxu0 %v5252
        %5388 = vmatmul.f32.gmra.mxu0 %v1229
        %v5389 = vpop.f32.mrf.mxu0
        %v5390 = vadd.f32 0.0, %v5389
        %5391 = vmatmul.f32.gmra.mxu0 %v1232
        %v5392 = vpop.f32.mrf.mxu0
        %v5393 = vadd.f32 0.0, %v5392
        %5394 = vdwg.mxu0
        %5395 = vmatpush.msra.mxu0 0.0
        %5396 = vmatpush.msra.mxu0 0.0
        %5397 = vmatpush.msra.mxu0 0.0
        %5398 = vmatpush.msra.mxu0 0.0
        %5399 = vmatpush.msra.mxu0 0.0
        %5400 = vmatpush.msra.mxu0 0.0
        %5401 = vmatpush.msra.mxu0 0.0
        %5402 = vmatpush.msra.mxu0 0.0
        %5403 = vmatpush.msra.mxu0 0.0
        %5404 = vmatpush.msra.mxu0 0.0
        %5405 = vmatpush.msra.mxu0 0.0
        %5406 = vmatpush.msra.mxu0 0.0
        %5407 = vmatpush.msra.mxu0 0.0
        %5408 = vmatpush.msra.mxu0 0.0
        %5409 = vmatpush.msra.mxu0 %v5278
        %5410 = vmatpush.msra.mxu0 %v5275
        %5411 = vmatmul.f32.gmra.mxu0 %v1229
        %v5412 = vpop.f32.mrf.mxu0
        %v5413 = vadd.f32 0.0, %v5412
        %5414 = vmatmul.f32.gmra.mxu0 %v1232
        %v5415 = vpop.f32.mrf.mxu0
        %v5416 = vadd.f32 0.0, %v5415
        %5417 = vdwg.mxu0
        %5418 = vmatpush.msra.mxu0 0.0
        %5419 = vmatpush.msra.mxu0 0.0
        %5420 = vmatpush.msra.mxu0 0.0
        %5421 = vmatpush.msra.mxu0 0.0
        %5422 = vmatpush.msra.mxu0 0.0
        %5423 = vmatpush.msra.mxu0 0.0
        %5424 = vmatpush.msra.mxu0 0.0
        %5425 = vmatpush.msra.mxu0 0.0
        %5426 = vmatpush.msra.mxu0 0.0
        %5427 = vmatpush.msra.mxu0 0.0
        %5428 = vmatpush.msra.mxu0 0.0
        %5429 = vmatpush.msra.mxu0 0.0
        %5430 = vmatpush.msra.mxu0 0.0
        %5431 = vmatpush.msra.mxu0 0.0
        %5432 = vmatpush.msra.mxu0 %v5163
        %5433 = vmatpush.msra.mxu0 %v5160
        %5434 = vmatmul.f32.gmra.mxu0 %v1304
        %v5435 = vpop.f32.mrf.mxu0
        %v5436 = vadd.f32 %v5367, %v5435
        %5437 = vmatmul.f32.gmra.mxu0 %v1307
        %v5438 = vpop.f32.mrf.mxu0
        %v5439 = vadd.f32 %v5370, %v5438
        %5440 = vdwg.mxu0
        %5441 = vmatpush.msra.mxu0 0.0
        %5442 = vmatpush.msra.mxu0 0.0
        %5443 = vmatpush.msra.mxu0 0.0
        %5444 = vmatpush.msra.mxu0 0.0
        %5445 = vmatpush.msra.mxu0 0.0
        %5446 = vmatpush.msra.mxu0 0.0
        %5447 = vmatpush.msra.mxu0 0.0
        %5448 = vmatpush.msra.mxu0 0.0
        %5449 = vmatpush.msra.mxu0 0.0
        %5450 = vmatpush.msra.mxu0 0.0
        %5451 = vmatpush.msra.mxu0 0.0
        %5452 = vmatpush.msra.mxu0 0.0
        %5453 = vmatpush.msra.mxu0 0.0
        %5454 = vmatpush.msra.mxu0 0.0
        %5455 = vmatpush.msra.mxu0 %v5186
        %5456 = vmatpush.msra.mxu0 %v5183
        %5457 = vmatmul.f32.gmra.mxu0 %v1304
        %v5458 = vpop.f32.mrf.mxu0
        %v5459 = vadd.f32 %v5390, %v5458
        %5460 = vmatmul.f32.gmra.mxu0 %v1307
        %v5461 = vpop.f32.mrf.mxu0
        %v5462 = vadd.f32 %v5393, %v5461
        %5463 = vdwg.mxu0
        %5464 = vmatpush.msra.mxu0 0.0
        %5465 = vmatpush.msra.mxu0 0.0
        %5466 = vmatpush.msra.mxu0 0.0
        %5467 = vmatpush.msra.mxu0 0.0
        %5468 = vmatpush.msra.mxu0 0.0
        %5469 = vmatpush.msra.mxu0 0.0
        %5470 = vmatpush.msra.mxu0 0.0
        %5471 = vmatpush.msra.mxu0 0.0
        %5472 = vmatpush.msra.mxu0 0.0
        %5473 = vmatpush.msra.mxu0 0.0
        %5474 = vmatpush.msra.mxu0 0.0
        %5475 = vmatpush.msra.mxu0 0.0
        %5476 = vmatpush.msra.mxu0 0.0
        %5477 = vmatpush.msra.mxu0 0.0
        %5478 = vmatpush.msra.mxu0 %v5209
        %5479 = vmatpush.msra.mxu0 %v5206
        %5480 = vmatmul.f32.gmra.mxu0 %v1304
        %v5481 = vpop.f32.mrf.mxu0
        %v5482 = vadd.f32 %v5413, %v5481
        %5483 = vmatmul.f32.gmra.mxu0 %v1307
        %v5484 = vpop.f32.mrf.mxu0
        %v5485 = vadd.f32 %v5416, %v5484
        %5486 = vdwg.mxu0
        %5487 = vmatpush.msra.mxu0 0.0
        %5488 = vmatpush.msra.mxu0 0.0
        %5489 = vmatpush.msra.mxu0 0.0
        %5490 = vmatpush.msra.mxu0 0.0
        %5491 = vmatpush.msra.mxu0 0.0
        %5492 = vmatpush.msra.mxu0 0.0
        %5493 = vmatpush.msra.mxu0 0.0
        %5494 = vmatpush.msra.mxu0 0.0
        %5495 = vmatpush.msra.mxu0 0.0
        %5496 = vmatpush.msra.mxu0 0.0
        %5497 = vmatpush.msra.mxu0 0.0
        %5498 = vmatpush.msra.mxu0 0.0
        %5499 = vmatpush.msra.mxu0 0.0
        %5500 = vmatpush.msra.mxu0 0.0
        %5501 = vmatpush.msra.mxu0 %v5301
        %5502 = vmatpush.msra.mxu0 %v5298
        %5503 = vmatmul.f32.gmra.mxu0 %v1379
        %v5504 = vpop.f32.mrf.mxu0
        %v5505 = vadd.f32 0.0, %v5504
        %5506 = vmatmul.f32.gmra.mxu0 %v1382
        %v5507 = vpop.f32.mrf.mxu0
        %v5508 = vadd.f32 0.0, %v5507
        %5509 = vdwg.mxu0
        %5510 = vmatpush.msra.mxu0 0.0
        %5511 = vmatpush.msra.mxu0 0.0
        %5512 = vmatpush.msra.mxu0 0.0
        %5513 = vmatpush.msra.mxu0 0.0
        %5514 = vmatpush.msra.mxu0 0.0
        %5515 = vmatpush.msra.mxu0 0.0
        %5516 = vmatpush.msra.mxu0 0.0
        %5517 = vmatpush.msra.mxu0 0.0
        %5518 = vmatpush.msra.mxu0 0.0
        %5519 = vmatpush.msra.mxu0 0.0
        %5520 = vmatpush.msra.mxu0 0.0
        %5521 = vmatpush.msra.mxu0 0.0
        %5522 = vmatpush.msra.mxu0 0.0
        %5523 = vmatpush.msra.mxu0 0.0
        %5524 = vmatpush.msra.mxu0 %v5324
        %5525 = vmatpush.msra.mxu0 %v5321
        %5526 = vmatmul.f32.gmra.mxu0 %v1379
        %v5527 = vpop.f32.mrf.mxu0
        %v5528 = vadd.f32 0.0, %v5527
        %5529 = vmatmul.f32.gmra.mxu0 %v1382
        %v5530 = vpop.f32.mrf.mxu0
        %v5531 = vadd.f32 0.0, %v5530
        %5532 = vdwg.mxu0
        %5533 = vmatpush.msra.mxu0 0.0
        %5534 = vmatpush.msra.mxu0 0.0
        %5535 = vmatpush.msra.mxu0 0.0
        %5536 = vmatpush.msra.mxu0 0.0
        %5537 = vmatpush.msra.mxu0 0.0
        %5538 = vmatpush.msra.mxu0 0.0
        %5539 = vmatpush.msra.mxu0 0.0
        %5540 = vmatpush.msra.mxu0 0.0
        %5541 = vmatpush.msra.mxu0 0.0
        %5542 = vmatpush.msra.mxu0 0.0
        %5543 = vmatpush.msra.mxu0 0.0
        %5544 = vmatpush.msra.mxu0 0.0
        %5545 = vmatpush.msra.mxu0 0.0
        %5546 = vmatpush.msra.mxu0 0.0
        %5547 = vmatpush.msra.mxu0 %v5347
        %5548 = vmatpush.msra.mxu0 %v5344
        %5549 = vmatmul.f32.gmra.mxu0 %v1379
        %v5550 = vpop.f32.mrf.mxu0
        %v5551 = vadd.f32 0.0, %v5550
        %5552 = vmatmul.f32.gmra.mxu0 %v1382
        %v5553 = vpop.f32.mrf.mxu0
        %v5554 = vadd.f32 0.0, %v5553
        %5555 = vdwg.mxu0
        %v5556 = vadd.f32 %v5436, %v5505
        %v5557 = vadd.f32 %v5459, %v5528
        %v5558 = vadd.f32 %v5482, %v5551
        %v5559 = vadd.f32 %v5439, %v5508
        %v5560 = vadd.f32 %v5462, %v5531
        %v5561 = vadd.f32 %v5485, %v5554
        %5562 = vmatpush.msra.mxu0 %v1000
        %5563 = vmatpush.msra.mxu0 %v998
        %5564 = vmatpush.msra.mxu0 %v996
        %5565 = vmatpush.msra.mxu0 %v994
        %5566 = vmatpush.msra.mxu0 %v992
        %5567 = vmatpush.msra.mxu0 %v990
        %5568 = vmatpush.msra.mxu0 %v988
        %5569 = vmatpush.msra.mxu0 %v986
        %5570 = vmatpush.msra.mxu0 %v984
        %5571 = vmatpush.msra.mxu0 %v982
        %5572 = vmatpush.msra.mxu0 %v980
        %5573 = vmatpush.msra.mxu0 %v978
        %5574 = vmatpush.msra.mxu0 %v976
        %5575 = vmatpush.msra.mxu0 %v974
        %5576 = vmatpush.msra.mxu0 %v972
        %5577 = vmatpush.msra.mxu0 %v970
        %5578 = vmatmul.f32.gmra.mxu0 %v5140
        %v5579 = vpop.f32.mrf.mxu0
        %v5580 = vadd.f32 %v1460, %v5579
        %5581 = vmatmul.f32.gmra.mxu0 %v5141
        %v5582 = vpop.f32.mrf.mxu0
        %v5583 = vadd.f32 %v1460, %v5582
        %5584 = vdwg.mxu0
        %5585 = vmatpush.msra.mxu0 %v1001
        %5586 = vmatpush.msra.mxu0 %v999
        %5587 = vmatpush.msra.mxu0 %v997
        %5588 = vmatpush.msra.mxu0 %v995
        %5589 = vmatpush.msra.mxu0 %v993
        %5590 = vmatpush.msra.mxu0 %v991
        %5591 = vmatpush.msra.mxu0 %v989
        %5592 = vmatpush.msra.mxu0 %v987
        %5593 = vmatpush.msra.mxu0 %v985
        %5594 = vmatpush.msra.mxu0 %v983
        %5595 = vmatpush.msra.mxu0 %v981
        %5596 = vmatpush.msra.mxu0 %v979
        %5597 = vmatpush.msra.mxu0 %v977
        %5598 = vmatpush.msra.mxu0 %v975
        %5599 = vmatpush.msra.mxu0 %v973
        %5600 = vmatpush.msra.mxu0 %v971
        %5601 = vmatmul.f32.gmra.mxu0 %v5140
        %v5602 = vpop.f32.mrf.mxu0
        %v5603 = vadd.f32 %v1461, %v5602
        %5604 = vmatmul.f32.gmra.mxu0 %v5141
        %v5605 = vpop.f32.mrf.mxu0
        %v5606 = vadd.f32 %v1461, %v5605
        %5607 = vdwg.mxu0
        %v5608 = vadd.f32 %v5580, %v5556
        %v5609 = vadd.f32 %v5603, %v5557
        %v5610 = vadd.f32 %v5583, %v5559
        %v5611 = vadd.f32 %v5606, %v5560
        %v5612 = vxor.u32 %v5608, 2147483648
        %v5613 = vxor.u32 %v5609, 2147483648
        %v5614 = vxor.u32 %v5610, 2147483648
        %v5615 = vxor.u32 %v5611, 2147483648
        %v5616 = vmul.f32 %v5612, 1.442695
        %v5617 = vpow.pop %v5616
        %v5618 = vmul.f32 %v5613, 1.442695
        %v5619 = vpow.pop %v5618
        %v5620 = vmul.f32 %v5614, 1.442695
        %v5621 = vpow.pop %v5620
        %v5622 = vmul.f32 %v5615, 1.442695
        %v5623 = vpow.pop %v5622
        %v5624 = vadd.f32 %v5617, 1.0
        %v5625 = vadd.f32 %v5619, 1.0
        %v5626 = vadd.f32 %v5621, 1.0
        %v5627 = vadd.f32 %v5623, 1.0
        %v5628 = vrcp.pop %v5624
        %v5629 = vmul.f32 %v5624, %v5628
        %v5630 = vsub.f32 1.0, %v5629
        %v5631 = vmul.f32 %v5628, %v5630
        %v5632 = vadd.f32 %v5628, %v5631
        %vm5633 = vweird.f32 %v5624
        %vm5634 = vweird.f32 %v5628
        %vm5635 = vmor %vm5633, %vm5634
        %v5636 = vsel %vm5635, %v5628, %v5632
        %v5637 = vand.u32 2147483647, %v5624
        %vm5638 = vcmp.eq.f32.partialorder %v5637, 8.507059e+37
        %v5639 = vand.u32 %v5624, 2147483648
        %v5640 = vor.u32 1.1754944e-38, %v5639
        %v5641 = vsel %vm5638, %v5640, %v5636
        %v5642 = vmul.f32 1.0, %v5641
        %v5643 = vrcp.pop %v5625
        %v5644 = vmul.f32 %v5625, %v5643
        %v5645 = vsub.f32 1.0, %v5644
        %v5646 = vmul.f32 %v5643, %v5645
        %v5647 = vadd.f32 %v5643, %v5646
        %vm5648 = vweird.f32 %v5625
        %vm5649 = vweird.f32 %v5643
        %vm5650 = vmor %vm5648, %vm5649
        %v5651 = vsel %vm5650, %v5643, %v5647
        %v5652 = vand.u32 2147483647, %v5625
        %vm5653 = vcmp.eq.f32.partialorder %v5652, 8.507059e+37
        %v5654 = vand.u32 %v5625, 2147483648
        %v5655 = vor.u32 1.1754944e-38, %v5654
        %v5656 = vsel %vm5653, %v5655, %v5651
        %v5657 = vmul.f32 1.0, %v5656
        %v5658 = vrcp.pop %v5626
        %v5659 = vmul.f32 %v5626, %v5658
        %v5660 = vsub.f32 1.0, %v5659
        %v5661 = vmul.f32 %v5658, %v5660
        %v5662 = vadd.f32 %v5658, %v5661
        %vm5663 = vweird.f32 %v5626
        %vm5664 = vweird.f32 %v5658
        %vm5665 = vmor %vm5663, %vm5664
        %v5666 = vsel %vm5665, %v5658, %v5662
        %v5667 = vand.u32 2147483647, %v5626
        %vm5668 = vcmp.eq.f32.partialorder %v5667, 8.507059e+37
        %v5669 = vand.u32 %v5626, 2147483648
        %v5670 = vor.u32 1.1754944e-38, %v5669
        %v5671 = vsel %vm5668, %v5670, %v5666
        %v5672 = vmul.f32 1.0, %v5671
        %v5673 = vrcp.pop %v5627
        %v5674 = vmul.f32 %v5627, %v5673
        %v5675 = vsub.f32 1.0, %v5674
        %v5676 = vmul.f32 %v5673, %v5675
        %v5677 = vadd.f32 %v5673, %v5676
        %vm5678 = vweird.f32 %v5627
        %vm5679 = vweird.f32 %v5673
        %vm5680 = vmor %vm5678, %vm5679
        %v5681 = vsel %vm5680, %v5673, %v5677
        %v5682 = vand.u32 2147483647, %v5627
        %vm5683 = vcmp.eq.f32.partialorder %v5682, 8.507059e+37
        %v5684 = vand.u32 %v5627, 2147483648
        %v5685 = vor.u32 1.1754944e-38, %v5684
        %v5686 = vsel %vm5683, %v5685, %v5681
        %v5687 = vmul.f32 1.0, %v5686
        %v5688 = vmul.f32 %v5657, %v5140
        %v5689 = vmul.f32 %v5687, %v5141
        %5690 = vmatpush.msra.mxu0 %v1017
        %5691 = vmatpush.msra.mxu0 %v1016
        %5692 = vmatpush.msra.mxu0 %v1015
        %5693 = vmatpush.msra.mxu0 %v1014
        %5694 = vmatpush.msra.mxu0 %v1013
        %5695 = vmatpush.msra.mxu0 %v1012
        %5696 = vmatpush.msra.mxu0 %v1011
        %5697 = vmatpush.msra.mxu0 %v1010
        %5698 = vmatpush.msra.mxu0 %v1009
        %5699 = vmatpush.msra.mxu0 %v1008
        %5700 = vmatpush.msra.mxu0 %v1007
        %5701 = vmatpush.msra.mxu0 %v1006
        %5702 = vmatpush.msra.mxu0 %v1005
        %5703 = vmatpush.msra.mxu0 %v1004
        %5704 = vmatpush.msra.mxu0 %v1003
        %5705 = vmatpush.msra.mxu0 %v1002
        %5706 = vmatmul.f32.gmra.mxu0 %v5688
        %v5707 = vpop.f32.mrf.mxu0
        %v5708 = vadd.f32 0.0, %v5707
        %5709 = vmatmul.f32.gmra.mxu0 %v5689
        %v5710 = vpop.f32.mrf.mxu0
        %v5711 = vadd.f32 0.0, %v5710
        %5712 = vdwg.mxu0
        %v5713 = vadd.f32 %v5558, %v5708
        %v5714 = vadd.f32 %v5561, %v5711
        %v5715 = vadd.f32 %v5713, %v1618
        %v5716 = vadd.f32 %v5714, %v1618
        %v5717 = vtanh.pop %v5715
        %v5718 = vtanh.pop %v5716
        %v5719 = vsub.f32 1.0, %v5642
        %v5720 = vsub.f32 1.0, %v5672
        %v5721 = vmul.f32 %v5719, %v5140
        %v5722 = vmul.f32 %v5720, %v5141
        %v5723 = vmul.f32 %v5642, %v5717
        %v5724 = vmul.f32 %v5672, %v5718
        %v5725 = vadd.f32 %v5721, %v5723
        %v5726 = vadd.f32 %v5722, %v5724
        %5727 = vmatpush.msra.mxu0 %v961
        %5728 = vmatpush.msra.mxu0 %v952
        %5729 = vmatpush.msra.mxu0 %v943
        %5730 = vmatpush.msra.mxu0 %v934
        %5731 = vmatpush.msra.mxu0 %v925
        %5732 = vmatpush.msra.mxu0 %v916
        %5733 = vmatpush.msra.mxu0 %v907
        %5734 = vmatpush.msra.mxu0 %v898
        %5735 = vmatpush.msra.mxu0 %v889
        %5736 = vmatpush.msra.mxu0 %v880
        %5737 = vmatpush.msra.mxu0 %v871
        %5738 = vmatpush.msra.mxu0 %v862
        %5739 = vmatpush.msra.mxu0 %v853
        %5740 = vmatpush.msra.mxu0 %v844
        %5741 = vmatpush.msra.mxu0 %v835
        %5742 = vmatpush.msra.mxu0 %v826
        %5743 = vmatmul.f32.gmra.mxu0 %v5725
        %v5744 = vpop.f32.mrf.mxu0
        %v5745 = vadd.f32 0.0, %v5744
        %5746 = vmatmul.f32.gmra.mxu0 %v5726
        %v5747 = vpop.f32.mrf.mxu0
        %v5748 = vadd.f32 0.0, %v5747
        %5749 = vdwg.mxu0
        %5750 = vmatpush.msra.mxu0 %v962
        %5751 = vmatpush.msra.mxu0 %v953
        %5752 = vmatpush.msra.mxu0 %v944
        %5753 = vmatpush.msra.mxu0 %v935
        %5754 = vmatpush.msra.mxu0 %v926
        %5755 = vmatpush.msra.mxu0 %v917
        %5756 = vmatpush.msra.mxu0 %v908
        %5757 = vmatpush.msra.mxu0 %v899
        %5758 = vmatpush.msra.mxu0 %v890
        %5759 = vmatpush.msra.mxu0 %v881
        %5760 = vmatpush.msra.mxu0 %v872
        %5761 = vmatpush.msra.mxu0 %v863
        %5762 = vmatpush.msra.mxu0 %v854
        %5763 = vmatpush.msra.mxu0 %v845
        %5764 = vmatpush.msra.mxu0 %v836
        %5765 = vmatpush.msra.mxu0 %v827
        %5766 = vmatmul.f32.gmra.mxu0 %v5725
        %v5767 = vpop.f32.mrf.mxu0
        %v5768 = vadd.f32 0.0, %v5767
        %5769 = vmatmul.f32.gmra.mxu0 %v5726
        %v5770 = vpop.f32.mrf.mxu0
        %v5771 = vadd.f32 0.0, %v5770
        %5772 = vdwg.mxu0
        %5773 = vmatpush.msra.mxu0 %v963
        %5774 = vmatpush.msra.mxu0 %v954
        %5775 = vmatpush.msra.mxu0 %v945
        %5776 = vmatpush.msra.mxu0 %v936
        %5777 = vmatpush.msra.mxu0 %v927
        %5778 = vmatpush.msra.mxu0 %v918
        %5779 = vmatpush.msra.mxu0 %v909
        %5780 = vmatpush.msra.mxu0 %v900
        %5781 = vmatpush.msra.mxu0 %v891
        %5782 = vmatpush.msra.mxu0 %v882
        %5783 = vmatpush.msra.mxu0 %v873
        %5784 = vmatpush.msra.mxu0 %v864
        %5785 = vmatpush.msra.mxu0 %v855
        %5786 = vmatpush.msra.mxu0 %v846
        %5787 = vmatpush.msra.mxu0 %v837
        %5788 = vmatpush.msra.mxu0 %v828
        %5789 = vmatmul.f32.gmra.mxu0 %v5725
        %v5790 = vpop.f32.mrf.mxu0
        %v5791 = vadd.f32 0.0, %v5790
        %5792 = vmatmul.f32.gmra.mxu0 %v5726
        %v5793 = vpop.f32.mrf.mxu0
        %v5794 = vadd.f32 0.0, %v5793
        %5795 = vdwg.mxu0
        %5796 = vmatpush.msra.mxu0 %v964
        %5797 = vmatpush.msra.mxu0 %v955
        %5798 = vmatpush.msra.mxu0 %v946
        %5799 = vmatpush.msra.mxu0 %v937
        %5800 = vmatpush.msra.mxu0 %v928
        %5801 = vmatpush.msra.mxu0 %v919
        %5802 = vmatpush.msra.mxu0 %v910
        %5803 = vmatpush.msra.mxu0 %v901
        %5804 = vmatpush.msra.mxu0 %v892
        %5805 = vmatpush.msra.mxu0 %v883
        %5806 = vmatpush.msra.mxu0 %v874
        %5807 = vmatpush.msra.mxu0 %v865
        %5808 = vmatpush.msra.mxu0 %v856
        %5809 = vmatpush.msra.mxu0 %v847
        %5810 = vmatpush.msra.mxu0 %v838
        %5811 = vmatpush.msra.mxu0 %v829
        %5812 = vmatmul.f32.gmra.mxu0 %v5725
        %v5813 = vpop.f32.mrf.mxu0
        %v5814 = vadd.f32 0.0, %v5813
        %5815 = vmatmul.f32.gmra.mxu0 %v5726
        %v5816 = vpop.f32.mrf.mxu0
        %v5817 = vadd.f32 0.0, %v5816
        %5818 = vdwg.mxu0
        %5819 = vmatpush.msra.mxu0 %v965
        %5820 = vmatpush.msra.mxu0 %v956
        %5821 = vmatpush.msra.mxu0 %v947
        %5822 = vmatpush.msra.mxu0 %v938
        %5823 = vmatpush.msra.mxu0 %v929
        %5824 = vmatpush.msra.mxu0 %v920
        %5825 = vmatpush.msra.mxu0 %v911
        %5826 = vmatpush.msra.mxu0 %v902
        %5827 = vmatpush.msra.mxu0 %v893
        %5828 = vmatpush.msra.mxu0 %v884
        %5829 = vmatpush.msra.mxu0 %v875
        %5830 = vmatpush.msra.mxu0 %v866
        %5831 = vmatpush.msra.mxu0 %v857
        %5832 = vmatpush.msra.mxu0 %v848
        %5833 = vmatpush.msra.mxu0 %v839
        %5834 = vmatpush.msra.mxu0 %v830
        %5835 = vmatmul.f32.gmra.mxu0 %v5725
        %v5836 = vpop.f32.mrf.mxu0
        %v5837 = vadd.f32 0.0, %v5836
        %5838 = vmatmul.f32.gmra.mxu0 %v5726
        %v5839 = vpop.f32.mrf.mxu0
        %v5840 = vadd.f32 0.0, %v5839
        %5841 = vdwg.mxu0
        %5842 = vmatpush.msra.mxu0 %v966
        %5843 = vmatpush.msra.mxu0 %v957
        %5844 = vmatpush.msra.mxu0 %v948
        %5845 = vmatpush.msra.mxu0 %v939
        %5846 = vmatpush.msra.mxu0 %v930
        %5847 = vmatpush.msra.mxu0 %v921
        %5848 = vmatpush.msra.mxu0 %v912
        %5849 = vmatpush.msra.mxu0 %v903
        %5850 = vmatpush.msra.mxu0 %v894
        %5851 = vmatpush.msra.mxu0 %v885
        %5852 = vmatpush.msra.mxu0 %v876
        %5853 = vmatpush.msra.mxu0 %v867
        %5854 = vmatpush.msra.mxu0 %v858
        %5855 = vmatpush.msra.mxu0 %v849
        %5856 = vmatpush.msra.mxu0 %v840
        %5857 = vmatpush.msra.mxu0 %v831
        %5858 = vmatmul.f32.gmra.mxu0 %v5725
        %v5859 = vpop.f32.mrf.mxu0
        %v5860 = vadd.f32 0.0, %v5859
        %5861 = vmatmul.f32.gmra.mxu0 %v5726
        %v5862 = vpop.f32.mrf.mxu0
        %v5863 = vadd.f32 0.0, %v5862
        %5864 = vdwg.mxu0
        %5865 = vmatpush.msra.mxu0 %v967
        %5866 = vmatpush.msra.mxu0 %v958
        %5867 = vmatpush.msra.mxu0 %v949
        %5868 = vmatpush.msra.mxu0 %v940
        %5869 = vmatpush.msra.mxu0 %v931
        %5870 = vmatpush.msra.mxu0 %v922
        %5871 = vmatpush.msra.mxu0 %v913
        %5872 = vmatpush.msra.mxu0 %v904
        %5873 = vmatpush.msra.mxu0 %v895
        %5874 = vmatpush.msra.mxu0 %v886
        %5875 = vmatpush.msra.mxu0 %v877
        %5876 = vmatpush.msra.mxu0 %v868
        %5877 = vmatpush.msra.mxu0 %v859
        %5878 = vmatpush.msra.mxu0 %v850
        %5879 = vmatpush.msra.mxu0 %v841
        %5880 = vmatpush.msra.mxu0 %v832
        %5881 = vmatmul.f32.gmra.mxu0 %v5725
        %v5882 = vpop.f32.mrf.mxu0
        %v5883 = vadd.f32 0.0, %v5882
        %5884 = vmatmul.f32.gmra.mxu0 %v5726
        %v5885 = vpop.f32.mrf.mxu0
        %v5886 = vadd.f32 0.0, %v5885
        %5887 = vdwg.mxu0
        %5888 = vmatpush.msra.mxu0 %v968
        %5889 = vmatpush.msra.mxu0 %v959
        %5890 = vmatpush.msra.mxu0 %v950
        %5891 = vmatpush.msra.mxu0 %v941
        %5892 = vmatpush.msra.mxu0 %v932
        %5893 = vmatpush.msra.mxu0 %v923
        %5894 = vmatpush.msra.mxu0 %v914
        %5895 = vmatpush.msra.mxu0 %v905
        %5896 = vmatpush.msra.mxu0 %v896
        %5897 = vmatpush.msra.mxu0 %v887
        %5898 = vmatpush.msra.mxu0 %v878
        %5899 = vmatpush.msra.mxu0 %v869
        %5900 = vmatpush.msra.mxu0 %v860
        %5901 = vmatpush.msra.mxu0 %v851
        %5902 = vmatpush.msra.mxu0 %v842
        %5903 = vmatpush.msra.mxu0 %v833
        %5904 = vmatmul.f32.gmra.mxu0 %v5725
        %v5905 = vpop.f32.mrf.mxu0
        %v5906 = vadd.f32 0.0, %v5905
        %5907 = vmatmul.f32.gmra.mxu0 %v5726
        %v5908 = vpop.f32.mrf.mxu0
        %v5909 = vadd.f32 0.0, %v5908
        %5910 = vdwg.mxu0
        %5911 = vmatpush.msra.mxu0 %v969
        %5912 = vmatpush.msra.mxu0 %v960
        %5913 = vmatpush.msra.mxu0 %v951
        %5914 = vmatpush.msra.mxu0 %v942
        %5915 = vmatpush.msra.mxu0 %v933
        %5916 = vmatpush.msra.mxu0 %v924
        %5917 = vmatpush.msra.mxu0 %v915
        %5918 = vmatpush.msra.mxu0 %v906
        %5919 = vmatpush.msra.mxu0 %v897
        %5920 = vmatpush.msra.mxu0 %v888
        %5921 = vmatpush.msra.mxu0 %v879
        %5922 = vmatpush.msra.mxu0 %v870
        %5923 = vmatpush.msra.mxu0 %v861
        %5924 = vmatpush.msra.mxu0 %v852
        %5925 = vmatpush.msra.mxu0 %v843
        %5926 = vmatpush.msra.mxu0 %v834
        %5927 = vmatmul.f32.gmra.mxu0 %v5725
        %v5928 = vpop.f32.mrf.mxu0
        %v5929 = vadd.f32 0.0, %v5928
        %5930 = vmatmul.f32.gmra.mxu0 %v5726
        %v5931 = vpop.f32.mrf.mxu0
        %v5932 = vadd.f32 0.0, %v5931
        %5933 = vdwg.mxu0
        %5934 = vmatpush.msra.mxu0 0.0
        %5935 = vmatpush.msra.mxu0 0.0
        %5936 = vmatpush.msra.mxu0 0.0
        %5937 = vmatpush.msra.mxu0 0.0
        %5938 = vmatpush.msra.mxu0 0.0
        %5939 = vmatpush.msra.mxu0 0.0
        %5940 = vmatpush.msra.mxu0 0.0
        %5941 = vmatpush.msra.mxu0 0.0
        %5942 = vmatpush.msra.mxu0 0.0
        %5943 = vmatpush.msra.mxu0 0.0
        %5944 = vmatpush.msra.mxu0 0.0
        %5945 = vmatpush.msra.mxu0 0.0
        %5946 = vmatpush.msra.mxu0 0.0
        %5947 = vmatpush.msra.mxu0 0.0
        %5948 = vmatpush.msra.mxu0 %v5817
        %5949 = vmatpush.msra.mxu0 %v5814
        %5950 = vmatmul.f32.gmra.mxu0 %v1229
        %v5951 = vpop.f32.mrf.mxu0
        %v5952 = vadd.f32 0.0, %v5951
        %5953 = vmatmul.f32.gmra.mxu0 %v1232
        %v5954 = vpop.f32.mrf.mxu0
        %v5955 = vadd.f32 0.0, %v5954
        %5956 = vdwg.mxu0
        %5957 = vmatpush.msra.mxu0 0.0
        %5958 = vmatpush.msra.mxu0 0.0
        %5959 = vmatpush.msra.mxu0 0.0
        %5960 = vmatpush.msra.mxu0 0.0
        %5961 = vmatpush.msra.mxu0 0.0
        %5962 = vmatpush.msra.mxu0 0.0
        %5963 = vmatpush.msra.mxu0 0.0
        %5964 = vmatpush.msra.mxu0 0.0
        %5965 = vmatpush.msra.mxu0 0.0
        %5966 = vmatpush.msra.mxu0 0.0
        %5967 = vmatpush.msra.mxu0 0.0
        %5968 = vmatpush.msra.mxu0 0.0
        %5969 = vmatpush.msra.mxu0 0.0
        %5970 = vmatpush.msra.mxu0 0.0
        %5971 = vmatpush.msra.mxu0 %v5840
        %5972 = vmatpush.msra.mxu0 %v5837
        %5973 = vmatmul.f32.gmra.mxu0 %v1229
        %v5974 = vpop.f32.mrf.mxu0
        %v5975 = vadd.f32 0.0, %v5974
        %5976 = vmatmul.f32.gmra.mxu0 %v1232
        %v5977 = vpop.f32.mrf.mxu0
        %v5978 = vadd.f32 0.0, %v5977
        %5979 = vdwg.mxu0
        %5980 = vmatpush.msra.mxu0 0.0
        %5981 = vmatpush.msra.mxu0 0.0
        %5982 = vmatpush.msra.mxu0 0.0
        %5983 = vmatpush.msra.mxu0 0.0
        %5984 = vmatpush.msra.mxu0 0.0
        %5985 = vmatpush.msra.mxu0 0.0
        %5986 = vmatpush.msra.mxu0 0.0
        %5987 = vmatpush.msra.mxu0 0.0
        %5988 = vmatpush.msra.mxu0 0.0
        %5989 = vmatpush.msra.mxu0 0.0
        %5990 = vmatpush.msra.mxu0 0.0
        %5991 = vmatpush.msra.mxu0 0.0
        %5992 = vmatpush.msra.mxu0 0.0
        %5993 = vmatpush.msra.mxu0 0.0
        %5994 = vmatpush.msra.mxu0 %v5863
        %5995 = vmatpush.msra.mxu0 %v5860
        %5996 = vmatmul.f32.gmra.mxu0 %v1229
        %v5997 = vpop.f32.mrf.mxu0
        %v5998 = vadd.f32 0.0, %v5997
        %5999 = vmatmul.f32.gmra.mxu0 %v1232
        %v6000 = vpop.f32.mrf.mxu0
        %v6001 = vadd.f32 0.0, %v6000
        %6002 = vdwg.mxu0
        %6003 = vmatpush.msra.mxu0 0.0
        %6004 = vmatpush.msra.mxu0 0.0
        %6005 = vmatpush.msra.mxu0 0.0
        %6006 = vmatpush.msra.mxu0 0.0
        %6007 = vmatpush.msra.mxu0 0.0
        %6008 = vmatpush.msra.mxu0 0.0
        %6009 = vmatpush.msra.mxu0 0.0
        %6010 = vmatpush.msra.mxu0 0.0
        %6011 = vmatpush.msra.mxu0 0.0
        %6012 = vmatpush.msra.mxu0 0.0
        %6013 = vmatpush.msra.mxu0 0.0
        %6014 = vmatpush.msra.mxu0 0.0
        %6015 = vmatpush.msra.mxu0 0.0
        %6016 = vmatpush.msra.mxu0 0.0
        %6017 = vmatpush.msra.mxu0 %v5748
        %6018 = vmatpush.msra.mxu0 %v5745
        %6019 = vmatmul.f32.gmra.mxu0 %v1304
        %v6020 = vpop.f32.mrf.mxu0
        %v6021 = vadd.f32 %v5952, %v6020
        %6022 = vmatmul.f32.gmra.mxu0 %v1307
        %v6023 = vpop.f32.mrf.mxu0
        %v6024 = vadd.f32 %v5955, %v6023
        %6025 = vdwg.mxu0
        %6026 = vmatpush.msra.mxu0 0.0
        %6027 = vmatpush.msra.mxu0 0.0
        %6028 = vmatpush.msra.mxu0 0.0
        %6029 = vmatpush.msra.mxu0 0.0
        %6030 = vmatpush.msra.mxu0 0.0
        %6031 = vmatpush.msra.mxu0 0.0
        %6032 = vmatpush.msra.mxu0 0.0
        %6033 = vmatpush.msra.mxu0 0.0
        %6034 = vmatpush.msra.mxu0 0.0
        %6035 = vmatpush.msra.mxu0 0.0
        %6036 = vmatpush.msra.mxu0 0.0
        %6037 = vmatpush.msra.mxu0 0.0
        %6038 = vmatpush.msra.mxu0 0.0
        %6039 = vmatpush.msra.mxu0 0.0
        %6040 = vmatpush.msra.mxu0 %v5771
        %6041 = vmatpush.msra.mxu0 %v5768
        %6042 = vmatmul.f32.gmra.mxu0 %v1304
        %v6043 = vpop.f32.mrf.mxu0
        %v6044 = vadd.f32 %v5975, %v6043
        %6045 = vmatmul.f32.gmra.mxu0 %v1307
        %v6046 = vpop.f32.mrf.mxu0
        %v6047 = vadd.f32 %v5978, %v6046
        %6048 = vdwg.mxu0
        %6049 = vmatpush.msra.mxu0 0.0
        %6050 = vmatpush.msra.mxu0 0.0
        %6051 = vmatpush.msra.mxu0 0.0
        %6052 = vmatpush.msra.mxu0 0.0
        %6053 = vmatpush.msra.mxu0 0.0
        %6054 = vmatpush.msra.mxu0 0.0
        %6055 = vmatpush.msra.mxu0 0.0
        %6056 = vmatpush.msra.mxu0 0.0
        %6057 = vmatpush.msra.mxu0 0.0
        %6058 = vmatpush.msra.mxu0 0.0
        %6059 = vmatpush.msra.mxu0 0.0
        %6060 = vmatpush.msra.mxu0 0.0
        %6061 = vmatpush.msra.mxu0 0.0
        %6062 = vmatpush.msra.mxu0 0.0
        %6063 = vmatpush.msra.mxu0 %v5794
        %6064 = vmatpush.msra.mxu0 %v5791
        %6065 = vmatmul.f32.gmra.mxu0 %v1304
        %v6066 = vpop.f32.mrf.mxu0
        %v6067 = vadd.f32 %v5998, %v6066
        %6068 = vmatmul.f32.gmra.mxu0 %v1307
        %v6069 = vpop.f32.mrf.mxu0
        %v6070 = vadd.f32 %v6001, %v6069
        %6071 = vdwg.mxu0
        %6072 = vmatpush.msra.mxu0 0.0
        %6073 = vmatpush.msra.mxu0 0.0
        %6074 = vmatpush.msra.mxu0 0.0
        %6075 = vmatpush.msra.mxu0 0.0
        %6076 = vmatpush.msra.mxu0 0.0
        %6077 = vmatpush.msra.mxu0 0.0
        %6078 = vmatpush.msra.mxu0 0.0
        %6079 = vmatpush.msra.mxu0 0.0
        %6080 = vmatpush.msra.mxu0 0.0
        %6081 = vmatpush.msra.mxu0 0.0
        %6082 = vmatpush.msra.mxu0 0.0
        %6083 = vmatpush.msra.mxu0 0.0
        %6084 = vmatpush.msra.mxu0 0.0
        %6085 = vmatpush.msra.mxu0 0.0
        %6086 = vmatpush.msra.mxu0 %v5886
        %6087 = vmatpush.msra.mxu0 %v5883
        %6088 = vmatmul.f32.gmra.mxu0 %v1379
        %v6089 = vpop.f32.mrf.mxu0
        %v6090 = vadd.f32 0.0, %v6089
        %6091 = vmatmul.f32.gmra.mxu0 %v1382
        %v6092 = vpop.f32.mrf.mxu0
        %v6093 = vadd.f32 0.0, %v6092
        %6094 = vdwg.mxu0
        %6095 = vmatpush.msra.mxu0 0.0
        %6096 = vmatpush.msra.mxu0 0.0
        %6097 = vmatpush.msra.mxu0 0.0
        %6098 = vmatpush.msra.mxu0 0.0
        %6099 = vmatpush.msra.mxu0 0.0
        %6100 = vmatpush.msra.mxu0 0.0
        %6101 = vmatpush.msra.mxu0 0.0
        %6102 = vmatpush.msra.mxu0 0.0
        %6103 = vmatpush.msra.mxu0 0.0
        %6104 = vmatpush.msra.mxu0 0.0
        %6105 = vmatpush.msra.mxu0 0.0
        %6106 = vmatpush.msra.mxu0 0.0
        %6107 = vmatpush.msra.mxu0 0.0
        %6108 = vmatpush.msra.mxu0 0.0
        %6109 = vmatpush.msra.mxu0 %v5909
        %6110 = vmatpush.msra.mxu0 %v5906
        %6111 = vmatmul.f32.gmra.mxu0 %v1379
        %v6112 = vpop.f32.mrf.mxu0
        %v6113 = vadd.f32 0.0, %v6112
        %6114 = vmatmul.f32.gmra.mxu0 %v1382
        %v6115 = vpop.f32.mrf.mxu0
        %v6116 = vadd.f32 0.0, %v6115
        %6117 = vdwg.mxu0
        %6118 = vmatpush.msra.mxu0 0.0
        %6119 = vmatpush.msra.mxu0 0.0
        %6120 = vmatpush.msra.mxu0 0.0
        %6121 = vmatpush.msra.mxu0 0.0
        %6122 = vmatpush.msra.mxu0 0.0
        %6123 = vmatpush.msra.mxu0 0.0
        %6124 = vmatpush.msra.mxu0 0.0
        %6125 = vmatpush.msra.mxu0 0.0
        %6126 = vmatpush.msra.mxu0 0.0
        %6127 = vmatpush.msra.mxu0 0.0
        %6128 = vmatpush.msra.mxu0 0.0
        %6129 = vmatpush.msra.mxu0 0.0
        %6130 = vmatpush.msra.mxu0 0.0
        %6131 = vmatpush.msra.mxu0 0.0
        %6132 = vmatpush.msra.mxu0 %v5932
        %6133 = vmatpush.msra.mxu0 %v5929
        %6134 = vmatmul.f32.gmra.mxu0 %v1379
        %v6135 = vpop.f32.mrf.mxu0
        %v6136 = vadd.f32 0.0, %v6135
        %6137 = vmatmul.f32.gmra.mxu0 %v1382
        %v6138 = vpop.f32.mrf.mxu0
        %v6139 = vadd.f32 0.0, %v6138
        %6140 = vdwg.mxu0
        %v6141 = vadd.f32 %v6021, %v6090
        %v6142 = vadd.f32 %v6044, %v6113
        %v6143 = vadd.f32 %v6067, %v6136
        %v6144 = vadd.f32 %v6024, %v6093
        %v6145 = vadd.f32 %v6047, %v6116
        %v6146 = vadd.f32 %v6070, %v6139
        %6147 = vmatpush.msra.mxu0 %v1000
        %6148 = vmatpush.msra.mxu0 %v998
        %6149 = vmatpush.msra.mxu0 %v996
        %6150 = vmatpush.msra.mxu0 %v994
        %6151 = vmatpush.msra.mxu0 %v992
        %6152 = vmatpush.msra.mxu0 %v990
        %6153 = vmatpush.msra.mxu0 %v988
        %6154 = vmatpush.msra.mxu0 %v986
        %6155 = vmatpush.msra.mxu0 %v984
        %6156 = vmatpush.msra.mxu0 %v982
        %6157 = vmatpush.msra.mxu0 %v980
        %6158 = vmatpush.msra.mxu0 %v978
        %6159 = vmatpush.msra.mxu0 %v976
        %6160 = vmatpush.msra.mxu0 %v974
        %6161 = vmatpush.msra.mxu0 %v972
        %6162 = vmatpush.msra.mxu0 %v970
        %6163 = vmatmul.f32.gmra.mxu0 %v5725
        %v6164 = vpop.f32.mrf.mxu0
        %v6165 = vadd.f32 %v1460, %v6164
        %6166 = vmatmul.f32.gmra.mxu0 %v5726
        %v6167 = vpop.f32.mrf.mxu0
        %v6168 = vadd.f32 %v1460, %v6167
        %6169 = vdwg.mxu0
        %6170 = vmatpush.msra.mxu0 %v1001
        %6171 = vmatpush.msra.mxu0 %v999
        %6172 = vmatpush.msra.mxu0 %v997
        %6173 = vmatpush.msra.mxu0 %v995
        %6174 = vmatpush.msra.mxu0 %v993
        %6175 = vmatpush.msra.mxu0 %v991
        %6176 = vmatpush.msra.mxu0 %v989
        %6177 = vmatpush.msra.mxu0 %v987
        %6178 = vmatpush.msra.mxu0 %v985
        %6179 = vmatpush.msra.mxu0 %v983
        %6180 = vmatpush.msra.mxu0 %v981
        %6181 = vmatpush.msra.mxu0 %v979
        %6182 = vmatpush.msra.mxu0 %v977
        %6183 = vmatpush.msra.mxu0 %v975
        %6184 = vmatpush.msra.mxu0 %v973
        %6185 = vmatpush.msra.mxu0 %v971
        %6186 = vmatmul.f32.gmra.mxu0 %v5725
        %v6187 = vpop.f32.mrf.mxu0
        %v6188 = vadd.f32 %v1461, %v6187
        %6189 = vmatmul.f32.gmra.mxu0 %v5726
        %v6190 = vpop.f32.mrf.mxu0
        %v6191 = vadd.f32 %v1461, %v6190
        %6192 = vdwg.mxu0
        %v6193 = vadd.f32 %v6165, %v6141
        %v6194 = vadd.f32 %v6188, %v6142
        %v6195 = vadd.f32 %v6168, %v6144
        %v6196 = vadd.f32 %v6191, %v6145
        %v6197 = vxor.u32 %v6193, 2147483648
        %v6198 = vxor.u32 %v6194, 2147483648
        %v6199 = vxor.u32 %v6195, 2147483648
        %v6200 = vxor.u32 %v6196, 2147483648
        %v6201 = vmul.f32 %v6197, 1.442695
        %v6202 = vpow.pop %v6201
        %v6203 = vmul.f32 %v6198, 1.442695
        %v6204 = vpow.pop %v6203
        %v6205 = vmul.f32 %v6199, 1.442695
        %v6206 = vpow.pop %v6205
        %v6207 = vmul.f32 %v6200, 1.442695
        %v6208 = vpow.pop %v6207
        %v6209 = vadd.f32 %v6202, 1.0
        %v6210 = vadd.f32 %v6204, 1.0
        %v6211 = vadd.f32 %v6206, 1.0
        %v6212 = vadd.f32 %v6208, 1.0
        %v6213 = vrcp.pop %v6209
        %v6214 = vmul.f32 %v6209, %v6213
        %v6215 = vsub.f32 1.0, %v6214
        %v6216 = vmul.f32 %v6213, %v6215
        %v6217 = vadd.f32 %v6213, %v6216
        %vm6218 = vweird.f32 %v6209
        %vm6219 = vweird.f32 %v6213
        %vm6220 = vmor %vm6218, %vm6219
        %v6221 = vsel %vm6220, %v6213, %v6217
        %v6222 = vand.u32 2147483647, %v6209
        %vm6223 = vcmp.eq.f32.partialorder %v6222, 8.507059e+37
        %v6224 = vand.u32 %v6209, 2147483648
        %v6225 = vor.u32 1.1754944e-38, %v6224
        %v6226 = vsel %vm6223, %v6225, %v6221
        %v6227 = vmul.f32 1.0, %v6226
        %v6228 = vrcp.pop %v6210
        %v6229 = vmul.f32 %v6210, %v6228
        %v6230 = vsub.f32 1.0, %v6229
        %v6231 = vmul.f32 %v6228, %v6230
        %v6232 = vadd.f32 %v6228, %v6231
        %vm6233 = vweird.f32 %v6210
        %vm6234 = vweird.f32 %v6228
        %vm6235 = vmor %vm6233, %vm6234
        %v6236 = vsel %vm6235, %v6228, %v6232
        %v6237 = vand.u32 2147483647, %v6210
        %vm6238 = vcmp.eq.f32.partialorder %v6237, 8.507059e+37
        %v6239 = vand.u32 %v6210, 2147483648
        %v6240 = vor.u32 1.1754944e-38, %v6239
        %v6241 = vsel %vm6238, %v6240, %v6236
        %v6242 = vmul.f32 1.0, %v6241
        %v6243 = vrcp.pop %v6211
        %v6244 = vmul.f32 %v6211, %v6243
        %v6245 = vsub.f32 1.0, %v6244
        %v6246 = vmul.f32 %v6243, %v6245
        %v6247 = vadd.f32 %v6243, %v6246
        %vm6248 = vweird.f32 %v6211
        %vm6249 = vweird.f32 %v6243
        %vm6250 = vmor %vm6248, %vm6249
        %v6251 = vsel %vm6250, %v6243, %v6247
        %v6252 = vand.u32 2147483647, %v6211
        %vm6253 = vcmp.eq.f32.partialorder %v6252, 8.507059e+37
        %v6254 = vand.u32 %v6211, 2147483648
        %v6255 = vor.u32 1.1754944e-38, %v6254
        %v6256 = vsel %vm6253, %v6255, %v6251
        %v6257 = vmul.f32 1.0, %v6256
        %v6258 = vrcp.pop %v6212
        %v6259 = vmul.f32 %v6212, %v6258
        %v6260 = vsub.f32 1.0, %v6259
        %v6261 = vmul.f32 %v6258, %v6260
        %v6262 = vadd.f32 %v6258, %v6261
        %vm6263 = vweird.f32 %v6212
        %vm6264 = vweird.f32 %v6258
        %vm6265 = vmor %vm6263, %vm6264
        %v6266 = vsel %vm6265, %v6258, %v6262
        %v6267 = vand.u32 2147483647, %v6212
        %vm6268 = vcmp.eq.f32.partialorder %v6267, 8.507059e+37
        %v6269 = vand.u32 %v6212, 2147483648
        %v6270 = vor.u32 1.1754944e-38, %v6269
        %v6271 = vsel %vm6268, %v6270, %v6266
        %v6272 = vmul.f32 1.0, %v6271
        %v6273 = vmul.f32 %v6242, %v5725
        %v6274 = vmul.f32 %v6272, %v5726
        %6275 = vmatpush.msra.mxu0 %v1017
        %6276 = vmatpush.msra.mxu0 %v1016
        %6277 = vmatpush.msra.mxu0 %v1015
        %6278 = vmatpush.msra.mxu0 %v1014
        %6279 = vmatpush.msra.mxu0 %v1013
        %6280 = vmatpush.msra.mxu0 %v1012
        %6281 = vmatpush.msra.mxu0 %v1011
        %6282 = vmatpush.msra.mxu0 %v1010
        %6283 = vmatpush.msra.mxu0 %v1009
        %6284 = vmatpush.msra.mxu0 %v1008
        %6285 = vmatpush.msra.mxu0 %v1007
        %6286 = vmatpush.msra.mxu0 %v1006
        %6287 = vmatpush.msra.mxu0 %v1005
        %6288 = vmatpush.msra.mxu0 %v1004
        %6289 = vmatpush.msra.mxu0 %v1003
        %6290 = vmatpush.msra.mxu0 %v1002
        %6291 = vmatmul.f32.gmra.mxu0 %v6273
        %v6292 = vpop.f32.mrf.mxu0
        %v6293 = vadd.f32 0.0, %v6292
        %6294 = vmatmul.f32.gmra.mxu0 %v6274
        %v6295 = vpop.f32.mrf.mxu0
        %v6296 = vadd.f32 0.0, %v6295
        %6297 = vdwg.mxu0
        %v6298 = vadd.f32 %v6143, %v6293
        %v6299 = vadd.f32 %v6146, %v6296
        %v6300 = vadd.f32 %v6298, %v1618
        %v6301 = vadd.f32 %v6299, %v1618
        %v6302 = vtanh.pop %v6300
        %v6303 = vtanh.pop %v6301
        %v6304 = vsub.f32 1.0, %v6227
        %v6305 = vsub.f32 1.0, %v6257
        %v6306 = vmul.f32 %v6304, %v5725
        %v6307 = vmul.f32 %v6305, %v5726
        %v6308 = vmul.f32 %v6227, %v6302
        %v6309 = vmul.f32 %v6257, %v6303
        %v6310 = vadd.f32 %v6306, %v6308
        %v6311 = vadd.f32 %v6307, %v6309
        %6312 = vmatpush.msra.mxu0 %v961
        %6313 = vmatpush.msra.mxu0 %v952
        %6314 = vmatpush.msra.mxu0 %v943
        %6315 = vmatpush.msra.mxu0 %v934
        %6316 = vmatpush.msra.mxu0 %v925
        %6317 = vmatpush.msra.mxu0 %v916
        %6318 = vmatpush.msra.mxu0 %v907
        %6319 = vmatpush.msra.mxu0 %v898
        %6320 = vmatpush.msra.mxu0 %v889
        %6321 = vmatpush.msra.mxu0 %v880
        %6322 = vmatpush.msra.mxu0 %v871
        %6323 = vmatpush.msra.mxu0 %v862
        %6324 = vmatpush.msra.mxu0 %v853
        %6325 = vmatpush.msra.mxu0 %v844
        %6326 = vmatpush.msra.mxu0 %v835
        %6327 = vmatpush.msra.mxu0 %v826
        %6328 = vmatmul.f32.gmra.mxu0 %v6310
        %v6329 = vpop.f32.mrf.mxu0
        %v6330 = vadd.f32 0.0, %v6329
        %6331 = vmatmul.f32.gmra.mxu0 %v6311
        %v6332 = vpop.f32.mrf.mxu0
        %v6333 = vadd.f32 0.0, %v6332
        %6334 = vdwg.mxu0
        %6335 = vmatpush.msra.mxu0 %v962
        %6336 = vmatpush.msra.mxu0 %v953
        %6337 = vmatpush.msra.mxu0 %v944
        %6338 = vmatpush.msra.mxu0 %v935
        %6339 = vmatpush.msra.mxu0 %v926
        %6340 = vmatpush.msra.mxu0 %v917
        %6341 = vmatpush.msra.mxu0 %v908
        %6342 = vmatpush.msra.mxu0 %v899
        %6343 = vmatpush.msra.mxu0 %v890
        %6344 = vmatpush.msra.mxu0 %v881
        %6345 = vmatpush.msra.mxu0 %v872
        %6346 = vmatpush.msra.mxu0 %v863
        %6347 = vmatpush.msra.mxu0 %v854
        %6348 = vmatpush.msra.mxu0 %v845
        %6349 = vmatpush.msra.mxu0 %v836
        %6350 = vmatpush.msra.mxu0 %v827
        %6351 = vmatmul.f32.gmra.mxu0 %v6310
        %v6352 = vpop.f32.mrf.mxu0
        %v6353 = vadd.f32 0.0, %v6352
        %6354 = vmatmul.f32.gmra.mxu0 %v6311
        %v6355 = vpop.f32.mrf.mxu0
        %v6356 = vadd.f32 0.0, %v6355
        %6357 = vdwg.mxu0
        %6358 = vmatpush.msra.mxu0 %v963
        %6359 = vmatpush.msra.mxu0 %v954
        %6360 = vmatpush.msra.mxu0 %v945
        %6361 = vmatpush.msra.mxu0 %v936
        %6362 = vmatpush.msra.mxu0 %v927
        %6363 = vmatpush.msra.mxu0 %v918
        %6364 = vmatpush.msra.mxu0 %v909
        %6365 = vmatpush.msra.mxu0 %v900
        %6366 = vmatpush.msra.mxu0 %v891
        %6367 = vmatpush.msra.mxu0 %v882
        %6368 = vmatpush.msra.mxu0 %v873
        %6369 = vmatpush.msra.mxu0 %v864
        %6370 = vmatpush.msra.mxu0 %v855
        %6371 = vmatpush.msra.mxu0 %v846
        %6372 = vmatpush.msra.mxu0 %v837
        %6373 = vmatpush.msra.mxu0 %v828
        %6374 = vmatmul.f32.gmra.mxu0 %v6310
        %v6375 = vpop.f32.mrf.mxu0
        %v6376 = vadd.f32 0.0, %v6375
        %6377 = vmatmul.f32.gmra.mxu0 %v6311
        %v6378 = vpop.f32.mrf.mxu0
        %v6379 = vadd.f32 0.0, %v6378
        %6380 = vdwg.mxu0
        %6381 = vmatpush.msra.mxu0 %v964
        %6382 = vmatpush.msra.mxu0 %v955
        %6383 = vmatpush.msra.mxu0 %v946
        %6384 = vmatpush.msra.mxu0 %v937
        %6385 = vmatpush.msra.mxu0 %v928
        %6386 = vmatpush.msra.mxu0 %v919
        %6387 = vmatpush.msra.mxu0 %v910
        %6388 = vmatpush.msra.mxu0 %v901
        %6389 = vmatpush.msra.mxu0 %v892
        %6390 = vmatpush.msra.mxu0 %v883
        %6391 = vmatpush.msra.mxu0 %v874
        %6392 = vmatpush.msra.mxu0 %v865
        %6393 = vmatpush.msra.mxu0 %v856
        %6394 = vmatpush.msra.mxu0 %v847
        %6395 = vmatpush.msra.mxu0 %v838
        %6396 = vmatpush.msra.mxu0 %v829
        %6397 = vmatmul.f32.gmra.mxu0 %v6310
        %v6398 = vpop.f32.mrf.mxu0
        %v6399 = vadd.f32 0.0, %v6398
        %6400 = vmatmul.f32.gmra.mxu0 %v6311
        %v6401 = vpop.f32.mrf.mxu0
        %v6402 = vadd.f32 0.0, %v6401
        %6403 = vdwg.mxu0
        %6404 = vmatpush.msra.mxu0 %v965
        %6405 = vmatpush.msra.mxu0 %v956
        %6406 = vmatpush.msra.mxu0 %v947
        %6407 = vmatpush.msra.mxu0 %v938
        %6408 = vmatpush.msra.mxu0 %v929
        %6409 = vmatpush.msra.mxu0 %v920
        %6410 = vmatpush.msra.mxu0 %v911
        %6411 = vmatpush.msra.mxu0 %v902
        %6412 = vmatpush.msra.mxu0 %v893
        %6413 = vmatpush.msra.mxu0 %v884
        %6414 = vmatpush.msra.mxu0 %v875
        %6415 = vmatpush.msra.mxu0 %v866
        %6416 = vmatpush.msra.mxu0 %v857
        %6417 = vmatpush.msra.mxu0 %v848
        %6418 = vmatpush.msra.mxu0 %v839
        %6419 = vmatpush.msra.mxu0 %v830
        %6420 = vmatmul.f32.gmra.mxu0 %v6310
        %v6421 = vpop.f32.mrf.mxu0
        %v6422 = vadd.f32 0.0, %v6421
        %6423 = vmatmul.f32.gmra.mxu0 %v6311
        %v6424 = vpop.f32.mrf.mxu0
        %v6425 = vadd.f32 0.0, %v6424
        %6426 = vdwg.mxu0
        %6427 = vmatpush.msra.mxu0 %v966
        %6428 = vmatpush.msra.mxu0 %v957
        %6429 = vmatpush.msra.mxu0 %v948
        %6430 = vmatpush.msra.mxu0 %v939
        %6431 = vmatpush.msra.mxu0 %v930
        %6432 = vmatpush.msra.mxu0 %v921
        %6433 = vmatpush.msra.mxu0 %v912
        %6434 = vmatpush.msra.mxu0 %v903
        %6435 = vmatpush.msra.mxu0 %v894
        %6436 = vmatpush.msra.mxu0 %v885
        %6437 = vmatpush.msra.mxu0 %v876
        %6438 = vmatpush.msra.mxu0 %v867
        %6439 = vmatpush.msra.mxu0 %v858
        %6440 = vmatpush.msra.mxu0 %v849
        %6441 = vmatpush.msra.mxu0 %v840
        %6442 = vmatpush.msra.mxu0 %v831
        %6443 = vmatmul.f32.gmra.mxu0 %v6310
        %v6444 = vpop.f32.mrf.mxu0
        %v6445 = vadd.f32 0.0, %v6444
        %6446 = vmatmul.f32.gmra.mxu0 %v6311
        %v6447 = vpop.f32.mrf.mxu0
        %v6448 = vadd.f32 0.0, %v6447
        %6449 = vdwg.mxu0
        %6450 = vmatpush.msra.mxu0 %v967
        %6451 = vmatpush.msra.mxu0 %v958
        %6452 = vmatpush.msra.mxu0 %v949
        %6453 = vmatpush.msra.mxu0 %v940
        %6454 = vmatpush.msra.mxu0 %v931
        %6455 = vmatpush.msra.mxu0 %v922
        %6456 = vmatpush.msra.mxu0 %v913
        %6457 = vmatpush.msra.mxu0 %v904
        %6458 = vmatpush.msra.mxu0 %v895
        %6459 = vmatpush.msra.mxu0 %v886
        %6460 = vmatpush.msra.mxu0 %v877
        %6461 = vmatpush.msra.mxu0 %v868
        %6462 = vmatpush.msra.mxu0 %v859
        %6463 = vmatpush.msra.mxu0 %v850
        %6464 = vmatpush.msra.mxu0 %v841
        %6465 = vmatpush.msra.mxu0 %v832
        %6466 = vmatmul.f32.gmra.mxu0 %v6310
        %v6467 = vpop.f32.mrf.mxu0
        %v6468 = vadd.f32 0.0, %v6467
        %6469 = vmatmul.f32.gmra.mxu0 %v6311
        %v6470 = vpop.f32.mrf.mxu0
        %v6471 = vadd.f32 0.0, %v6470
        %6472 = vdwg.mxu0
        %6473 = vmatpush.msra.mxu0 %v968
        %6474 = vmatpush.msra.mxu0 %v959
        %6475 = vmatpush.msra.mxu0 %v950
        %6476 = vmatpush.msra.mxu0 %v941
        %6477 = vmatpush.msra.mxu0 %v932
        %6478 = vmatpush.msra.mxu0 %v923
        %6479 = vmatpush.msra.mxu0 %v914
        %6480 = vmatpush.msra.mxu0 %v905
        %6481 = vmatpush.msra.mxu0 %v896
        %6482 = vmatpush.msra.mxu0 %v887
        %6483 = vmatpush.msra.mxu0 %v878
        %6484 = vmatpush.msra.mxu0 %v869
        %6485 = vmatpush.msra.mxu0 %v860
        %6486 = vmatpush.msra.mxu0 %v851
        %6487 = vmatpush.msra.mxu0 %v842
        %6488 = vmatpush.msra.mxu0 %v833
        %6489 = vmatmul.f32.gmra.mxu0 %v6310
        %v6490 = vpop.f32.mrf.mxu0
        %v6491 = vadd.f32 0.0, %v6490
        %6492 = vmatmul.f32.gmra.mxu0 %v6311
        %v6493 = vpop.f32.mrf.mxu0
        %v6494 = vadd.f32 0.0, %v6493
        %6495 = vdwg.mxu0
        %6496 = vmatpush.msra.mxu0 %v969
        %6497 = vmatpush.msra.mxu0 %v960
        %6498 = vmatpush.msra.mxu0 %v951
        %6499 = vmatpush.msra.mxu0 %v942
        %6500 = vmatpush.msra.mxu0 %v933
        %6501 = vmatpush.msra.mxu0 %v924
        %6502 = vmatpush.msra.mxu0 %v915
        %6503 = vmatpush.msra.mxu0 %v906
        %6504 = vmatpush.msra.mxu0 %v897
        %6505 = vmatpush.msra.mxu0 %v888
        %6506 = vmatpush.msra.mxu0 %v879
        %6507 = vmatpush.msra.mxu0 %v870
        %6508 = vmatpush.msra.mxu0 %v861
        %6509 = vmatpush.msra.mxu0 %v852
        %6510 = vmatpush.msra.mxu0 %v843
        %6511 = vmatpush.msra.mxu0 %v834
        %6512 = vmatmul.f32.gmra.mxu0 %v6310
        %v6513 = vpop.f32.mrf.mxu0
        %v6514 = vadd.f32 0.0, %v6513
        %6515 = vmatmul.f32.gmra.mxu0 %v6311
        %v6516 = vpop.f32.mrf.mxu0
        %v6517 = vadd.f32 0.0, %v6516
        %6518 = vdwg.mxu0
        %6519 = vmatpush.msra.mxu0 0.0
        %6520 = vmatpush.msra.mxu0 0.0
        %6521 = vmatpush.msra.mxu0 0.0
        %6522 = vmatpush.msra.mxu0 0.0
        %6523 = vmatpush.msra.mxu0 0.0
        %6524 = vmatpush.msra.mxu0 0.0
        %6525 = vmatpush.msra.mxu0 0.0
        %6526 = vmatpush.msra.mxu0 0.0
        %6527 = vmatpush.msra.mxu0 0.0
        %6528 = vmatpush.msra.mxu0 0.0
        %6529 = vmatpush.msra.mxu0 0.0
        %6530 = vmatpush.msra.mxu0 0.0
        %6531 = vmatpush.msra.mxu0 0.0
        %6532 = vmatpush.msra.mxu0 0.0
        %6533 = vmatpush.msra.mxu0 %v6402
        %6534 = vmatpush.msra.mxu0 %v6399
        %6535 = vmatmul.f32.gmra.mxu0 %v1229
        %v6536 = vpop.f32.mrf.mxu0
        %v6537 = vadd.f32 0.0, %v6536
        %6538 = vmatmul.f32.gmra.mxu0 %v1232
        %v6539 = vpop.f32.mrf.mxu0
        %v6540 = vadd.f32 0.0, %v6539
        %6541 = vdwg.mxu0
        %6542 = vmatpush.msra.mxu0 0.0
        %6543 = vmatpush.msra.mxu0 0.0
        %6544 = vmatpush.msra.mxu0 0.0
        %6545 = vmatpush.msra.mxu0 0.0
        %6546 = vmatpush.msra.mxu0 0.0
        %6547 = vmatpush.msra.mxu0 0.0
        %6548 = vmatpush.msra.mxu0 0.0
        %6549 = vmatpush.msra.mxu0 0.0
        %6550 = vmatpush.msra.mxu0 0.0
        %6551 = vmatpush.msra.mxu0 0.0
        %6552 = vmatpush.msra.mxu0 0.0
        %6553 = vmatpush.msra.mxu0 0.0
        %6554 = vmatpush.msra.mxu0 0.0
        %6555 = vmatpush.msra.mxu0 0.0
        %6556 = vmatpush.msra.mxu0 %v6425
        %6557 = vmatpush.msra.mxu0 %v6422
        %6558 = vmatmul.f32.gmra.mxu0 %v1229
        %v6559 = vpop.f32.mrf.mxu0
        %v6560 = vadd.f32 0.0, %v6559
        %6561 = vmatmul.f32.gmra.mxu0 %v1232
        %v6562 = vpop.f32.mrf.mxu0
        %v6563 = vadd.f32 0.0, %v6562
        %6564 = vdwg.mxu0
        %6565 = vmatpush.msra.mxu0 0.0
        %6566 = vmatpush.msra.mxu0 0.0
        %6567 = vmatpush.msra.mxu0 0.0
        %6568 = vmatpush.msra.mxu0 0.0
        %6569 = vmatpush.msra.mxu0 0.0
        %6570 = vmatpush.msra.mxu0 0.0
        %6571 = vmatpush.msra.mxu0 0.0
        %6572 = vmatpush.msra.mxu0 0.0
        %6573 = vmatpush.msra.mxu0 0.0
        %6574 = vmatpush.msra.mxu0 0.0
        %6575 = vmatpush.msra.mxu0 0.0
        %6576 = vmatpush.msra.mxu0 0.0
        %6577 = vmatpush.msra.mxu0 0.0
        %6578 = vmatpush.msra.mxu0 0.0
        %6579 = vmatpush.msra.mxu0 %v6448
        %6580 = vmatpush.msra.mxu0 %v6445
        %6581 = vmatmul.f32.gmra.mxu0 %v1229
        %v6582 = vpop.f32.mrf.mxu0
        %v6583 = vadd.f32 0.0, %v6582
        %6584 = vmatmul.f32.gmra.mxu0 %v1232
        %v6585 = vpop.f32.mrf.mxu0
        %v6586 = vadd.f32 0.0, %v6585
        %6587 = vdwg.mxu0
        %6588 = vmatpush.msra.mxu0 0.0
        %6589 = vmatpush.msra.mxu0 0.0
        %6590 = vmatpush.msra.mxu0 0.0
        %6591 = vmatpush.msra.mxu0 0.0
        %6592 = vmatpush.msra.mxu0 0.0
        %6593 = vmatpush.msra.mxu0 0.0
        %6594 = vmatpush.msra.mxu0 0.0
        %6595 = vmatpush.msra.mxu0 0.0
        %6596 = vmatpush.msra.mxu0 0.0
        %6597 = vmatpush.msra.mxu0 0.0
        %6598 = vmatpush.msra.mxu0 0.0
        %6599 = vmatpush.msra.mxu0 0.0
        %6600 = vmatpush.msra.mxu0 0.0
        %6601 = vmatpush.msra.mxu0 0.0
        %6602 = vmatpush.msra.mxu0 %v6333
        %6603 = vmatpush.msra.mxu0 %v6330
        %6604 = vmatmul.f32.gmra.mxu0 %v1304
        %v6605 = vpop.f32.mrf.mxu0
        %v6606 = vadd.f32 %v6537, %v6605
        %6607 = vmatmul.f32.gmra.mxu0 %v1307
        %v6608 = vpop.f32.mrf.mxu0
        %v6609 = vadd.f32 %v6540, %v6608
        %6610 = vdwg.mxu0
        %6611 = vmatpush.msra.mxu0 0.0
        %6612 = vmatpush.msra.mxu0 0.0
        %6613 = vmatpush.msra.mxu0 0.0
        %6614 = vmatpush.msra.mxu0 0.0
        %6615 = vmatpush.msra.mxu0 0.0
        %6616 = vmatpush.msra.mxu0 0.0
        %6617 = vmatpush.msra.mxu0 0.0
        %6618 = vmatpush.msra.mxu0 0.0
        %6619 = vmatpush.msra.mxu0 0.0
        %6620 = vmatpush.msra.mxu0 0.0
        %6621 = vmatpush.msra.mxu0 0.0
        %6622 = vmatpush.msra.mxu0 0.0
        %6623 = vmatpush.msra.mxu0 0.0
        %6624 = vmatpush.msra.mxu0 0.0
        %6625 = vmatpush.msra.mxu0 %v6356
        %6626 = vmatpush.msra.mxu0 %v6353
        %6627 = vmatmul.f32.gmra.mxu0 %v1304
        %v6628 = vpop.f32.mrf.mxu0
        %v6629 = vadd.f32 %v6560, %v6628
        %6630 = vmatmul.f32.gmra.mxu0 %v1307
        %v6631 = vpop.f32.mrf.mxu0
        %v6632 = vadd.f32 %v6563, %v6631
        %6633 = vdwg.mxu0
        %6634 = vmatpush.msra.mxu0 0.0
        %6635 = vmatpush.msra.mxu0 0.0
        %6636 = vmatpush.msra.mxu0 0.0
        %6637 = vmatpush.msra.mxu0 0.0
        %6638 = vmatpush.msra.mxu0 0.0
        %6639 = vmatpush.msra.mxu0 0.0
        %6640 = vmatpush.msra.mxu0 0.0
        %6641 = vmatpush.msra.mxu0 0.0
        %6642 = vmatpush.msra.mxu0 0.0
        %6643 = vmatpush.msra.mxu0 0.0
        %6644 = vmatpush.msra.mxu0 0.0
        %6645 = vmatpush.msra.mxu0 0.0
        %6646 = vmatpush.msra.mxu0 0.0
        %6647 = vmatpush.msra.mxu0 0.0
        %6648 = vmatpush.msra.mxu0 %v6379
        %6649 = vmatpush.msra.mxu0 %v6376
        %6650 = vmatmul.f32.gmra.mxu0 %v1304
        %v6651 = vpop.f32.mrf.mxu0
        %v6652 = vadd.f32 %v6583, %v6651
        %6653 = vmatmul.f32.gmra.mxu0 %v1307
        %v6654 = vpop.f32.mrf.mxu0
        %v6655 = vadd.f32 %v6586, %v6654
        %6656 = vdwg.mxu0
        %6657 = vmatpush.msra.mxu0 0.0
        %6658 = vmatpush.msra.mxu0 0.0
        %6659 = vmatpush.msra.mxu0 0.0
        %6660 = vmatpush.msra.mxu0 0.0
        %6661 = vmatpush.msra.mxu0 0.0
        %6662 = vmatpush.msra.mxu0 0.0
        %6663 = vmatpush.msra.mxu0 0.0
        %6664 = vmatpush.msra.mxu0 0.0
        %6665 = vmatpush.msra.mxu0 0.0
        %6666 = vmatpush.msra.mxu0 0.0
        %6667 = vmatpush.msra.mxu0 0.0
        %6668 = vmatpush.msra.mxu0 0.0
        %6669 = vmatpush.msra.mxu0 0.0
        %6670 = vmatpush.msra.mxu0 0.0
        %6671 = vmatpush.msra.mxu0 %v6471
        %6672 = vmatpush.msra.mxu0 %v6468
        %6673 = vmatmul.f32.gmra.mxu0 %v1379
        %v6674 = vpop.f32.mrf.mxu0
        %v6675 = vadd.f32 0.0, %v6674
        %6676 = vmatmul.f32.gmra.mxu0 %v1382
        %v6677 = vpop.f32.mrf.mxu0
        %v6678 = vadd.f32 0.0, %v6677
        %6679 = vdwg.mxu0
        %6680 = vmatpush.msra.mxu0 0.0
        %6681 = vmatpush.msra.mxu0 0.0
        %6682 = vmatpush.msra.mxu0 0.0
        %6683 = vmatpush.msra.mxu0 0.0
        %6684 = vmatpush.msra.mxu0 0.0
        %6685 = vmatpush.msra.mxu0 0.0
        %6686 = vmatpush.msra.mxu0 0.0
        %6687 = vmatpush.msra.mxu0 0.0
        %6688 = vmatpush.msra.mxu0 0.0
        %6689 = vmatpush.msra.mxu0 0.0
        %6690 = vmatpush.msra.mxu0 0.0
        %6691 = vmatpush.msra.mxu0 0.0
        %6692 = vmatpush.msra.mxu0 0.0
        %6693 = vmatpush.msra.mxu0 0.0
        %6694 = vmatpush.msra.mxu0 %v6494
        %6695 = vmatpush.msra.mxu0 %v6491
        %6696 = vmatmul.f32.gmra.mxu0 %v1379
        %v6697 = vpop.f32.mrf.mxu0
        %v6698 = vadd.f32 0.0, %v6697
        %6699 = vmatmul.f32.gmra.mxu0 %v1382
        %v6700 = vpop.f32.mrf.mxu0
        %v6701 = vadd.f32 0.0, %v6700
        %6702 = vdwg.mxu0
        %6703 = vmatpush.msra.mxu0 0.0
        %6704 = vmatpush.msra.mxu0 0.0
        %6705 = vmatpush.msra.mxu0 0.0
        %6706 = vmatpush.msra.mxu0 0.0
        %6707 = vmatpush.msra.mxu0 0.0
        %6708 = vmatpush.msra.mxu0 0.0
        %6709 = vmatpush.msra.mxu0 0.0
        %6710 = vmatpush.msra.mxu0 0.0
        %6711 = vmatpush.msra.mxu0 0.0
        %6712 = vmatpush.msra.mxu0 0.0
        %6713 = vmatpush.msra.mxu0 0.0
        %6714 = vmatpush.msra.mxu0 0.0
        %6715 = vmatpush.msra.mxu0 0.0
        %6716 = vmatpush.msra.mxu0 0.0
        %6717 = vmatpush.msra.mxu0 %v6517
        %6718 = vmatpush.msra.mxu0 %v6514
        %6719 = vmatmul.f32.gmra.mxu0 %v1379
        %v6720 = vpop.f32.mrf.mxu0
        %v6721 = vadd.f32 0.0, %v6720
        %6722 = vmatmul.f32.gmra.mxu0 %v1382
        %v6723 = vpop.f32.mrf.mxu0
        %v6724 = vadd.f32 0.0, %v6723
        %6725 = vdwg.mxu0
        %v6726 = vadd.f32 %v6606, %v6675
        %v6727 = vadd.f32 %v6629, %v6698
        %v6728 = vadd.f32 %v6652, %v6721
        %v6729 = vadd.f32 %v6609, %v6678
        %v6730 = vadd.f32 %v6632, %v6701
        %v6731 = vadd.f32 %v6655, %v6724
        %6732 = vmatpush.msra.mxu0 %v1000
        %6733 = vmatpush.msra.mxu0 %v998
        %6734 = vmatpush.msra.mxu0 %v996
        %6735 = vmatpush.msra.mxu0 %v994
        %6736 = vmatpush.msra.mxu0 %v992
        %6737 = vmatpush.msra.mxu0 %v990
        %6738 = vmatpush.msra.mxu0 %v988
        %6739 = vmatpush.msra.mxu0 %v986
        %6740 = vmatpush.msra.mxu0 %v984
        %6741 = vmatpush.msra.mxu0 %v982
        %6742 = vmatpush.msra.mxu0 %v980
        %6743 = vmatpush.msra.mxu0 %v978
        %6744 = vmatpush.msra.mxu0 %v976
        %6745 = vmatpush.msra.mxu0 %v974
        %6746 = vmatpush.msra.mxu0 %v972
        %6747 = vmatpush.msra.mxu0 %v970
        %6748 = vmatmul.f32.gmra.mxu0 %v6310
        %v6749 = vpop.f32.mrf.mxu0
        %v6750 = vadd.f32 %v1460, %v6749
        %6751 = vmatmul.f32.gmra.mxu0 %v6311
        %v6752 = vpop.f32.mrf.mxu0
        %v6753 = vadd.f32 %v1460, %v6752
        %6754 = vdwg.mxu0
        %6755 = vmatpush.msra.mxu0 %v1001
        %6756 = vmatpush.msra.mxu0 %v999
        %6757 = vmatpush.msra.mxu0 %v997
        %6758 = vmatpush.msra.mxu0 %v995
        %6759 = vmatpush.msra.mxu0 %v993
        %6760 = vmatpush.msra.mxu0 %v991
        %6761 = vmatpush.msra.mxu0 %v989
        %6762 = vmatpush.msra.mxu0 %v987
        %6763 = vmatpush.msra.mxu0 %v985
        %6764 = vmatpush.msra.mxu0 %v983
        %6765 = vmatpush.msra.mxu0 %v981
        %6766 = vmatpush.msra.mxu0 %v979
        %6767 = vmatpush.msra.mxu0 %v977
        %6768 = vmatpush.msra.mxu0 %v975
        %6769 = vmatpush.msra.mxu0 %v973
        %6770 = vmatpush.msra.mxu0 %v971
        %6771 = vmatmul.f32.gmra.mxu0 %v6310
        %v6772 = vpop.f32.mrf.mxu0
        %v6773 = vadd.f32 %v1461, %v6772
        %6774 = vmatmul.f32.gmra.mxu0 %v6311
        %v6775 = vpop.f32.mrf.mxu0
        %v6776 = vadd.f32 %v1461, %v6775
        %6777 = vdwg.mxu0
        %v6778 = vadd.f32 %v6750, %v6726
        %v6779 = vadd.f32 %v6773, %v6727
        %v6780 = vadd.f32 %v6753, %v6729
        %v6781 = vadd.f32 %v6776, %v6730
        %v6782 = vxor.u32 %v6778, 2147483648
        %v6783 = vxor.u32 %v6779, 2147483648
        %v6784 = vxor.u32 %v6780, 2147483648
        %v6785 = vxor.u32 %v6781, 2147483648
        %v6786 = vmul.f32 %v6782, 1.442695
        %v6787 = vpow.pop %v6786
        %v6788 = vmul.f32 %v6783, 1.442695
        %v6789 = vpow.pop %v6788
        %v6790 = vmul.f32 %v6784, 1.442695
        %v6791 = vpow.pop %v6790
        %v6792 = vmul.f32 %v6785, 1.442695
        %v6793 = vpow.pop %v6792
        %v6794 = vadd.f32 %v6787, 1.0
        %v6795 = vadd.f32 %v6789, 1.0
        %v6796 = vadd.f32 %v6791, 1.0
        %v6797 = vadd.f32 %v6793, 1.0
        %v6798 = vrcp.pop %v6794
        %v6799 = vmul.f32 %v6794, %v6798
        %v6800 = vsub.f32 1.0, %v6799
        %v6801 = vmul.f32 %v6798, %v6800
        %v6802 = vadd.f32 %v6798, %v6801
        %vm6803 = vweird.f32 %v6794
        %vm6804 = vweird.f32 %v6798
        %vm6805 = vmor %vm6803, %vm6804
        %v6806 = vsel %vm6805, %v6798, %v6802
        %v6807 = vand.u32 2147483647, %v6794
        %vm6808 = vcmp.eq.f32.partialorder %v6807, 8.507059e+37
        %v6809 = vand.u32 %v6794, 2147483648
        %v6810 = vor.u32 1.1754944e-38, %v6809
        %v6811 = vsel %vm6808, %v6810, %v6806
        %v6812 = vmul.f32 1.0, %v6811
        %v6813 = vrcp.pop %v6795
        %v6814 = vmul.f32 %v6795, %v6813
        %v6815 = vsub.f32 1.0, %v6814
        %v6816 = vmul.f32 %v6813, %v6815
        %v6817 = vadd.f32 %v6813, %v6816
        %vm6818 = vweird.f32 %v6795
        %vm6819 = vweird.f32 %v6813
        %vm6820 = vmor %vm6818, %vm6819
        %v6821 = vsel %vm6820, %v6813, %v6817
        %v6822 = vand.u32 2147483647, %v6795
        %vm6823 = vcmp.eq.f32.partialorder %v6822, 8.507059e+37
        %v6824 = vand.u32 %v6795, 2147483648
        %v6825 = vor.u32 1.1754944e-38, %v6824
        %v6826 = vsel %vm6823, %v6825, %v6821
        %v6827 = vmul.f32 1.0, %v6826
        %v6828 = vrcp.pop %v6796
        %v6829 = vmul.f32 %v6796, %v6828
        %v6830 = vsub.f32 1.0, %v6829
        %v6831 = vmul.f32 %v6828, %v6830
        %v6832 = vadd.f32 %v6828, %v6831
        %vm6833 = vweird.f32 %v6796
        %vm6834 = vweird.f32 %v6828
        %vm6835 = vmor %vm6833, %vm6834
        %v6836 = vsel %vm6835, %v6828, %v6832
        %v6837 = vand.u32 2147483647, %v6796
        %vm6838 = vcmp.eq.f32.partialorder %v6837, 8.507059e+37
        %v6839 = vand.u32 %v6796, 2147483648
        %v6840 = vor.u32 1.1754944e-38, %v6839
        %v6841 = vsel %vm6838, %v6840, %v6836
        %v6842 = vmul.f32 1.0, %v6841
        %v6843 = vrcp.pop %v6797
        %v6844 = vmul.f32 %v6797, %v6843
        %v6845 = vsub.f32 1.0, %v6844
        %v6846 = vmul.f32 %v6843, %v6845
        %v6847 = vadd.f32 %v6843, %v6846
        %vm6848 = vweird.f32 %v6797
        %vm6849 = vweird.f32 %v6843
        %vm6850 = vmor %vm6848, %vm6849
        %v6851 = vsel %vm6850, %v6843, %v6847
        %v6852 = vand.u32 2147483647, %v6797
        %vm6853 = vcmp.eq.f32.partialorder %v6852, 8.507059e+37
        %v6854 = vand.u32 %v6797, 2147483648
        %v6855 = vor.u32 1.1754944e-38, %v6854
        %v6856 = vsel %vm6853, %v6855, %v6851
        %v6857 = vmul.f32 1.0, %v6856
        %v6858 = vmul.f32 %v6827, %v6310
        %v6859 = vmul.f32 %v6857, %v6311
        %6860 = vmatpush.msra.mxu0 %v1017
        %6861 = vmatpush.msra.mxu0 %v1016
        %6862 = vmatpush.msra.mxu0 %v1015
        %6863 = vmatpush.msra.mxu0 %v1014
        %6864 = vmatpush.msra.mxu0 %v1013
        %6865 = vmatpush.msra.mxu0 %v1012
        %6866 = vmatpush.msra.mxu0 %v1011
        %6867 = vmatpush.msra.mxu0 %v1010
        %6868 = vmatpush.msra.mxu0 %v1009
        %6869 = vmatpush.msra.mxu0 %v1008
        %6870 = vmatpush.msra.mxu0 %v1007
        %6871 = vmatpush.msra.mxu0 %v1006
        %6872 = vmatpush.msra.mxu0 %v1005
        %6873 = vmatpush.msra.mxu0 %v1004
        %6874 = vmatpush.msra.mxu0 %v1003
        %6875 = vmatpush.msra.mxu0 %v1002
        %6876 = vmatmul.f32.gmra.mxu0 %v6858
        %v6877 = vpop.f32.mrf.mxu0
        %v6878 = vadd.f32 0.0, %v6877
        %6879 = vmatmul.f32.gmra.mxu0 %v6859
        %v6880 = vpop.f32.mrf.mxu0
        %v6881 = vadd.f32 0.0, %v6880
        %6882 = vdwg.mxu0
        %v6883 = vadd.f32 %v6728, %v6878
        %v6884 = vadd.f32 %v6731, %v6881
        %v6885 = vadd.f32 %v6883, %v1618
        %v6886 = vadd.f32 %v6884, %v1618
        %v6887 = vtanh.pop %v6885
        %v6888 = vtanh.pop %v6886
        %v6889 = vsub.f32 1.0, %v6812
        %v6890 = vsub.f32 1.0, %v6842
        %v6891 = vmul.f32 %v6889, %v6310
        %v6892 = vmul.f32 %v6890, %v6311
        %v6893 = vmul.f32 %v6812, %v6887
        %v6894 = vmul.f32 %v6842, %v6888
        %v6895 = vadd.f32 %v6891, %v6893
        %v6896 = vadd.f32 %v6892, %v6894
        %v6897 = vld [vmem:[%s16] sm:$0xf]
        %v6898 = vld [vmem:[#allocation17] sm:$0xff]
        %v6899 = vld [vmem:[#allocation17 + $0x8] sm:$0xff]
        %v6900 = vld [vmem:[#allocation17 + $0x10] sm:$0xff]
        %v6901 = vld [vmem:[#allocation17 + $0x18] sm:$0xff]
        %v6902 = vld [vmem:[#allocation17 + $0x20] sm:$0xff]
        %v6903 = vld [vmem:[#allocation17 + $0x28] sm:$0xff]
        %v6904 = vld [vmem:[#allocation17 + $0x30] sm:$0xff]
        %v6905 = vld [vmem:[#allocation17 + $0x38] sm:$0xff]
        %v6906 = vld [vmem:[#allocation17 + $0x40] sm:$0xff]
        %v6907 = vld [vmem:[#allocation17 + $0x48] sm:$0xff]
        %v6908 = vld [vmem:[#allocation17 + $0x50] sm:$0xff]
        %v6909 = vld [vmem:[#allocation17 + $0x58] sm:$0xff]
        %v6910 = vld [vmem:[#allocation17 + $0x60] sm:$0xff]
        %v6911 = vld [vmem:[#allocation17 + $0x68] sm:$0xff]
        %v6912 = vld [vmem:[#allocation17 + $0x70] sm:$0xff]
        %v6913 = vld [vmem:[#allocation17 + $0x78] sm:$0xff]
        %v6914 = vld [vmem:[%s13] sm:$0x1]
        %v6916 = vperm.slane %v6914, 0
        %6918 = vmatpush.msra.mxu0 %v6913
        %6919 = vmatpush.msra.mxu0 %v6912
        %6920 = vmatpush.msra.mxu0 %v6911
        %6921 = vmatpush.msra.mxu0 %v6910
        %6922 = vmatpush.msra.mxu0 %v6909
        %6923 = vmatpush.msra.mxu0 %v6908
        %6924 = vmatpush.msra.mxu0 %v6907
        %6925 = vmatpush.msra.mxu0 %v6906
        %6926 = vmatpush.msra.mxu0 %v6905
        %6927 = vmatpush.msra.mxu0 %v6904
        %6928 = vmatpush.msra.mxu0 %v6903
        %6929 = vmatpush.msra.mxu0 %v6902
        %6930 = vmatpush.msra.mxu0 %v6901
        %6931 = vmatpush.msra.mxu0 %v6900
        %6932 = vmatpush.msra.mxu0 %v6899
        %6933 = vmatpush.msra.mxu0 %v6898
        %6934 = vmatmul.f32.gmra.mxu0 %v6895
        %v6935 = vpop.f32.mrf.mxu0
        %v6936 = vadd.f32 %v6916, %v6935
        %6937 = vmatmul.f32.gmra.mxu0 %v6896
        %v6938 = vpop.f32.mrf.mxu0
        %v6939 = vadd.f32 %v6916, %v6938
        %6940 = vdwg.mxu0
        %v6941 = vtanh.pop %v6936
        %v6942 = vtanh.pop %v6939
        %v6943 = vld [vmem:[%s14] sm:$0xff]
        %v6944 = vld [vmem:[%s14 + $0x8] sm:$0xff]
        %v6945 = vld [vmem:[%s14 + $0x10] sm:$0xff]
        %v6946 = vld [vmem:[%s14 + $0x18] sm:$0xff]
        %v6947 = vld [vmem:[%s14 + $0x20] sm:$0xff]
        %v6948 = vld [vmem:[%s14 + $0x28] sm:$0xff]
        %v6949 = vld [vmem:[%s14 + $0x30] sm:$0xff]
        %v6950 = vld [vmem:[%s14 + $0x38] sm:$0xff]
        %v6951 = vld [vmem:[%s14 + $0x40] sm:$0xff]
        %v6952 = vld [vmem:[%s14 + $0x48] sm:$0xff]
        %v6953 = vld [vmem:[%s14 + $0x50] sm:$0xff]
        %v6954 = vld [vmem:[%s14 + $0x58] sm:$0xff]
        %v6955 = vld [vmem:[%s14 + $0x60] sm:$0xff]
        %v6956 = vld [vmem:[%s14 + $0x68] sm:$0xff]
        %v6957 = vld [vmem:[%s14 + $0x70] sm:$0xff]
        %v6958 = vld [vmem:[%s14 + $0x78] sm:$0xff]
        %6959 = vmatpush.msra.mxu0 %v6958
        %6960 = vmatpush.msra.mxu0 %v6957
        %6961 = vmatpush.msra.mxu0 %v6956
        %6962 = vmatpush.msra.mxu0 %v6955
        %6963 = vmatpush.msra.mxu0 %v6954
        %6964 = vmatpush.msra.mxu0 %v6953
        %6965 = vmatpush.msra.mxu0 %v6952
        %6966 = vmatpush.msra.mxu0 %v6951
        %6967 = vmatpush.msra.mxu0 %v6950
        %6968 = vmatpush.msra.mxu0 %v6949
        %6969 = vmatpush.msra.mxu0 %v6948
        %6970 = vmatpush.msra.mxu0 %v6947
        %6971 = vmatpush.msra.mxu0 %v6946
        %6972 = vmatpush.msra.mxu0 %v6945
        %6973 = vmatpush.msra.mxu0 %v6944
        %6974 = vmatpush.msra.mxu0 %v6943
        %6975 = vmatmul.f32.gmra.mxu0 %v6941
        %v6976 = vpop.f32.mrf.mxu0
        %v6977 = vadd.f32 0.0, %v6976
        %6978 = vmatmul.f32.gmra.mxu0 %v6942
        %v6979 = vpop.f32.mrf.mxu0
        %v6980 = vadd.f32 0.0, %v6979
        %6981 = vdwg.mxu0
        %vm6982 = vcmask 125952
        %v6983 = vsel %vm6982, %v6897, 0.0
        %6984 = vadd.xlane.f32.xlu0 %v6983
        %v6985 = vpop.xlane.xlu0 %6984
        %v6986 = vmax.f32 %v6985, 1.0
        %v6988 = vsel %vm1227, %v6897, 0
        %6990 = vmatpush.msra.mxu0 0.0
        %6991 = vmatpush.msra.mxu0 0.0
        %6992 = vmatpush.msra.mxu0 0.0
        %6993 = vmatpush.msra.mxu0 0.0
        %6994 = vmatpush.msra.mxu0 0.0
        %6995 = vmatpush.msra.mxu0 0.0
        %6996 = vmatpush.msra.mxu0 0.0
        %6997 = vmatpush.msra.mxu0 0.0
        %6998 = vmatpush.msra.mxu0 0.0
        %6999 = vmatpush.msra.mxu0 0.0
        %7000 = vmatpush.msra.mxu0 0.0
        %7001 = vmatpush.msra.mxu0 0.0
        %7002 = vmatpush.msra.mxu0 0.0
        %7003 = vmatpush.msra.mxu0 0.0
        %7004 = vmatpush.msra.mxu0 %v6980
        %7005 = vmatpush.msra.mxu0 %v6977
        %7006 = vmatmul.f32.gmra.mxu0 %v6988
        %v7007 = vpop.f32.mrf.mxu0
        %v7008 = vadd.f32 0.0, %v7007
        %7009 = vdwg.mxu0
        %v7010 = vrcp.pop %v6986
        %v7011 = vmul.f32 %v6986, %v7010
        %v7012 = vsub.f32 1.0, %v7011
        %v7013 = vmul.f32 %v7010, %v7012
        %v7014 = vadd.f32 %v7010, %v7013
        %vm7015 = vweird.f32 %v6986
        %vm7016 = vweird.f32 %v7010
        %vm7017 = vmor %vm7015, %vm7016
        %v7018 = vsel %vm7017, %v7010, %v7014
        %v7019 = vand.u32 2147483647, %v6986
        %vm7020 = vcmp.eq.f32.partialorder %v7019, 8.507059e+37
        %v7021 = vand.u32 %v6986, 2147483648
        %v7022 = vor.u32 1.1754944e-38, %v7021
        %v7023 = vsel %vm7020, %v7022, %v7018
        %v7024 = vmul.f32 %v7008, %v7023
        %v7025 = vld [vmem:[%s17] sm:$0xff]
        %v7026 = vld [vmem:[%s17 + $0x8] sm:$0xff]
        %vm7027 = vcmask 31744
        %v7029 = vsel %vm7027, %v7025, 0
        %v7032 = vsel %vm7027, %v7026, 0
        %vm7034 = vcmask 1043456
        %v7036 = vsel %vm7034, %v7024, 0
        %7038 = vmatpush.msra.mxu0 0.0
        %7039 = vmatpush.msra.mxu0 0.0
        %7040 = vmatpush.msra.mxu0 0.0
        %7041 = vmatpush.msra.mxu0 0.0
        %7042 = vmatpush.msra.mxu0 0.0
        %7043 = vmatpush.msra.mxu0 0.0
        %7044 = vmatpush.msra.mxu0 0.0
        %7045 = vmatpush.msra.mxu0 0.0
        %7046 = vmatpush.msra.mxu0 0.0
        %7047 = vmatpush.msra.mxu0 0.0
        %7048 = vmatpush.msra.mxu0 0.0
        %7049 = vmatpush.msra.mxu0 0.0
        %7050 = vmatpush.msra.mxu0 0.0
        %7051 = vmatpush.msra.mxu0 0.0
        %7052 = vmatpush.msra.mxu0 0.0
        %7053 = vmatpush.msra.mxu0 %v7036
        %7054 = vmatmul.f32.gmra.mxu0 %v7029
        %v7055 = vpop.f32.mrf.mxu0
        %v7056 = vadd.f32 0.0, %v7055
        %7057 = vmatmul.f32.gmra.mxu0 %v7032
        %v7058 = vpop.f32.mrf.mxu0
        %v7059 = vadd.f32 0.0, %v7058
        %7060 = vdwg.mxu0
        %v7061 = vsub.f32 %v6977, %v7056
        %v7062 = vsub.f32 %v6980, %v7059
        %v7063 = vmul.f32 %v7061, 1.442695
        %v7064 = vpow.pop %v7063
        %v7065 = vmul.f32 %v7062, 1.442695
        %v7066 = vpow.pop %v7065
        %v7067 = vld [vmem:[%s15] sm:$0xf]
        %v7069 = vsel %vm7027, %v7064, 0
        %v7072 = vsel %vm7027, %v7066, 0
        %v7075 = vsel %vm7034, %v7067, 0
        %7077 = vmatpush.msra.mxu0 0.0
        %7078 = vmatpush.msra.mxu0 0.0
        %7079 = vmatpush.msra.mxu0 0.0
        %7080 = vmatpush.msra.mxu0 0.0
        %7081 = vmatpush.msra.mxu0 0.0
        %7082 = vmatpush.msra.mxu0 0.0
        %7083 = vmatpush.msra.mxu0 0.0
        %7084 = vmatpush.msra.mxu0 0.0
        %7085 = vmatpush.msra.mxu0 0.0
        %7086 = vmatpush.msra.mxu0 0.0
        %7087 = vmatpush.msra.mxu0 0.0
        %7088 = vmatpush.msra.mxu0 0.0
        %7089 = vmatpush.msra.mxu0 0.0
        %7090 = vmatpush.msra.mxu0 0.0
        %7091 = vmatpush.msra.mxu0 0.0
        %7092 = vmatpush.msra.mxu0 %v7075
        %7093 = vmatmul.f32.gmra.mxu0 %v7069
        %v7094 = vpop.f32.mrf.mxu0
        %v7095 = vadd.f32 0.0, %v7094
        %7096 = vmatmul.f32.gmra.mxu0 %v7072
        %v7097 = vpop.f32.mrf.mxu0
        %v7098 = vadd.f32 0.0, %v7097
        %7099 = vdwg.mxu0
        %v7100 = vmul.f32 %v7095, %v6895
        %v7101 = vmul.f32 %v7098, %v6896
        %7102 = vmatpush.msra.mxu0 0.0
        %7103 = vmatpush.msra.mxu0 0.0
        %7104 = vmatpush.msra.mxu0 0.0
        %7105 = vmatpush.msra.mxu0 0.0
        %7106 = vmatpush.msra.mxu0 0.0
        %7107 = vmatpush.msra.mxu0 0.0
        %7108 = vmatpush.msra.mxu0 0.0
        %7109 = vmatpush.msra.mxu0 0.0
        %7110 = vmatpush.msra.mxu0 0.0
        %7111 = vmatpush.msra.mxu0 0.0
        %7112 = vmatpush.msra.mxu0 0.0
        %7113 = vmatpush.msra.mxu0 0.0
        %7114 = vmatpush.msra.mxu0 0.0
        %7115 = vmatpush.msra.mxu0 0.0
        %7116 = vmatpush.msra.mxu0 %v7101
        %7117 = vmatpush.msra.mxu0 %v7100
        %7118 = vmatmul.f32.gmra.mxu0 %v6988
        %v7119 = vpop.f32.mrf.mxu0
        %v7120 = vadd.f32 0.0, %v7119
        %7121 = vdwg.mxu0
        %7122 = vmatpush.msra.mxu0 0.0
        %7123 = vmatpush.msra.mxu0 0.0
        %7124 = vmatpush.msra.mxu0 0.0
        %7125 = vmatpush.msra.mxu0 0.0
        %7126 = vmatpush.msra.mxu0 0.0
        %7127 = vmatpush.msra.mxu0 0.0
        %7128 = vmatpush.msra.mxu0 0.0
        %7129 = vmatpush.msra.mxu0 0.0
        %7130 = vmatpush.msra.mxu0 0.0
        %7131 = vmatpush.msra.mxu0 0.0
        %7132 = vmatpush.msra.mxu0 0.0
        %7133 = vmatpush.msra.mxu0 0.0
        %7134 = vmatpush.msra.mxu0 0.0
        %7135 = vmatpush.msra.mxu0 0.0
        %7136 = vmatpush.msra.mxu0 %v7066
        %7137 = vmatpush.msra.mxu0 %v7064
        %7138 = vmatmul.f32.gmra.mxu0 %v6988
        %v7139 = vpop.f32.mrf.mxu0
        %v7140 = vadd.f32 0.0, %v7139
        %7141 = vdwg.mxu0
        %v7143 = vsel %vm7027, %v7140, 0
        %7145 = vmatpush.msra.mxu0 0.0
        %7146 = vmatpush.msra.mxu0 0.0
        %7147 = vmatpush.msra.mxu0 0.0
        %7148 = vmatpush.msra.mxu0 0.0
        %7149 = vmatpush.msra.mxu0 0.0
        %7150 = vmatpush.msra.mxu0 0.0
        %7151 = vmatpush.msra.mxu0 0.0
        %7152 = vmatpush.msra.mxu0 0.0
        %7153 = vmatpush.msra.mxu0 0.0
        %7154 = vmatpush.msra.mxu0 0.0
        %7155 = vmatpush.msra.mxu0 0.0
        %7156 = vmatpush.msra.mxu0 0.0
        %7157 = vmatpush.msra.mxu0 0.0
        %7158 = vmatpush.msra.mxu0 0.0
        %7159 = vmatpush.msra.mxu0 0.0
        %7160 = vmatpush.msra.mxu0 %v7075
        %7161 = vmatmul.f32.gmra.mxu0 %v7143
        %v7162 = vpop.f32.mrf.mxu0
        %v7163 = vadd.f32 0.0, %v7162
        %7164 = vdwg.mxu0
        %v7165 = vmax.f32 %v7163, 1e-12
        %v7166 = vrcp.pop %v7165
        %v7167 = vmul.f32 %v7165, %v7166
        %v7168 = vsub.f32 1.0, %v7167
        %v7169 = vmul.f32 %v7166, %v7168
        %v7170 = vadd.f32 %v7166, %v7169
        %vm7171 = vweird.f32 %v7165
        %vm7172 = vweird.f32 %v7166
        %vm7173 = vmor %vm7171, %vm7172
        %v7174 = vsel %vm7173, %v7166, %v7170
        %v7175 = vand.u32 2147483647, %v7165
        %vm7176 = vcmp.eq.f32.partialorder %v7175, 8.507059e+37
        %v7177 = vand.u32 %v7165, 2147483648
        %v7178 = vor.u32 1.1754944e-38, %v7177
        %v7179 = vsel %vm7176, %v7178, %v7174
        %v7180 = vmul.f32 %v7120, %v7179
        %7181 = vst [vmem:[%s724] sm:$0xf] %v7180
        %s7182 = sand.u32 %s429, 1
        %s7183 = scalar_lea.sflag [#allocation4], %s7182
        %s7184 = sand.u32 %s429, 1
        %s7185 = smul.addr %s7184, 4
        %s7186 = scalar_lea.vmem [#allocation19], %s7185
        // Predicated region
        $region133: #{tpu_custom_call.1} parent=91 // pred_check
          %p7187 = pneg %p439
        $region134: #{tpu_custom_call.1} parent=91 // pred_check_branch
          %7189 = sbr.rel (%p7187) target = $region136
        $region135: #{tpu_custom_call.1} parent=91 // pred_region
          %7191 = vsyncadd %s7183, 0
          %s7192 = smul.addr %s38, 4
          %s7193 = scalar_lea.hbm %s18, %s7192
          %s7195 = sshll.u32 %s7186, 4
          %s7196 = int_to_ptr.vmem [resolvable:$true] %s7195
          %s7197 = sshll.u32 %s7193, 4
          %s7198 = int_to_ptr.hbm [resolvable:$true] %s7197
          %7200 = dma.vmem_to_hbm [thread:$0]  %s7196, 64, %s7198, %s7183
        $region136: #{tpu_custom_call.1} parent=91 // pred_fallthru
          _
      $region92: #{tpu_custom_call.1} parent=5 // pred_fallthru
        _
      %p7201 = scmp.le.s32.totalorder 2, %s33
      // Predicated region
      $region137: #{tpu_custom_call.1} parent=5 // pred_check
        %p7202 = pneg %p7201
      $region138: #{tpu_custom_call.1} parent=5 // pred_check_branch
        %7204 = sbr.rel (%p7202) target = $region140
      $region139: #{tpu_custom_call.1} parent=5 // pred_region
        %s7205 = ssub.s32 %s33, 2
        // Predicated region
        $region141: #{tpu_custom_call.1} parent=139 // pred_check
          %p7206 = pneg %p445
        $region142: #{tpu_custom_call.1} parent=139 // pred_check_branch
          %7208 = sbr.rel (%p7206) target = $region144
        $region143: #{tpu_custom_call.1} parent=139 // pred_region
          %s7209 = sand.u32 %s430, 1
          %s7210 = scalar_lea.sflag [#allocation4], %s7209
          %s7211 = sand.u32 %s430, 1
          %s7212 = smul.addr %s7211, 4
          %s7213 = scalar_lea.vmem [#allocation19], %s7212
          %7215 = dma.done %s7210, 64
        $region144: #{tpu_custom_call.1} parent=139 // pred_fallthru
          _
      $region140: #{tpu_custom_call.1} parent=5 // pred_fallthru
        _
    $region6: #{tpu_custom_call.1} parent=1 // loop_footer
      %s37 = sadd.s32 1, %s33
    $region7: #{tpu_custom_call.1} parent=1 // loop_footer_branch
      %32 = sbr.rel target = $region3
    $region8: #{tpu_custom_call.1} parent=1 // loop_exit
      _
    %7216 = vsyncpa [#allocation3], 1
    %s7217 = scalar_lea.sflag [#allocation3], 1
    %7218 = vsyncpa %s7217, 1
    %7219 = vsyncpa [#allocation6], 1
    %7220 = vsyncpa [#allocation9], 1
    %7221 = vsyncpa [#allocation12], 1
    %7222 = vsyncpa [#allocation15], 1
    %7223 = vsyncpa [#allocation18], 1
    %7224 = vsyncpa [#allocation4], 1
    %s7225 = scalar_lea.sflag [#allocation4], 1
    %7226 = vsyncpa %s7225, 1

</llo_original>
